<compile_context>
chip_gen: v7x
topology: tpu7x:2x2x1
jax: 0.10.0
libtpu: 0.0.40
codegen_flags: <defaults>
</compile_context>

<pallas_src>
import functools

import jax
import jax.numpy as jnp
from jax.experimental import pallas as pl
from jax.experimental.pallas import tpu as pltpu

# ----------------------------- config (small, ViT-like) -----------------------------
BATCH = 2
CHANNELS = 3
IMG = 16
PATCH = 4
NUM_PATCHES = (IMG // PATCH) * (IMG // PATCH)      # 16
SEQ = NUM_PATCHES + 1                              # 17 (cls token)
HIDDEN = 32
NUM_HEADS = 4
HEAD_DIM = HIDDEN // NUM_HEADS                     # 8
MLP_DIM = 64
NUM_LAYERS = 2
NUM_CLASSES = 10
LN_EPS = 1e-6                                      # torchvision ViT uses eps=1e-6
PATCH_DIM = CHANNELS * PATCH * PATCH               # 48


# ----------------------------- in-kernel helpers (value-level) -----------------------------
def _layer_norm(x, g, b):
    mean = jnp.mean(x, axis=-1, keepdims=True)
    cent = x - mean
    var = jnp.mean(cent * cent, axis=-1, keepdims=True)   # biased, like torch
    return cent * jax.lax.rsqrt(var + LN_EPS) * g + b


def _gelu(y):
    # TODO(synk): torch nn.GELU() default is the exact erf form; using the tanh
    # approximation (Mosaic-safe transcendental), ~1e-3 numeric delta.
    return 0.5 * y * (1.0 + jnp.tanh(0.7978845608028654 * (y + 0.044715 * y * y * y)))


# ----------------------------- the fused ViT kernel -----------------------------
def _vit_kernel(nb, patches_ref, conv_w_ref, base_ref,
                ln1_g_ref, ln1_b_ref,
                wqkv_ref, bqkv_ref, wo_ref, bo_ref,
                ln2_g_ref, ln2_b_ref,
                w1_ref, b1_ref, w2_ref, b2_ref,
                lnf_g_ref, lnf_b_ref, wh_ref, bh_ref,
                logits_ref):
    H, HD = HIDDEN, HEAD_DIM

    # Patch embedding.  Row 0 of each image's patch slab is zeros; `base` carries
    # cls_token (row 0), the conv bias (rows 1..) and the positional embedding,
    # tiled `nb` times so the whole (nb*SEQ, H) activation is built in one add.
    conv_w = conv_w_ref[...]
    embeds = [jnp.dot(patches_ref[b], conv_w, preferred_element_type=jnp.float32)
              for b in range(nb)]
    x = (embeds[0] if nb == 1 else jnp.concatenate(embeds, axis=0)) + base_ref[...]

    for l in range(NUM_LAYERS):          # static unroll; all weights VMEM-resident
        # --- MHSA: x = x + W_o · softmax(q kᵀ) v   (1/sqrt(d) folded into W_q) ---
        h = _layer_norm(x, ln1_g_ref[l], ln1_b_ref[l])
        # One fused lane-dense QKV matmul: (M, 32) x (32, 96).
        qkv = jnp.dot(h, wqkv_ref[l], preferred_element_type=jnp.float32) + bqkv_ref[l]

        per_img = []
        for b in range(nb):                          # per-image attention only
            rows = qkv[b * SEQ:(b + 1) * SEQ]        # (SEQ, 3H)
            heads = []
            for hd in range(NUM_HEADS):              # static lane slices of fused QKV
                q = rows[:, hd * HD:(hd + 1) * HD]
                k = rows[:, H + hd * HD:H + (hd + 1) * HD]
                v = rows[:, 2 * H + hd * HD:2 * H + (hd + 1) * HD]
                s = jax.lax.dot_general(q, k, (((1,), (1,)), ((), ())),
                                        preferred_element_type=jnp.float32)   # (S, S)
                m = jnp.max(s, axis=-1, keepdims=True)
                p = jnp.exp(s - m)
                denom = jnp.sum(p, axis=-1, keepdims=True)
                o = jnp.dot(p, v, preferred_element_type=jnp.float32)         # (S, HD)
                # deferred normalization on the small (S, HD) tile via EUP reciprocal
                heads.append(o * pl.reciprocal(denom, approx=True))
            per_img.append(jnp.concatenate(heads, axis=-1))                   # (S, H)
        attn = per_img[0] if nb == 1 else jnp.concatenate(per_img, axis=0)    # (M, H)
        # One fused output projection: (M, 32) x (32, 32).
        x = x + jnp.dot(attn, wo_ref[l], preferred_element_type=jnp.float32) + bo_ref[l]

        # --- MLP: x = x + W2 · GELU(W1 · LN2(x)) ---
        h2 = _layer_norm(x, ln2_g_ref[l], ln2_b_ref[l])
        m1 = _gelu(jnp.dot(h2, w1_ref[l], preferred_element_type=jnp.float32) + b1_ref[l])
        x = x + jnp.dot(m1, w2_ref[l], preferred_element_type=jnp.float32) + b2_ref[l]

    # Final LayerNorm + classification head on the cls rows ONLY.
    cls = (x[0:1, :] if nb == 1
           else jnp.concatenate([x[b * SEQ:b * SEQ + 1, :] for b in range(nb)], axis=0))
    hf = _layer_norm(cls, lnf_g_ref[...], lnf_b_ref[...])                      # (nb, H)
    logits = jnp.dot(hf, wh_ref[...],
                     preferred_element_type=jnp.float32) + bh_ref[...]         # (nb, NC)
    logits_ref[0] = logits.astype(logits_ref.dtype)


# ----------------------------- parameter packing (plain JAX, runs once) -----------------------------
def pack_params(params, nb):
    H = HIDDEN
    scale = 1.0 / float(HEAD_DIM) ** 0.5

    conv_w = params["conv_w"].reshape(H, PATCH_DIM).T                      # (CPP, H)
    base = jnp.concatenate(
        [params["cls_token"].reshape(1, H),
         jnp.broadcast_to(params["conv_b"].reshape(1, H), (NUM_PATCHES, H))],
        axis=0) + params["pos_emb"].reshape(SEQ, H)                        # (SEQ, H)
    base = jnp.tile(base, (nb, 1))                                         # (nb*SEQ, H)

    def stack(fn):
        return jnp.stack([fn(layer) for layer in params["layers"]], axis=0)

    # Fold the 1/sqrt(head_dim) softmax scale into the Q columns at pack time.
    qscale = jnp.concatenate([jnp.full((H,), scale, jnp.float32),
                              jnp.ones((2 * H,), jnp.float32)])
    w_qkv = stack(lambda L: L["w_qkv"] * qscale[None, :])                  # (L, H, 3H) lane-dense
    b_qkv = stack(lambda L: (L["b_qkv"] * qscale).reshape(1, 3 * H))       # (L, 1, 3H)
    w_out = stack(lambda L: L["w_out"])                                    # (L, H, H)
    b_out = stack(lambda L: L["b_out"].reshape(1, H))
    ln1_g = stack(lambda L: L["ln1_g"].reshape(1, H))
    ln1_b = stack(lambda L: L["ln1_b"].reshape(1, H))
    ln2_g = stack(lambda L: L["ln2_g"].reshape(1, H))
    ln2_b = stack(lambda L: L["ln2_b"].reshape(1, H))
    w1 = stack(lambda L: L["w_mlp1"])
    b1 = stack(lambda L: L["b_mlp1"].reshape(1, MLP_DIM))
    w2 = stack(lambda L: L["w_mlp2"])
    b2 = stack(lambda L: L["b_mlp2"].reshape(1, H))

    lnf_g = params["ln_g"].reshape(1, H)
    lnf_b = params["ln_b"].reshape(1, H)
    wh = params["w_head"]
    bh = params["b_head"].reshape(1, NUM_CLASSES)

    return (conv_w, base, ln1_g, ln1_b, w_qkv, b_qkv, w_out, b_out,
            ln2_g, ln2_b, w1, b1, w2, b2, lnf_g, lnf_b, wh, bh)


def _resident(shape):
    """Whole-array VMEM-resident block (same block for every grid step)."""
    zeros = (0,) * len(shape)
    return pl.BlockSpec(shape, lambda b: zeros)


def _images_per_step(batch):
    """Chip-aware batch handling: per-image grid only where it buys parallelism."""
    kind = ""
    try:
        kind = jax.devices()[0].device_kind.lower()
    except Exception:
        pass
    # v7x: 2 TensorCores/chip -> one image per "parallel" grid step (~2x).
    if "v7" in kind or "tpu7" in kind:
        return 1
    # Single-TC v5e/v6e (and unknown chips): collapse the batch into one grid step
    # so projection/MLP matmuls run on M = B*SEQ rows and per-step overhead is paid once.
    return batch


# ----------------------------- forward -----------------------------
def vit_forward(params, x, images_per_step=None):
    B, C, Himg, Wimg = x.shape
    hp, wp = Himg // PATCH, Wimg // PATCH
    nb = images_per_step if images_per_step is not None else _images_per_step(B)
    if B % nb != 0:
        nb = 1

    # conv_proj (kernel == stride == PATCH) == patchify + matmul.  Patchify is
    # cheap plain-JAX glue; the matmul happens inside the fused kernel.
    patches = (x.reshape(B, C, hp, PATCH, wp, PATCH)
                 .transpose(0, 2, 4, 1, 3, 5)                               # (B, hp, wp, C, P, P)
                 .reshape(B, hp * wp, C * PATCH * PATCH))
    patches = jnp.concatenate(
        [jnp.zeros((B, 1, PATCH_DIM), jnp.float32), patches], axis=1)       # (B, SEQ, CPP)

    packed = pack_params(params, nb)

    in_specs = [pl.BlockSpec((nb, SEQ, PATCH_DIM), lambda g: (g, 0, 0))]
    in_specs += [_resident(a.shape) for a in packed]

    logits = pl.pallas_call(
        functools.partial(_vit_kernel, nb),
        out_shape=jax.ShapeDtypeStruct((B // nb, nb, NUM_CLASSES), jnp.float32),
        grid=(B // nb,),
        in_specs=in_specs,
        out_specs=pl.BlockSpec((1, nb, NUM_CLASSES), lambda g: (g, 0, 0)),
        compiler_params=pltpu.CompilerParams(
            dimension_semantics=("parallel",)),
    )(patches, *packed)

    return logits.reshape(B, NUM_CLASSES)


# ----------------------------- deterministic parameter init -----------------------------
def _nrm(key, shape, std=0.02):
    return std * jax.random.normal(key, shape, dtype=jnp.float32)


def init_params(key):
    keys = iter(jax.random.split(key, 8 + NUM_LAYERS * 8))
    params = {
        "conv_w": _nrm(next(keys), (HIDDEN, CHANNELS, PATCH, PATCH)),
        "conv_b": jnp.zeros((HIDDEN,), jnp.float32),
        "cls_token": _nrm(next(keys), (1, 1, HIDDEN)),
        "pos_emb": _nrm(next(keys), (1, SEQ, HIDDEN)),
        "ln_g": jnp.ones((HIDDEN,), jnp.float32),
        "ln_b": jnp.zeros((HIDDEN,), jnp.float32),
        "w_head": _nrm(next(keys), (HIDDEN, NUM_CLASSES)),
        "b_head": jnp.zeros((NUM_CLASSES,), jnp.float32),
        "layers": [],
    }
    for _ in range(NUM_LAYERS):
        params["layers"].append({
            "ln1_g": jnp.ones((HIDDEN,), jnp.float32),
            "ln1_b": jnp.zeros((HIDDEN,), jnp.float32),
            "w_qkv": _nrm(next(keys), (HIDDEN, 3 * HIDDEN)),
            "b_qkv": jnp.zeros((3 * HIDDEN,), jnp.float32),
            "w_out": _nrm(next(keys), (HIDDEN, HIDDEN)),
            "b_out": jnp.zeros((HIDDEN,), jnp.float32),
            "ln2_g": jnp.ones((HIDDEN,), jnp.float32),
            "ln2_b": jnp.zeros((HIDDEN,), jnp.float32),
            "w_mlp1": _nrm(next(keys), (HIDDEN, MLP_DIM)),
            "b_mlp1": jnp.zeros((MLP_DIM,), jnp.float32),
            "w_mlp2": _nrm(next(keys), (MLP_DIM, HIDDEN)),
            "b_mlp2": jnp.zeros((HIDDEN,), jnp.float32),
        })
    return params


if __name__ == "__main__":
    root = jax.random.PRNGKey(0)
    k_params, k_x = jax.random.split(root)
    params = init_params(k_params)
    x = jax.random.normal(k_x, (BATCH, CHANNELS, IMG, IMG), dtype=jnp.float32)  # NCHW

    logits = jax.jit(vit_forward)(params, x)
    logits = jax.block_until_ready(logits)

    assert logits.shape == (BATCH, NUM_CLASSES), logits.shape
    assert bool(jnp.all(jnp.isfinite(logits)))
    print("KERNEL_OK")
</pallas_src>

<mosaic_0001>
module attributes {stable_mosaic.version = 11 : i64} {
  func.func @_vit_kernel(%arg0: i32, %arg1: memref<2x17x48xf32, #tpu.memory_space<vmem>>, %arg2: memref<48x32xf32, #tpu.memory_space<vmem>>, %arg3: memref<34x32xf32, #tpu.memory_space<vmem>>, %arg4: memref<2x1x32xf32, #tpu.memory_space<vmem>>, %arg5: memref<2x1x32xf32, #tpu.memory_space<vmem>>, %arg6: memref<2x32x96xf32, #tpu.memory_space<vmem>>, %arg7: memref<2x1x96xf32, #tpu.memory_space<vmem>>, %arg8: memref<2x32x32xf32, #tpu.memory_space<vmem>>, %arg9: memref<2x1x32xf32, #tpu.memory_space<vmem>>, %arg10: memref<2x1x32xf32, #tpu.memory_space<vmem>>, %arg11: memref<2x1x32xf32, #tpu.memory_space<vmem>>, %arg12: memref<2x32x64xf32, #tpu.memory_space<vmem>>, %arg13: memref<2x1x64xf32, #tpu.memory_space<vmem>>, %arg14: memref<2x64x32xf32, #tpu.memory_space<vmem>>, %arg15: memref<2x1x32xf32, #tpu.memory_space<vmem>>, %arg16: memref<1x32xf32, #tpu.memory_space<vmem>>, %arg17: memref<1x32xf32, #tpu.memory_space<vmem>>, %arg18: memref<32x10xf32, #tpu.memory_space<vmem>>, %arg19: memref<1x10xf32, #tpu.memory_space<vmem>>, %arg20: memref<1x2x10xf32, #tpu.memory_space<vmem>>) attributes {dimension_semantics = [#tpu.dimension_semantics<parallel>], iteration_bounds = array<i64: 1>, scalar_prefetch = 0 : i64, scratch_operands = 0 : i64, tpu.core_type = #tpu.core_type<tc>, window_params = [{transform_indices = @transform_0, window_bounds = array<i64: 2, 17, 48>}, {pipeline_mode = #tpu.pipeline_mode<synchronous>, transform_indices = @transform_1, window_bounds = array<i64: 48, 32>}, {pipeline_mode = #tpu.pipeline_mode<synchronous>, transform_indices = @transform_2, window_bounds = array<i64: 34, 32>}, {pipeline_mode = #tpu.pipeline_mode<synchronous>, transform_indices = @transform_3, window_bounds = array<i64: 2, 1, 32>}, {pipeline_mode = #tpu.pipeline_mode<synchronous>, transform_indices = @transform_4, window_bounds = array<i64: 2, 1, 32>}, {pipeline_mode = #tpu.pipeline_mode<synchronous>, transform_indices = @transform_5, window_bounds = array<i64: 2, 32, 96>}, {pipeline_mode = #tpu.pipeline_mode<synchronous>, transform_indices = @transform_6, window_bounds = array<i64: 2, 1, 96>}, {pipeline_mode = #tpu.pipeline_mode<synchronous>, transform_indices = @transform_7, window_bounds = array<i64: 2, 32, 32>}, {pipeline_mode = #tpu.pipeline_mode<synchronous>, transform_indices = @transform_8, window_bounds = array<i64: 2, 1, 32>}, {pipeline_mode = #tpu.pipeline_mode<synchronous>, transform_indices = @transform_9, window_bounds = array<i64: 2, 1, 32>}, {pipeline_mode = #tpu.pipeline_mode<synchronous>, transform_indices = @transform_10, window_bounds = array<i64: 2, 1, 32>}, {pipeline_mode = #tpu.pipeline_mode<synchronous>, transform_indices = @transform_11, window_bounds = array<i64: 2, 32, 64>}, {pipeline_mode = #tpu.pipeline_mode<synchronous>, transform_indices = @transform_12, window_bounds = array<i64: 2, 1, 64>}, {pipeline_mode = #tpu.pipeline_mode<synchronous>, transform_indices = @transform_13, window_bounds = array<i64: 2, 64, 32>}, {pipeline_mode = #tpu.pipeline_mode<synchronous>, transform_indices = @transform_14, window_bounds = array<i64: 2, 1, 32>}, {pipeline_mode = #tpu.pipeline_mode<synchronous>, transform_indices = @transform_15, window_bounds = array<i64: 1, 32>}, {pipeline_mode = #tpu.pipeline_mode<synchronous>, transform_indices = @transform_16, window_bounds = array<i64: 1, 32>}, {pipeline_mode = #tpu.pipeline_mode<synchronous>, transform_indices = @transform_17, window_bounds = array<i64: 32, 10>}, {pipeline_mode = #tpu.pipeline_mode<synchronous>, transform_indices = @transform_18, window_bounds = array<i64: 1, 10>}, {transform_indices = @transform_19, window_bounds = array<i64: 1, 2, 10>}]} {
    %c0 = arith.constant 0 : index
    %c0_0 = arith.constant 0 : index
    %0 = vector.load %arg2[%c0, %c0_0] : memref<48x32xf32, #tpu.memory_space<vmem>>, vector<48x32xf32>
    %c0_1 = arith.constant 0 : index
    %c0_2 = arith.constant 0 : index
    %c0_3 = arith.constant 0 : index
    %1 = vector.load %arg1[%c0_1, %c0_2, %c0_3] : memref<2x17x48xf32, #tpu.memory_space<vmem>>, vector<1x17x48xf32>
    %2 = vector.shape_cast %1 : vector<1x17x48xf32> to vector<17x48xf32>
    %cst = arith.constant dense<0.000000e+00> : vector<17x32xf32>
    %3 = tpu.matmul %2, %0, %cst {dimension_numbers = #tpu.dot_dimension_numbers<[1], [0], [0], [1], [0, 0, 1, 1], [], []>} : vector<17x48xf32>, vector<48x32xf32>, vector<17x32xf32> -> vector<17x32xf32>
    %c1 = arith.constant 1 : index
    %c0_4 = arith.constant 0 : index
    %c0_5 = arith.constant 0 : index
    %4 = vector.load %arg1[%c1, %c0_4, %c0_5] : memref<2x17x48xf32, #tpu.memory_space<vmem>>, vector<1x17x48xf32>
    %5 = vector.shape_cast %4 : vector<1x17x48xf32> to vector<17x48xf32>
    %cst_6 = arith.constant dense<0.000000e+00> : vector<17x32xf32>
    %6 = tpu.matmul %5, %0, %cst_6 {dimension_numbers = #tpu.dot_dimension_numbers<[1], [0], [0], [1], [0, 0, 1, 1], [], []>} : vector<17x48xf32>, vector<48x32xf32>, vector<17x32xf32> -> vector<17x32xf32>
    %7 = tpu.concatenate %3, %6 in 0 : vector<17x32xf32>, vector<17x32xf32> -> vector<34x32xf32>
    %c0_7 = arith.constant 0 : index
    %c0_8 = arith.constant 0 : index
    %8 = vector.load %arg3[%c0_7, %c0_8] : memref<34x32xf32, #tpu.memory_space<vmem>>, vector<34x32xf32>
    %9 = arith.addf %7, %8 : vector<34x32xf32>
    %c0_9 = arith.constant 0 : index
    %c0_10 = arith.constant 0 : index
    %c0_11 = arith.constant 0 : index
    %10 = vector.load %arg4[%c0_9, %c0_10, %c0_11] : memref<2x1x32xf32, #tpu.memory_space<vmem>>, vector<1x1x32xf32>
    %11 = vector.shape_cast %10 : vector<1x1x32xf32> to vector<1x32xf32>
    %c0_12 = arith.constant 0 : index
    %c0_13 = arith.constant 0 : index
    %c0_14 = arith.constant 0 : index
    %12 = vector.load %arg5[%c0_12, %c0_13, %c0_14] : memref<2x1x32xf32, #tpu.memory_space<vmem>>, vector<1x1x32xf32>
    %13 = vector.shape_cast %12 : vector<1x1x32xf32> to vector<1x32xf32>
    %cst_15 = arith.constant dense<0.000000e+00> : vector<34xf32>
    %14 = vector.multi_reduction <add>, %9, %cst_15 [1] : vector<34x32xf32> to vector<34xf32>
    %15 = vector.shape_cast %14 : vector<34xf32> to vector<34x1xf32>
    %cst_16 = arith.constant 3.200000e+01 : f32
    %16 = vector.broadcast %cst_16 : f32 to vector<34x1xf32>
    %17 = arith.divf %15, %16 : vector<34x1xf32>
    %18 = vector.broadcast %17 : vector<34x1xf32> to vector<34x32xf32>
    %19 = arith.subf %9, %18 : vector<34x32xf32>
    %20 = arith.mulf %19, %19 : vector<34x32xf32>
    %cst_17 = arith.constant dense<0.000000e+00> : vector<34xf32>
    %21 = vector.multi_reduction <add>, %20, %cst_17 [1] : vector<34x32xf32> to vector<34xf32>
    %22 = vector.shape_cast %21 : vector<34xf32> to vector<34x1xf32>
    %cst_18 = arith.constant 3.200000e+01 : f32
    %23 = vector.broadcast %cst_18 : f32 to vector<34x1xf32>
    %24 = arith.divf %22, %23 : vector<34x1xf32>
    %cst_19 = arith.constant 9.99999997E-7 : f32
    %25 = vector.broadcast %cst_19 : f32 to vector<34x1xf32>
    %26 = arith.addf %24, %25 : vector<34x1xf32>
    %27 = math.rsqrt %26 : vector<34x1xf32>
    %28 = vector.broadcast %27 : vector<34x1xf32> to vector<34x32xf32>
    %29 = arith.mulf %19, %28 : vector<34x32xf32>
    %30 = vector.broadcast %11 : vector<1x32xf32> to vector<34x32xf32>
    %31 = arith.mulf %29, %30 : vector<34x32xf32>
    %32 = vector.broadcast %13 : vector<1x32xf32> to vector<34x32xf32>
    %33 = arith.addf %31, %32 : vector<34x32xf32>
    %c0_20 = arith.constant 0 : index
    %c0_21 = arith.constant 0 : index
    %c0_22 = arith.constant 0 : index
    %34 = vector.load %arg6[%c0_20, %c0_21, %c0_22] : memref<2x32x96xf32, #tpu.memory_space<vmem>>, vector<1x32x96xf32>
    %35 = vector.shape_cast %34 : vector<1x32x96xf32> to vector<32x96xf32>
    %cst_23 = arith.constant dense<0.000000e+00> : vector<34x96xf32>
    %36 = tpu.matmul %33, %35, %cst_23 {dimension_numbers = #tpu.dot_dimension_numbers<[1], [0], [0], [1], [0, 0, 1, 1], [], []>} : vector<34x32xf32>, vector<32x96xf32>, vector<34x96xf32> -> vector<34x96xf32>
    %c0_24 = arith.constant 0 : index
    %c0_25 = arith.constant 0 : index
    %c0_26 = arith.constant 0 : index
    %37 = vector.load %arg7[%c0_24, %c0_25, %c0_26] : memref<2x1x96xf32, #tpu.memory_space<vmem>>, vector<1x1x96xf32>
    %38 = vector.shape_cast %37 : vector<1x1x96xf32> to vector<1x96xf32>
    %39 = vector.broadcast %38 : vector<1x96xf32> to vector<34x96xf32>
    %40 = arith.addf %36, %39 : vector<34x96xf32>
    %41 = vector.extract_strided_slice %40 {offsets = [0, 0], sizes = [17, 96], strides = [1, 1]} : vector<34x96xf32> to vector<17x96xf32>
    %42 = vector.extract_strided_slice %41 {offsets = [0, 0], sizes = [17, 8], strides = [1, 1]} : vector<17x96xf32> to vector<17x8xf32>
    %43 = vector.extract_strided_slice %41 {offsets = [0, 32], sizes = [17, 8], strides = [1, 1]} : vector<17x96xf32> to vector<17x8xf32>
    %44 = vector.extract_strided_slice %41 {offsets = [0, 64], sizes = [17, 8], strides = [1, 1]} : vector<17x96xf32> to vector<17x8xf32>
    %cst_27 = arith.constant dense<0.000000e+00> : vector<17x17xf32>
    %45 = tpu.matmul %42, %43, %cst_27 {dimension_numbers = #tpu.dot_dimension_numbers<[1], [1], [0], [0], [0, 0, 1, 0], [], []>} : vector<17x8xf32>, vector<17x8xf32>, vector<17x17xf32> -> vector<17x17xf32>
    %cst_28 = arith.constant dense<0xFF800000> : vector<17xf32>
    %46 = vector.multi_reduction <maximumf>, %45, %cst_28 [1] : vector<17x17xf32> to vector<17xf32>
    %47 = vector.shape_cast %46 : vector<17xf32> to vector<17x1xf32>
    %48 = vector.broadcast %47 : vector<17x1xf32> to vector<17x17xf32>
    %49 = arith.subf %45, %48 : vector<17x17xf32>
    %50 = math.exp %49 : vector<17x17xf32>
    %cst_29 = arith.constant dense<0.000000e+00> : vector<17xf32>
    %51 = vector.multi_reduction <add>, %50, %cst_29 [1] : vector<17x17xf32> to vector<17xf32>
    %52 = vector.shape_cast %51 : vector<17xf32> to vector<17x1xf32>
    %cst_30 = arith.constant dense<0.000000e+00> : vector<17x8xf32>
    %53 = tpu.matmul %50, %44, %cst_30 {dimension_numbers = #tpu.dot_dimension_numbers<[1], [0], [0], [1], [0, 0, 1, 1], [], []>} : vector<17x17xf32>, vector<17x8xf32>, vector<17x8xf32> -> vector<17x8xf32>
    %54 = tpu.reciprocal %52 {approx = true} : vector<17x1xf32> -> vector<17x1xf32>
    %55 = vector.broadcast %54 : vector<17x1xf32> to vector<17x8xf32>
    %56 = arith.mulf %53, %55 : vector<17x8xf32>
    %57 = vector.extract_strided_slice %41 {offsets = [0, 8], sizes = [17, 8], strides = [1, 1]} : vector<17x96xf32> to vector<17x8xf32>
    %58 = vector.extract_strided_slice %41 {offsets = [0, 40], sizes = [17, 8], strides = [1, 1]} : vector<17x96xf32> to vector<17x8xf32>
    %59 = vector.extract_strided_slice %41 {offsets = [0, 72], sizes = [17, 8], strides = [1, 1]} : vector<17x96xf32> to vector<17x8xf32>
    %cst_31 = arith.constant dense<0.000000e+00> : vector<17x17xf32>
    %60 = tpu.matmul %57, %58, %cst_31 {dimension_numbers = #tpu.dot_dimension_numbers<[1], [1], [0], [0], [0, 0, 1, 0], [], []>} : vector<17x8xf32>, vector<17x8xf32>, vector<17x17xf32> -> vector<17x17xf32>
    %cst_32 = arith.constant dense<0xFF800000> : vector<17xf32>
    %61 = vector.multi_reduction <maximumf>, %60, %cst_32 [1] : vector<17x17xf32> to vector<17xf32>
    %62 = vector.shape_cast %61 : vector<17xf32> to vector<17x1xf32>
    %63 = vector.broadcast %62 : vector<17x1xf32> to vector<17x17xf32>
    %64 = arith.subf %60, %63 : vector<17x17xf32>
    %65 = math.exp %64 : vector<17x17xf32>
    %cst_33 = arith.constant dense<0.000000e+00> : vector<17xf32>
    %66 = vector.multi_reduction <add>, %65, %cst_33 [1] : vector<17x17xf32> to vector<17xf32>
    %67 = vector.shape_cast %66 : vector<17xf32> to vector<17x1xf32>
    %cst_34 = arith.constant dense<0.000000e+00> : vector<17x8xf32>
    %68 = tpu.matmul %65, %59, %cst_34 {dimension_numbers = #tpu.dot_dimension_numbers<[1], [0], [0], [1], [0, 0, 1, 1], [], []>} : vector<17x17xf32>, vector<17x8xf32>, vector<17x8xf32> -> vector<17x8xf32>
    %69 = tpu.reciprocal %67 {approx = true} : vector<17x1xf32> -> vector<17x1xf32>
    %70 = vector.broadcast %69 : vector<17x1xf32> to vector<17x8xf32>
    %71 = arith.mulf %68, %70 : vector<17x8xf32>
    %72 = vector.extract_strided_slice %41 {offsets = [0, 16], sizes = [17, 8], strides = [1, 1]} : vector<17x96xf32> to vector<17x8xf32>
    %73 = vector.extract_strided_slice %41 {offsets = [0, 48], sizes = [17, 8], strides = [1, 1]} : vector<17x96xf32> to vector<17x8xf32>
    %74 = vector.extract_strided_slice %41 {offsets = [0, 80], sizes = [17, 8], strides = [1, 1]} : vector<17x96xf32> to vector<17x8xf32>
    %cst_35 = arith.constant dense<0.000000e+00> : vector<17x17xf32>
    %75 = tpu.matmul %72, %73, %cst_35 {dimension_numbers = #tpu.dot_dimension_numbers<[1], [1], [0], [0], [0, 0, 1, 0], [], []>} : vector<17x8xf32>, vector<17x8xf32>, vector<17x17xf32> -> vector<17x17xf32>
    %cst_36 = arith.constant dense<0xFF800000> : vector<17xf32>
    %76 = vector.multi_reduction <maximumf>, %75, %cst_36 [1] : vector<17x17xf32> to vector<17xf32>
    %77 = vector.shape_cast %76 : vector<17xf32> to vector<17x1xf32>
    %78 = vector.broadcast %77 : vector<17x1xf32> to vector<17x17xf32>
    %79 = arith.subf %75, %78 : vector<17x17xf32>
    %80 = math.exp %79 : vector<17x17xf32>
    %cst_37 = arith.constant dense<0.000000e+00> : vector<17xf32>
    %81 = vector.multi_reduction <add>, %80, %cst_37 [1] : vector<17x17xf32> to vector<17xf32>
    %82 = vector.shape_cast %81 : vector<17xf32> to vector<17x1xf32>
    %cst_38 = arith.constant dense<0.000000e+00> : vector<17x8xf32>
    %83 = tpu.matmul %80, %74, %cst_38 {dimension_numbers = #tpu.dot_dimension_numbers<[1], [0], [0], [1], [0, 0, 1, 1], [], []>} : vector<17x17xf32>, vector<17x8xf32>, vector<17x8xf32> -> vector<17x8xf32>
    %84 = tpu.reciprocal %82 {approx = true} : vector<17x1xf32> -> vector<17x1xf32>
    %85 = vector.broadcast %84 : vector<17x1xf32> to vector<17x8xf32>
    %86 = arith.mulf %83, %85 : vector<17x8xf32>
    %87 = vector.extract_strided_slice %41 {offsets = [0, 24], sizes = [17, 8], strides = [1, 1]} : vector<17x96xf32> to vector<17x8xf32>
    %88 = vector.extract_strided_slice %41 {offsets = [0, 56], sizes = [17, 8], strides = [1, 1]} : vector<17x96xf32> to vector<17x8xf32>
    %89 = vector.extract_strided_slice %41 {offsets = [0, 88], sizes = [17, 8], strides = [1, 1]} : vector<17x96xf32> to vector<17x8xf32>
    %cst_39 = arith.constant dense<0.000000e+00> : vector<17x17xf32>
    %90 = tpu.matmul %87, %88, %cst_39 {dimension_numbers = #tpu.dot_dimension_numbers<[1], [1], [0], [0], [0, 0, 1, 0], [], []>} : vector<17x8xf32>, vector<17x8xf32>, vector<17x17xf32> -> vector<17x17xf32>
    %cst_40 = arith.constant dense<0xFF800000> : vector<17xf32>
    %91 = vector.multi_reduction <maximumf>, %90, %cst_40 [1] : vector<17x17xf32> to vector<17xf32>
    %92 = vector.shape_cast %91 : vector<17xf32> to vector<17x1xf32>
    %93 = vector.broadcast %92 : vector<17x1xf32> to vector<17x17xf32>
    %94 = arith.subf %90, %93 : vector<17x17xf32>
    %95 = math.exp %94 : vector<17x17xf32>
    %cst_41 = arith.constant dense<0.000000e+00> : vector<17xf32>
    %96 = vector.multi_reduction <add>, %95, %cst_41 [1] : vector<17x17xf32> to vector<17xf32>
    %97 = vector.shape_cast %96 : vector<17xf32> to vector<17x1xf32>
    %cst_42 = arith.constant dense<0.000000e+00> : vector<17x8xf32>
    %98 = tpu.matmul %95, %89, %cst_42 {dimension_numbers = #tpu.dot_dimension_numbers<[1], [0], [0], [1], [0, 0, 1, 1], [], []>} : vector<17x17xf32>, vector<17x8xf32>, vector<17x8xf32> -> vector<17x8xf32>
    %99 = tpu.reciprocal %97 {approx = true} : vector<17x1xf32> -> vector<17x1xf32>
    %100 = vector.broadcast %99 : vector<17x1xf32> to vector<17x8xf32>
    %101 = arith.mulf %98, %100 : vector<17x8xf32>
    %102 = tpu.concatenate %56, %71, %86, %101 in 1 : vector<17x8xf32>, vector<17x8xf32>, vector<17x8xf32>, vector<17x8xf32> -> vector<17x32xf32>
    %103 = vector.extract_strided_slice %40 {offsets = [17, 0], sizes = [17, 96], strides = [1, 1]} : vector<34x96xf32> to vector<17x96xf32>
    %104 = vector.extract_strided_slice %103 {offsets = [0, 0], sizes = [17, 8], strides = [1, 1]} : vector<17x96xf32> to vector<17x8xf32>
    %105 = vector.extract_strided_slice %103 {offsets = [0, 32], sizes = [17, 8], strides = [1, 1]} : vector<17x96xf32> to vector<17x8xf32>
    %106 = vector.extract_strided_slice %103 {offsets = [0, 64], sizes = [17, 8], strides = [1, 1]} : vector<17x96xf32> to vector<17x8xf32>
    %cst_43 = arith.constant dense<0.000000e+00> : vector<17x17xf32>
    %107 = tpu.matmul %104, %105, %cst_43 {dimension_numbers = #tpu.dot_dimension_numbers<[1], [1], [0], [0], [0, 0, 1, 0], [], []>} : vector<17x8xf32>, vector<17x8xf32>, vector<17x17xf32> -> vector<17x17xf32>
    %cst_44 = arith.constant dense<0xFF800000> : vector<17xf32>
    %108 = vector.multi_reduction <maximumf>, %107, %cst_44 [1] : vector<17x17xf32> to vector<17xf32>
    %109 = vector.shape_cast %108 : vector<17xf32> to vector<17x1xf32>
    %110 = vector.broadcast %109 : vector<17x1xf32> to vector<17x17xf32>
    %111 = arith.subf %107, %110 : vector<17x17xf32>
    %112 = math.exp %111 : vector<17x17xf32>
    %cst_45 = arith.constant dense<0.000000e+00> : vector<17xf32>
    %113 = vector.multi_reduction <add>, %112, %cst_45 [1] : vector<17x17xf32> to vector<17xf32>
    %114 = vector.shape_cast %113 : vector<17xf32> to vector<17x1xf32>
    %cst_46 = arith.constant dense<0.000000e+00> : vector<17x8xf32>
    %115 = tpu.matmul %112, %106, %cst_46 {dimension_numbers = #tpu.dot_dimension_numbers<[1], [0], [0], [1], [0, 0, 1, 1], [], []>} : vector<17x17xf32>, vector<17x8xf32>, vector<17x8xf32> -> vector<17x8xf32>
    %116 = tpu.reciprocal %114 {approx = true} : vector<17x1xf32> -> vector<17x1xf32>
    %117 = vector.broadcast %116 : vector<17x1xf32> to vector<17x8xf32>
    %118 = arith.mulf %115, %117 : vector<17x8xf32>
    %119 = vector.extract_strided_slice %103 {offsets = [0, 8], sizes = [17, 8], strides = [1, 1]} : vector<17x96xf32> to vector<17x8xf32>
    %120 = vector.extract_strided_slice %103 {offsets = [0, 40], sizes = [17, 8], strides = [1, 1]} : vector<17x96xf32> to vector<17x8xf32>
    %121 = vector.extract_strided_slice %103 {offsets = [0, 72], sizes = [17, 8], strides = [1, 1]} : vector<17x96xf32> to vector<17x8xf32>
    %cst_47 = arith.constant dense<0.000000e+00> : vector<17x17xf32>
    %122 = tpu.matmul %119, %120, %cst_47 {dimension_numbers = #tpu.dot_dimension_numbers<[1], [1], [0], [0], [0, 0, 1, 0], [], []>} : vector<17x8xf32>, vector<17x8xf32>, vector<17x17xf32> -> vector<17x17xf32>
    %cst_48 = arith.constant dense<0xFF800000> : vector<17xf32>
    %123 = vector.multi_reduction <maximumf>, %122, %cst_48 [1] : vector<17x17xf32> to vector<17xf32>
    %124 = vector.shape_cast %123 : vector<17xf32> to vector<17x1xf32>
    %125 = vector.broadcast %124 : vector<17x1xf32> to vector<17x17xf32>
    %126 = arith.subf %122, %125 : vector<17x17xf32>
    %127 = math.exp %126 : vector<17x17xf32>
    %cst_49 = arith.constant dense<0.000000e+00> : vector<17xf32>
    %128 = vector.multi_reduction <add>, %127, %cst_49 [1] : vector<17x17xf32> to vector<17xf32>
    %129 = vector.shape_cast %128 : vector<17xf32> to vector<17x1xf32>
    %cst_50 = arith.constant dense<0.000000e+00> : vector<17x8xf32>
    %130 = tpu.matmul %127, %121, %cst_50 {dimension_numbers = #tpu.dot_dimension_numbers<[1], [0], [0], [1], [0, 0, 1, 1], [], []>} : vector<17x17xf32>, vector<17x8xf32>, vector<17x8xf32> -> vector<17x8xf32>
    %131 = tpu.reciprocal %129 {approx = true} : vector<17x1xf32> -> vector<17x1xf32>
    %132 = vector.broadcast %131 : vector<17x1xf32> to vector<17x8xf32>
    %133 = arith.mulf %130, %132 : vector<17x8xf32>
    %134 = vector.extract_strided_slice %103 {offsets = [0, 16], sizes = [17, 8], strides = [1, 1]} : vector<17x96xf32> to vector<17x8xf32>
    %135 = vector.extract_strided_slice %103 {offsets = [0, 48], sizes = [17, 8], strides = [1, 1]} : vector<17x96xf32> to vector<17x8xf32>
    %136 = vector.extract_strided_slice %103 {offsets = [0, 80], sizes = [17, 8], strides = [1, 1]} : vector<17x96xf32> to vector<17x8xf32>
    %cst_51 = arith.constant dense<0.000000e+00> : vector<17x17xf32>
    %137 = tpu.matmul %134, %135, %cst_51 {dimension_numbers = #tpu.dot_dimension_numbers<[1], [1], [0], [0], [0, 0, 1, 0], [], []>} : vector<17x8xf32>, vector<17x8xf32>, vector<17x17xf32> -> vector<17x17xf32>
    %cst_52 = arith.constant dense<0xFF800000> : vector<17xf32>
    %138 = vector.multi_reduction <maximumf>, %137, %cst_52 [1] : vector<17x17xf32> to vector<17xf32>
    %139 = vector.shape_cast %138 : vector<17xf32> to vector<17x1xf32>
    %140 = vector.broadcast %139 : vector<17x1xf32> to vector<17x17xf32>
    %141 = arith.subf %137, %140 : vector<17x17xf32>
    %142 = math.exp %141 : vector<17x17xf32>
    %cst_53 = arith.constant dense<0.000000e+00> : vector<17xf32>
    %143 = vector.multi_reduction <add>, %142, %cst_53 [1] : vector<17x17xf32> to vector<17xf32>
    %144 = vector.shape_cast %143 : vector<17xf32> to vector<17x1xf32>
    %cst_54 = arith.constant dense<0.000000e+00> : vector<17x8xf32>
    %145 = tpu.matmul %142, %136, %cst_54 {dimension_numbers = #tpu.dot_dimension_numbers<[1], [0], [0], [1], [0, 0, 1, 1], [], []>} : vector<17x17xf32>, vector<17x8xf32>, vector<17x8xf32> -> vector<17x8xf32>
    %146 = tpu.reciprocal %144 {approx = true} : vector<17x1xf32> -> vector<17x1xf32>
    %147 = vector.broadcast %146 : vector<17x1xf32> to vector<17x8xf32>
    %148 = arith.mulf %145, %147 : vector<17x8xf32>
    %149 = vector.extract_strided_slice %103 {offsets = [0, 24], sizes = [17, 8], strides = [1, 1]} : vector<17x96xf32> to vector<17x8xf32>
    %150 = vector.extract_strided_slice %103 {offsets = [0, 56], sizes = [17, 8], strides = [1, 1]} : vector<17x96xf32> to vector<17x8xf32>
    %151 = vector.extract_strided_slice %103 {offsets = [0, 88], sizes = [17, 8], strides = [1, 1]} : vector<17x96xf32> to vector<17x8xf32>
    %cst_55 = arith.constant dense<0.000000e+00> : vector<17x17xf32>
    %152 = tpu.matmul %149, %150, %cst_55 {dimension_numbers = #tpu.dot_dimension_numbers<[1], [1], [0], [0], [0, 0, 1, 0], [], []>} : vector<17x8xf32>, vector<17x8xf32>, vector<17x17xf32> -> vector<17x17xf32>
    %cst_56 = arith.constant dense<0xFF800000> : vector<17xf32>
    %153 = vector.multi_reduction <maximumf>, %152, %cst_56 [1] : vector<17x17xf32> to vector<17xf32>
    %154 = vector.shape_cast %153 : vector<17xf32> to vector<17x1xf32>
    %155 = vector.broadcast %154 : vector<17x1xf32> to vector<17x17xf32>
    %156 = arith.subf %152, %155 : vector<17x17xf32>
    %157 = math.exp %156 : vector<17x17xf32>
    %cst_57 = arith.constant dense<0.000000e+00> : vector<17xf32>
    %158 = vector.multi_reduction <add>, %157, %cst_57 [1] : vector<17x17xf32> to vector<17xf32>
    %159 = vector.shape_cast %158 : vector<17xf32> to vector<17x1xf32>
    %cst_58 = arith.constant dense<0.000000e+00> : vector<17x8xf32>
    %160 = tpu.matmul %157, %151, %cst_58 {dimension_numbers = #tpu.dot_dimension_numbers<[1], [0], [0], [1], [0, 0, 1, 1], [], []>} : vector<17x17xf32>, vector<17x8xf32>, vector<17x8xf32> -> vector<17x8xf32>
    %161 = tpu.reciprocal %159 {approx = true} : vector<17x1xf32> -> vector<17x1xf32>
    %162 = vector.broadcast %161 : vector<17x1xf32> to vector<17x8xf32>
    %163 = arith.mulf %160, %162 : vector<17x8xf32>
    %164 = tpu.concatenate %118, %133, %148, %163 in 1 : vector<17x8xf32>, vector<17x8xf32>, vector<17x8xf32>, vector<17x8xf32> -> vector<17x32xf32>
    %165 = tpu.concatenate %102, %164 in 0 : vector<17x32xf32>, vector<17x32xf32> -> vector<34x32xf32>
    %c0_59 = arith.constant 0 : index
    %c0_60 = arith.constant 0 : index
    %c0_61 = arith.constant 0 : index
    %166 = vector.load %arg8[%c0_59, %c0_60, %c0_61] : memref<2x32x32xf32, #tpu.memory_space<vmem>>, vector<1x32x32xf32>
    %167 = vector.shape_cast %166 : vector<1x32x32xf32> to vector<32x32xf32>
    %cst_62 = arith.constant dense<0.000000e+00> : vector<34x32xf32>
    %168 = tpu.matmul %165, %167, %cst_62 {dimension_numbers = #tpu.dot_dimension_numbers<[1], [0], [0], [1], [0, 0, 1, 1], [], []>} : vector<34x32xf32>, vector<32x32xf32>, vector<34x32xf32> -> vector<34x32xf32>
    %169 = arith.addf %9, %168 : vector<34x32xf32>
    %c0_63 = arith.constant 0 : index
    %c0_64 = arith.constant 0 : index
    %c0_65 = arith.constant 0 : index
    %170 = vector.load %arg9[%c0_63, %c0_64, %c0_65] : memref<2x1x32xf32, #tpu.memory_space<vmem>>, vector<1x1x32xf32>
    %171 = vector.shape_cast %170 : vector<1x1x32xf32> to vector<1x32xf32>
    %172 = vector.broadcast %171 : vector<1x32xf32> to vector<34x32xf32>
    %173 = arith.addf %169, %172 : vector<34x32xf32>
    %c0_66 = arith.constant 0 : index
    %c0_67 = arith.constant 0 : index
    %c0_68 = arith.constant 0 : index
    %174 = vector.load %arg10[%c0_66, %c0_67, %c0_68] : memref<2x1x32xf32, #tpu.memory_space<vmem>>, vector<1x1x32xf32>
    %175 = vector.shape_cast %174 : vector<1x1x32xf32> to vector<1x32xf32>
    %c0_69 = arith.constant 0 : index
    %c0_70 = arith.constant 0 : index
    %c0_71 = arith.constant 0 : index
    %176 = vector.load %arg11[%c0_69, %c0_70, %c0_71] : memref<2x1x32xf32, #tpu.memory_space<vmem>>, vector<1x1x32xf32>
    %177 = vector.shape_cast %176 : vector<1x1x32xf32> to vector<1x32xf32>
    %cst_72 = arith.constant dense<0.000000e+00> : vector<34xf32>
    %178 = vector.multi_reduction <add>, %173, %cst_72 [1] : vector<34x32xf32> to vector<34xf32>
    %179 = vector.shape_cast %178 : vector<34xf32> to vector<34x1xf32>
    %cst_73 = arith.constant 3.200000e+01 : f32
    %180 = vector.broadcast %cst_73 : f32 to vector<34x1xf32>
    %181 = arith.divf %179, %180 : vector<34x1xf32>
    %182 = vector.broadcast %181 : vector<34x1xf32> to vector<34x32xf32>
    %183 = arith.subf %173, %182 : vector<34x32xf32>
    %184 = arith.mulf %183, %183 : vector<34x32xf32>
    %cst_74 = arith.constant dense<0.000000e+00> : vector<34xf32>
    %185 = vector.multi_reduction <add>, %184, %cst_74 [1] : vector<34x32xf32> to vector<34xf32>
    %186 = vector.shape_cast %185 : vector<34xf32> to vector<34x1xf32>
    %cst_75 = arith.constant 3.200000e+01 : f32
    %187 = vector.broadcast %cst_75 : f32 to vector<34x1xf32>
    %188 = arith.divf %186, %187 : vector<34x1xf32>
    %cst_76 = arith.constant 9.99999997E-7 : f32
    %189 = vector.broadcast %cst_76 : f32 to vector<34x1xf32>
    %190 = arith.addf %188, %189 : vector<34x1xf32>
    %191 = math.rsqrt %190 : vector<34x1xf32>
    %192 = vector.broadcast %191 : vector<34x1xf32> to vector<34x32xf32>
    %193 = arith.mulf %183, %192 : vector<34x32xf32>
    %194 = vector.broadcast %175 : vector<1x32xf32> to vector<34x32xf32>
    %195 = arith.mulf %193, %194 : vector<34x32xf32>
    %196 = vector.broadcast %177 : vector<1x32xf32> to vector<34x32xf32>
    %197 = arith.addf %195, %196 : vector<34x32xf32>
    %c0_77 = arith.constant 0 : index
    %c0_78 = arith.constant 0 : index
    %c0_79 = arith.constant 0 : index
    %198 = vector.load %arg12[%c0_77, %c0_78, %c0_79] : memref<2x32x64xf32, #tpu.memory_space<vmem>>, vector<1x32x64xf32>
    %199 = vector.shape_cast %198 : vector<1x32x64xf32> to vector<32x64xf32>
    %cst_80 = arith.constant dense<0.000000e+00> : vector<34x64xf32>
    %200 = tpu.matmul %197, %199, %cst_80 {dimension_numbers = #tpu.dot_dimension_numbers<[1], [0], [0], [1], [0, 0, 1, 1], [], []>} : vector<34x32xf32>, vector<32x64xf32>, vector<34x64xf32> -> vector<34x64xf32>
    %c0_81 = arith.constant 0 : index
    %c0_82 = arith.constant 0 : index
    %c0_83 = arith.constant 0 : index
    %201 = vector.load %arg13[%c0_81, %c0_82, %c0_83] : memref<2x1x64xf32, #tpu.memory_space<vmem>>, vector<1x1x64xf32>
    %202 = vector.shape_cast %201 : vector<1x1x64xf32> to vector<1x64xf32>
    %203 = vector.broadcast %202 : vector<1x64xf32> to vector<34x64xf32>
    %204 = arith.addf %200, %203 : vector<34x64xf32>
    %cst_84 = arith.constant 5.000000e-01 : f32
    %205 = vector.broadcast %cst_84 : f32 to vector<34x64xf32>
    %206 = arith.mulf %205, %204 : vector<34x64xf32>
    %cst_85 = arith.constant 4.471500e-02 : f32
    %207 = vector.broadcast %cst_85 : f32 to vector<34x64xf32>
    %208 = arith.mulf %207, %204 : vector<34x64xf32>
    %209 = arith.mulf %208, %204 : vector<34x64xf32>
    %210 = arith.mulf %209, %204 : vector<34x64xf32>
    %211 = arith.addf %204, %210 : vector<34x64xf32>
    %cst_86 = arith.constant 0.797884583 : f32
    %212 = vector.broadcast %cst_86 : f32 to vector<34x64xf32>
    %213 = arith.mulf %212, %211 : vector<34x64xf32>
    %214 = math.tanh %213 : vector<34x64xf32>
    %cst_87 = arith.constant 1.000000e+00 : f32
    %215 = vector.broadcast %cst_87 : f32 to vector<34x64xf32>
    %216 = arith.addf %215, %214 : vector<34x64xf32>
    %217 = arith.mulf %206, %216 : vector<34x64xf32>
    %c0_88 = arith.constant 0 : index
    %c0_89 = arith.constant 0 : index
    %c0_90 = arith.constant 0 : index
    %218 = vector.load %arg14[%c0_88, %c0_89, %c0_90] : memref<2x64x32xf32, #tpu.memory_space<vmem>>, vector<1x64x32xf32>
    %219 = vector.shape_cast %218 : vector<1x64x32xf32> to vector<64x32xf32>
    %cst_91 = arith.constant dense<0.000000e+00> : vector<34x32xf32>
    %220 = tpu.matmul %217, %219, %cst_91 {dimension_numbers = #tpu.dot_dimension_numbers<[1], [0], [0], [1], [0, 0, 1, 1], [], []>} : vector<34x64xf32>, vector<64x32xf32>, vector<34x32xf32> -> vector<34x32xf32>
    %221 = arith.addf %173, %220 : vector<34x32xf32>
    %c0_92 = arith.constant 0 : index
    %c0_93 = arith.constant 0 : index
    %c0_94 = arith.constant 0 : index
    %222 = vector.load %arg15[%c0_92, %c0_93, %c0_94] : memref<2x1x32xf32, #tpu.memory_space<vmem>>, vector<1x1x32xf32>
    %223 = vector.shape_cast %222 : vector<1x1x32xf32> to vector<1x32xf32>
    %224 = vector.broadcast %223 : vector<1x32xf32> to vector<34x32xf32>
    %225 = arith.addf %221, %224 : vector<34x32xf32>
    %c1_95 = arith.constant 1 : index
    %c0_96 = arith.constant 0 : index
    %c0_97 = arith.constant 0 : index
    %226 = vector.load %arg4[%c1_95, %c0_96, %c0_97] : memref<2x1x32xf32, #tpu.memory_space<vmem>>, vector<1x1x32xf32>
    %227 = vector.shape_cast %226 : vector<1x1x32xf32> to vector<1x32xf32>
    %c1_98 = arith.constant 1 : index
    %c0_99 = arith.constant 0 : index
    %c0_100 = arith.constant 0 : index
    %228 = vector.load %arg5[%c1_98, %c0_99, %c0_100] : memref<2x1x32xf32, #tpu.memory_space<vmem>>, vector<1x1x32xf32>
    %229 = vector.shape_cast %228 : vector<1x1x32xf32> to vector<1x32xf32>
    %cst_101 = arith.constant dense<0.000000e+00> : vector<34xf32>
    %230 = vector.multi_reduction <add>, %225, %cst_101 [1] : vector<34x32xf32> to vector<34xf32>
    %231 = vector.shape_cast %230 : vector<34xf32> to vector<34x1xf32>
    %cst_102 = arith.constant 3.200000e+01 : f32
    %232 = vector.broadcast %cst_102 : f32 to vector<34x1xf32>
    %233 = arith.divf %231, %232 : vector<34x1xf32>
    %234 = vector.broadcast %233 : vector<34x1xf32> to vector<34x32xf32>
    %235 = arith.subf %225, %234 : vector<34x32xf32>
    %236 = arith.mulf %235, %235 : vector<34x32xf32>
    %cst_103 = arith.constant dense<0.000000e+00> : vector<34xf32>
    %237 = vector.multi_reduction <add>, %236, %cst_103 [1] : vector<34x32xf32> to vector<34xf32>
    %238 = vector.shape_cast %237 : vector<34xf32> to vector<34x1xf32>
    %cst_104 = arith.constant 3.200000e+01 : f32
    %239 = vector.broadcast %cst_104 : f32 to vector<34x1xf32>
    %240 = arith.divf %238, %239 : vector<34x1xf32>
    %cst_105 = arith.constant 9.99999997E-7 : f32
    %241 = vector.broadcast %cst_105 : f32 to vector<34x1xf32>
    %242 = arith.addf %240, %241 : vector<34x1xf32>
    %243 = math.rsqrt %242 : vector<34x1xf32>
    %244 = vector.broadcast %243 : vector<34x1xf32> to vector<34x32xf32>
    %245 = arith.mulf %235, %244 : vector<34x32xf32>
    %246 = vector.broadcast %227 : vector<1x32xf32> to vector<34x32xf32>
    %247 = arith.mulf %245, %246 : vector<34x32xf32>
    %248 = vector.broadcast %229 : vector<1x32xf32> to vector<34x32xf32>
    %249 = arith.addf %247, %248 : vector<34x32xf32>
    %c1_106 = arith.constant 1 : index
    %c0_107 = arith.constant 0 : index
    %c0_108 = arith.constant 0 : index
    %250 = vector.load %arg6[%c1_106, %c0_107, %c0_108] : memref<2x32x96xf32, #tpu.memory_space<vmem>>, vector<1x32x96xf32>
    %251 = vector.shape_cast %250 : vector<1x32x96xf32> to vector<32x96xf32>
    %cst_109 = arith.constant dense<0.000000e+00> : vector<34x96xf32>
    %252 = tpu.matmul %249, %251, %cst_109 {dimension_numbers = #tpu.dot_dimension_numbers<[1], [0], [0], [1], [0, 0, 1, 1], [], []>} : vector<34x32xf32>, vector<32x96xf32>, vector<34x96xf32> -> vector<34x96xf32>
    %c1_110 = arith.constant 1 : index
    %c0_111 = arith.constant 0 : index
    %c0_112 = arith.constant 0 : index
    %253 = vector.load %arg7[%c1_110, %c0_111, %c0_112] : memref<2x1x96xf32, #tpu.memory_space<vmem>>, vector<1x1x96xf32>
    %254 = vector.shape_cast %253 : vector<1x1x96xf32> to vector<1x96xf32>
    %255 = vector.broadcast %254 : vector<1x96xf32> to vector<34x96xf32>
    %256 = arith.addf %252, %255 : vector<34x96xf32>
    %257 = vector.extract_strided_slice %256 {offsets = [0, 0], sizes = [17, 96], strides = [1, 1]} : vector<34x96xf32> to vector<17x96xf32>
    %258 = vector.extract_strided_slice %257 {offsets = [0, 0], sizes = [17, 8], strides = [1, 1]} : vector<17x96xf32> to vector<17x8xf32>
    %259 = vector.extract_strided_slice %257 {offsets = [0, 32], sizes = [17, 8], strides = [1, 1]} : vector<17x96xf32> to vector<17x8xf32>
    %260 = vector.extract_strided_slice %257 {offsets = [0, 64], sizes = [17, 8], strides = [1, 1]} : vector<17x96xf32> to vector<17x8xf32>
    %cst_113 = arith.constant dense<0.000000e+00> : vector<17x17xf32>
    %261 = tpu.matmul %258, %259, %cst_113 {dimension_numbers = #tpu.dot_dimension_numbers<[1], [1], [0], [0], [0, 0, 1, 0], [], []>} : vector<17x8xf32>, vector<17x8xf32>, vector<17x17xf32> -> vector<17x17xf32>
    %cst_114 = arith.constant dense<0xFF800000> : vector<17xf32>
    %262 = vector.multi_reduction <maximumf>, %261, %cst_114 [1] : vector<17x17xf32> to vector<17xf32>
    %263 = vector.shape_cast %262 : vector<17xf32> to vector<17x1xf32>
    %264 = vector.broadcast %263 : vector<17x1xf32> to vector<17x17xf32>
    %265 = arith.subf %261, %264 : vector<17x17xf32>
    %266 = math.exp %265 : vector<17x17xf32>
    %cst_115 = arith.constant dense<0.000000e+00> : vector<17xf32>
    %267 = vector.multi_reduction <add>, %266, %cst_115 [1] : vector<17x17xf32> to vector<17xf32>
    %268 = vector.shape_cast %267 : vector<17xf32> to vector<17x1xf32>
    %cst_116 = arith.constant dense<0.000000e+00> : vector<17x8xf32>
    %269 = tpu.matmul %266, %260, %cst_116 {dimension_numbers = #tpu.dot_dimension_numbers<[1], [0], [0], [1], [0, 0, 1, 1], [], []>} : vector<17x17xf32>, vector<17x8xf32>, vector<17x8xf32> -> vector<17x8xf32>
    %270 = tpu.reciprocal %268 {approx = true} : vector<17x1xf32> -> vector<17x1xf32>
    %271 = vector.broadcast %270 : vector<17x1xf32> to vector<17x8xf32>
    %272 = arith.mulf %269, %271 : vector<17x8xf32>
    %273 = vector.extract_strided_slice %257 {offsets = [0, 8], sizes = [17, 8], strides = [1, 1]} : vector<17x96xf32> to vector<17x8xf32>
    %274 = vector.extract_strided_slice %257 {offsets = [0, 40], sizes = [17, 8], strides = [1, 1]} : vector<17x96xf32> to vector<17x8xf32>
    %275 = vector.extract_strided_slice %257 {offsets = [0, 72], sizes = [17, 8], strides = [1, 1]} : vector<17x96xf32> to vector<17x8xf32>
    %cst_117 = arith.constant dense<0.000000e+00> : vector<17x17xf32>
    %276 = tpu.matmul %273, %274, %cst_117 {dimension_numbers = #tpu.dot_dimension_numbers<[1], [1], [0], [0], [0, 0, 1, 0], [], []>} : vector<17x8xf32>, vector<17x8xf32>, vector<17x17xf32> -> vector<17x17xf32>
    %cst_118 = arith.constant dense<0xFF800000> : vector<17xf32>
    %277 = vector.multi_reduction <maximumf>, %276, %cst_118 [1] : vector<17x17xf32> to vector<17xf32>
    %278 = vector.shape_cast %277 : vector<17xf32> to vector<17x1xf32>
    %279 = vector.broadcast %278 : vector<17x1xf32> to vector<17x17xf32>
    %280 = arith.subf %276, %279 : vector<17x17xf32>
    %281 = math.exp %280 : vector<17x17xf32>
    %cst_119 = arith.constant dense<0.000000e+00> : vector<17xf32>
    %282 = vector.multi_reduction <add>, %281, %cst_119 [1] : vector<17x17xf32> to vector<17xf32>
    %283 = vector.shape_cast %282 : vector<17xf32> to vector<17x1xf32>
    %cst_120 = arith.constant dense<0.000000e+00> : vector<17x8xf32>
    %284 = tpu.matmul %281, %275, %cst_120 {dimension_numbers = #tpu.dot_dimension_numbers<[1], [0], [0], [1], [0, 0, 1, 1], [], []>} : vector<17x17xf32>, vector<17x8xf32>, vector<17x8xf32> -> vector<17x8xf32>
    %285 = tpu.reciprocal %283 {approx = true} : vector<17x1xf32> -> vector<17x1xf32>
    %286 = vector.broadcast %285 : vector<17x1xf32> to vector<17x8xf32>
    %287 = arith.mulf %284, %286 : vector<17x8xf32>
    %288 = vector.extract_strided_slice %257 {offsets = [0, 16], sizes = [17, 8], strides = [1, 1]} : vector<17x96xf32> to vector<17x8xf32>
    %289 = vector.extract_strided_slice %257 {offsets = [0, 48], sizes = [17, 8], strides = [1, 1]} : vector<17x96xf32> to vector<17x8xf32>
    %290 = vector.extract_strided_slice %257 {offsets = [0, 80], sizes = [17, 8], strides = [1, 1]} : vector<17x96xf32> to vector<17x8xf32>
    %cst_121 = arith.constant dense<0.000000e+00> : vector<17x17xf32>
    %291 = tpu.matmul %288, %289, %cst_121 {dimension_numbers = #tpu.dot_dimension_numbers<[1], [1], [0], [0], [0, 0, 1, 0], [], []>} : vector<17x8xf32>, vector<17x8xf32>, vector<17x17xf32> -> vector<17x17xf32>
    %cst_122 = arith.constant dense<0xFF800000> : vector<17xf32>
    %292 = vector.multi_reduction <maximumf>, %291, %cst_122 [1] : vector<17x17xf32> to vector<17xf32>
    %293 = vector.shape_cast %292 : vector<17xf32> to vector<17x1xf32>
    %294 = vector.broadcast %293 : vector<17x1xf32> to vector<17x17xf32>
    %295 = arith.subf %291, %294 : vector<17x17xf32>
    %296 = math.exp %295 : vector<17x17xf32>
    %cst_123 = arith.constant dense<0.000000e+00> : vector<17xf32>
    %297 = vector.multi_reduction <add>, %296, %cst_123 [1] : vector<17x17xf32> to vector<17xf32>
    %298 = vector.shape_cast %297 : vector<17xf32> to vector<17x1xf32>
    %cst_124 = arith.constant dense<0.000000e+00> : vector<17x8xf32>
    %299 = tpu.matmul %296, %290, %cst_124 {dimension_numbers = #tpu.dot_dimension_numbers<[1], [0], [0], [1], [0, 0, 1, 1], [], []>} : vector<17x17xf32>, vector<17x8xf32>, vector<17x8xf32> -> vector<17x8xf32>
    %300 = tpu.reciprocal %298 {approx = true} : vector<17x1xf32> -> vector<17x1xf32>
    %301 = vector.broadcast %300 : vector<17x1xf32> to vector<17x8xf32>
    %302 = arith.mulf %299, %301 : vector<17x8xf32>
    %303 = vector.extract_strided_slice %257 {offsets = [0, 24], sizes = [17, 8], strides = [1, 1]} : vector<17x96xf32> to vector<17x8xf32>
    %304 = vector.extract_strided_slice %257 {offsets = [0, 56], sizes = [17, 8], strides = [1, 1]} : vector<17x96xf32> to vector<17x8xf32>
    %305 = vector.extract_strided_slice %257 {offsets = [0, 88], sizes = [17, 8], strides = [1, 1]} : vector<17x96xf32> to vector<17x8xf32>
    %cst_125 = arith.constant dense<0.000000e+00> : vector<17x17xf32>
    %306 = tpu.matmul %303, %304, %cst_125 {dimension_numbers = #tpu.dot_dimension_numbers<[1], [1], [0], [0], [0, 0, 1, 0], [], []>} : vector<17x8xf32>, vector<17x8xf32>, vector<17x17xf32> -> vector<17x17xf32>
    %cst_126 = arith.constant dense<0xFF800000> : vector<17xf32>
    %307 = vector.multi_reduction <maximumf>, %306, %cst_126 [1] : vector<17x17xf32> to vector<17xf32>
    %308 = vector.shape_cast %307 : vector<17xf32> to vector<17x1xf32>
    %309 = vector.broadcast %308 : vector<17x1xf32> to vector<17x17xf32>
    %310 = arith.subf %306, %309 : vector<17x17xf32>
    %311 = math.exp %310 : vector<17x17xf32>
    %cst_127 = arith.constant dense<0.000000e+00> : vector<17xf32>
    %312 = vector.multi_reduction <add>, %311, %cst_127 [1] : vector<17x17xf32> to vector<17xf32>
    %313 = vector.shape_cast %312 : vector<17xf32> to vector<17x1xf32>
    %cst_128 = arith.constant dense<0.000000e+00> : vector<17x8xf32>
    %314 = tpu.matmul %311, %305, %cst_128 {dimension_numbers = #tpu.dot_dimension_numbers<[1], [0], [0], [1], [0, 0, 1, 1], [], []>} : vector<17x17xf32>, vector<17x8xf32>, vector<17x8xf32> -> vector<17x8xf32>
    %315 = tpu.reciprocal %313 {approx = true} : vector<17x1xf32> -> vector<17x1xf32>
    %316 = vector.broadcast %315 : vector<17x1xf32> to vector<17x8xf32>
    %317 = arith.mulf %314, %316 : vector<17x8xf32>
    %318 = tpu.concatenate %272, %287, %302, %317 in 1 : vector<17x8xf32>, vector<17x8xf32>, vector<17x8xf32>, vector<17x8xf32> -> vector<17x32xf32>
    %319 = vector.extract_strided_slice %256 {offsets = [17, 0], sizes = [17, 96], strides = [1, 1]} : vector<34x96xf32> to vector<17x96xf32>
    %320 = vector.extract_strided_slice %319 {offsets = [0, 0], sizes = [17, 8], strides = [1, 1]} : vector<17x96xf32> to vector<17x8xf32>
    %321 = vector.extract_strided_slice %319 {offsets = [0, 32], sizes = [17, 8], strides = [1, 1]} : vector<17x96xf32> to vector<17x8xf32>
    %322 = vector.extract_strided_slice %319 {offsets = [0, 64], sizes = [17, 8], strides = [1, 1]} : vector<17x96xf32> to vector<17x8xf32>
    %cst_129 = arith.constant dense<0.000000e+00> : vector<17x17xf32>
    %323 = tpu.matmul %320, %321, %cst_129 {dimension_numbers = #tpu.dot_dimension_numbers<[1], [1], [0], [0], [0, 0, 1, 0], [], []>} : vector<17x8xf32>, vector<17x8xf32>, vector<17x17xf32> -> vector<17x17xf32>
    %cst_130 = arith.constant dense<0xFF800000> : vector<17xf32>
    %324 = vector.multi_reduction <maximumf>, %323, %cst_130 [1] : vector<17x17xf32> to vector<17xf32>
    %325 = vector.shape_cast %324 : vector<17xf32> to vector<17x1xf32>
    %326 = vector.broadcast %325 : vector<17x1xf32> to vector<17x17xf32>
    %327 = arith.subf %323, %326 : vector<17x17xf32>
    %328 = math.exp %327 : vector<17x17xf32>
    %cst_131 = arith.constant dense<0.000000e+00> : vector<17xf32>
    %329 = vector.multi_reduction <add>, %328, %cst_131 [1] : vector<17x17xf32> to vector<17xf32>
    %330 = vector.shape_cast %329 : vector<17xf32> to vector<17x1xf32>
    %cst_132 = arith.constant dense<0.000000e+00> : vector<17x8xf32>
    %331 = tpu.matmul %328, %322, %cst_132 {dimension_numbers = #tpu.dot_dimension_numbers<[1], [0], [0], [1], [0, 0, 1, 1], [], []>} : vector<17x17xf32>, vector<17x8xf32>, vector<17x8xf32> -> vector<17x8xf32>
    %332 = tpu.reciprocal %330 {approx = true} : vector<17x1xf32> -> vector<17x1xf32>
    %333 = vector.broadcast %332 : vector<17x1xf32> to vector<17x8xf32>
    %334 = arith.mulf %331, %333 : vector<17x8xf32>
    %335 = vector.extract_strided_slice %319 {offsets = [0, 8], sizes = [17, 8], strides = [1, 1]} : vector<17x96xf32> to vector<17x8xf32>
    %336 = vector.extract_strided_slice %319 {offsets = [0, 40], sizes = [17, 8], strides = [1, 1]} : vector<17x96xf32> to vector<17x8xf32>
    %337 = vector.extract_strided_slice %319 {offsets = [0, 72], sizes = [17, 8], strides = [1, 1]} : vector<17x96xf32> to vector<17x8xf32>
    %cst_133 = arith.constant dense<0.000000e+00> : vector<17x17xf32>
    %338 = tpu.matmul %335, %336, %cst_133 {dimension_numbers = #tpu.dot_dimension_numbers<[1], [1], [0], [0], [0, 0, 1, 0], [], []>} : vector<17x8xf32>, vector<17x8xf32>, vector<17x17xf32> -> vector<17x17xf32>
    %cst_134 = arith.constant dense<0xFF800000> : vector<17xf32>
    %339 = vector.multi_reduction <maximumf>, %338, %cst_134 [1] : vector<17x17xf32> to vector<17xf32>
    %340 = vector.shape_cast %339 : vector<17xf32> to vector<17x1xf32>
    %341 = vector.broadcast %340 : vector<17x1xf32> to vector<17x17xf32>
    %342 = arith.subf %338, %341 : vector<17x17xf32>
    %343 = math.exp %342 : vector<17x17xf32>
    %cst_135 = arith.constant dense<0.000000e+00> : vector<17xf32>
    %344 = vector.multi_reduction <add>, %343, %cst_135 [1] : vector<17x17xf32> to vector<17xf32>
    %345 = vector.shape_cast %344 : vector<17xf32> to vector<17x1xf32>
    %cst_136 = arith.constant dense<0.000000e+00> : vector<17x8xf32>
    %346 = tpu.matmul %343, %337, %cst_136 {dimension_numbers = #tpu.dot_dimension_numbers<[1], [0], [0], [1], [0, 0, 1, 1], [], []>} : vector<17x17xf32>, vector<17x8xf32>, vector<17x8xf32> -> vector<17x8xf32>
    %347 = tpu.reciprocal %345 {approx = true} : vector<17x1xf32> -> vector<17x1xf32>
    %348 = vector.broadcast %347 : vector<17x1xf32> to vector<17x8xf32>
    %349 = arith.mulf %346, %348 : vector<17x8xf32>
    %350 = vector.extract_strided_slice %319 {offsets = [0, 16], sizes = [17, 8], strides = [1, 1]} : vector<17x96xf32> to vector<17x8xf32>
    %351 = vector.extract_strided_slice %319 {offsets = [0, 48], sizes = [17, 8], strides = [1, 1]} : vector<17x96xf32> to vector<17x8xf32>
    %352 = vector.extract_strided_slice %319 {offsets = [0, 80], sizes = [17, 8], strides = [1, 1]} : vector<17x96xf32> to vector<17x8xf32>
    %cst_137 = arith.constant dense<0.000000e+00> : vector<17x17xf32>
    %353 = tpu.matmul %350, %351, %cst_137 {dimension_numbers = #tpu.dot_dimension_numbers<[1], [1], [0], [0], [0, 0, 1, 0], [], []>} : vector<17x8xf32>, vector<17x8xf32>, vector<17x17xf32> -> vector<17x17xf32>
    %cst_138 = arith.constant dense<0xFF800000> : vector<17xf32>
    %354 = vector.multi_reduction <maximumf>, %353, %cst_138 [1] : vector<17x17xf32> to vector<17xf32>
    %355 = vector.shape_cast %354 : vector<17xf32> to vector<17x1xf32>
    %356 = vector.broadcast %355 : vector<17x1xf32> to vector<17x17xf32>
    %357 = arith.subf %353, %356 : vector<17x17xf32>
    %358 = math.exp %357 : vector<17x17xf32>
    %cst_139 = arith.constant dense<0.000000e+00> : vector<17xf32>
    %359 = vector.multi_reduction <add>, %358, %cst_139 [1] : vector<17x17xf32> to vector<17xf32>
    %360 = vector.shape_cast %359 : vector<17xf32> to vector<17x1xf32>
    %cst_140 = arith.constant dense<0.000000e+00> : vector<17x8xf32>
    %361 = tpu.matmul %358, %352, %cst_140 {dimension_numbers = #tpu.dot_dimension_numbers<[1], [0], [0], [1], [0, 0, 1, 1], [], []>} : vector<17x17xf32>, vector<17x8xf32>, vector<17x8xf32> -> vector<17x8xf32>
    %362 = tpu.reciprocal %360 {approx = true} : vector<17x1xf32> -> vector<17x1xf32>
    %363 = vector.broadcast %362 : vector<17x1xf32> to vector<17x8xf32>
    %364 = arith.mulf %361, %363 : vector<17x8xf32>
    %365 = vector.extract_strided_slice %319 {offsets = [0, 24], sizes = [17, 8], strides = [1, 1]} : vector<17x96xf32> to vector<17x8xf32>
    %366 = vector.extract_strided_slice %319 {offsets = [0, 56], sizes = [17, 8], strides = [1, 1]} : vector<17x96xf32> to vector<17x8xf32>
    %367 = vector.extract_strided_slice %319 {offsets = [0, 88], sizes = [17, 8], strides = [1, 1]} : vector<17x96xf32> to vector<17x8xf32>
    %cst_141 = arith.constant dense<0.000000e+00> : vector<17x17xf32>
    %368 = tpu.matmul %365, %366, %cst_141 {dimension_numbers = #tpu.dot_dimension_numbers<[1], [1], [0], [0], [0, 0, 1, 0], [], []>} : vector<17x8xf32>, vector<17x8xf32>, vector<17x17xf32> -> vector<17x17xf32>
    %cst_142 = arith.constant dense<0xFF800000> : vector<17xf32>
    %369 = vector.multi_reduction <maximumf>, %368, %cst_142 [1] : vector<17x17xf32> to vector<17xf32>
    %370 = vector.shape_cast %369 : vector<17xf32> to vector<17x1xf32>
    %371 = vector.broadcast %370 : vector<17x1xf32> to vector<17x17xf32>
    %372 = arith.subf %368, %371 : vector<17x17xf32>
    %373 = math.exp %372 : vector<17x17xf32>
    %cst_143 = arith.constant dense<0.000000e+00> : vector<17xf32>
    %374 = vector.multi_reduction <add>, %373, %cst_143 [1] : vector<17x17xf32> to vector<17xf32>
    %375 = vector.shape_cast %374 : vector<17xf32> to vector<17x1xf32>
    %cst_144 = arith.constant dense<0.000000e+00> : vector<17x8xf32>
    %376 = tpu.matmul %373, %367, %cst_144 {dimension_numbers = #tpu.dot_dimension_numbers<[1], [0], [0], [1], [0, 0, 1, 1], [], []>} : vector<17x17xf32>, vector<17x8xf32>, vector<17x8xf32> -> vector<17x8xf32>
    %377 = tpu.reciprocal %375 {approx = true} : vector<17x1xf32> -> vector<17x1xf32>
    %378 = vector.broadcast %377 : vector<17x1xf32> to vector<17x8xf32>
    %379 = arith.mulf %376, %378 : vector<17x8xf32>
    %380 = tpu.concatenate %334, %349, %364, %379 in 1 : vector<17x8xf32>, vector<17x8xf32>, vector<17x8xf32>, vector<17x8xf32> -> vector<17x32xf32>
    %381 = tpu.concatenate %318, %380 in 0 : vector<17x32xf32>, vector<17x32xf32> -> vector<34x32xf32>
    %c1_145 = arith.constant 1 : index
    %c0_146 = arith.constant 0 : index
    %c0_147 = arith.constant 0 : index
    %382 = vector.load %arg8[%c1_145, %c0_146, %c0_147] : memref<2x32x32xf32, #tpu.memory_space<vmem>>, vector<1x32x32xf32>
    %383 = vector.shape_cast %382 : vector<1x32x32xf32> to vector<32x32xf32>
    %cst_148 = arith.constant dense<0.000000e+00> : vector<34x32xf32>
    %384 = tpu.matmul %381, %383, %cst_148 {dimension_numbers = #tpu.dot_dimension_numbers<[1], [0], [0], [1], [0, 0, 1, 1], [], []>} : vector<34x32xf32>, vector<32x32xf32>, vector<34x32xf32> -> vector<34x32xf32>
    %385 = arith.addf %225, %384 : vector<34x32xf32>
    %c1_149 = arith.constant 1 : index
    %c0_150 = arith.constant 0 : index
    %c0_151 = arith.constant 0 : index
    %386 = vector.load %arg9[%c1_149, %c0_150, %c0_151] : memref<2x1x32xf32, #tpu.memory_space<vmem>>, vector<1x1x32xf32>
    %387 = vector.shape_cast %386 : vector<1x1x32xf32> to vector<1x32xf32>
    %388 = vector.broadcast %387 : vector<1x32xf32> to vector<34x32xf32>
    %389 = arith.addf %385, %388 : vector<34x32xf32>
    %c1_152 = arith.constant 1 : index
    %c0_153 = arith.constant 0 : index
    %c0_154 = arith.constant 0 : index
    %390 = vector.load %arg10[%c1_152, %c0_153, %c0_154] : memref<2x1x32xf32, #tpu.memory_space<vmem>>, vector<1x1x32xf32>
    %391 = vector.shape_cast %390 : vector<1x1x32xf32> to vector<1x32xf32>
    %c1_155 = arith.constant 1 : index
    %c0_156 = arith.constant 0 : index
    %c0_157 = arith.constant 0 : index
    %392 = vector.load %arg11[%c1_155, %c0_156, %c0_157] : memref<2x1x32xf32, #tpu.memory_space<vmem>>, vector<1x1x32xf32>
    %393 = vector.shape_cast %392 : vector<1x1x32xf32> to vector<1x32xf32>
    %cst_158 = arith.constant dense<0.000000e+00> : vector<34xf32>
    %394 = vector.multi_reduction <add>, %389, %cst_158 [1] : vector<34x32xf32> to vector<34xf32>
    %395 = vector.shape_cast %394 : vector<34xf32> to vector<34x1xf32>
    %cst_159 = arith.constant 3.200000e+01 : f32
    %396 = vector.broadcast %cst_159 : f32 to vector<34x1xf32>
    %397 = arith.divf %395, %396 : vector<34x1xf32>
    %398 = vector.broadcast %397 : vector<34x1xf32> to vector<34x32xf32>
    %399 = arith.subf %389, %398 : vector<34x32xf32>
    %400 = arith.mulf %399, %399 : vector<34x32xf32>
    %cst_160 = arith.constant dense<0.000000e+00> : vector<34xf32>
    %401 = vector.multi_reduction <add>, %400, %cst_160 [1] : vector<34x32xf32> to vector<34xf32>
    %402 = vector.shape_cast %401 : vector<34xf32> to vector<34x1xf32>
    %cst_161 = arith.constant 3.200000e+01 : f32
    %403 = vector.broadcast %cst_161 : f32 to vector<34x1xf32>
    %404 = arith.divf %402, %403 : vector<34x1xf32>
    %cst_162 = arith.constant 9.99999997E-7 : f32
    %405 = vector.broadcast %cst_162 : f32 to vector<34x1xf32>
    %406 = arith.addf %404, %405 : vector<34x1xf32>
    %407 = math.rsqrt %406 : vector<34x1xf32>
    %408 = vector.broadcast %407 : vector<34x1xf32> to vector<34x32xf32>
    %409 = arith.mulf %399, %408 : vector<34x32xf32>
    %410 = vector.broadcast %391 : vector<1x32xf32> to vector<34x32xf32>
    %411 = arith.mulf %409, %410 : vector<34x32xf32>
    %412 = vector.broadcast %393 : vector<1x32xf32> to vector<34x32xf32>
    %413 = arith.addf %411, %412 : vector<34x32xf32>
    %c1_163 = arith.constant 1 : index
    %c0_164 = arith.constant 0 : index
    %c0_165 = arith.constant 0 : index
    %414 = vector.load %arg12[%c1_163, %c0_164, %c0_165] : memref<2x32x64xf32, #tpu.memory_space<vmem>>, vector<1x32x64xf32>
    %415 = vector.shape_cast %414 : vector<1x32x64xf32> to vector<32x64xf32>
    %cst_166 = arith.constant dense<0.000000e+00> : vector<34x64xf32>
    %416 = tpu.matmul %413, %415, %cst_166 {dimension_numbers = #tpu.dot_dimension_numbers<[1], [0], [0], [1], [0, 0, 1, 1], [], []>} : vector<34x32xf32>, vector<32x64xf32>, vector<34x64xf32> -> vector<34x64xf32>
    %c1_167 = arith.constant 1 : index
    %c0_168 = arith.constant 0 : index
    %c0_169 = arith.constant 0 : index
    %417 = vector.load %arg13[%c1_167, %c0_168, %c0_169] : memref<2x1x64xf32, #tpu.memory_space<vmem>>, vector<1x1x64xf32>
    %418 = vector.shape_cast %417 : vector<1x1x64xf32> to vector<1x64xf32>
    %419 = vector.broadcast %418 : vector<1x64xf32> to vector<34x64xf32>
    %420 = arith.addf %416, %419 : vector<34x64xf32>
    %cst_170 = arith.constant 5.000000e-01 : f32
    %421 = vector.broadcast %cst_170 : f32 to vector<34x64xf32>
    %422 = arith.mulf %421, %420 : vector<34x64xf32>
    %cst_171 = arith.constant 4.471500e-02 : f32
    %423 = vector.broadcast %cst_171 : f32 to vector<34x64xf32>
    %424 = arith.mulf %423, %420 : vector<34x64xf32>
    %425 = arith.mulf %424, %420 : vector<34x64xf32>
    %426 = arith.mulf %425, %420 : vector<34x64xf32>
    %427 = arith.addf %420, %426 : vector<34x64xf32>
    %cst_172 = arith.constant 0.797884583 : f32
    %428 = vector.broadcast %cst_172 : f32 to vector<34x64xf32>
    %429 = arith.mulf %428, %427 : vector<34x64xf32>
    %430 = math.tanh %429 : vector<34x64xf32>
    %cst_173 = arith.constant 1.000000e+00 : f32
    %431 = vector.broadcast %cst_173 : f32 to vector<34x64xf32>
    %432 = arith.addf %431, %430 : vector<34x64xf32>
    %433 = arith.mulf %422, %432 : vector<34x64xf32>
    %c1_174 = arith.constant 1 : index
    %c0_175 = arith.constant 0 : index
    %c0_176 = arith.constant 0 : index
    %434 = vector.load %arg14[%c1_174, %c0_175, %c0_176] : memref<2x64x32xf32, #tpu.memory_space<vmem>>, vector<1x64x32xf32>
    %435 = vector.shape_cast %434 : vector<1x64x32xf32> to vector<64x32xf32>
    %cst_177 = arith.constant dense<0.000000e+00> : vector<34x32xf32>
    %436 = tpu.matmul %433, %435, %cst_177 {dimension_numbers = #tpu.dot_dimension_numbers<[1], [0], [0], [1], [0, 0, 1, 1], [], []>} : vector<34x64xf32>, vector<64x32xf32>, vector<34x32xf32> -> vector<34x32xf32>
    %437 = arith.addf %389, %436 : vector<34x32xf32>
    %c1_178 = arith.constant 1 : index
    %c0_179 = arith.constant 0 : index
    %c0_180 = arith.constant 0 : index
    %438 = vector.load %arg15[%c1_178, %c0_179, %c0_180] : memref<2x1x32xf32, #tpu.memory_space<vmem>>, vector<1x1x32xf32>
    %439 = vector.shape_cast %438 : vector<1x1x32xf32> to vector<1x32xf32>
    %440 = vector.broadcast %439 : vector<1x32xf32> to vector<34x32xf32>
    %441 = arith.addf %437, %440 : vector<34x32xf32>
    %442 = vector.extract_strided_slice %441 {offsets = [0, 0], sizes = [1, 32], strides = [1, 1]} : vector<34x32xf32> to vector<1x32xf32>
    %443 = vector.extract_strided_slice %441 {offsets = [17, 0], sizes = [1, 32], strides = [1, 1]} : vector<34x32xf32> to vector<1x32xf32>
    %444 = tpu.concatenate %442, %443 in 0 : vector<1x32xf32>, vector<1x32xf32> -> vector<2x32xf32>
    %c0_181 = arith.constant 0 : index
    %c0_182 = arith.constant 0 : index
    %445 = vector.load %arg16[%c0_181, %c0_182] : memref<1x32xf32, #tpu.memory_space<vmem>>, vector<1x32xf32>
    %c0_183 = arith.constant 0 : index
    %c0_184 = arith.constant 0 : index
    %446 = vector.load %arg17[%c0_183, %c0_184] : memref<1x32xf32, #tpu.memory_space<vmem>>, vector<1x32xf32>
    %cst_185 = arith.constant dense<0.000000e+00> : vector<2xf32>
    %447 = vector.multi_reduction <add>, %444, %cst_185 [1] : vector<2x32xf32> to vector<2xf32>
    %448 = vector.shape_cast %447 : vector<2xf32> to vector<2x1xf32>
    %cst_186 = arith.constant 3.200000e+01 : f32
    %449 = vector.broadcast %cst_186 : f32 to vector<2x1xf32>
    %450 = arith.divf %448, %449 : vector<2x1xf32>
    %451 = vector.broadcast %450 : vector<2x1xf32> to vector<2x32xf32>
    %452 = arith.subf %444, %451 : vector<2x32xf32>
    %453 = arith.mulf %452, %452 : vector<2x32xf32>
    %cst_187 = arith.constant dense<0.000000e+00> : vector<2xf32>
    %454 = vector.multi_reduction <add>, %453, %cst_187 [1] : vector<2x32xf32> to vector<2xf32>
    %455 = vector.shape_cast %454 : vector<2xf32> to vector<2x1xf32>
    %cst_188 = arith.constant 3.200000e+01 : f32
    %456 = vector.broadcast %cst_188 : f32 to vector<2x1xf32>
    %457 = arith.divf %455, %456 : vector<2x1xf32>
    %cst_189 = arith.constant 9.99999997E-7 : f32
    %458 = vector.broadcast %cst_189 : f32 to vector<2x1xf32>
    %459 = arith.addf %457, %458 : vector<2x1xf32>
    %460 = math.rsqrt %459 : vector<2x1xf32>
    %461 = vector.broadcast %460 : vector<2x1xf32> to vector<2x32xf32>
    %462 = arith.mulf %452, %461 : vector<2x32xf32>
    %463 = vector.broadcast %445 : vector<1x32xf32> to vector<2x32xf32>
    %464 = arith.mulf %462, %463 : vector<2x32xf32>
    %465 = vector.broadcast %446 : vector<1x32xf32> to vector<2x32xf32>
    %466 = arith.addf %464, %465 : vector<2x32xf32>
    %c0_190 = arith.constant 0 : index
    %c0_191 = arith.constant 0 : index
    %467 = vector.load %arg18[%c0_190, %c0_191] : memref<32x10xf32, #tpu.memory_space<vmem>>, vector<32x10xf32>
    %cst_192 = arith.constant dense<0.000000e+00> : vector<2x10xf32>
    %468 = tpu.matmul %466, %467, %cst_192 {dimension_numbers = #tpu.dot_dimension_numbers<[1], [0], [0], [1], [0, 0, 1, 1], [], []>} : vector<2x32xf32>, vector<32x10xf32>, vector<2x10xf32> -> vector<2x10xf32>
    %c0_193 = arith.constant 0 : index
    %c0_194 = arith.constant 0 : index
    %469 = vector.load %arg19[%c0_193, %c0_194] : memref<1x10xf32, #tpu.memory_space<vmem>>, vector<1x10xf32>
    %470 = vector.broadcast %469 : vector<1x10xf32> to vector<2x10xf32>
    %471 = arith.addf %468, %470 : vector<2x10xf32>
    %c0_195 = arith.constant 0 : index
    %c0_196 = arith.constant 0 : index
    %c0_197 = arith.constant 0 : index
    %472 = vector.load %arg20[%c0_195, %c0_196, %c0_197] : memref<1x2x10xf32, #tpu.memory_space<vmem>>, vector<1x2x10xf32>
    %473 = vector.shape_cast %472 : vector<1x2x10xf32> to vector<2x10xf32>
    %474 = vector.shape_cast %471 : vector<2x10xf32> to vector<1x2x10xf32>
    tpu.vector_store %arg20[%c0_195, %c0_196, %c0_197], %474 {strides = array<i32>} : memref<1x2x10xf32, #tpu.memory_space<vmem>>, vector<1x2x10xf32>,
    return
  }
  func.func @transform_0(%arg0: i32) -> (i32, i32, i32) {
    %c0_i32 = arith.constant 0 : i32
    %c0_i32_0 = arith.constant 0 : i32
    %c0_i32_1 = arith.constant 0 : i32
    return %arg0, %c0_i32, %c0_i32_0 : i32, i32, i32
  }
  func.func @transform_1(%arg0: i32) -> (i32, i32) {
    %c0_i32 = arith.constant 0 : i32
    %c0_i32_0 = arith.constant 0 : i32
    %c0_i32_1 = arith.constant 0 : i32
    return %c0_i32, %c0_i32_0 : i32, i32
  }
  func.func @transform_2(%arg0: i32) -> (i32, i32) {
    %c0_i32 = arith.constant 0 : i32
    %c0_i32_0 = arith.constant 0 : i32
    %c0_i32_1 = arith.constant 0 : i32
    return %c0_i32, %c0_i32_0 : i32, i32
  }
  func.func @transform_3(%arg0: i32) -> (i32, i32, i32) {
    %c0_i32 = arith.constant 0 : i32
    %c0_i32_0 = arith.constant 0 : i32
    %c0_i32_1 = arith.constant 0 : i32
    %c0_i32_2 = arith.constant 0 : i32
    return %c0_i32, %c0_i32_0, %c0_i32_1 : i32, i32, i32
  }
  func.func @transform_4(%arg0: i32) -> (i32, i32, i32) {
    %c0_i32 = arith.constant 0 : i32
    %c0_i32_0 = arith.constant 0 : i32
    %c0_i32_1 = arith.constant 0 : i32
    %c0_i32_2 = arith.constant 0 : i32
    return %c0_i32, %c0_i32_0, %c0_i32_1 : i32, i32, i32
  }
  func.func @transform_5(%arg0: i32) -> (i32, i32, i32) {
    %c0_i32 = arith.constant 0 : i32
    %c0_i32_0 = arith.constant 0 : i32
    %c0_i32_1 = arith.constant 0 : i32
    %c0_i32_2 = arith.constant 0 : i32
    return %c0_i32, %c0_i32_0, %c0_i32_1 : i32, i32, i32
  }
  func.func @transform_6(%arg0: i32) -> (i32, i32, i32) {
    %c0_i32 = arith.constant 0 : i32
    %c0_i32_0 = arith.constant 0 : i32
    %c0_i32_1 = arith.constant 0 : i32
    %c0_i32_2 = arith.constant 0 : i32
    return %c0_i32, %c0_i32_0, %c0_i32_1 : i32, i32, i32
  }
  func.func @transform_7(%arg0: i32) -> (i32, i32, i32) {
    %c0_i32 = arith.constant 0 : i32
    %c0_i32_0 = arith.constant 0 : i32
    %c0_i32_1 = arith.constant 0 : i32
    %c0_i32_2 = arith.constant 0 : i32
    return %c0_i32, %c0_i32_0, %c0_i32_1 : i32, i32, i32
  }
  func.func @transform_8(%arg0: i32) -> (i32, i32, i32) {
    %c0_i32 = arith.constant 0 : i32
    %c0_i32_0 = arith.constant 0 : i32
    %c0_i32_1 = arith.constant 0 : i32
    %c0_i32_2 = arith.constant 0 : i32
    return %c0_i32, %c0_i32_0, %c0_i32_1 : i32, i32, i32
  }
  func.func @transform_9(%arg0: i32) -> (i32, i32, i32) {
    %c0_i32 = arith.constant 0 : i32
    %c0_i32_0 = arith.constant 0 : i32
    %c0_i32_1 = arith.constant 0 : i32
    %c0_i32_2 = arith.constant 0 : i32
    return %c0_i32, %c0_i32_0, %c0_i32_1 : i32, i32, i32
  }
  func.func @transform_10(%arg0: i32) -> (i32, i32, i32) {
    %c0_i32 = arith.constant 0 : i32
    %c0_i32_0 = arith.constant 0 : i32
    %c0_i32_1 = arith.constant 0 : i32
    %c0_i32_2 = arith.constant 0 : i32
    return %c0_i32, %c0_i32_0, %c0_i32_1 : i32, i32, i32
  }
  func.func @transform_11(%arg0: i32) -> (i32, i32, i32) {
    %c0_i32 = arith.constant 0 : i32
    %c0_i32_0 = arith.constant 0 : i32
    %c0_i32_1 = arith.constant 0 : i32
    %c0_i32_2 = arith.constant 0 : i32
    return %c0_i32, %c0_i32_0, %c0_i32_1 : i32, i32, i32
  }
  func.func @transform_12(%arg0: i32) -> (i32, i32, i32) {
    %c0_i32 = arith.constant 0 : i32
    %c0_i32_0 = arith.constant 0 : i32
    %c0_i32_1 = arith.constant 0 : i32
    %c0_i32_2 = arith.constant 0 : i32
    return %c0_i32, %c0_i32_0, %c0_i32_1 : i32, i32, i32
  }
  func.func @transform_13(%arg0: i32) -> (i32, i32, i32) {
    %c0_i32 = arith.constant 0 : i32
    %c0_i32_0 = arith.constant 0 : i32
    %c0_i32_1 = arith.constant 0 : i32
    %c0_i32_2 = arith.constant 0 : i32
    return %c0_i32, %c0_i32_0, %c0_i32_1 : i32, i32, i32
  }
  func.func @transform_14(%arg0: i32) -> (i32, i32, i32) {
    %c0_i32 = arith.constant 0 : i32
    %c0_i32_0 = arith.constant 0 : i32
    %c0_i32_1 = arith.constant 0 : i32
    %c0_i32_2 = arith.constant 0 : i32
    return %c0_i32, %c0_i32_0, %c0_i32_1 : i32, i32, i32
  }
  func.func @transform_15(%arg0: i32) -> (i32, i32) {
    %c0_i32 = arith.constant 0 : i32
    %c0_i32_0 = arith.constant 0 : i32
    %c0_i32_1 = arith.constant 0 : i32
    return %c0_i32, %c0_i32_0 : i32, i32
  }
  func.func @transform_16(%arg0: i32) -> (i32, i32) {
    %c0_i32 = arith.constant 0 : i32
    %c0_i32_0 = arith.constant 0 : i32
    %c0_i32_1 = arith.constant 0 : i32
    return %c0_i32, %c0_i32_0 : i32, i32
  }
  func.func @transform_17(%arg0: i32) -> (i32, i32) {
    %c0_i32 = arith.constant 0 : i32
    %c0_i32_0 = arith.constant 0 : i32
    %c0_i32_1 = arith.constant 0 : i32
    return %c0_i32, %c0_i32_0 : i32, i32
  }
  func.func @transform_18(%arg0: i32) -> (i32, i32) {
    %c0_i32 = arith.constant 0 : i32
    %c0_i32_0 = arith.constant 0 : i32
    %c0_i32_1 = arith.constant 0 : i32
    return %c0_i32, %c0_i32_0 : i32, i32
  }
  func.func @transform_19(%arg0: i32) -> (i32, i32, i32) {
    %c0_i32 = arith.constant 0 : i32
    %c0_i32_0 = arith.constant 0 : i32
    %c0_i32_1 = arith.constant 0 : i32
    return %arg0, %c0_i32, %c0_i32_0 : i32, i32, i32
  }
}

</mosaic_0001>

<llo_original>
// kernel: tile.9
$region0: #{tile.9}
  %s0 = inlined_call_operand.vmem [shape: f32[2,17,32], index: 0, kind: input, shape index: {}]
  %s1 = inlined_call_operand.vmem [shape: f32[34,32], index: 1, kind: output, shape index: {}]
  %v2 = vld [vmem:[%s0] sm:$0xff]
  %vm3 = vcmask 261120
  %4 = vst.msk [vmem:[%s1] sm:$0xff] %vm3, %v2
  %s5 = scalar_lea.vmem %s0, 8
  %v6 = vld [vmem:[%s5] sm:$0xff]
  %vm7 = vcmask 261120
  %s8 = scalar_lea.vmem %s1, 8
  %9 = vst.msk [vmem:[%s8] sm:$0xff] %vm7, %v6
  %s10 = scalar_lea.vmem %s0, 16
  %s11 = smov 3
  %v12 = vld [vmem:[%s10] ss:$8 sm:%s11]
  %vm13 = vcmask 261120
  %s14 = scalar_lea.vmem %s1, 16
  %15 = vst.msk [vmem:[%s14] sm:$0x3] %vm13, %v12
  %s16 = scalar_lea.vmem %s0, 25
  %v17 = vld [vmem:[%s16] sm:$0xff]
  %vm18 = vcmask 261120
  %s19 = scalar_lea.vmem %s1, 18
  %20 = vst.msk [vmem:[%s19] sm:$0xff] %vm18, %v17
  %s21 = scalar_lea.vmem %s0, 33
  %v22 = vld [vmem:[%s21] sm:$0xff]
  %vm23 = vcmask 261120
  %s24 = scalar_lea.vmem %s1, 26
  %25 = vst.msk [vmem:[%s24] sm:$0xff] %vm23, %v22

// kernel: vit_forward.1
$region0: #{vit_forward.1}
  #allocation0 [shape = 'u32[]', space=smem, size = 0x4, offset = 0x4, fixed_abs, tag = 'smem constant byte address 0x4 - core index']
  #allocation1 [shape = 'u32[144,128]{1,0:T(1,128)}', space=vmem, size = 0x12000, scoped, tag = 'internal scratch']
  %s0 = inlined_call_operand.vmem [shape: f32[2,17,48], index: 0, kind: input, shape index: {}]
  %s1 = inlined_call_operand.vmem [shape: f32[48,32], index: 1, kind: input, shape index: {}]
  %s2 = inlined_call_operand.vmem [shape: f32[34,32], index: 2, kind: input, shape index: {}]
  %s3 = inlined_call_operand.vmem [shape: f32[2,1,32], index: 3, kind: input, shape index: {}]
  %s4 = inlined_call_operand.vmem [shape: f32[2,1,32], index: 4, kind: input, shape index: {}]
  %s5 = inlined_call_operand.vmem [shape: f32[2,32,96], index: 5, kind: input, shape index: {}]
  %s6 = inlined_call_operand.vmem [shape: f32[2,1,96], index: 6, kind: input, shape index: {}]
  %s7 = inlined_call_operand.vmem [shape: f32[2,32,32], index: 7, kind: input, shape index: {}]
  %s8 = inlined_call_operand.vmem [shape: f32[2,1,32], index: 8, kind: input, shape index: {}]
  %s9 = inlined_call_operand.vmem [shape: f32[2,1,32], index: 9, kind: input, shape index: {}]
  %s10 = inlined_call_operand.vmem [shape: f32[2,1,32], index: 10, kind: input, shape index: {}]
  %s11 = inlined_call_operand.vmem [shape: f32[2,32,64], index: 11, kind: input, shape index: {}]
  %s12 = inlined_call_operand.vmem [shape: f32[2,1,64], index: 12, kind: input, shape index: {}]
  %s13 = inlined_call_operand.vmem [shape: f32[2,64,32], index: 13, kind: input, shape index: {}]
  %s14 = inlined_call_operand.vmem [shape: f32[2,1,32], index: 14, kind: input, shape index: {}]
  %s15 = inlined_call_operand.vmem [shape: f32[1,32], index: 15, kind: input, shape index: {}]
  %s16 = inlined_call_operand.vmem [shape: f32[1,32], index: 16, kind: input, shape index: {}]
  %s17 = inlined_call_operand.vmem [shape: f32[32,10], index: 17, kind: input, shape index: {}]
  %s18 = inlined_call_operand.vmem [shape: f32[1,10], index: 18, kind: input, shape index: {}]
  %s19 = inlined_call_operand.hbm [shape: f32[1,2,10], index: 19, kind: output, shape index: {}]
  %s20 = sld [smem:[#allocation0]]
  $region86: #{vit_forward.1} parent=0
    _
  %s22 = ssub.s32 1, %s20
  %s23 = scalar_select 0, %s22, %s20
  $region1: #{vit_forward.1} parent=0
    #allocation2 [shape = 'u8[1024]{0}', space=vmem, size = 0x400, scoped, tag = 'output window, operand 0, single buffered']
    #allocation3 [shape = 's32[1]{0}', space=sflag, size = 0x4, scoped, tag = 'scoped memory for vit_forward.1']
    %24 = vsyncpa [#allocation3], 0
    // Predicated region
    $region2: #{vit_forward.1} parent=1 // pred_check
      _
    $region3: #{vit_forward.1} parent=1 // pred_check_branch
      %26 = sbr.rel (0) target = $region5
    $region4: #{vit_forward.1} parent=1 // pred_region
      _
    $region5: #{vit_forward.1} parent=1 // pred_fallthru
      _
    // Predicated region
    $region6: #{vit_forward.1} parent=1 // pred_check
      _
    $region7: #{vit_forward.1} parent=1 // pred_check_branch
      %28 = sbr.rel (0) target = $region9
    $region8: #{vit_forward.1} parent=1 // pred_region
      _
    $region9: #{vit_forward.1} parent=1 // pred_fallthru
      _
    // Predicated region
    $region10: #{vit_forward.1} parent=1 // pred_check
      _
    $region11: #{vit_forward.1} parent=1 // pred_check_branch
      %30 = sbr.rel (0) target = $region13
    $region12: #{vit_forward.1} parent=1 // pred_region
      _
    $region13: #{vit_forward.1} parent=1 // pred_fallthru
      _
    // Predicated region
    $region14: #{vit_forward.1} parent=1 // pred_check
      _
    $region15: #{vit_forward.1} parent=1 // pred_check_branch
      %32 = sbr.rel (0) target = $region17
    $region16: #{vit_forward.1} parent=1 // pred_region
      _
    $region17: #{vit_forward.1} parent=1 // pred_fallthru
      _
    // Predicated region
    $region18: #{vit_forward.1} parent=1 // pred_check
      _
    $region19: #{vit_forward.1} parent=1 // pred_check_branch
      %34 = sbr.rel (0) target = $region21
    $region20: #{vit_forward.1} parent=1 // pred_region
      _
    $region21: #{vit_forward.1} parent=1 // pred_fallthru
      _
    // Predicated region
    $region22: #{vit_forward.1} parent=1 // pred_check
      _
    $region23: #{vit_forward.1} parent=1 // pred_check_branch
      %36 = sbr.rel (0) target = $region25
    $region24: #{vit_forward.1} parent=1 // pred_region
      _
    $region25: #{vit_forward.1} parent=1 // pred_fallthru
      _
    // Predicated region
    $region26: #{vit_forward.1} parent=1 // pred_check
      _
    $region27: #{vit_forward.1} parent=1 // pred_check_branch
      %38 = sbr.rel (0) target = $region29
    $region28: #{vit_forward.1} parent=1 // pred_region
      _
    $region29: #{vit_forward.1} parent=1 // pred_fallthru
      _
    // Predicated region
    $region30: #{vit_forward.1} parent=1 // pred_check
      _
    $region31: #{vit_forward.1} parent=1 // pred_check_branch
      %40 = sbr.rel (0) target = $region33
    $region32: #{vit_forward.1} parent=1 // pred_region
      _
    $region33: #{vit_forward.1} parent=1 // pred_fallthru
      _
    // Predicated region
    $region34: #{vit_forward.1} parent=1 // pred_check
      _
    $region35: #{vit_forward.1} parent=1 // pred_check_branch
      %42 = sbr.rel (0) target = $region37
    $region36: #{vit_forward.1} parent=1 // pred_region
      _
    $region37: #{vit_forward.1} parent=1 // pred_fallthru
      _
    // Predicated region
    $region38: #{vit_forward.1} parent=1 // pred_check
      _
    $region39: #{vit_forward.1} parent=1 // pred_check_branch
      %44 = sbr.rel (0) target = $region41
    $region40: #{vit_forward.1} parent=1 // pred_region
      _
    $region41: #{vit_forward.1} parent=1 // pred_fallthru
      _
    // Predicated region
    $region42: #{vit_forward.1} parent=1 // pred_check
      _
    $region43: #{vit_forward.1} parent=1 // pred_check_branch
      %46 = sbr.rel (0) target = $region45
    $region44: #{vit_forward.1} parent=1 // pred_region
      _
    $region45: #{vit_forward.1} parent=1 // pred_fallthru
      _
    // Predicated region
    $region46: #{vit_forward.1} parent=1 // pred_check
      _
    $region47: #{vit_forward.1} parent=1 // pred_check_branch
      %48 = sbr.rel (0) target = $region49
    $region48: #{vit_forward.1} parent=1 // pred_region
      _
    $region49: #{vit_forward.1} parent=1 // pred_fallthru
      _
    // Predicated region
    $region50: #{vit_forward.1} parent=1 // pred_check
      _
    $region51: #{vit_forward.1} parent=1 // pred_check_branch
      %50 = sbr.rel (0) target = $region53
    $region52: #{vit_forward.1} parent=1 // pred_region
      _
    $region53: #{vit_forward.1} parent=1 // pred_fallthru
      _
    // Predicated region
    $region54: #{vit_forward.1} parent=1 // pred_check
      _
    $region55: #{vit_forward.1} parent=1 // pred_check_branch
      %52 = sbr.rel (0) target = $region57
    $region56: #{vit_forward.1} parent=1 // pred_region
      _
    $region57: #{vit_forward.1} parent=1 // pred_fallthru
      _
    // Predicated region
    $region58: #{vit_forward.1} parent=1 // pred_check
      _
    $region59: #{vit_forward.1} parent=1 // pred_check_branch
      %54 = sbr.rel (0) target = $region61
    $region60: #{vit_forward.1} parent=1 // pred_region
      _
    $region61: #{vit_forward.1} parent=1 // pred_fallthru
      _
    // Predicated region
    $region62: #{vit_forward.1} parent=1 // pred_check
      _
    $region63: #{vit_forward.1} parent=1 // pred_check_branch
      %56 = sbr.rel (0) target = $region65
    $region64: #{vit_forward.1} parent=1 // pred_region
      _
    $region65: #{vit_forward.1} parent=1 // pred_fallthru
      _
    // Predicated region
    $region66: #{vit_forward.1} parent=1 // pred_check
      _
    $region67: #{vit_forward.1} parent=1 // pred_check_branch
      %58 = sbr.rel (0) target = $region69
    $region68: #{vit_forward.1} parent=1 // pred_region
      _
    $region69: #{vit_forward.1} parent=1 // pred_fallthru
      _
    // Predicated region
    $region70: #{vit_forward.1} parent=1 // pred_check
      _
    $region71: #{vit_forward.1} parent=1 // pred_check_branch
      %60 = sbr.rel (0) target = $region73
    $region72: #{vit_forward.1} parent=1 // pred_region
      _
    $region73: #{vit_forward.1} parent=1 // pred_fallthru
      _
    // Predicated region
    $region74: #{vit_forward.1} parent=1 // pred_check
      _
    $region75: #{vit_forward.1} parent=1 // pred_check_branch
      %62 = sbr.rel (0) target = $region77
    $region76: #{vit_forward.1} parent=1 // pred_region
      _
    $region77: #{vit_forward.1} parent=1 // pred_fallthru
      _
    %v63 = vld [vmem:[%s1] sm:$0xff]
    %v64 = vld [vmem:[%s1 + $0x8] sm:$0xff]
    %v65 = vld [vmem:[%s1 + $0x10] sm:$0xff]
    %v66 = vld [vmem:[%s1 + $0x18] sm:$0xff]
    %v67 = vld [vmem:[%s1 + $0x20] sm:$0xff]
    %v68 = vld [vmem:[%s1 + $0x28] sm:$0xff]
    %v69 = vld [vmem:[%s0] sm:$0xff]
    %v70 = vld [vmem:[%s0 + $0x8] sm:$0xff]
    %v71 = vld [vmem:[%s0 + $0x10] sm:$0x1]
    %vm72 = vcmask 392192
    %v74 = vsel %vm72, %v69, 0
    %v77 = vsel %vm72, %v70, 0
    %v80 = vsel %vm72, %v71, 0
    %82 = vmatprep.subr.mxu0 0.0
    %83 = vmatpush1.msra.mxu0 %v63
    %84 = vmatprep.subr.mxu0 0.0
    %85 = vmatpush1.msra.mxu0 %v64
    %86 = vmatprep.subr.mxu0 0.0
    %87 = vmatpush1.msra.mxu0 %v65
    %88 = vmatprep.subr.mxu0 0.0
    %89 = vmatpush1.msra.mxu0 %v66
    %90 = vmatprep.subr.mxu0 0.0
    %91 = vmatpush1.msra.mxu0 %v67
    %92 = vmatprep.subr.mxu0 0.0
    %93 = vmatpush1.msra.mxu0 %v68
    %94 = vmatprep.subr.mxu0 0.0
    %95 = vmatpush1.msra.mxu0 0.0
    %96 = vmatprep.subr.mxu0 0.0
    %97 = vmatpush1.msra.mxu0 0.0
    %98 = vmatprep.subr.mxu0 0.0
    %99 = vmatpush1.msra.mxu0 0.0
    %100 = vmatprep.subr.mxu0 0.0
    %101 = vmatpush1.msra.mxu0 0.0
    %102 = vmatprep.subr.mxu0 0.0
    %103 = vmatpush1.msra.mxu0 0.0
    %104 = vmatprep.subr.mxu0 0.0
    %105 = vmatpush1.msra.mxu0 0.0
    %106 = vmatprep.subr.mxu0 0.0
    %107 = vmatpush1.msra.mxu0 0.0
    %108 = vmatprep.subr.mxu0 0.0
    %109 = vmatpush1.msra.mxu0 0.0
    %110 = vmatprep.subr.mxu0 0.0
    %111 = vmatpush1.msra.mxu0 0.0
    %112 = vmatprep.subr.mxu0 0.0
    %113 = vmatpush1.msra.mxu0 0.0
    %114 = vmatprep.subr.mxu0 0.0
    %115 = vmatpush1.msra.mxu0 0.0
    %116 = vmatprep.subr.mxu0 0.0
    %117 = vmatpush1.msra.mxu0 0.0
    %118 = vmatprep.subr.mxu0 0.0
    %119 = vmatpush1.msra.mxu0 0.0
    %120 = vmatprep.subr.mxu0 0.0
    %121 = vmatpush1.msra.mxu0 0.0
    %122 = vmatprep.subr.mxu0 0.0
    %123 = vmatpush1.msra.mxu0 0.0
    %124 = vmatprep.subr.mxu0 0.0
    %125 = vmatpush1.msra.mxu0 0.0
    %126 = vmatprep.subr.mxu0 0.0
    %127 = vmatpush1.msra.mxu0 0.0
    %128 = vmatprep.subr.mxu0 0.0
    %129 = vmatpush1.msra.mxu0 0.0
    %130 = vmatprep.subr.mxu0 0.0
    %131 = vmatpush1.msra.mxu0 0.0
    %132 = vmatprep.subr.mxu0 0.0
    %133 = vmatpush1.msra.mxu0 0.0
    %134 = vmatprep.subr.mxu0 0.0
    %135 = vmatpush1.msra.mxu0 0.0
    %136 = vmatprep.subr.mxu0 0.0
    %137 = vmatpush1.msra.mxu0 0.0
    %138 = vmatprep.subr.mxu0 0.0
    %139 = vmatpush1.msra.mxu0 0.0
    %140 = vmatprep.subr.mxu0 0.0
    %141 = vmatpush1.msra.mxu0 0.0
    %142 = vmatprep.subr.mxu0 0.0
    %143 = vmatpush1.msra.mxu0 0.0
    %144 = vmatprep.subr.mxu0 0.0
    %145 = vmatpush1.msra.mxu0 0.0
    %146 = vmatprep.mubr.f32.mxu0 0.0
    %147 = vmatmul.mubr.f32.gmra.mrb[0].mxu0 %v74
    %v148 = vpop.f32.mrb[0].mxu0
    %v149 = vadd.f32 0.0, %v148
    %v150 = vpop.f32.mrb[0].mxu0
    %151 = vmatprep.mubr.f32.mxu0 0.0
    %152 = vmatmul.mubr.f32.gmra.mrb[0].mxu0 %v77
    %v153 = vpop.f32.mrb[0].mxu0
    %v154 = vadd.f32 0.0, %v153
    %v155 = vpop.f32.mrb[0].mxu0
    %156 = vmatprep.mubr.f32.mxu0 0.0
    %157 = vmatmul.mubr.f32.gmra.mrb[0].mxu0 %v80
    %v158 = vpop.f32.mrb[0].mxu0
    %v159 = vadd.f32 0.0, %v158
    %v160 = vpop.f32.mrb[0].mxu0
    %161 = vdwg.mxu0
    %s162 = scalar_lea.vmem %s0, 24
    %v163 = vld [vmem:[%s162] sm:$0xff]
    %v164 = vld [vmem:[%s162 + $0x8] sm:$0xff]
    %v165 = vld [vmem:[%s162 + $0x10] sm:$0x1]
    %v167 = vsel %vm72, %v163, 0
    %v170 = vsel %vm72, %v164, 0
    %v173 = vsel %vm72, %v165, 0
    %175 = vmatprep.subr.mxu0 0.0
    %176 = vmatpush1.msra.mxu0 %v63
    %177 = vmatprep.subr.mxu0 0.0
    %178 = vmatpush1.msra.mxu0 %v64
    %179 = vmatprep.subr.mxu0 0.0
    %180 = vmatpush1.msra.mxu0 %v65
    %181 = vmatprep.subr.mxu0 0.0
    %182 = vmatpush1.msra.mxu0 %v66
    %183 = vmatprep.subr.mxu0 0.0
    %184 = vmatpush1.msra.mxu0 %v67
    %185 = vmatprep.subr.mxu0 0.0
    %186 = vmatpush1.msra.mxu0 %v68
    %187 = vmatprep.subr.mxu0 0.0
    %188 = vmatpush1.msra.mxu0 0.0
    %189 = vmatprep.subr.mxu0 0.0
    %190 = vmatpush1.msra.mxu0 0.0
    %191 = vmatprep.subr.mxu0 0.0
    %192 = vmatpush1.msra.mxu0 0.0
    %193 = vmatprep.subr.mxu0 0.0
    %194 = vmatpush1.msra.mxu0 0.0
    %195 = vmatprep.subr.mxu0 0.0
    %196 = vmatpush1.msra.mxu0 0.0
    %197 = vmatprep.subr.mxu0 0.0
    %198 = vmatpush1.msra.mxu0 0.0
    %199 = vmatprep.subr.mxu0 0.0
    %200 = vmatpush1.msra.mxu0 0.0
    %201 = vmatprep.subr.mxu0 0.0
    %202 = vmatpush1.msra.mxu0 0.0
    %203 = vmatprep.subr.mxu0 0.0
    %204 = vmatpush1.msra.mxu0 0.0
    %205 = vmatprep.subr.mxu0 0.0
    %206 = vmatpush1.msra.mxu0 0.0
    %207 = vmatprep.subr.mxu0 0.0
    %208 = vmatpush1.msra.mxu0 0.0
    %209 = vmatprep.subr.mxu0 0.0
    %210 = vmatpush1.msra.mxu0 0.0
    %211 = vmatprep.subr.mxu0 0.0
    %212 = vmatpush1.msra.mxu0 0.0
    %213 = vmatprep.subr.mxu0 0.0
    %214 = vmatpush1.msra.mxu0 0.0
    %215 = vmatprep.subr.mxu0 0.0
    %216 = vmatpush1.msra.mxu0 0.0
    %217 = vmatprep.subr.mxu0 0.0
    %218 = vmatpush1.msra.mxu0 0.0
    %219 = vmatprep.subr.mxu0 0.0
    %220 = vmatpush1.msra.mxu0 0.0
    %221 = vmatprep.subr.mxu0 0.0
    %222 = vmatpush1.msra.mxu0 0.0
    %223 = vmatprep.subr.mxu0 0.0
    %224 = vmatpush1.msra.mxu0 0.0
    %225 = vmatprep.subr.mxu0 0.0
    %226 = vmatpush1.msra.mxu0 0.0
    %227 = vmatprep.subr.mxu0 0.0
    %228 = vmatpush1.msra.mxu0 0.0
    %229 = vmatprep.subr.mxu0 0.0
    %230 = vmatpush1.msra.mxu0 0.0
    %231 = vmatprep.subr.mxu0 0.0
    %232 = vmatpush1.msra.mxu0 0.0
    %233 = vmatprep.subr.mxu0 0.0
    %234 = vmatpush1.msra.mxu0 0.0
    %235 = vmatprep.subr.mxu0 0.0
    %236 = vmatpush1.msra.mxu0 0.0
    %237 = vmatprep.subr.mxu0 0.0
    %238 = vmatpush1.msra.mxu0 0.0
    %239 = vmatprep.mubr.f32.mxu0 0.0
    %240 = vmatmul.mubr.f32.gmra.mrb[0].mxu0 %v167
    %v241 = vpop.f32.mrb[0].mxu0
    %v242 = vadd.f32 0.0, %v241
    %v243 = vpop.f32.mrb[0].mxu0
    %244 = vmatprep.mubr.f32.mxu0 0.0
    %245 = vmatmul.mubr.f32.gmra.mrb[0].mxu0 %v170
    %v246 = vpop.f32.mrb[0].mxu0
    %v247 = vadd.f32 0.0, %v246
    %v248 = vpop.f32.mrb[0].mxu0
    %249 = vmatprep.mubr.f32.mxu0 0.0
    %250 = vmatmul.mubr.f32.gmra.mrb[0].mxu0 %v173
    %v251 = vpop.f32.mrb[0].mxu0
    %v252 = vadd.f32 0.0, %v251
    %v253 = vpop.f32.mrb[0].mxu0
    %254 = vdwg.mxu0
    %vm258 = vcmask 1040384
    %v259 = vrot.slane %v242, 7
    %v260 = vrot.slane %v247, 7
    %v261 = vsel %vm258, %v259, %v260
    %v262 = vrot.slane %v252, 7
    %v263 = vsel %vm258, %v260, %v262
    %v267 = vsel %vm258, %v159, %v259
    %v268 = vld [vmem:[%s2] sm:$0xff]
    %v269 = vld [vmem:[%s2 + $0x8] sm:$0xff]
    %v270 = vld [vmem:[%s2 + $0x10] sm:$0xff]
    %v271 = vld [vmem:[%s2 + $0x18] sm:$0xff]
    %v272 = vld [vmem:[%s2 + $0x20] sm:$0x3]
    %v273 = vadd.f32 %v149, %v268
    %v274 = vadd.f32 %v154, %v269
    %v275 = vadd.f32 %v267, %v270
    %v276 = vadd.f32 %v261, %v271
    %v277 = vadd.f32 %v263, %v272
    %v278 = vld [vmem:[%s3] sm:$0x1]
    %v279 = vld [vmem:[%s4] sm:$0x1]
    %vm280 = vcmask 261120
    %v281 = vsel %vm280, %v273, 0.0
    %282 = vadd.xlane.f32.xlu0 %v281
    %v283 = vpop.xlane.xlu0 %282
    %v284 = vsel %vm280, %v274, 0.0
    %285 = vadd.xlane.f32.xlu0 %v284
    %v286 = vpop.xlane.xlu0 %285
    %v287 = vsel %vm280, %v275, 0.0
    %288 = vadd.xlane.f32.xlu0 %v287
    %v289 = vpop.xlane.xlu0 %288
    %v290 = vsel %vm280, %v276, 0.0
    %291 = vadd.xlane.f32.xlu0 %v290
    %v292 = vpop.xlane.xlu0 %291
    %vm293 = vcmask 254976
    %v294 = vsel %vm293, %v277, 0.0
    %295 = vadd.xlane.f32.xlu0 %v294
    %v296 = vpop.xlane.xlu0 %295
    %v297 = vrcp.pop 32.0
    %v298 = vmul.f32 %v283, %v297
    %v299 = vmul.f32 %v286, %v297
    %v300 = vmul.f32 %v289, %v297
    %v301 = vmul.f32 %v292, %v297
    %v302 = vmul.f32 %v296, %v297
    %v303 = vsub.f32 %v273, %v298
    %v304 = vsub.f32 %v274, %v299
    %v305 = vsub.f32 %v275, %v300
    %v306 = vsub.f32 %v276, %v301
    %v307 = vsub.f32 %v277, %v302
    %v308 = vmul.f32 %v303, %v303
    %v309 = vmul.f32 %v304, %v304
    %v310 = vmul.f32 %v305, %v305
    %v311 = vmul.f32 %v306, %v306
    %v312 = vmul.f32 %v307, %v307
    %v313 = vsel %vm280, %v308, 0.0
    %314 = vadd.xlane.f32.xlu0 %v313
    %v315 = vpop.xlane.xlu0 %314
    %v316 = vsel %vm280, %v309, 0.0
    %317 = vadd.xlane.f32.xlu0 %v316
    %v318 = vpop.xlane.xlu0 %317
    %v319 = vsel %vm280, %v310, 0.0
    %320 = vadd.xlane.f32.xlu0 %v319
    %v321 = vpop.xlane.xlu0 %320
    %v322 = vsel %vm280, %v311, 0.0
    %323 = vadd.xlane.f32.xlu0 %v322
    %v324 = vpop.xlane.xlu0 %323
    %v325 = vsel %vm293, %v312, 0.0
    %326 = vadd.xlane.f32.xlu0 %v325
    %v327 = vpop.xlane.xlu0 %326
    %v328 = vmul.f32 %v315, %v297
    %v329 = vmul.f32 %v318, %v297
    %v330 = vmul.f32 %v321, %v297
    %v331 = vmul.f32 %v324, %v297
    %v332 = vmul.f32 %v327, %v297
    %v333 = vadd.f32 %v328, 1e-06
    %v334 = vadd.f32 %v329, 1e-06
    %v335 = vadd.f32 %v330, 1e-06
    %v336 = vadd.f32 %v331, 1e-06
    %v337 = vadd.f32 %v332, 1e-06
    %v338 = vrsqrt.pop %v333
    %v339 = vrsqrt.pop %v334
    %v340 = vrsqrt.pop %v335
    %v341 = vrsqrt.pop %v336
    %v342 = vrsqrt.pop %v337
    %v343 = vmul.f32 %v303, %v338
    %v344 = vmul.f32 %v304, %v339
    %v345 = vmul.f32 %v305, %v340
    %v346 = vmul.f32 %v306, %v341
    %v347 = vmul.f32 %v307, %v342
    %v349 = vlaneseq
    %v350 = vshrl.u32 %v349, 7
    %v351 = vsub.s32 0, %v350
    %v352 = vrot.slane %v278, %v351
    %v354 = vmul.f32 %v343, %v352
    %v355 = vmul.f32 %v344, %v352
    %v356 = vmul.f32 %v345, %v352
    %v357 = vmul.f32 %v346, %v352
    %v358 = vmul.f32 %v347, %v352
    %v360 = vlaneseq
    %v361 = vshrl.u32 %v360, 7
    %v362 = vsub.s32 0, %v361
    %v363 = vrot.slane %v279, %v362
    %v365 = vadd.f32 %v354, %v363
    %v366 = vadd.f32 %v355, %v363
    %v367 = vadd.f32 %v356, %v363
    %v368 = vadd.f32 %v357, %v363
    %v369 = vadd.f32 %v358, %v363
    %v370 = vld [vmem:[%s5] sm:$0xff]
    %v371 = vld [vmem:[%s5 + $0x8] sm:$0xff]
    %v372 = vld [vmem:[%s5 + $0x10] sm:$0xff]
    %v373 = vld [vmem:[%s5 + $0x18] sm:$0xff]
    %v374 = vld [vmem:[%s6] sm:$0x1]
    %v376 = vlaneseq
    %v377 = vshrl.u32 %v376, 7
    %v378 = vsub.s32 0, %v377
    %v379 = vrot.slane %v374, %v378
    %v382 = vsel %vm280, %v365, 0
    %v385 = vsel %vm280, %v366, 0
    %v388 = vsel %vm280, %v367, 0
    %v391 = vsel %vm280, %v368, 0
    %v394 = vsel %vm280, %v369, 0
    %396 = vmatprep.subr.mxu0 0.0
    %397 = vmatpush1.msra.mxu0 %v370
    %398 = vmatprep.subr.mxu0 0.0
    %399 = vmatpush1.msra.mxu0 %v371
    %400 = vmatprep.subr.mxu0 0.0
    %401 = vmatpush1.msra.mxu0 %v372
    %402 = vmatprep.subr.mxu0 0.0
    %403 = vmatpush1.msra.mxu0 %v373
    %404 = vmatprep.subr.mxu0 0.0
    %405 = vmatpush1.msra.mxu0 0.0
    %406 = vmatprep.subr.mxu0 0.0
    %407 = vmatpush1.msra.mxu0 0.0
    %408 = vmatprep.subr.mxu0 0.0
    %409 = vmatpush1.msra.mxu0 0.0
    %410 = vmatprep.subr.mxu0 0.0
    %411 = vmatpush1.msra.mxu0 0.0
    %412 = vmatprep.subr.mxu0 0.0
    %413 = vmatpush1.msra.mxu0 0.0
    %414 = vmatprep.subr.mxu0 0.0
    %415 = vmatpush1.msra.mxu0 0.0
    %416 = vmatprep.subr.mxu0 0.0
    %417 = vmatpush1.msra.mxu0 0.0
    %418 = vmatprep.subr.mxu0 0.0
    %419 = vmatpush1.msra.mxu0 0.0
    %420 = vmatprep.subr.mxu0 0.0
    %421 = vmatpush1.msra.mxu0 0.0
    %422 = vmatprep.subr.mxu0 0.0
    %423 = vmatpush1.msra.mxu0 0.0
    %424 = vmatprep.subr.mxu0 0.0
    %425 = vmatpush1.msra.mxu0 0.0
    %426 = vmatprep.subr.mxu0 0.0
    %427 = vmatpush1.msra.mxu0 0.0
    %428 = vmatprep.subr.mxu0 0.0
    %429 = vmatpush1.msra.mxu0 0.0
    %430 = vmatprep.subr.mxu0 0.0
    %431 = vmatpush1.msra.mxu0 0.0
    %432 = vmatprep.subr.mxu0 0.0
    %433 = vmatpush1.msra.mxu0 0.0
    %434 = vmatprep.subr.mxu0 0.0
    %435 = vmatpush1.msra.mxu0 0.0
    %436 = vmatprep.subr.mxu0 0.0
    %437 = vmatpush1.msra.mxu0 0.0
    %438 = vmatprep.subr.mxu0 0.0
    %439 = vmatpush1.msra.mxu0 0.0
    %440 = vmatprep.subr.mxu0 0.0
    %441 = vmatpush1.msra.mxu0 0.0
    %442 = vmatprep.subr.mxu0 0.0
    %443 = vmatpush1.msra.mxu0 0.0
    %444 = vmatprep.subr.mxu0 0.0
    %445 = vmatpush1.msra.mxu0 0.0
    %446 = vmatprep.subr.mxu0 0.0
    %447 = vmatpush1.msra.mxu0 0.0
    %448 = vmatprep.subr.mxu0 0.0
    %449 = vmatpush1.msra.mxu0 0.0
    %450 = vmatprep.subr.mxu0 0.0
    %451 = vmatpush1.msra.mxu0 0.0
    %452 = vmatprep.subr.mxu0 0.0
    %453 = vmatpush1.msra.mxu0 0.0
    %454 = vmatprep.subr.mxu0 0.0
    %455 = vmatpush1.msra.mxu0 0.0
    %456 = vmatprep.subr.mxu0 0.0
    %457 = vmatpush1.msra.mxu0 0.0
    %458 = vmatprep.subr.mxu0 0.0
    %459 = vmatpush1.msra.mxu0 0.0
    %460 = vmatprep.mubr.f32.mxu0 0.0
    %461 = vmatmul.mubr.f32.gmra.mrb[0].mxu0 %v382
    %v462 = vpop.f32.mrb[0].mxu0
    %v463 = vadd.f32 %v379, %v462
    %v464 = vpop.f32.mrb[0].mxu0
    %465 = vmatprep.mubr.f32.mxu0 0.0
    %466 = vmatmul.mubr.f32.gmra.mrb[0].mxu0 %v385
    %v467 = vpop.f32.mrb[0].mxu0
    %v468 = vadd.f32 %v379, %v467
    %v469 = vpop.f32.mrb[0].mxu0
    %470 = vmatprep.mubr.f32.mxu0 0.0
    %471 = vmatmul.mubr.f32.gmra.mrb[0].mxu0 %v388
    %v472 = vpop.f32.mrb[0].mxu0
    %v473 = vadd.f32 %v379, %v472
    %v474 = vpop.f32.mrb[0].mxu0
    %475 = vmatprep.mubr.f32.mxu0 0.0
    %476 = vmatmul.mubr.f32.gmra.mrb[0].mxu0 %v391
    %v477 = vpop.f32.mrb[0].mxu0
    %v478 = vadd.f32 %v379, %v477
    %v479 = vpop.f32.mrb[0].mxu0
    %480 = vmatprep.mubr.f32.mxu0 0.0
    %481 = vmatmul.mubr.f32.gmra.mrb[0].mxu0 %v394
    %v482 = vpop.f32.mrb[0].mxu0
    %v483 = vadd.f32 %v379, %v482
    %v484 = vpop.f32.mrb[0].mxu0
    %485 = vdwg.mxu0
    %489 = vrot.lane.b32.xlu0 %v463, 96
    %v490 = vpop.permute.xlu0 %489
    %491 = vrot.lane.b32.xlu0 %v468, 96
    %v492 = vpop.permute.xlu0 %491
    %493 = vrot.lane.b32.xlu0 %v473, 96
    %v494 = vpop.permute.xlu0 %493
    %vm495 = vcmask 64512
    %v496 = vsel %vm495, %v463, 0
    %v498 = vsel %vm495, %v468, 0
    %v500 = vsel %vm495, %v473, 0
    %v502 = vsel %vm495, %v490, 0
    %v504 = vsel %vm495, %v492, 0
    %v506 = vsel %vm495, %v494, 0
    %508 = vmatprep.subr.mxu0 0.0
    %509 = vmatpush1.xpose.msra.mxu0 %v502
    %510 = vmatprep.subr.mxu0 0.0
    %511 = vmatpush1.xpose.msra.mxu0 %v504
    %512 = vmatprep.subr.mxu0 0.0
    %513 = vmatpush1.xpose.msra.mxu0 %v506
    %514 = vmatprep.subr.mxu0 0.0
    %515 = vmatpush1.xpose.msra.mxu0 0.0
    %516 = vmatprep.subr.mxu0 0.0
    %517 = vmatpush1.xpose.msra.mxu0 0.0
    %518 = vmatprep.subr.mxu0 0.0
    %519 = vmatpush1.xpose.msra.mxu0 0.0
    %520 = vmatprep.subr.mxu0 0.0
    %521 = vmatpush1.xpose.msra.mxu0 0.0
    %522 = vmatprep.subr.mxu0 0.0
    %523 = vmatpush1.xpose.msra.mxu0 0.0
    %524 = vmatprep.subr.mxu0 0.0
    %525 = vmatpush1.xpose.msra.mxu0 0.0
    %526 = vmatprep.subr.mxu0 0.0
    %527 = vmatpush1.xpose.msra.mxu0 0.0
    %528 = vmatprep.subr.mxu0 0.0
    %529 = vmatpush1.xpose.msra.mxu0 0.0
    %530 = vmatprep.subr.mxu0 0.0
    %531 = vmatpush1.xpose.msra.mxu0 0.0
    %532 = vmatprep.subr.mxu0 0.0
    %533 = vmatpush1.xpose.msra.mxu0 0.0
    %534 = vmatprep.subr.mxu0 0.0
    %535 = vmatpush1.xpose.msra.mxu0 0.0
    %536 = vmatprep.subr.mxu0 0.0
    %537 = vmatpush1.xpose.msra.mxu0 0.0
    %538 = vmatprep.subr.mxu0 0.0
    %539 = vmatpush1.xpose.msra.mxu0 0.0
    %540 = vmatprep.subr.mxu0 0.0
    %541 = vmatpush1.xpose.msra.mxu0 0.0
    %542 = vmatprep.subr.mxu0 0.0
    %543 = vmatpush1.xpose.msra.mxu0 0.0
    %544 = vmatprep.subr.mxu0 0.0
    %545 = vmatpush1.xpose.msra.mxu0 0.0
    %546 = vmatprep.subr.mxu0 0.0
    %547 = vmatpush1.xpose.msra.mxu0 0.0
    %548 = vmatprep.subr.mxu0 0.0
    %549 = vmatpush1.xpose.msra.mxu0 0.0
    %550 = vmatprep.subr.mxu0 0.0
    %551 = vmatpush1.xpose.msra.mxu0 0.0
    %552 = vmatprep.subr.mxu0 0.0
    %553 = vmatpush1.xpose.msra.mxu0 0.0
    %554 = vmatprep.subr.mxu0 0.0
    %555 = vmatpush1.xpose.msra.mxu0 0.0
    %556 = vmatprep.subr.mxu0 0.0
    %557 = vmatpush1.xpose.msra.mxu0 0.0
    %558 = vmatprep.subr.mxu0 0.0
    %559 = vmatpush1.xpose.msra.mxu0 0.0
    %560 = vmatprep.subr.mxu0 0.0
    %561 = vmatpush1.xpose.msra.mxu0 0.0
    %562 = vmatprep.subr.mxu0 0.0
    %563 = vmatpush1.xpose.msra.mxu0 0.0
    %564 = vmatprep.subr.mxu0 0.0
    %565 = vmatpush1.xpose.msra.mxu0 0.0
    %566 = vmatprep.subr.mxu0 0.0
    %567 = vmatpush1.xpose.msra.mxu0 0.0
    %568 = vmatprep.subr.mxu0 0.0
    %569 = vmatpush1.xpose.msra.mxu0 0.0
    %570 = vmatprep.subr.mxu0 0.0
    %571 = vmatpush1.xpose.msra.mxu0 0.0
    %572 = vmatprep.mubr.f32.mxu0 0.0
    %573 = vmatmul.mubr.f32.gmra.mrb[0].mxu0 %v496
    %v574 = vpop.f32.mrb[0].mxu0
    %v575 = vadd.f32 0.0, %v574
    %v576 = vpop.f32.mrb[0].mxu0
    %577 = vmatprep.mubr.f32.mxu0 0.0
    %578 = vmatmul.mubr.f32.gmra.mrb[0].mxu0 %v498
    %v579 = vpop.f32.mrb[0].mxu0
    %v580 = vadd.f32 0.0, %v579
    %v581 = vpop.f32.mrb[0].mxu0
    %582 = vmatprep.mubr.f32.mxu0 0.0
    %583 = vmatmul.mubr.f32.gmra.mrb[0].mxu0 %v500
    %v584 = vpop.f32.mrb[0].mxu0
    %v585 = vadd.f32 0.0, %v584
    %v586 = vpop.f32.mrb[0].mxu0
    %587 = vdwg.mxu0
    %vm588 = vcmask 138240
    %v589 = vsel %vm588, %v575, -inf
    %590 = vmax.xlane.f32.xlu0 %v589
    %v591 = vpop.xlane.xlu0 %590
    %v592 = vsel %vm588, %v580, -inf
    %593 = vmax.xlane.f32.xlu0 %v592
    %v594 = vpop.xlane.xlu0 %593
    %vm595 = vcmask 131072
    %v596 = vsel %vm595, %v585, -inf
    %597 = vmax.xlane.f32.xlu0 %v596
    %v598 = vpop.xlane.xlu0 %597
    %v599 = vsub.f32 %v575, %v591
    %v600 = vsub.f32 %v580, %v594
    %v601 = vsub.f32 %v585, %v598
    %v602 = vmul.f32 %v599, 1.442695
    %v603 = vpow.pop %v602
    %v604 = vmul.f32 %v600, 1.442695
    %v605 = vpow.pop %v604
    %v606 = vmul.f32 %v601, 1.442695
    %v607 = vpow.pop %v606
    %v608 = vsel %vm588, %v603, 0.0
    %609 = vadd.xlane.f32.xlu0 %v608
    %v610 = vpop.xlane.xlu0 %609
    %v611 = vsel %vm588, %v605, 0.0
    %612 = vadd.xlane.f32.xlu0 %v611
    %v613 = vpop.xlane.xlu0 %612
    %v614 = vsel %vm595, %v607, 0.0
    %615 = vadd.xlane.f32.xlu0 %v614
    %v616 = vpop.xlane.xlu0 %615
    %617 = vrot.lane.b32.xlu0 %v463, 64
    %v618 = vpop.permute.xlu0 %617
    %619 = vrot.lane.b32.xlu0 %v468, 64
    %v620 = vpop.permute.xlu0 %619
    %621 = vrot.lane.b32.xlu0 %v473, 64
    %v622 = vpop.permute.xlu0 %621
    %v626 = vsel %vm588, %v603, 0
    %v629 = vsel %vm588, %v605, 0
    %v632 = vsel %vm588, %v607, 0
    %v634 = vsel %vm258, %v622, 0
    %636 = vmatprep.subr.mxu0 0.0
    %637 = vmatpush1.msra.mxu0 %v618
    %638 = vmatprep.subr.mxu0 0.0
    %639 = vmatpush1.msra.mxu0 %v620
    %640 = vmatprep.subr.mxu0 0.0
    %641 = vmatpush1.msra.mxu0 %v634
    %642 = vmatprep.subr.mxu0 0.0
    %643 = vmatpush1.msra.mxu0 0.0
    %644 = vmatprep.subr.mxu0 0.0
    %645 = vmatpush1.msra.mxu0 0.0
    %646 = vmatprep.subr.mxu0 0.0
    %647 = vmatpush1.msra.mxu0 0.0
    %648 = vmatprep.subr.mxu0 0.0
    %649 = vmatpush1.msra.mxu0 0.0
    %650 = vmatprep.subr.mxu0 0.0
    %651 = vmatpush1.msra.mxu0 0.0
    %652 = vmatprep.subr.mxu0 0.0
    %653 = vmatpush1.msra.mxu0 0.0
    %654 = vmatprep.subr.mxu0 0.0
    %655 = vmatpush1.msra.mxu0 0.0
    %656 = vmatprep.subr.mxu0 0.0
    %657 = vmatpush1.msra.mxu0 0.0
    %658 = vmatprep.subr.mxu0 0.0
    %659 = vmatpush1.msra.mxu0 0.0
    %660 = vmatprep.subr.mxu0 0.0
    %661 = vmatpush1.msra.mxu0 0.0
    %662 = vmatprep.subr.mxu0 0.0
    %663 = vmatpush1.msra.mxu0 0.0
    %664 = vmatprep.subr.mxu0 0.0
    %665 = vmatpush1.msra.mxu0 0.0
    %666 = vmatprep.subr.mxu0 0.0
    %667 = vmatpush1.msra.mxu0 0.0
    %668 = vmatprep.subr.mxu0 0.0
    %669 = vmatpush1.msra.mxu0 0.0
    %670 = vmatprep.subr.mxu0 0.0
    %671 = vmatpush1.msra.mxu0 0.0
    %672 = vmatprep.subr.mxu0 0.0
    %673 = vmatpush1.msra.mxu0 0.0
    %674 = vmatprep.subr.mxu0 0.0
    %675 = vmatpush1.msra.mxu0 0.0
    %676 = vmatprep.subr.mxu0 0.0
    %677 = vmatpush1.msra.mxu0 0.0
    %678 = vmatprep.subr.mxu0 0.0
    %679 = vmatpush1.msra.mxu0 0.0
    %680 = vmatprep.subr.mxu0 0.0
    %681 = vmatpush1.msra.mxu0 0.0
    %682 = vmatprep.subr.mxu0 0.0
    %683 = vmatpush1.msra.mxu0 0.0
    %684 = vmatprep.subr.mxu0 0.0
    %685 = vmatpush1.msra.mxu0 0.0
    %686 = vmatprep.subr.mxu0 0.0
    %687 = vmatpush1.msra.mxu0 0.0
    %688 = vmatprep.subr.mxu0 0.0
    %689 = vmatpush1.msra.mxu0 0.0
    %690 = vmatprep.subr.mxu0 0.0
    %691 = vmatpush1.msra.mxu0 0.0
    %692 = vmatprep.subr.mxu0 0.0
    %693 = vmatpush1.msra.mxu0 0.0
    %694 = vmatprep.subr.mxu0 0.0
    %695 = vmatpush1.msra.mxu0 0.0
    %696 = vmatprep.subr.mxu0 0.0
    %697 = vmatpush1.msra.mxu0 0.0
    %698 = vmatprep.subr.mxu0 0.0
    %699 = vmatpush1.msra.mxu0 0.0
    %700 = vmatprep.mubr.f32.mxu0 0.0
    %701 = vmatmul.mubr.f32.gmra.mrb[0].mxu0 %v626
    %v702 = vpop.f32.mrb[0].mxu0
    %v703 = vadd.f32 0.0, %v702
    %v704 = vpop.f32.mrb[0].mxu0
    %705 = vmatprep.mubr.f32.mxu0 0.0
    %706 = vmatmul.mubr.f32.gmra.mrb[0].mxu0 %v629
    %v707 = vpop.f32.mrb[0].mxu0
    %v708 = vadd.f32 0.0, %v707
    %v709 = vpop.f32.mrb[0].mxu0
    %710 = vmatprep.mubr.f32.mxu0 0.0
    %711 = vmatmul.mubr.f32.gmra.mrb[0].mxu0 %v632
    %v712 = vpop.f32.mrb[0].mxu0
    %v713 = vadd.f32 0.0, %v712
    %v714 = vpop.f32.mrb[0].mxu0
    %715 = vdwg.mxu0
    %v716 = vrcp.pop %v610
    %v717 = vrcp.pop %v613
    %v718 = vrcp.pop %v616
    %v719 = vmul.f32 %v703, %v716
    %v720 = vmul.f32 %v708, %v717
    %v721 = vmul.f32 %v713, %v718
    %722 = vrot.lane.b32.xlu0 %v463, 120
    %v723 = vpop.permute.xlu0 %722
    %724 = vrot.lane.b32.xlu0 %v468, 120
    %v725 = vpop.permute.xlu0 %724
    %726 = vrot.lane.b32.xlu0 %v473, 120
    %v727 = vpop.permute.xlu0 %726
    %728 = vrot.lane.b32.xlu0 %v463, 88
    %v729 = vpop.permute.xlu0 %728
    %730 = vrot.lane.b32.xlu0 %v468, 88
    %v731 = vpop.permute.xlu0 %730
    %732 = vrot.lane.b32.xlu0 %v473, 88
    %v733 = vpop.permute.xlu0 %732
    %v734 = vsel %vm495, %v723, 0
    %v736 = vsel %vm495, %v725, 0
    %v738 = vsel %vm495, %v727, 0
    %v740 = vsel %vm495, %v729, 0
    %v742 = vsel %vm495, %v731, 0
    %v744 = vsel %vm495, %v733, 0
    %746 = vmatprep.subr.mxu0 0.0
    %747 = vmatpush1.xpose.msra.mxu0 %v740
    %748 = vmatprep.subr.mxu0 0.0
    %749 = vmatpush1.xpose.msra.mxu0 %v742
    %750 = vmatprep.subr.mxu0 0.0
    %751 = vmatpush1.xpose.msra.mxu0 %v744
    %752 = vmatprep.subr.mxu0 0.0
    %753 = vmatpush1.xpose.msra.mxu0 0.0
    %754 = vmatprep.subr.mxu0 0.0
    %755 = vmatpush1.xpose.msra.mxu0 0.0
    %756 = vmatprep.subr.mxu0 0.0
    %757 = vmatpush1.xpose.msra.mxu0 0.0
    %758 = vmatprep.subr.mxu0 0.0
    %759 = vmatpush1.xpose.msra.mxu0 0.0
    %760 = vmatprep.subr.mxu0 0.0
    %761 = vmatpush1.xpose.msra.mxu0 0.0
    %762 = vmatprep.subr.mxu0 0.0
    %763 = vmatpush1.xpose.msra.mxu0 0.0
    %764 = vmatprep.subr.mxu0 0.0
    %765 = vmatpush1.xpose.msra.mxu0 0.0
    %766 = vmatprep.subr.mxu0 0.0
    %767 = vmatpush1.xpose.msra.mxu0 0.0
    %768 = vmatprep.subr.mxu0 0.0
    %769 = vmatpush1.xpose.msra.mxu0 0.0
    %770 = vmatprep.subr.mxu0 0.0
    %771 = vmatpush1.xpose.msra.mxu0 0.0
    %772 = vmatprep.subr.mxu0 0.0
    %773 = vmatpush1.xpose.msra.mxu0 0.0
    %774 = vmatprep.subr.mxu0 0.0
    %775 = vmatpush1.xpose.msra.mxu0 0.0
    %776 = vmatprep.subr.mxu0 0.0
    %777 = vmatpush1.xpose.msra.mxu0 0.0
    %778 = vmatprep.subr.mxu0 0.0
    %779 = vmatpush1.xpose.msra.mxu0 0.0
    %780 = vmatprep.subr.mxu0 0.0
    %781 = vmatpush1.xpose.msra.mxu0 0.0
    %782 = vmatprep.subr.mxu0 0.0
    %783 = vmatpush1.xpose.msra.mxu0 0.0
    %784 = vmatprep.subr.mxu0 0.0
    %785 = vmatpush1.xpose.msra.mxu0 0.0
    %786 = vmatprep.subr.mxu0 0.0
    %787 = vmatpush1.xpose.msra.mxu0 0.0
    %788 = vmatprep.subr.mxu0 0.0
    %789 = vmatpush1.xpose.msra.mxu0 0.0
    %790 = vmatprep.subr.mxu0 0.0
    %791 = vmatpush1.xpose.msra.mxu0 0.0
    %792 = vmatprep.subr.mxu0 0.0
    %793 = vmatpush1.xpose.msra.mxu0 0.0
    %794 = vmatprep.subr.mxu0 0.0
    %795 = vmatpush1.xpose.msra.mxu0 0.0
    %796 = vmatprep.subr.mxu0 0.0
    %797 = vmatpush1.xpose.msra.mxu0 0.0
    %798 = vmatprep.subr.mxu0 0.0
    %799 = vmatpush1.xpose.msra.mxu0 0.0
    %800 = vmatprep.subr.mxu0 0.0
    %801 = vmatpush1.xpose.msra.mxu0 0.0
    %802 = vmatprep.subr.mxu0 0.0
    %803 = vmatpush1.xpose.msra.mxu0 0.0
    %804 = vmatprep.subr.mxu0 0.0
    %805 = vmatpush1.xpose.msra.mxu0 0.0
    %806 = vmatprep.subr.mxu0 0.0
    %807 = vmatpush1.xpose.msra.mxu0 0.0
    %808 = vmatprep.subr.mxu0 0.0
    %809 = vmatpush1.xpose.msra.mxu0 0.0
    %810 = vmatprep.mubr.f32.mxu0 0.0
    %811 = vmatmul.mubr.f32.gmra.mrb[0].mxu0 %v734
    %v812 = vpop.f32.mrb[0].mxu0
    %v813 = vadd.f32 0.0, %v812
    %v814 = vpop.f32.mrb[0].mxu0
    %815 = vmatprep.mubr.f32.mxu0 0.0
    %816 = vmatmul.mubr.f32.gmra.mrb[0].mxu0 %v736
    %v817 = vpop.f32.mrb[0].mxu0
    %v818 = vadd.f32 0.0, %v817
    %v819 = vpop.f32.mrb[0].mxu0
    %820 = vmatprep.mubr.f32.mxu0 0.0
    %821 = vmatmul.mubr.f32.gmra.mrb[0].mxu0 %v738
    %v822 = vpop.f32.mrb[0].mxu0
    %v823 = vadd.f32 0.0, %v822
    %v824 = vpop.f32.mrb[0].mxu0
    %825 = vdwg.mxu0
    %v826 = vsel %vm588, %v813, -inf
    %827 = vmax.xlane.f32.xlu0 %v826
    %v828 = vpop.xlane.xlu0 %827
    %v829 = vsel %vm588, %v818, -inf
    %830 = vmax.xlane.f32.xlu0 %v829
    %v831 = vpop.xlane.xlu0 %830
    %v832 = vsel %vm595, %v823, -inf
    %833 = vmax.xlane.f32.xlu0 %v832
    %v834 = vpop.xlane.xlu0 %833
    %v835 = vsub.f32 %v813, %v828
    %v836 = vsub.f32 %v818, %v831
    %v837 = vsub.f32 %v823, %v834
    %v838 = vmul.f32 %v835, 1.442695
    %v839 = vpow.pop %v838
    %v840 = vmul.f32 %v836, 1.442695
    %v841 = vpow.pop %v840
    %v842 = vmul.f32 %v837, 1.442695
    %v843 = vpow.pop %v842
    %v844 = vsel %vm588, %v839, 0.0
    %845 = vadd.xlane.f32.xlu0 %v844
    %v846 = vpop.xlane.xlu0 %845
    %v847 = vsel %vm588, %v841, 0.0
    %848 = vadd.xlane.f32.xlu0 %v847
    %v849 = vpop.xlane.xlu0 %848
    %v850 = vsel %vm595, %v843, 0.0
    %851 = vadd.xlane.f32.xlu0 %v850
    %v852 = vpop.xlane.xlu0 %851
    %853 = vrot.lane.b32.xlu0 %v463, 56
    %v854 = vpop.permute.xlu0 %853
    %855 = vrot.lane.b32.xlu0 %v468, 56
    %v856 = vpop.permute.xlu0 %855
    %857 = vrot.lane.b32.xlu0 %v473, 56
    %v858 = vpop.permute.xlu0 %857
    %v862 = vsel %vm588, %v839, 0
    %v865 = vsel %vm588, %v841, 0
    %v868 = vsel %vm588, %v843, 0
    %v870 = vsel %vm258, %v858, 0
    %872 = vmatprep.subr.mxu0 0.0
    %873 = vmatpush1.msra.mxu0 %v854
    %874 = vmatprep.subr.mxu0 0.0
    %875 = vmatpush1.msra.mxu0 %v856
    %876 = vmatprep.subr.mxu0 0.0
    %877 = vmatpush1.msra.mxu0 %v870
    %878 = vmatprep.subr.mxu0 0.0
    %879 = vmatpush1.msra.mxu0 0.0
    %880 = vmatprep.subr.mxu0 0.0
    %881 = vmatpush1.msra.mxu0 0.0
    %882 = vmatprep.subr.mxu0 0.0
    %883 = vmatpush1.msra.mxu0 0.0
    %884 = vmatprep.subr.mxu0 0.0
    %885 = vmatpush1.msra.mxu0 0.0
    %886 = vmatprep.subr.mxu0 0.0
    %887 = vmatpush1.msra.mxu0 0.0
    %888 = vmatprep.subr.mxu0 0.0
    %889 = vmatpush1.msra.mxu0 0.0
    %890 = vmatprep.subr.mxu0 0.0
    %891 = vmatpush1.msra.mxu0 0.0
    %892 = vmatprep.subr.mxu0 0.0
    %893 = vmatpush1.msra.mxu0 0.0
    %894 = vmatprep.subr.mxu0 0.0
    %895 = vmatpush1.msra.mxu0 0.0
    %896 = vmatprep.subr.mxu0 0.0
    %897 = vmatpush1.msra.mxu0 0.0
    %898 = vmatprep.subr.mxu0 0.0
    %899 = vmatpush1.msra.mxu0 0.0
    %900 = vmatprep.subr.mxu0 0.0
    %901 = vmatpush1.msra.mxu0 0.0
    %902 = vmatprep.subr.mxu0 0.0
    %903 = vmatpush1.msra.mxu0 0.0
    %904 = vmatprep.subr.mxu0 0.0
    %905 = vmatpush1.msra.mxu0 0.0
    %906 = vmatprep.subr.mxu0 0.0
    %907 = vmatpush1.msra.mxu0 0.0
    %908 = vmatprep.subr.mxu0 0.0
    %909 = vmatpush1.msra.mxu0 0.0
    %910 = vmatprep.subr.mxu0 0.0
    %911 = vmatpush1.msra.mxu0 0.0
    %912 = vmatprep.subr.mxu0 0.0
    %913 = vmatpush1.msra.mxu0 0.0
    %914 = vmatprep.subr.mxu0 0.0
    %915 = vmatpush1.msra.mxu0 0.0
    %916 = vmatprep.subr.mxu0 0.0
    %917 = vmatpush1.msra.mxu0 0.0
    %918 = vmatprep.subr.mxu0 0.0
    %919 = vmatpush1.msra.mxu0 0.0
    %920 = vmatprep.subr.mxu0 0.0
    %921 = vmatpush1.msra.mxu0 0.0
    %922 = vmatprep.subr.mxu0 0.0
    %923 = vmatpush1.msra.mxu0 0.0
    %924 = vmatprep.subr.mxu0 0.0
    %925 = vmatpush1.msra.mxu0 0.0
    %926 = vmatprep.subr.mxu0 0.0
    %927 = vmatpush1.msra.mxu0 0.0
    %928 = vmatprep.subr.mxu0 0.0
    %929 = vmatpush1.msra.mxu0 0.0
    %930 = vmatprep.subr.mxu0 0.0
    %931 = vmatpush1.msra.mxu0 0.0
    %932 = vmatprep.subr.mxu0 0.0
    %933 = vmatpush1.msra.mxu0 0.0
    %934 = vmatprep.subr.mxu0 0.0
    %935 = vmatpush1.msra.mxu0 0.0
    %936 = vmatprep.mubr.f32.mxu0 0.0
    %937 = vmatmul.mubr.f32.gmra.mrb[0].mxu0 %v862
    %v938 = vpop.f32.mrb[0].mxu0
    %v939 = vadd.f32 0.0, %v938
    %v940 = vpop.f32.mrb[0].mxu0
    %941 = vmatprep.mubr.f32.mxu0 0.0
    %942 = vmatmul.mubr.f32.gmra.mrb[0].mxu0 %v865
    %v943 = vpop.f32.mrb[0].mxu0
    %v944 = vadd.f32 0.0, %v943
    %v945 = vpop.f32.mrb[0].mxu0
    %946 = vmatprep.mubr.f32.mxu0 0.0
    %947 = vmatmul.mubr.f32.gmra.mrb[0].mxu0 %v868
    %v948 = vpop.f32.mrb[0].mxu0
    %v949 = vadd.f32 0.0, %v948
    %v950 = vpop.f32.mrb[0].mxu0
    %951 = vdwg.mxu0
    %v952 = vrcp.pop %v846
    %v953 = vrcp.pop %v849
    %v954 = vrcp.pop %v852
    %v955 = vmul.f32 %v939, %v952
    %v956 = vmul.f32 %v944, %v953
    %v957 = vmul.f32 %v949, %v954
    %958 = vrot.lane.b32.xlu0 %v463, 112
    %v959 = vpop.permute.xlu0 %958
    %960 = vrot.lane.b32.xlu0 %v468, 112
    %v961 = vpop.permute.xlu0 %960
    %962 = vrot.lane.b32.xlu0 %v473, 112
    %v963 = vpop.permute.xlu0 %962
    %964 = vrot.lane.b32.xlu0 %v463, 80
    %v965 = vpop.permute.xlu0 %964
    %966 = vrot.lane.b32.xlu0 %v468, 80
    %v967 = vpop.permute.xlu0 %966
    %968 = vrot.lane.b32.xlu0 %v473, 80
    %v969 = vpop.permute.xlu0 %968
    %v970 = vsel %vm495, %v959, 0
    %v972 = vsel %vm495, %v961, 0
    %v974 = vsel %vm495, %v963, 0
    %v976 = vsel %vm495, %v965, 0
    %v978 = vsel %vm495, %v967, 0
    %v980 = vsel %vm495, %v969, 0
    %982 = vmatprep.subr.mxu0 0.0
    %983 = vmatpush1.xpose.msra.mxu0 %v976
    %984 = vmatprep.subr.mxu0 0.0
    %985 = vmatpush1.xpose.msra.mxu0 %v978
    %986 = vmatprep.subr.mxu0 0.0
    %987 = vmatpush1.xpose.msra.mxu0 %v980
    %988 = vmatprep.subr.mxu0 0.0
    %989 = vmatpush1.xpose.msra.mxu0 0.0
    %990 = vmatprep.subr.mxu0 0.0
    %991 = vmatpush1.xpose.msra.mxu0 0.0
    %992 = vmatprep.subr.mxu0 0.0
    %993 = vmatpush1.xpose.msra.mxu0 0.0
    %994 = vmatprep.subr.mxu0 0.0
    %995 = vmatpush1.xpose.msra.mxu0 0.0
    %996 = vmatprep.subr.mxu0 0.0
    %997 = vmatpush1.xpose.msra.mxu0 0.0
    %998 = vmatprep.subr.mxu0 0.0
    %999 = vmatpush1.xpose.msra.mxu0 0.0
    %1000 = vmatprep.subr.mxu0 0.0
    %1001 = vmatpush1.xpose.msra.mxu0 0.0
    %1002 = vmatprep.subr.mxu0 0.0
    %1003 = vmatpush1.xpose.msra.mxu0 0.0
    %1004 = vmatprep.subr.mxu0 0.0
    %1005 = vmatpush1.xpose.msra.mxu0 0.0
    %1006 = vmatprep.subr.mxu0 0.0
    %1007 = vmatpush1.xpose.msra.mxu0 0.0
    %1008 = vmatprep.subr.mxu0 0.0
    %1009 = vmatpush1.xpose.msra.mxu0 0.0
    %1010 = vmatprep.subr.mxu0 0.0
    %1011 = vmatpush1.xpose.msra.mxu0 0.0
    %1012 = vmatprep.subr.mxu0 0.0
    %1013 = vmatpush1.xpose.msra.mxu0 0.0
    %1014 = vmatprep.subr.mxu0 0.0
    %1015 = vmatpush1.xpose.msra.mxu0 0.0
    %1016 = vmatprep.subr.mxu0 0.0
    %1017 = vmatpush1.xpose.msra.mxu0 0.0
    %1018 = vmatprep.subr.mxu0 0.0
    %1019 = vmatpush1.xpose.msra.mxu0 0.0
    %1020 = vmatprep.subr.mxu0 0.0
    %1021 = vmatpush1.xpose.msra.mxu0 0.0
    %1022 = vmatprep.subr.mxu0 0.0
    %1023 = vmatpush1.xpose.msra.mxu0 0.0
    %1024 = vmatprep.subr.mxu0 0.0
    %1025 = vmatpush1.xpose.msra.mxu0 0.0
    %1026 = vmatprep.subr.mxu0 0.0
    %1027 = vmatpush1.xpose.msra.mxu0 0.0
    %1028 = vmatprep.subr.mxu0 0.0
    %1029 = vmatpush1.xpose.msra.mxu0 0.0
    %1030 = vmatprep.subr.mxu0 0.0
    %1031 = vmatpush1.xpose.msra.mxu0 0.0
    %1032 = vmatprep.subr.mxu0 0.0
    %1033 = vmatpush1.xpose.msra.mxu0 0.0
    %1034 = vmatprep.subr.mxu0 0.0
    %1035 = vmatpush1.xpose.msra.mxu0 0.0
    %1036 = vmatprep.subr.mxu0 0.0
    %1037 = vmatpush1.xpose.msra.mxu0 0.0
    %1038 = vmatprep.subr.mxu0 0.0
    %1039 = vmatpush1.xpose.msra.mxu0 0.0
    %1040 = vmatprep.subr.mxu0 0.0
    %1041 = vmatpush1.xpose.msra.mxu0 0.0
    %1042 = vmatprep.subr.mxu0 0.0
    %1043 = vmatpush1.xpose.msra.mxu0 0.0
    %1044 = vmatprep.subr.mxu0 0.0
    %1045 = vmatpush1.xpose.msra.mxu0 0.0
    %1046 = vmatprep.mubr.f32.mxu0 0.0
    %1047 = vmatmul.mubr.f32.gmra.mrb[0].mxu0 %v970
    %v1048 = vpop.f32.mrb[0].mxu0
    %v1049 = vadd.f32 0.0, %v1048
    %v1050 = vpop.f32.mrb[0].mxu0
    %1051 = vmatprep.mubr.f32.mxu0 0.0
    %1052 = vmatmul.mubr.f32.gmra.mrb[0].mxu0 %v972
    %v1053 = vpop.f32.mrb[0].mxu0
    %v1054 = vadd.f32 0.0, %v1053
    %v1055 = vpop.f32.mrb[0].mxu0
    %1056 = vmatprep.mubr.f32.mxu0 0.0
    %1057 = vmatmul.mubr.f32.gmra.mrb[0].mxu0 %v974
    %v1058 = vpop.f32.mrb[0].mxu0
    %v1059 = vadd.f32 0.0, %v1058
    %v1060 = vpop.f32.mrb[0].mxu0
    %1061 = vdwg.mxu0
    %v1062 = vsel %vm588, %v1049, -inf
    %1063 = vmax.xlane.f32.xlu0 %v1062
    %v1064 = vpop.xlane.xlu0 %1063
    %v1065 = vsel %vm588, %v1054, -inf
    %1066 = vmax.xlane.f32.xlu0 %v1065
    %v1067 = vpop.xlane.xlu0 %1066
    %v1068 = vsel %vm595, %v1059, -inf
    %1069 = vmax.xlane.f32.xlu0 %v1068
    %v1070 = vpop.xlane.xlu0 %1069
    %v1071 = vsub.f32 %v1049, %v1064
    %v1072 = vsub.f32 %v1054, %v1067
    %v1073 = vsub.f32 %v1059, %v1070
    %v1074 = vmul.f32 %v1071, 1.442695
    %v1075 = vpow.pop %v1074
    %v1076 = vmul.f32 %v1072, 1.442695
    %v1077 = vpow.pop %v1076
    %v1078 = vmul.f32 %v1073, 1.442695
    %v1079 = vpow.pop %v1078
    %v1080 = vsel %vm588, %v1075, 0.0
    %1081 = vadd.xlane.f32.xlu0 %v1080
    %v1082 = vpop.xlane.xlu0 %1081
    %v1083 = vsel %vm588, %v1077, 0.0
    %1084 = vadd.xlane.f32.xlu0 %v1083
    %v1085 = vpop.xlane.xlu0 %1084
    %v1086 = vsel %vm595, %v1079, 0.0
    %1087 = vadd.xlane.f32.xlu0 %v1086
    %v1088 = vpop.xlane.xlu0 %1087
    %1089 = vrot.lane.b32.xlu0 %v463, 48
    %v1090 = vpop.permute.xlu0 %1089
    %1091 = vrot.lane.b32.xlu0 %v468, 48
    %v1092 = vpop.permute.xlu0 %1091
    %1093 = vrot.lane.b32.xlu0 %v473, 48
    %v1094 = vpop.permute.xlu0 %1093
    %v1098 = vsel %vm588, %v1075, 0
    %v1101 = vsel %vm588, %v1077, 0
    %v1104 = vsel %vm588, %v1079, 0
    %v1106 = vsel %vm258, %v1094, 0
    %1108 = vmatprep.subr.mxu0 0.0
    %1109 = vmatpush1.msra.mxu0 %v1090
    %1110 = vmatprep.subr.mxu0 0.0
    %1111 = vmatpush1.msra.mxu0 %v1092
    %1112 = vmatprep.subr.mxu0 0.0
    %1113 = vmatpush1.msra.mxu0 %v1106
    %1114 = vmatprep.subr.mxu0 0.0
    %1115 = vmatpush1.msra.mxu0 0.0
    %1116 = vmatprep.subr.mxu0 0.0
    %1117 = vmatpush1.msra.mxu0 0.0
    %1118 = vmatprep.subr.mxu0 0.0
    %1119 = vmatpush1.msra.mxu0 0.0
    %1120 = vmatprep.subr.mxu0 0.0
    %1121 = vmatpush1.msra.mxu0 0.0
    %1122 = vmatprep.subr.mxu0 0.0
    %1123 = vmatpush1.msra.mxu0 0.0
    %1124 = vmatprep.subr.mxu0 0.0
    %1125 = vmatpush1.msra.mxu0 0.0
    %1126 = vmatprep.subr.mxu0 0.0
    %1127 = vmatpush1.msra.mxu0 0.0
    %1128 = vmatprep.subr.mxu0 0.0
    %1129 = vmatpush1.msra.mxu0 0.0
    %1130 = vmatprep.subr.mxu0 0.0
    %1131 = vmatpush1.msra.mxu0 0.0
    %1132 = vmatprep.subr.mxu0 0.0
    %1133 = vmatpush1.msra.mxu0 0.0
    %1134 = vmatprep.subr.mxu0 0.0
    %1135 = vmatpush1.msra.mxu0 0.0
    %1136 = vmatprep.subr.mxu0 0.0
    %1137 = vmatpush1.msra.mxu0 0.0
    %1138 = vmatprep.subr.mxu0 0.0
    %1139 = vmatpush1.msra.mxu0 0.0
    %1140 = vmatprep.subr.mxu0 0.0
    %1141 = vmatpush1.msra.mxu0 0.0
    %1142 = vmatprep.subr.mxu0 0.0
    %1143 = vmatpush1.msra.mxu0 0.0
    %1144 = vmatprep.subr.mxu0 0.0
    %1145 = vmatpush1.msra.mxu0 0.0
    %1146 = vmatprep.subr.mxu0 0.0
    %1147 = vmatpush1.msra.mxu0 0.0
    %1148 = vmatprep.subr.mxu0 0.0
    %1149 = vmatpush1.msra.mxu0 0.0
    %1150 = vmatprep.subr.mxu0 0.0
    %1151 = vmatpush1.msra.mxu0 0.0
    %1152 = vmatprep.subr.mxu0 0.0
    %1153 = vmatpush1.msra.mxu0 0.0
    %1154 = vmatprep.subr.mxu0 0.0
    %1155 = vmatpush1.msra.mxu0 0.0
    %1156 = vmatprep.subr.mxu0 0.0
    %1157 = vmatpush1.msra.mxu0 0.0
    %1158 = vmatprep.subr.mxu0 0.0
    %1159 = vmatpush1.msra.mxu0 0.0
    %1160 = vmatprep.subr.mxu0 0.0
    %1161 = vmatpush1.msra.mxu0 0.0
    %1162 = vmatprep.subr.mxu0 0.0
    %1163 = vmatpush1.msra.mxu0 0.0
    %1164 = vmatprep.subr.mxu0 0.0
    %1165 = vmatpush1.msra.mxu0 0.0
    %1166 = vmatprep.subr.mxu0 0.0
    %1167 = vmatpush1.msra.mxu0 0.0
    %1168 = vmatprep.subr.mxu0 0.0
    %1169 = vmatpush1.msra.mxu0 0.0
    %1170 = vmatprep.subr.mxu0 0.0
    %1171 = vmatpush1.msra.mxu0 0.0
    %1172 = vmatprep.mubr.f32.mxu0 0.0
    %1173 = vmatmul.mubr.f32.gmra.mrb[0].mxu0 %v1098
    %v1174 = vpop.f32.mrb[0].mxu0
    %v1175 = vadd.f32 0.0, %v1174
    %v1176 = vpop.f32.mrb[0].mxu0
    %1177 = vmatprep.mubr.f32.mxu0 0.0
    %1178 = vmatmul.mubr.f32.gmra.mrb[0].mxu0 %v1101
    %v1179 = vpop.f32.mrb[0].mxu0
    %v1180 = vadd.f32 0.0, %v1179
    %v1181 = vpop.f32.mrb[0].mxu0
    %1182 = vmatprep.mubr.f32.mxu0 0.0
    %1183 = vmatmul.mubr.f32.gmra.mrb[0].mxu0 %v1104
    %v1184 = vpop.f32.mrb[0].mxu0
    %v1185 = vadd.f32 0.0, %v1184
    %v1186 = vpop.f32.mrb[0].mxu0
    %1187 = vdwg.mxu0
    %v1188 = vrcp.pop %v1082
    %v1189 = vrcp.pop %v1085
    %v1190 = vrcp.pop %v1088
    %v1191 = vmul.f32 %v1175, %v1188
    %v1192 = vmul.f32 %v1180, %v1189
    %v1193 = vmul.f32 %v1185, %v1190
    %1194 = vrot.lane.b32.xlu0 %v463, 104
    %v1195 = vpop.permute.xlu0 %1194
    %1196 = vrot.lane.b32.xlu0 %v468, 104
    %v1197 = vpop.permute.xlu0 %1196
    %1198 = vrot.lane.b32.xlu0 %v473, 104
    %v1199 = vpop.permute.xlu0 %1198
    %1200 = vrot.lane.b32.xlu0 %v463, 72
    %v1201 = vpop.permute.xlu0 %1200
    %1202 = vrot.lane.b32.xlu0 %v468, 72
    %v1203 = vpop.permute.xlu0 %1202
    %1204 = vrot.lane.b32.xlu0 %v473, 72
    %v1205 = vpop.permute.xlu0 %1204
    %v1206 = vsel %vm495, %v1195, 0
    %v1208 = vsel %vm495, %v1197, 0
    %v1210 = vsel %vm495, %v1199, 0
    %v1212 = vsel %vm495, %v1201, 0
    %v1214 = vsel %vm495, %v1203, 0
    %v1216 = vsel %vm495, %v1205, 0
    %1218 = vmatprep.subr.mxu0 0.0
    %1219 = vmatpush1.xpose.msra.mxu0 %v1212
    %1220 = vmatprep.subr.mxu0 0.0
    %1221 = vmatpush1.xpose.msra.mxu0 %v1214
    %1222 = vmatprep.subr.mxu0 0.0
    %1223 = vmatpush1.xpose.msra.mxu0 %v1216
    %1224 = vmatprep.subr.mxu0 0.0
    %1225 = vmatpush1.xpose.msra.mxu0 0.0
    %1226 = vmatprep.subr.mxu0 0.0
    %1227 = vmatpush1.xpose.msra.mxu0 0.0
    %1228 = vmatprep.subr.mxu0 0.0
    %1229 = vmatpush1.xpose.msra.mxu0 0.0
    %1230 = vmatprep.subr.mxu0 0.0
    %1231 = vmatpush1.xpose.msra.mxu0 0.0
    %1232 = vmatprep.subr.mxu0 0.0
    %1233 = vmatpush1.xpose.msra.mxu0 0.0
    %1234 = vmatprep.subr.mxu0 0.0
    %1235 = vmatpush1.xpose.msra.mxu0 0.0
    %1236 = vmatprep.subr.mxu0 0.0
    %1237 = vmatpush1.xpose.msra.mxu0 0.0
    %1238 = vmatprep.subr.mxu0 0.0
    %1239 = vmatpush1.xpose.msra.mxu0 0.0
    %1240 = vmatprep.subr.mxu0 0.0
    %1241 = vmatpush1.xpose.msra.mxu0 0.0
    %1242 = vmatprep.subr.mxu0 0.0
    %1243 = vmatpush1.xpose.msra.mxu0 0.0
    %1244 = vmatprep.subr.mxu0 0.0
    %1245 = vmatpush1.xpose.msra.mxu0 0.0
    %1246 = vmatprep.subr.mxu0 0.0
    %1247 = vmatpush1.xpose.msra.mxu0 0.0
    %1248 = vmatprep.subr.mxu0 0.0
    %1249 = vmatpush1.xpose.msra.mxu0 0.0
    %1250 = vmatprep.subr.mxu0 0.0
    %1251 = vmatpush1.xpose.msra.mxu0 0.0
    %1252 = vmatprep.subr.mxu0 0.0
    %1253 = vmatpush1.xpose.msra.mxu0 0.0
    %1254 = vmatprep.subr.mxu0 0.0
    %1255 = vmatpush1.xpose.msra.mxu0 0.0
    %1256 = vmatprep.subr.mxu0 0.0
    %1257 = vmatpush1.xpose.msra.mxu0 0.0
    %1258 = vmatprep.subr.mxu0 0.0
    %1259 = vmatpush1.xpose.msra.mxu0 0.0
    %1260 = vmatprep.subr.mxu0 0.0
    %1261 = vmatpush1.xpose.msra.mxu0 0.0
    %1262 = vmatprep.subr.mxu0 0.0
    %1263 = vmatpush1.xpose.msra.mxu0 0.0
    %1264 = vmatprep.subr.mxu0 0.0
    %1265 = vmatpush1.xpose.msra.mxu0 0.0
    %1266 = vmatprep.subr.mxu0 0.0
    %1267 = vmatpush1.xpose.msra.mxu0 0.0
    %1268 = vmatprep.subr.mxu0 0.0
    %1269 = vmatpush1.xpose.msra.mxu0 0.0
    %1270 = vmatprep.subr.mxu0 0.0
    %1271 = vmatpush1.xpose.msra.mxu0 0.0
    %1272 = vmatprep.subr.mxu0 0.0
    %1273 = vmatpush1.xpose.msra.mxu0 0.0
    %1274 = vmatprep.subr.mxu0 0.0
    %1275 = vmatpush1.xpose.msra.mxu0 0.0
    %1276 = vmatprep.subr.mxu0 0.0
    %1277 = vmatpush1.xpose.msra.mxu0 0.0
    %1278 = vmatprep.subr.mxu0 0.0
    %1279 = vmatpush1.xpose.msra.mxu0 0.0
    %1280 = vmatprep.subr.mxu0 0.0
    %1281 = vmatpush1.xpose.msra.mxu0 0.0
    %1282 = vmatprep.mubr.f32.mxu0 0.0
    %1283 = vmatmul.mubr.f32.gmra.mrb[0].mxu0 %v1206
    %v1284 = vpop.f32.mrb[0].mxu0
    %v1285 = vadd.f32 0.0, %v1284
    %v1286 = vpop.f32.mrb[0].mxu0
    %1287 = vmatprep.mubr.f32.mxu0 0.0
    %1288 = vmatmul.mubr.f32.gmra.mrb[0].mxu0 %v1208
    %v1289 = vpop.f32.mrb[0].mxu0
    %v1290 = vadd.f32 0.0, %v1289
    %v1291 = vpop.f32.mrb[0].mxu0
    %1292 = vmatprep.mubr.f32.mxu0 0.0
    %1293 = vmatmul.mubr.f32.gmra.mrb[0].mxu0 %v1210
    %v1294 = vpop.f32.mrb[0].mxu0
    %v1295 = vadd.f32 0.0, %v1294
    %v1296 = vpop.f32.mrb[0].mxu0
    %1297 = vdwg.mxu0
    %v1298 = vsel %vm588, %v1285, -inf
    %1299 = vmax.xlane.f32.xlu0 %v1298
    %v1300 = vpop.xlane.xlu0 %1299
    %v1301 = vsel %vm588, %v1290, -inf
    %1302 = vmax.xlane.f32.xlu0 %v1301
    %v1303 = vpop.xlane.xlu0 %1302
    %v1304 = vsel %vm595, %v1295, -inf
    %1305 = vmax.xlane.f32.xlu0 %v1304
    %v1306 = vpop.xlane.xlu0 %1305
    %v1307 = vsub.f32 %v1285, %v1300
    %v1308 = vsub.f32 %v1290, %v1303
    %v1309 = vsub.f32 %v1295, %v1306
    %v1310 = vmul.f32 %v1307, 1.442695
    %v1311 = vpow.pop %v1310
    %v1312 = vmul.f32 %v1308, 1.442695
    %v1313 = vpow.pop %v1312
    %v1314 = vmul.f32 %v1309, 1.442695
    %v1315 = vpow.pop %v1314
    %v1316 = vsel %vm588, %v1311, 0.0
    %1317 = vadd.xlane.f32.xlu0 %v1316
    %v1318 = vpop.xlane.xlu0 %1317
    %v1319 = vsel %vm588, %v1313, 0.0
    %1320 = vadd.xlane.f32.xlu0 %v1319
    %v1321 = vpop.xlane.xlu0 %1320
    %v1322 = vsel %vm595, %v1315, 0.0
    %1323 = vadd.xlane.f32.xlu0 %v1322
    %v1324 = vpop.xlane.xlu0 %1323
    %1325 = vrot.lane.b32.xlu0 %v463, 40
    %v1326 = vpop.permute.xlu0 %1325
    %1327 = vrot.lane.b32.xlu0 %v468, 40
    %v1328 = vpop.permute.xlu0 %1327
    %1329 = vrot.lane.b32.xlu0 %v473, 40
    %v1330 = vpop.permute.xlu0 %1329
    %v1334 = vsel %vm588, %v1311, 0
    %v1337 = vsel %vm588, %v1313, 0
    %v1340 = vsel %vm588, %v1315, 0
    %v1342 = vsel %vm258, %v1330, 0
    %1344 = vmatprep.subr.mxu0 0.0
    %1345 = vmatpush1.msra.mxu0 %v1326
    %1346 = vmatprep.subr.mxu0 0.0
    %1347 = vmatpush1.msra.mxu0 %v1328
    %1348 = vmatprep.subr.mxu0 0.0
    %1349 = vmatpush1.msra.mxu0 %v1342
    %1350 = vmatprep.subr.mxu0 0.0
    %1351 = vmatpush1.msra.mxu0 0.0
    %1352 = vmatprep.subr.mxu0 0.0
    %1353 = vmatpush1.msra.mxu0 0.0
    %1354 = vmatprep.subr.mxu0 0.0
    %1355 = vmatpush1.msra.mxu0 0.0
    %1356 = vmatprep.subr.mxu0 0.0
    %1357 = vmatpush1.msra.mxu0 0.0
    %1358 = vmatprep.subr.mxu0 0.0
    %1359 = vmatpush1.msra.mxu0 0.0
    %1360 = vmatprep.subr.mxu0 0.0
    %1361 = vmatpush1.msra.mxu0 0.0
    %1362 = vmatprep.subr.mxu0 0.0
    %1363 = vmatpush1.msra.mxu0 0.0
    %1364 = vmatprep.subr.mxu0 0.0
    %1365 = vmatpush1.msra.mxu0 0.0
    %1366 = vmatprep.subr.mxu0 0.0
    %1367 = vmatpush1.msra.mxu0 0.0
    %1368 = vmatprep.subr.mxu0 0.0
    %1369 = vmatpush1.msra.mxu0 0.0
    %1370 = vmatprep.subr.mxu0 0.0
    %1371 = vmatpush1.msra.mxu0 0.0
    %1372 = vmatprep.subr.mxu0 0.0
    %1373 = vmatpush1.msra.mxu0 0.0
    %1374 = vmatprep.subr.mxu0 0.0
    %1375 = vmatpush1.msra.mxu0 0.0
    %1376 = vmatprep.subr.mxu0 0.0
    %1377 = vmatpush1.msra.mxu0 0.0
    %1378 = vmatprep.subr.mxu0 0.0
    %1379 = vmatpush1.msra.mxu0 0.0
    %1380 = vmatprep.subr.mxu0 0.0
    %1381 = vmatpush1.msra.mxu0 0.0
    %1382 = vmatprep.subr.mxu0 0.0
    %1383 = vmatpush1.msra.mxu0 0.0
    %1384 = vmatprep.subr.mxu0 0.0
    %1385 = vmatpush1.msra.mxu0 0.0
    %1386 = vmatprep.subr.mxu0 0.0
    %1387 = vmatpush1.msra.mxu0 0.0
    %1388 = vmatprep.subr.mxu0 0.0
    %1389 = vmatpush1.msra.mxu0 0.0
    %1390 = vmatprep.subr.mxu0 0.0
    %1391 = vmatpush1.msra.mxu0 0.0
    %1392 = vmatprep.subr.mxu0 0.0
    %1393 = vmatpush1.msra.mxu0 0.0
    %1394 = vmatprep.subr.mxu0 0.0
    %1395 = vmatpush1.msra.mxu0 0.0
    %1396 = vmatprep.subr.mxu0 0.0
    %1397 = vmatpush1.msra.mxu0 0.0
    %1398 = vmatprep.subr.mxu0 0.0
    %1399 = vmatpush1.msra.mxu0 0.0
    %1400 = vmatprep.subr.mxu0 0.0
    %1401 = vmatpush1.msra.mxu0 0.0
    %1402 = vmatprep.subr.mxu0 0.0
    %1403 = vmatpush1.msra.mxu0 0.0
    %1404 = vmatprep.subr.mxu0 0.0
    %1405 = vmatpush1.msra.mxu0 0.0
    %1406 = vmatprep.subr.mxu0 0.0
    %1407 = vmatpush1.msra.mxu0 0.0
    %1408 = vmatprep.mubr.f32.mxu0 0.0
    %1409 = vmatmul.mubr.f32.gmra.mrb[0].mxu0 %v1334
    %v1410 = vpop.f32.mrb[0].mxu0
    %v1411 = vadd.f32 0.0, %v1410
    %v1412 = vpop.f32.mrb[0].mxu0
    %1413 = vmatprep.mubr.f32.mxu0 0.0
    %1414 = vmatmul.mubr.f32.gmra.mrb[0].mxu0 %v1337
    %v1415 = vpop.f32.mrb[0].mxu0
    %v1416 = vadd.f32 0.0, %v1415
    %v1417 = vpop.f32.mrb[0].mxu0
    %1418 = vmatprep.mubr.f32.mxu0 0.0
    %1419 = vmatmul.mubr.f32.gmra.mrb[0].mxu0 %v1340
    %v1420 = vpop.f32.mrb[0].mxu0
    %v1421 = vadd.f32 0.0, %v1420
    %v1422 = vpop.f32.mrb[0].mxu0
    %1423 = vdwg.mxu0
    %v1424 = vrcp.pop %v1318
    %v1425 = vrcp.pop %v1321
    %v1426 = vrcp.pop %v1324
    %v1427 = vmul.f32 %v1411, %v1424
    %v1428 = vmul.f32 %v1416, %v1425
    %v1429 = vmul.f32 %v1421, %v1426
    %1433 = vrot.lane.b32.xlu0 %v955, 8
    %v1434 = vpop.permute.xlu0 %1433
    %1435 = vrot.lane.b32.xlu0 %v956, 8
    %v1436 = vpop.permute.xlu0 %1435
    %1437 = vrot.lane.b32.xlu0 %v957, 8
    %v1438 = vpop.permute.xlu0 %1437
    %1445 = vrot.lane.b32.xlu0 %v1191, 16
    %v1446 = vpop.permute.xlu0 %1445
    %1447 = vrot.lane.b32.xlu0 %v1192, 16
    %v1448 = vpop.permute.xlu0 %1447
    %1449 = vrot.lane.b32.xlu0 %v1193, 16
    %v1450 = vpop.permute.xlu0 %1449
    %1457 = vrot.lane.b32.xlu0 %v1427, 24
    %v1458 = vpop.permute.xlu0 %1457
    %1459 = vrot.lane.b32.xlu0 %v1428, 24
    %v1460 = vpop.permute.xlu0 %1459
    %1461 = vrot.lane.b32.xlu0 %v1429, 24
    %v1462 = vpop.permute.xlu0 %1461
    %v1466 = vsel %vm495, %v719, %v1434
    %v1467 = vsel %vm495, %v720, %v1436
    %v1468 = vsel %vm495, %v721, %v1438
    %vm1469 = vcmask 130048
    %v1470 = vsel %vm1469, %v1466, %v1446
    %v1471 = vsel %vm1469, %v1467, %v1448
    %v1472 = vsel %vm1469, %v1468, %v1450
    %vm1473 = vcmask 195584
    %v1474 = vsel %vm1473, %v1470, %v1458
    %v1475 = vsel %vm1473, %v1471, %v1460
    %v1476 = vsel %vm1473, %v1472, %v1462
    %vm1479 = vcmask 1046528
    %v1480 = vrot.slane %v473, 1
    %v1481 = vrot.slane %v478, 1
    %v1482 = vsel %vm1479, %v1480, %v1481
    %v1483 = vrot.slane %v483, 1
    %v1484 = vsel %vm1479, %v1481, %v1483
    %1485 = vrot.lane.b32.xlu0 %v1482, 96
    %v1486 = vpop.permute.xlu0 %1485
    %1487 = vrot.lane.b32.xlu0 %v1484, 96
    %v1488 = vpop.permute.xlu0 %1487
    %1489 = vrot.lane.b32.xlu0 %v1483, 96
    %v1490 = vpop.permute.xlu0 %1489
    %v1491 = vsel %vm495, %v1482, 0
    %v1493 = vsel %vm495, %v1484, 0
    %v1495 = vsel %vm495, %v1483, 0
    %v1497 = vsel %vm495, %v1486, 0
    %v1499 = vsel %vm495, %v1488, 0
    %v1501 = vsel %vm495, %v1490, 0
    %1503 = vmatprep.subr.mxu0 0.0
    %1504 = vmatpush1.xpose.msra.mxu0 %v1497
    %1505 = vmatprep.subr.mxu0 0.0
    %1506 = vmatpush1.xpose.msra.mxu0 %v1499
    %1507 = vmatprep.subr.mxu0 0.0
    %1508 = vmatpush1.xpose.msra.mxu0 %v1501
    %1509 = vmatprep.subr.mxu0 0.0
    %1510 = vmatpush1.xpose.msra.mxu0 0.0
    %1511 = vmatprep.subr.mxu0 0.0
    %1512 = vmatpush1.xpose.msra.mxu0 0.0
    %1513 = vmatprep.subr.mxu0 0.0
    %1514 = vmatpush1.xpose.msra.mxu0 0.0
    %1515 = vmatprep.subr.mxu0 0.0
    %1516 = vmatpush1.xpose.msra.mxu0 0.0
    %1517 = vmatprep.subr.mxu0 0.0
    %1518 = vmatpush1.xpose.msra.mxu0 0.0
    %1519 = vmatprep.subr.mxu0 0.0
    %1520 = vmatpush1.xpose.msra.mxu0 0.0
    %1521 = vmatprep.subr.mxu0 0.0
    %1522 = vmatpush1.xpose.msra.mxu0 0.0
    %1523 = vmatprep.subr.mxu0 0.0
    %1524 = vmatpush1.xpose.msra.mxu0 0.0
    %1525 = vmatprep.subr.mxu0 0.0
    %1526 = vmatpush1.xpose.msra.mxu0 0.0
    %1527 = vmatprep.subr.mxu0 0.0
    %1528 = vmatpush1.xpose.msra.mxu0 0.0
    %1529 = vmatprep.subr.mxu0 0.0
    %1530 = vmatpush1.xpose.msra.mxu0 0.0
    %1531 = vmatprep.subr.mxu0 0.0
    %1532 = vmatpush1.xpose.msra.mxu0 0.0
    %1533 = vmatprep.subr.mxu0 0.0
    %1534 = vmatpush1.xpose.msra.mxu0 0.0
    %1535 = vmatprep.subr.mxu0 0.0
    %1536 = vmatpush1.xpose.msra.mxu0 0.0
    %1537 = vmatprep.subr.mxu0 0.0
    %1538 = vmatpush1.xpose.msra.mxu0 0.0
    %1539 = vmatprep.subr.mxu0 0.0
    %1540 = vmatpush1.xpose.msra.mxu0 0.0
    %1541 = vmatprep.subr.mxu0 0.0
    %1542 = vmatpush1.xpose.msra.mxu0 0.0
    %1543 = vmatprep.subr.mxu0 0.0
    %1544 = vmatpush1.xpose.msra.mxu0 0.0
    %1545 = vmatprep.subr.mxu0 0.0
    %1546 = vmatpush1.xpose.msra.mxu0 0.0
    %1547 = vmatprep.subr.mxu0 0.0
    %1548 = vmatpush1.xpose.msra.mxu0 0.0
    %1549 = vmatprep.subr.mxu0 0.0
    %1550 = vmatpush1.xpose.msra.mxu0 0.0
    %1551 = vmatprep.subr.mxu0 0.0
    %1552 = vmatpush1.xpose.msra.mxu0 0.0
    %1553 = vmatprep.subr.mxu0 0.0
    %1554 = vmatpush1.xpose.msra.mxu0 0.0
    %1555 = vmatprep.subr.mxu0 0.0
    %1556 = vmatpush1.xpose.msra.mxu0 0.0
    %1557 = vmatprep.subr.mxu0 0.0
    %1558 = vmatpush1.xpose.msra.mxu0 0.0
    %1559 = vmatprep.subr.mxu0 0.0
    %1560 = vmatpush1.xpose.msra.mxu0 0.0
    %1561 = vmatprep.subr.mxu0 0.0
    %1562 = vmatpush1.xpose.msra.mxu0 0.0
    %1563 = vmatprep.subr.mxu0 0.0
    %1564 = vmatpush1.xpose.msra.mxu0 0.0
    %1565 = vmatprep.subr.mxu0 0.0
    %1566 = vmatpush1.xpose.msra.mxu0 0.0
    %1567 = vmatprep.mubr.f32.mxu0 0.0
    %1568 = vmatmul.mubr.f32.gmra.mrb[0].mxu0 %v1491
    %v1569 = vpop.f32.mrb[0].mxu0
    %v1570 = vadd.f32 0.0, %v1569
    %v1571 = vpop.f32.mrb[0].mxu0
    %1572 = vmatprep.mubr.f32.mxu0 0.0
    %1573 = vmatmul.mubr.f32.gmra.mrb[0].mxu0 %v1493
    %v1574 = vpop.f32.mrb[0].mxu0
    %v1575 = vadd.f32 0.0, %v1574
    %v1576 = vpop.f32.mrb[0].mxu0
    %1577 = vmatprep.mubr.f32.mxu0 0.0
    %1578 = vmatmul.mubr.f32.gmra.mrb[0].mxu0 %v1495
    %v1579 = vpop.f32.mrb[0].mxu0
    %v1580 = vadd.f32 0.0, %v1579
    %v1581 = vpop.f32.mrb[0].mxu0
    %1582 = vdwg.mxu0
    %v1583 = vsel %vm588, %v1570, -inf
    %1584 = vmax.xlane.f32.xlu0 %v1583
    %v1585 = vpop.xlane.xlu0 %1584
    %v1586 = vsel %vm588, %v1575, -inf
    %1587 = vmax.xlane.f32.xlu0 %v1586
    %v1588 = vpop.xlane.xlu0 %1587
    %v1589 = vsel %vm595, %v1580, -inf
    %1590 = vmax.xlane.f32.xlu0 %v1589
    %v1591 = vpop.xlane.xlu0 %1590
    %v1592 = vsub.f32 %v1570, %v1585
    %v1593 = vsub.f32 %v1575, %v1588
    %v1594 = vsub.f32 %v1580, %v1591
    %v1595 = vmul.f32 %v1592, 1.442695
    %v1596 = vpow.pop %v1595
    %v1597 = vmul.f32 %v1593, 1.442695
    %v1598 = vpow.pop %v1597
    %v1599 = vmul.f32 %v1594, 1.442695
    %v1600 = vpow.pop %v1599
    %v1601 = vsel %vm588, %v1596, 0.0
    %1602 = vadd.xlane.f32.xlu0 %v1601
    %v1603 = vpop.xlane.xlu0 %1602
    %v1604 = vsel %vm588, %v1598, 0.0
    %1605 = vadd.xlane.f32.xlu0 %v1604
    %v1606 = vpop.xlane.xlu0 %1605
    %v1607 = vsel %vm595, %v1600, 0.0
    %1608 = vadd.xlane.f32.xlu0 %v1607
    %v1609 = vpop.xlane.xlu0 %1608
    %1610 = vrot.lane.b32.xlu0 %v1482, 64
    %v1611 = vpop.permute.xlu0 %1610
    %1612 = vrot.lane.b32.xlu0 %v1484, 64
    %v1613 = vpop.permute.xlu0 %1612
    %1614 = vrot.lane.b32.xlu0 %v1483, 64
    %v1615 = vpop.permute.xlu0 %1614
    %v1619 = vsel %vm588, %v1596, 0
    %v1622 = vsel %vm588, %v1598, 0
    %v1625 = vsel %vm588, %v1600, 0
    %v1627 = vsel %vm258, %v1615, 0
    %1629 = vmatprep.subr.mxu0 0.0
    %1630 = vmatpush1.msra.mxu0 %v1611
    %1631 = vmatprep.subr.mxu0 0.0
    %1632 = vmatpush1.msra.mxu0 %v1613
    %1633 = vmatprep.subr.mxu0 0.0
    %1634 = vmatpush1.msra.mxu0 %v1627
    %1635 = vmatprep.subr.mxu0 0.0
    %1636 = vmatpush1.msra.mxu0 0.0
    %1637 = vmatprep.subr.mxu0 0.0
    %1638 = vmatpush1.msra.mxu0 0.0
    %1639 = vmatprep.subr.mxu0 0.0
    %1640 = vmatpush1.msra.mxu0 0.0
    %1641 = vmatprep.subr.mxu0 0.0
    %1642 = vmatpush1.msra.mxu0 0.0
    %1643 = vmatprep.subr.mxu0 0.0
    %1644 = vmatpush1.msra.mxu0 0.0
    %1645 = vmatprep.subr.mxu0 0.0
    %1646 = vmatpush1.msra.mxu0 0.0
    %1647 = vmatprep.subr.mxu0 0.0
    %1648 = vmatpush1.msra.mxu0 0.0
    %1649 = vmatprep.subr.mxu0 0.0
    %1650 = vmatpush1.msra.mxu0 0.0
    %1651 = vmatprep.subr.mxu0 0.0
    %1652 = vmatpush1.msra.mxu0 0.0
    %1653 = vmatprep.subr.mxu0 0.0
    %1654 = vmatpush1.msra.mxu0 0.0
    %1655 = vmatprep.subr.mxu0 0.0
    %1656 = vmatpush1.msra.mxu0 0.0
    %1657 = vmatprep.subr.mxu0 0.0
    %1658 = vmatpush1.msra.mxu0 0.0
    %1659 = vmatprep.subr.mxu0 0.0
    %1660 = vmatpush1.msra.mxu0 0.0
    %1661 = vmatprep.subr.mxu0 0.0
    %1662 = vmatpush1.msra.mxu0 0.0
    %1663 = vmatprep.subr.mxu0 0.0
    %1664 = vmatpush1.msra.mxu0 0.0
    %1665 = vmatprep.subr.mxu0 0.0
    %1666 = vmatpush1.msra.mxu0 0.0
    %1667 = vmatprep.subr.mxu0 0.0
    %1668 = vmatpush1.msra.mxu0 0.0
    %1669 = vmatprep.subr.mxu0 0.0
    %1670 = vmatpush1.msra.mxu0 0.0
    %1671 = vmatprep.subr.mxu0 0.0
    %1672 = vmatpush1.msra.mxu0 0.0
    %1673 = vmatprep.subr.mxu0 0.0
    %1674 = vmatpush1.msra.mxu0 0.0
    %1675 = vmatprep.subr.mxu0 0.0
    %1676 = vmatpush1.msra.mxu0 0.0
    %1677 = vmatprep.subr.mxu0 0.0
    %1678 = vmatpush1.msra.mxu0 0.0
    %1679 = vmatprep.subr.mxu0 0.0
    %1680 = vmatpush1.msra.mxu0 0.0
    %1681 = vmatprep.subr.mxu0 0.0
    %1682 = vmatpush1.msra.mxu0 0.0
    %1683 = vmatprep.subr.mxu0 0.0
    %1684 = vmatpush1.msra.mxu0 0.0
    %1685 = vmatprep.subr.mxu0 0.0
    %1686 = vmatpush1.msra.mxu0 0.0
    %1687 = vmatprep.subr.mxu0 0.0
    %1688 = vmatpush1.msra.mxu0 0.0
    %1689 = vmatprep.subr.mxu0 0.0
    %1690 = vmatpush1.msra.mxu0 0.0
    %1691 = vmatprep.subr.mxu0 0.0
    %1692 = vmatpush1.msra.mxu0 0.0
    %1693 = vmatprep.mubr.f32.mxu0 0.0
    %1694 = vmatmul.mubr.f32.gmra.mrb[0].mxu0 %v1619
    %v1695 = vpop.f32.mrb[0].mxu0
    %v1696 = vadd.f32 0.0, %v1695
    %v1697 = vpop.f32.mrb[0].mxu0
    %1698 = vmatprep.mubr.f32.mxu0 0.0
    %1699 = vmatmul.mubr.f32.gmra.mrb[0].mxu0 %v1622
    %v1700 = vpop.f32.mrb[0].mxu0
    %v1701 = vadd.f32 0.0, %v1700
    %v1702 = vpop.f32.mrb[0].mxu0
    %1703 = vmatprep.mubr.f32.mxu0 0.0
    %1704 = vmatmul.mubr.f32.gmra.mrb[0].mxu0 %v1625
    %v1705 = vpop.f32.mrb[0].mxu0
    %v1706 = vadd.f32 0.0, %v1705
    %v1707 = vpop.f32.mrb[0].mxu0
    %1708 = vdwg.mxu0
    %v1709 = vrcp.pop %v1603
    %v1710 = vrcp.pop %v1606
    %v1711 = vrcp.pop %v1609
    %v1712 = vmul.f32 %v1696, %v1709
    %v1713 = vmul.f32 %v1701, %v1710
    %v1714 = vmul.f32 %v1706, %v1711
    %1715 = vrot.lane.b32.xlu0 %v1482, 120
    %v1716 = vpop.permute.xlu0 %1715
    %1717 = vrot.lane.b32.xlu0 %v1484, 120
    %v1718 = vpop.permute.xlu0 %1717
    %1719 = vrot.lane.b32.xlu0 %v1483, 120
    %v1720 = vpop.permute.xlu0 %1719
    %1721 = vrot.lane.b32.xlu0 %v1482, 88
    %v1722 = vpop.permute.xlu0 %1721
    %1723 = vrot.lane.b32.xlu0 %v1484, 88
    %v1724 = vpop.permute.xlu0 %1723
    %1725 = vrot.lane.b32.xlu0 %v1483, 88
    %v1726 = vpop.permute.xlu0 %1725
    %v1727 = vsel %vm495, %v1716, 0
    %v1729 = vsel %vm495, %v1718, 0
    %v1731 = vsel %vm495, %v1720, 0
    %v1733 = vsel %vm495, %v1722, 0
    %v1735 = vsel %vm495, %v1724, 0
    %v1737 = vsel %vm495, %v1726, 0
    %1739 = vmatprep.subr.mxu0 0.0
    %1740 = vmatpush1.xpose.msra.mxu0 %v1733
    %1741 = vmatprep.subr.mxu0 0.0
    %1742 = vmatpush1.xpose.msra.mxu0 %v1735
    %1743 = vmatprep.subr.mxu0 0.0
    %1744 = vmatpush1.xpose.msra.mxu0 %v1737
    %1745 = vmatprep.subr.mxu0 0.0
    %1746 = vmatpush1.xpose.msra.mxu0 0.0
    %1747 = vmatprep.subr.mxu0 0.0
    %1748 = vmatpush1.xpose.msra.mxu0 0.0
    %1749 = vmatprep.subr.mxu0 0.0
    %1750 = vmatpush1.xpose.msra.mxu0 0.0
    %1751 = vmatprep.subr.mxu0 0.0
    %1752 = vmatpush1.xpose.msra.mxu0 0.0
    %1753 = vmatprep.subr.mxu0 0.0
    %1754 = vmatpush1.xpose.msra.mxu0 0.0
    %1755 = vmatprep.subr.mxu0 0.0
    %1756 = vmatpush1.xpose.msra.mxu0 0.0
    %1757 = vmatprep.subr.mxu0 0.0
    %1758 = vmatpush1.xpose.msra.mxu0 0.0
    %1759 = vmatprep.subr.mxu0 0.0
    %1760 = vmatpush1.xpose.msra.mxu0 0.0
    %1761 = vmatprep.subr.mxu0 0.0
    %1762 = vmatpush1.xpose.msra.mxu0 0.0
    %1763 = vmatprep.subr.mxu0 0.0
    %1764 = vmatpush1.xpose.msra.mxu0 0.0
    %1765 = vmatprep.subr.mxu0 0.0
    %1766 = vmatpush1.xpose.msra.mxu0 0.0
    %1767 = vmatprep.subr.mxu0 0.0
    %1768 = vmatpush1.xpose.msra.mxu0 0.0
    %1769 = vmatprep.subr.mxu0 0.0
    %1770 = vmatpush1.xpose.msra.mxu0 0.0
    %1771 = vmatprep.subr.mxu0 0.0
    %1772 = vmatpush1.xpose.msra.mxu0 0.0
    %1773 = vmatprep.subr.mxu0 0.0
    %1774 = vmatpush1.xpose.msra.mxu0 0.0
    %1775 = vmatprep.subr.mxu0 0.0
    %1776 = vmatpush1.xpose.msra.mxu0 0.0
    %1777 = vmatprep.subr.mxu0 0.0
    %1778 = vmatpush1.xpose.msra.mxu0 0.0
    %1779 = vmatprep.subr.mxu0 0.0
    %1780 = vmatpush1.xpose.msra.mxu0 0.0
    %1781 = vmatprep.subr.mxu0 0.0
    %1782 = vmatpush1.xpose.msra.mxu0 0.0
    %1783 = vmatprep.subr.mxu0 0.0
    %1784 = vmatpush1.xpose.msra.mxu0 0.0
    %1785 = vmatprep.subr.mxu0 0.0
    %1786 = vmatpush1.xpose.msra.mxu0 0.0
    %1787 = vmatprep.subr.mxu0 0.0
    %1788 = vmatpush1.xpose.msra.mxu0 0.0
    %1789 = vmatprep.subr.mxu0 0.0
    %1790 = vmatpush1.xpose.msra.mxu0 0.0
    %1791 = vmatprep.subr.mxu0 0.0
    %1792 = vmatpush1.xpose.msra.mxu0 0.0
    %1793 = vmatprep.subr.mxu0 0.0
    %1794 = vmatpush1.xpose.msra.mxu0 0.0
    %1795 = vmatprep.subr.mxu0 0.0
    %1796 = vmatpush1.xpose.msra.mxu0 0.0
    %1797 = vmatprep.subr.mxu0 0.0
    %1798 = vmatpush1.xpose.msra.mxu0 0.0
    %1799 = vmatprep.subr.mxu0 0.0
    %1800 = vmatpush1.xpose.msra.mxu0 0.0
    %1801 = vmatprep.subr.mxu0 0.0
    %1802 = vmatpush1.xpose.msra.mxu0 0.0
    %1803 = vmatprep.mubr.f32.mxu0 0.0
    %1804 = vmatmul.mubr.f32.gmra.mrb[0].mxu0 %v1727
    %v1805 = vpop.f32.mrb[0].mxu0
    %v1806 = vadd.f32 0.0, %v1805
    %v1807 = vpop.f32.mrb[0].mxu0
    %1808 = vmatprep.mubr.f32.mxu0 0.0
    %1809 = vmatmul.mubr.f32.gmra.mrb[0].mxu0 %v1729
    %v1810 = vpop.f32.mrb[0].mxu0
    %v1811 = vadd.f32 0.0, %v1810
    %v1812 = vpop.f32.mrb[0].mxu0
    %1813 = vmatprep.mubr.f32.mxu0 0.0
    %1814 = vmatmul.mubr.f32.gmra.mrb[0].mxu0 %v1731
    %v1815 = vpop.f32.mrb[0].mxu0
    %v1816 = vadd.f32 0.0, %v1815
    %v1817 = vpop.f32.mrb[0].mxu0
    %1818 = vdwg.mxu0
    %v1819 = vsel %vm588, %v1806, -inf
    %1820 = vmax.xlane.f32.xlu0 %v1819
    %v1821 = vpop.xlane.xlu0 %1820
    %v1822 = vsel %vm588, %v1811, -inf
    %1823 = vmax.xlane.f32.xlu0 %v1822
    %v1824 = vpop.xlane.xlu0 %1823
    %v1825 = vsel %vm595, %v1816, -inf
    %1826 = vmax.xlane.f32.xlu0 %v1825
    %v1827 = vpop.xlane.xlu0 %1826
    %v1828 = vsub.f32 %v1806, %v1821
    %v1829 = vsub.f32 %v1811, %v1824
    %v1830 = vsub.f32 %v1816, %v1827
    %v1831 = vmul.f32 %v1828, 1.442695
    %v1832 = vpow.pop %v1831
    %v1833 = vmul.f32 %v1829, 1.442695
    %v1834 = vpow.pop %v1833
    %v1835 = vmul.f32 %v1830, 1.442695
    %v1836 = vpow.pop %v1835
    %v1837 = vsel %vm588, %v1832, 0.0
    %1838 = vadd.xlane.f32.xlu0 %v1837
    %v1839 = vpop.xlane.xlu0 %1838
    %v1840 = vsel %vm588, %v1834, 0.0
    %1841 = vadd.xlane.f32.xlu0 %v1840
    %v1842 = vpop.xlane.xlu0 %1841
    %v1843 = vsel %vm595, %v1836, 0.0
    %1844 = vadd.xlane.f32.xlu0 %v1843
    %v1845 = vpop.xlane.xlu0 %1844
    %1846 = vrot.lane.b32.xlu0 %v1482, 56
    %v1847 = vpop.permute.xlu0 %1846
    %1848 = vrot.lane.b32.xlu0 %v1484, 56
    %v1849 = vpop.permute.xlu0 %1848
    %1850 = vrot.lane.b32.xlu0 %v1483, 56
    %v1851 = vpop.permute.xlu0 %1850
    %v1855 = vsel %vm588, %v1832, 0
    %v1858 = vsel %vm588, %v1834, 0
    %v1861 = vsel %vm588, %v1836, 0
    %v1863 = vsel %vm258, %v1851, 0
    %1865 = vmatprep.subr.mxu0 0.0
    %1866 = vmatpush1.msra.mxu0 %v1847
    %1867 = vmatprep.subr.mxu0 0.0
    %1868 = vmatpush1.msra.mxu0 %v1849
    %1869 = vmatprep.subr.mxu0 0.0
    %1870 = vmatpush1.msra.mxu0 %v1863
    %1871 = vmatprep.subr.mxu0 0.0
    %1872 = vmatpush1.msra.mxu0 0.0
    %1873 = vmatprep.subr.mxu0 0.0
    %1874 = vmatpush1.msra.mxu0 0.0
    %1875 = vmatprep.subr.mxu0 0.0
    %1876 = vmatpush1.msra.mxu0 0.0
    %1877 = vmatprep.subr.mxu0 0.0
    %1878 = vmatpush1.msra.mxu0 0.0
    %1879 = vmatprep.subr.mxu0 0.0
    %1880 = vmatpush1.msra.mxu0 0.0
    %1881 = vmatprep.subr.mxu0 0.0
    %1882 = vmatpush1.msra.mxu0 0.0
    %1883 = vmatprep.subr.mxu0 0.0
    %1884 = vmatpush1.msra.mxu0 0.0
    %1885 = vmatprep.subr.mxu0 0.0
    %1886 = vmatpush1.msra.mxu0 0.0
    %1887 = vmatprep.subr.mxu0 0.0
    %1888 = vmatpush1.msra.mxu0 0.0
    %1889 = vmatprep.subr.mxu0 0.0
    %1890 = vmatpush1.msra.mxu0 0.0
    %1891 = vmatprep.subr.mxu0 0.0
    %1892 = vmatpush1.msra.mxu0 0.0
    %1893 = vmatprep.subr.mxu0 0.0
    %1894 = vmatpush1.msra.mxu0 0.0
    %1895 = vmatprep.subr.mxu0 0.0
    %1896 = vmatpush1.msra.mxu0 0.0
    %1897 = vmatprep.subr.mxu0 0.0
    %1898 = vmatpush1.msra.mxu0 0.0
    %1899 = vmatprep.subr.mxu0 0.0
    %1900 = vmatpush1.msra.mxu0 0.0
    %1901 = vmatprep.subr.mxu0 0.0
    %1902 = vmatpush1.msra.mxu0 0.0
    %1903 = vmatprep.subr.mxu0 0.0
    %1904 = vmatpush1.msra.mxu0 0.0
    %1905 = vmatprep.subr.mxu0 0.0
    %1906 = vmatpush1.msra.mxu0 0.0
    %1907 = vmatprep.subr.mxu0 0.0
    %1908 = vmatpush1.msra.mxu0 0.0
    %1909 = vmatprep.subr.mxu0 0.0
    %1910 = vmatpush1.msra.mxu0 0.0
    %1911 = vmatprep.subr.mxu0 0.0
    %1912 = vmatpush1.msra.mxu0 0.0
    %1913 = vmatprep.subr.mxu0 0.0
    %1914 = vmatpush1.msra.mxu0 0.0
    %1915 = vmatprep.subr.mxu0 0.0
    %1916 = vmatpush1.msra.mxu0 0.0
    %1917 = vmatprep.subr.mxu0 0.0
    %1918 = vmatpush1.msra.mxu0 0.0
    %1919 = vmatprep.subr.mxu0 0.0
    %1920 = vmatpush1.msra.mxu0 0.0
    %1921 = vmatprep.subr.mxu0 0.0
    %1922 = vmatpush1.msra.mxu0 0.0
    %1923 = vmatprep.subr.mxu0 0.0
    %1924 = vmatpush1.msra.mxu0 0.0
    %1925 = vmatprep.subr.mxu0 0.0
    %1926 = vmatpush1.msra.mxu0 0.0
    %1927 = vmatprep.subr.mxu0 0.0
    %1928 = vmatpush1.msra.mxu0 0.0
    %1929 = vmatprep.mubr.f32.mxu0 0.0
    %1930 = vmatmul.mubr.f32.gmra.mrb[0].mxu0 %v1855
    %v1931 = vpop.f32.mrb[0].mxu0
    %v1932 = vadd.f32 0.0, %v1931
    %v1933 = vpop.f32.mrb[0].mxu0
    %1934 = vmatprep.mubr.f32.mxu0 0.0
    %1935 = vmatmul.mubr.f32.gmra.mrb[0].mxu0 %v1858
    %v1936 = vpop.f32.mrb[0].mxu0
    %v1937 = vadd.f32 0.0, %v1936
    %v1938 = vpop.f32.mrb[0].mxu0
    %1939 = vmatprep.mubr.f32.mxu0 0.0
    %1940 = vmatmul.mubr.f32.gmra.mrb[0].mxu0 %v1861
    %v1941 = vpop.f32.mrb[0].mxu0
    %v1942 = vadd.f32 0.0, %v1941
    %v1943 = vpop.f32.mrb[0].mxu0
    %1944 = vdwg.mxu0
    %v1945 = vrcp.pop %v1839
    %v1946 = vrcp.pop %v1842
    %v1947 = vrcp.pop %v1845
    %v1948 = vmul.f32 %v1932, %v1945
    %v1949 = vmul.f32 %v1937, %v1946
    %v1950 = vmul.f32 %v1942, %v1947
    %1951 = vrot.lane.b32.xlu0 %v1482, 112
    %v1952 = vpop.permute.xlu0 %1951
    %1953 = vrot.lane.b32.xlu0 %v1484, 112
    %v1954 = vpop.permute.xlu0 %1953
    %1955 = vrot.lane.b32.xlu0 %v1483, 112
    %v1956 = vpop.permute.xlu0 %1955
    %1957 = vrot.lane.b32.xlu0 %v1482, 80
    %v1958 = vpop.permute.xlu0 %1957
    %1959 = vrot.lane.b32.xlu0 %v1484, 80
    %v1960 = vpop.permute.xlu0 %1959
    %1961 = vrot.lane.b32.xlu0 %v1483, 80
    %v1962 = vpop.permute.xlu0 %1961
    %v1963 = vsel %vm495, %v1952, 0
    %v1965 = vsel %vm495, %v1954, 0
    %v1967 = vsel %vm495, %v1956, 0
    %v1969 = vsel %vm495, %v1958, 0
    %v1971 = vsel %vm495, %v1960, 0
    %v1973 = vsel %vm495, %v1962, 0
    %1975 = vmatprep.subr.mxu0 0.0
    %1976 = vmatpush1.xpose.msra.mxu0 %v1969
    %1977 = vmatprep.subr.mxu0 0.0
    %1978 = vmatpush1.xpose.msra.mxu0 %v1971
    %1979 = vmatprep.subr.mxu0 0.0
    %1980 = vmatpush1.xpose.msra.mxu0 %v1973
    %1981 = vmatprep.subr.mxu0 0.0
    %1982 = vmatpush1.xpose.msra.mxu0 0.0
    %1983 = vmatprep.subr.mxu0 0.0
    %1984 = vmatpush1.xpose.msra.mxu0 0.0
    %1985 = vmatprep.subr.mxu0 0.0
    %1986 = vmatpush1.xpose.msra.mxu0 0.0
    %1987 = vmatprep.subr.mxu0 0.0
    %1988 = vmatpush1.xpose.msra.mxu0 0.0
    %1989 = vmatprep.subr.mxu0 0.0
    %1990 = vmatpush1.xpose.msra.mxu0 0.0
    %1991 = vmatprep.subr.mxu0 0.0
    %1992 = vmatpush1.xpose.msra.mxu0 0.0
    %1993 = vmatprep.subr.mxu0 0.0
    %1994 = vmatpush1.xpose.msra.mxu0 0.0
    %1995 = vmatprep.subr.mxu0 0.0
    %1996 = vmatpush1.xpose.msra.mxu0 0.0
    %1997 = vmatprep.subr.mxu0 0.0
    %1998 = vmatpush1.xpose.msra.mxu0 0.0
    %1999 = vmatprep.subr.mxu0 0.0
    %2000 = vmatpush1.xpose.msra.mxu0 0.0
    %2001 = vmatprep.subr.mxu0 0.0
    %2002 = vmatpush1.xpose.msra.mxu0 0.0
    %2003 = vmatprep.subr.mxu0 0.0
    %2004 = vmatpush1.xpose.msra.mxu0 0.0
    %2005 = vmatprep.subr.mxu0 0.0
    %2006 = vmatpush1.xpose.msra.mxu0 0.0
    %2007 = vmatprep.subr.mxu0 0.0
    %2008 = vmatpush1.xpose.msra.mxu0 0.0
    %2009 = vmatprep.subr.mxu0 0.0
    %2010 = vmatpush1.xpose.msra.mxu0 0.0
    %2011 = vmatprep.subr.mxu0 0.0
    %2012 = vmatpush1.xpose.msra.mxu0 0.0
    %2013 = vmatprep.subr.mxu0 0.0
    %2014 = vmatpush1.xpose.msra.mxu0 0.0
    %2015 = vmatprep.subr.mxu0 0.0
    %2016 = vmatpush1.xpose.msra.mxu0 0.0
    %2017 = vmatprep.subr.mxu0 0.0
    %2018 = vmatpush1.xpose.msra.mxu0 0.0
    %2019 = vmatprep.subr.mxu0 0.0
    %2020 = vmatpush1.xpose.msra.mxu0 0.0
    %2021 = vmatprep.subr.mxu0 0.0
    %2022 = vmatpush1.xpose.msra.mxu0 0.0
    %2023 = vmatprep.subr.mxu0 0.0
    %2024 = vmatpush1.xpose.msra.mxu0 0.0
    %2025 = vmatprep.subr.mxu0 0.0
    %2026 = vmatpush1.xpose.msra.mxu0 0.0
    %2027 = vmatprep.subr.mxu0 0.0
    %2028 = vmatpush1.xpose.msra.mxu0 0.0
    %2029 = vmatprep.subr.mxu0 0.0
    %2030 = vmatpush1.xpose.msra.mxu0 0.0
    %2031 = vmatprep.subr.mxu0 0.0
    %2032 = vmatpush1.xpose.msra.mxu0 0.0
    %2033 = vmatprep.subr.mxu0 0.0
    %2034 = vmatpush1.xpose.msra.mxu0 0.0
    %2035 = vmatprep.subr.mxu0 0.0
    %2036 = vmatpush1.xpose.msra.mxu0 0.0
    %2037 = vmatprep.subr.mxu0 0.0
    %2038 = vmatpush1.xpose.msra.mxu0 0.0
    %2039 = vmatprep.mubr.f32.mxu0 0.0
    %2040 = vmatmul.mubr.f32.gmra.mrb[0].mxu0 %v1963
    %v2041 = vpop.f32.mrb[0].mxu0
    %v2042 = vadd.f32 0.0, %v2041
    %v2043 = vpop.f32.mrb[0].mxu0
    %2044 = vmatprep.mubr.f32.mxu0 0.0
    %2045 = vmatmul.mubr.f32.gmra.mrb[0].mxu0 %v1965
    %v2046 = vpop.f32.mrb[0].mxu0
    %v2047 = vadd.f32 0.0, %v2046
    %v2048 = vpop.f32.mrb[0].mxu0
    %2049 = vmatprep.mubr.f32.mxu0 0.0
    %2050 = vmatmul.mubr.f32.gmra.mrb[0].mxu0 %v1967
    %v2051 = vpop.f32.mrb[0].mxu0
    %v2052 = vadd.f32 0.0, %v2051
    %v2053 = vpop.f32.mrb[0].mxu0
    %2054 = vdwg.mxu0
    %v2055 = vsel %vm588, %v2042, -inf
    %2056 = vmax.xlane.f32.xlu0 %v2055
    %v2057 = vpop.xlane.xlu0 %2056
    %v2058 = vsel %vm588, %v2047, -inf
    %2059 = vmax.xlane.f32.xlu0 %v2058
    %v2060 = vpop.xlane.xlu0 %2059
    %v2061 = vsel %vm595, %v2052, -inf
    %2062 = vmax.xlane.f32.xlu0 %v2061
    %v2063 = vpop.xlane.xlu0 %2062
    %v2064 = vsub.f32 %v2042, %v2057
    %v2065 = vsub.f32 %v2047, %v2060
    %v2066 = vsub.f32 %v2052, %v2063
    %v2067 = vmul.f32 %v2064, 1.442695
    %v2068 = vpow.pop %v2067
    %v2069 = vmul.f32 %v2065, 1.442695
    %v2070 = vpow.pop %v2069
    %v2071 = vmul.f32 %v2066, 1.442695
    %v2072 = vpow.pop %v2071
    %v2073 = vsel %vm588, %v2068, 0.0
    %2074 = vadd.xlane.f32.xlu0 %v2073
    %v2075 = vpop.xlane.xlu0 %2074
    %v2076 = vsel %vm588, %v2070, 0.0
    %2077 = vadd.xlane.f32.xlu0 %v2076
    %v2078 = vpop.xlane.xlu0 %2077
    %v2079 = vsel %vm595, %v2072, 0.0
    %2080 = vadd.xlane.f32.xlu0 %v2079
    %v2081 = vpop.xlane.xlu0 %2080
    %2082 = vrot.lane.b32.xlu0 %v1482, 48
    %v2083 = vpop.permute.xlu0 %2082
    %2084 = vrot.lane.b32.xlu0 %v1484, 48
    %v2085 = vpop.permute.xlu0 %2084
    %2086 = vrot.lane.b32.xlu0 %v1483, 48
    %v2087 = vpop.permute.xlu0 %2086
    %v2091 = vsel %vm588, %v2068, 0
    %v2094 = vsel %vm588, %v2070, 0
    %v2097 = vsel %vm588, %v2072, 0
    %v2099 = vsel %vm258, %v2087, 0
    %2101 = vmatprep.subr.mxu0 0.0
    %2102 = vmatpush1.msra.mxu0 %v2083
    %2103 = vmatprep.subr.mxu0 0.0
    %2104 = vmatpush1.msra.mxu0 %v2085
    %2105 = vmatprep.subr.mxu0 0.0
    %2106 = vmatpush1.msra.mxu0 %v2099
    %2107 = vmatprep.subr.mxu0 0.0
    %2108 = vmatpush1.msra.mxu0 0.0
    %2109 = vmatprep.subr.mxu0 0.0
    %2110 = vmatpush1.msra.mxu0 0.0
    %2111 = vmatprep.subr.mxu0 0.0
    %2112 = vmatpush1.msra.mxu0 0.0
    %2113 = vmatprep.subr.mxu0 0.0
    %2114 = vmatpush1.msra.mxu0 0.0
    %2115 = vmatprep.subr.mxu0 0.0
    %2116 = vmatpush1.msra.mxu0 0.0
    %2117 = vmatprep.subr.mxu0 0.0
    %2118 = vmatpush1.msra.mxu0 0.0
    %2119 = vmatprep.subr.mxu0 0.0
    %2120 = vmatpush1.msra.mxu0 0.0
    %2121 = vmatprep.subr.mxu0 0.0
    %2122 = vmatpush1.msra.mxu0 0.0
    %2123 = vmatprep.subr.mxu0 0.0
    %2124 = vmatpush1.msra.mxu0 0.0
    %2125 = vmatprep.subr.mxu0 0.0
    %2126 = vmatpush1.msra.mxu0 0.0
    %2127 = vmatprep.subr.mxu0 0.0
    %2128 = vmatpush1.msra.mxu0 0.0
    %2129 = vmatprep.subr.mxu0 0.0
    %2130 = vmatpush1.msra.mxu0 0.0
    %2131 = vmatprep.subr.mxu0 0.0
    %2132 = vmatpush1.msra.mxu0 0.0
    %2133 = vmatprep.subr.mxu0 0.0
    %2134 = vmatpush1.msra.mxu0 0.0
    %2135 = vmatprep.subr.mxu0 0.0
    %2136 = vmatpush1.msra.mxu0 0.0
    %2137 = vmatprep.subr.mxu0 0.0
    %2138 = vmatpush1.msra.mxu0 0.0
    %2139 = vmatprep.subr.mxu0 0.0
    %2140 = vmatpush1.msra.mxu0 0.0
    %2141 = vmatprep.subr.mxu0 0.0
    %2142 = vmatpush1.msra.mxu0 0.0
    %2143 = vmatprep.subr.mxu0 0.0
    %2144 = vmatpush1.msra.mxu0 0.0
    %2145 = vmatprep.subr.mxu0 0.0
    %2146 = vmatpush1.msra.mxu0 0.0
    %2147 = vmatprep.subr.mxu0 0.0
    %2148 = vmatpush1.msra.mxu0 0.0
    %2149 = vmatprep.subr.mxu0 0.0
    %2150 = vmatpush1.msra.mxu0 0.0
    %2151 = vmatprep.subr.mxu0 0.0
    %2152 = vmatpush1.msra.mxu0 0.0
    %2153 = vmatprep.subr.mxu0 0.0
    %2154 = vmatpush1.msra.mxu0 0.0
    %2155 = vmatprep.subr.mxu0 0.0
    %2156 = vmatpush1.msra.mxu0 0.0
    %2157 = vmatprep.subr.mxu0 0.0
    %2158 = vmatpush1.msra.mxu0 0.0
    %2159 = vmatprep.subr.mxu0 0.0
    %2160 = vmatpush1.msra.mxu0 0.0
    %2161 = vmatprep.subr.mxu0 0.0
    %2162 = vmatpush1.msra.mxu0 0.0
    %2163 = vmatprep.subr.mxu0 0.0
    %2164 = vmatpush1.msra.mxu0 0.0
    %2165 = vmatprep.mubr.f32.mxu0 0.0
    %2166 = vmatmul.mubr.f32.gmra.mrb[0].mxu0 %v2091
    %v2167 = vpop.f32.mrb[0].mxu0
    %v2168 = vadd.f32 0.0, %v2167
    %v2169 = vpop.f32.mrb[0].mxu0
    %2170 = vmatprep.mubr.f32.mxu0 0.0
    %2171 = vmatmul.mubr.f32.gmra.mrb[0].mxu0 %v2094
    %v2172 = vpop.f32.mrb[0].mxu0
    %v2173 = vadd.f32 0.0, %v2172
    %v2174 = vpop.f32.mrb[0].mxu0
    %2175 = vmatprep.mubr.f32.mxu0 0.0
    %2176 = vmatmul.mubr.f32.gmra.mrb[0].mxu0 %v2097
    %v2177 = vpop.f32.mrb[0].mxu0
    %v2178 = vadd.f32 0.0, %v2177
    %v2179 = vpop.f32.mrb[0].mxu0
    %2180 = vdwg.mxu0
    %v2181 = vrcp.pop %v2075
    %v2182 = vrcp.pop %v2078
    %v2183 = vrcp.pop %v2081
    %v2184 = vmul.f32 %v2168, %v2181
    %v2185 = vmul.f32 %v2173, %v2182
    %v2186 = vmul.f32 %v2178, %v2183
    %2187 = vrot.lane.b32.xlu0 %v1482, 104
    %v2188 = vpop.permute.xlu0 %2187
    %2189 = vrot.lane.b32.xlu0 %v1484, 104
    %v2190 = vpop.permute.xlu0 %2189
    %2191 = vrot.lane.b32.xlu0 %v1483, 104
    %v2192 = vpop.permute.xlu0 %2191
    %2193 = vrot.lane.b32.xlu0 %v1482, 72
    %v2194 = vpop.permute.xlu0 %2193
    %2195 = vrot.lane.b32.xlu0 %v1484, 72
    %v2196 = vpop.permute.xlu0 %2195
    %2197 = vrot.lane.b32.xlu0 %v1483, 72
    %v2198 = vpop.permute.xlu0 %2197
    %v2199 = vsel %vm495, %v2188, 0
    %v2201 = vsel %vm495, %v2190, 0
    %v2203 = vsel %vm495, %v2192, 0
    %v2205 = vsel %vm495, %v2194, 0
    %v2207 = vsel %vm495, %v2196, 0
    %v2209 = vsel %vm495, %v2198, 0
    %2211 = vmatprep.subr.mxu0 0.0
    %2212 = vmatpush1.xpose.msra.mxu0 %v2205
    %2213 = vmatprep.subr.mxu0 0.0
    %2214 = vmatpush1.xpose.msra.mxu0 %v2207
    %2215 = vmatprep.subr.mxu0 0.0
    %2216 = vmatpush1.xpose.msra.mxu0 %v2209
    %2217 = vmatprep.subr.mxu0 0.0
    %2218 = vmatpush1.xpose.msra.mxu0 0.0
    %2219 = vmatprep.subr.mxu0 0.0
    %2220 = vmatpush1.xpose.msra.mxu0 0.0
    %2221 = vmatprep.subr.mxu0 0.0
    %2222 = vmatpush1.xpose.msra.mxu0 0.0
    %2223 = vmatprep.subr.mxu0 0.0
    %2224 = vmatpush1.xpose.msra.mxu0 0.0
    %2225 = vmatprep.subr.mxu0 0.0
    %2226 = vmatpush1.xpose.msra.mxu0 0.0
    %2227 = vmatprep.subr.mxu0 0.0
    %2228 = vmatpush1.xpose.msra.mxu0 0.0
    %2229 = vmatprep.subr.mxu0 0.0
    %2230 = vmatpush1.xpose.msra.mxu0 0.0
    %2231 = vmatprep.subr.mxu0 0.0
    %2232 = vmatpush1.xpose.msra.mxu0 0.0
    %2233 = vmatprep.subr.mxu0 0.0
    %2234 = vmatpush1.xpose.msra.mxu0 0.0
    %2235 = vmatprep.subr.mxu0 0.0
    %2236 = vmatpush1.xpose.msra.mxu0 0.0
    %2237 = vmatprep.subr.mxu0 0.0
    %2238 = vmatpush1.xpose.msra.mxu0 0.0
    %2239 = vmatprep.subr.mxu0 0.0
    %2240 = vmatpush1.xpose.msra.mxu0 0.0
    %2241 = vmatprep.subr.mxu0 0.0
    %2242 = vmatpush1.xpose.msra.mxu0 0.0
    %2243 = vmatprep.subr.mxu0 0.0
    %2244 = vmatpush1.xpose.msra.mxu0 0.0
    %2245 = vmatprep.subr.mxu0 0.0
    %2246 = vmatpush1.xpose.msra.mxu0 0.0
    %2247 = vmatprep.subr.mxu0 0.0
    %2248 = vmatpush1.xpose.msra.mxu0 0.0
    %2249 = vmatprep.subr.mxu0 0.0
    %2250 = vmatpush1.xpose.msra.mxu0 0.0
    %2251 = vmatprep.subr.mxu0 0.0
    %2252 = vmatpush1.xpose.msra.mxu0 0.0
    %2253 = vmatprep.subr.mxu0 0.0
    %2254 = vmatpush1.xpose.msra.mxu0 0.0
    %2255 = vmatprep.subr.mxu0 0.0
    %2256 = vmatpush1.xpose.msra.mxu0 0.0
    %2257 = vmatprep.subr.mxu0 0.0
    %2258 = vmatpush1.xpose.msra.mxu0 0.0
    %2259 = vmatprep.subr.mxu0 0.0
    %2260 = vmatpush1.xpose.msra.mxu0 0.0
    %2261 = vmatprep.subr.mxu0 0.0
    %2262 = vmatpush1.xpose.msra.mxu0 0.0
    %2263 = vmatprep.subr.mxu0 0.0
    %2264 = vmatpush1.xpose.msra.mxu0 0.0
    %2265 = vmatprep.subr.mxu0 0.0
    %2266 = vmatpush1.xpose.msra.mxu0 0.0
    %2267 = vmatprep.subr.mxu0 0.0
    %2268 = vmatpush1.xpose.msra.mxu0 0.0
    %2269 = vmatprep.subr.mxu0 0.0
    %2270 = vmatpush1.xpose.msra.mxu0 0.0
    %2271 = vmatprep.subr.mxu0 0.0
    %2272 = vmatpush1.xpose.msra.mxu0 0.0
    %2273 = vmatprep.subr.mxu0 0.0
    %2274 = vmatpush1.xpose.msra.mxu0 0.0
    %2275 = vmatprep.mubr.f32.mxu0 0.0
    %2276 = vmatmul.mubr.f32.gmra.mrb[0].mxu0 %v2199
    %v2277 = vpop.f32.mrb[0].mxu0
    %v2278 = vadd.f32 0.0, %v2277
    %v2279 = vpop.f32.mrb[0].mxu0
    %2280 = vmatprep.mubr.f32.mxu0 0.0
    %2281 = vmatmul.mubr.f32.gmra.mrb[0].mxu0 %v2201
    %v2282 = vpop.f32.mrb[0].mxu0
    %v2283 = vadd.f32 0.0, %v2282
    %v2284 = vpop.f32.mrb[0].mxu0
    %2285 = vmatprep.mubr.f32.mxu0 0.0
    %2286 = vmatmul.mubr.f32.gmra.mrb[0].mxu0 %v2203
    %v2287 = vpop.f32.mrb[0].mxu0
    %v2288 = vadd.f32 0.0, %v2287
    %v2289 = vpop.f32.mrb[0].mxu0
    %2290 = vdwg.mxu0
    %v2291 = vsel %vm588, %v2278, -inf
    %2292 = vmax.xlane.f32.xlu0 %v2291
    %v2293 = vpop.xlane.xlu0 %2292
    %v2294 = vsel %vm588, %v2283, -inf
    %2295 = vmax.xlane.f32.xlu0 %v2294
    %v2296 = vpop.xlane.xlu0 %2295
    %v2297 = vsel %vm595, %v2288, -inf
    %2298 = vmax.xlane.f32.xlu0 %v2297
    %v2299 = vpop.xlane.xlu0 %2298
    %v2300 = vsub.f32 %v2278, %v2293
    %v2301 = vsub.f32 %v2283, %v2296
    %v2302 = vsub.f32 %v2288, %v2299
    %v2303 = vmul.f32 %v2300, 1.442695
    %v2304 = vpow.pop %v2303
    %v2305 = vmul.f32 %v2301, 1.442695
    %v2306 = vpow.pop %v2305
    %v2307 = vmul.f32 %v2302, 1.442695
    %v2308 = vpow.pop %v2307
    %v2309 = vsel %vm588, %v2304, 0.0
    %2310 = vadd.xlane.f32.xlu0 %v2309
    %v2311 = vpop.xlane.xlu0 %2310
    %v2312 = vsel %vm588, %v2306, 0.0
    %2313 = vadd.xlane.f32.xlu0 %v2312
    %v2314 = vpop.xlane.xlu0 %2313
    %v2315 = vsel %vm595, %v2308, 0.0
    %2316 = vadd.xlane.f32.xlu0 %v2315
    %v2317 = vpop.xlane.xlu0 %2316
    %2318 = vrot.lane.b32.xlu0 %v1482, 40
    %v2319 = vpop.permute.xlu0 %2318
    %2320 = vrot.lane.b32.xlu0 %v1484, 40
    %v2321 = vpop.permute.xlu0 %2320
    %2322 = vrot.lane.b32.xlu0 %v1483, 40
    %v2323 = vpop.permute.xlu0 %2322
    %v2327 = vsel %vm588, %v2304, 0
    %v2330 = vsel %vm588, %v2306, 0
    %v2333 = vsel %vm588, %v2308, 0
    %v2335 = vsel %vm258, %v2323, 0
    %2337 = vmatprep.subr.mxu0 0.0
    %2338 = vmatpush1.msra.mxu0 %v2319
    %2339 = vmatprep.subr.mxu0 0.0
    %2340 = vmatpush1.msra.mxu0 %v2321
    %2341 = vmatprep.subr.mxu0 0.0
    %2342 = vmatpush1.msra.mxu0 %v2335
    %2343 = vmatprep.subr.mxu0 0.0
    %2344 = vmatpush1.msra.mxu0 0.0
    %2345 = vmatprep.subr.mxu0 0.0
    %2346 = vmatpush1.msra.mxu0 0.0
    %2347 = vmatprep.subr.mxu0 0.0
    %2348 = vmatpush1.msra.mxu0 0.0
    %2349 = vmatprep.subr.mxu0 0.0
    %2350 = vmatpush1.msra.mxu0 0.0
    %2351 = vmatprep.subr.mxu0 0.0
    %2352 = vmatpush1.msra.mxu0 0.0
    %2353 = vmatprep.subr.mxu0 0.0
    %2354 = vmatpush1.msra.mxu0 0.0
    %2355 = vmatprep.subr.mxu0 0.0
    %2356 = vmatpush1.msra.mxu0 0.0
    %2357 = vmatprep.subr.mxu0 0.0
    %2358 = vmatpush1.msra.mxu0 0.0
    %2359 = vmatprep.subr.mxu0 0.0
    %2360 = vmatpush1.msra.mxu0 0.0
    %2361 = vmatprep.subr.mxu0 0.0
    %2362 = vmatpush1.msra.mxu0 0.0
    %2363 = vmatprep.subr.mxu0 0.0
    %2364 = vmatpush1.msra.mxu0 0.0
    %2365 = vmatprep.subr.mxu0 0.0
    %2366 = vmatpush1.msra.mxu0 0.0
    %2367 = vmatprep.subr.mxu0 0.0
    %2368 = vmatpush1.msra.mxu0 0.0
    %2369 = vmatprep.subr.mxu0 0.0
    %2370 = vmatpush1.msra.mxu0 0.0
    %2371 = vmatprep.subr.mxu0 0.0
    %2372 = vmatpush1.msra.mxu0 0.0
    %2373 = vmatprep.subr.mxu0 0.0
    %2374 = vmatpush1.msra.mxu0 0.0
    %2375 = vmatprep.subr.mxu0 0.0
    %2376 = vmatpush1.msra.mxu0 0.0
    %2377 = vmatprep.subr.mxu0 0.0
    %2378 = vmatpush1.msra.mxu0 0.0
    %2379 = vmatprep.subr.mxu0 0.0
    %2380 = vmatpush1.msra.mxu0 0.0
    %2381 = vmatprep.subr.mxu0 0.0
    %2382 = vmatpush1.msra.mxu0 0.0
    %2383 = vmatprep.subr.mxu0 0.0
    %2384 = vmatpush1.msra.mxu0 0.0
    %2385 = vmatprep.subr.mxu0 0.0
    %2386 = vmatpush1.msra.mxu0 0.0
    %2387 = vmatprep.subr.mxu0 0.0
    %2388 = vmatpush1.msra.mxu0 0.0
    %2389 = vmatprep.subr.mxu0 0.0
    %2390 = vmatpush1.msra.mxu0 0.0
    %2391 = vmatprep.subr.mxu0 0.0
    %2392 = vmatpush1.msra.mxu0 0.0
    %2393 = vmatprep.subr.mxu0 0.0
    %2394 = vmatpush1.msra.mxu0 0.0
    %2395 = vmatprep.subr.mxu0 0.0
    %2396 = vmatpush1.msra.mxu0 0.0
    %2397 = vmatprep.subr.mxu0 0.0
    %2398 = vmatpush1.msra.mxu0 0.0
    %2399 = vmatprep.subr.mxu0 0.0
    %2400 = vmatpush1.msra.mxu0 0.0
    %2401 = vmatprep.mubr.f32.mxu0 0.0
    %2402 = vmatmul.mubr.f32.gmra.mrb[0].mxu0 %v2327
    %v2403 = vpop.f32.mrb[0].mxu0
    %v2404 = vadd.f32 0.0, %v2403
    %v2405 = vpop.f32.mrb[0].mxu0
    %2406 = vmatprep.mubr.f32.mxu0 0.0
    %2407 = vmatmul.mubr.f32.gmra.mrb[0].mxu0 %v2330
    %v2408 = vpop.f32.mrb[0].mxu0
    %v2409 = vadd.f32 0.0, %v2408
    %v2410 = vpop.f32.mrb[0].mxu0
    %2411 = vmatprep.mubr.f32.mxu0 0.0
    %2412 = vmatmul.mubr.f32.gmra.mrb[0].mxu0 %v2333
    %v2413 = vpop.f32.mrb[0].mxu0
    %v2414 = vadd.f32 0.0, %v2413
    %v2415 = vpop.f32.mrb[0].mxu0
    %2416 = vdwg.mxu0
    %v2417 = vrcp.pop %v2311
    %v2418 = vrcp.pop %v2314
    %v2419 = vrcp.pop %v2317
    %v2420 = vmul.f32 %v2404, %v2417
    %v2421 = vmul.f32 %v2409, %v2418
    %v2422 = vmul.f32 %v2414, %v2419
    %2426 = vrot.lane.b32.xlu0 %v1948, 8
    %v2427 = vpop.permute.xlu0 %2426
    %2428 = vrot.lane.b32.xlu0 %v1949, 8
    %v2429 = vpop.permute.xlu0 %2428
    %2430 = vrot.lane.b32.xlu0 %v1950, 8
    %v2431 = vpop.permute.xlu0 %2430
    %2438 = vrot.lane.b32.xlu0 %v2184, 16
    %v2439 = vpop.permute.xlu0 %2438
    %2440 = vrot.lane.b32.xlu0 %v2185, 16
    %v2441 = vpop.permute.xlu0 %2440
    %2442 = vrot.lane.b32.xlu0 %v2186, 16
    %v2443 = vpop.permute.xlu0 %2442
    %2450 = vrot.lane.b32.xlu0 %v2420, 24
    %v2451 = vpop.permute.xlu0 %2450
    %2452 = vrot.lane.b32.xlu0 %v2421, 24
    %v2453 = vpop.permute.xlu0 %2452
    %2454 = vrot.lane.b32.xlu0 %v2422, 24
    %v2455 = vpop.permute.xlu0 %2454
    %v2459 = vsel %vm495, %v1712, %v2427
    %v2460 = vsel %vm495, %v1713, %v2429
    %v2461 = vsel %vm495, %v1714, %v2431
    %v2462 = vsel %vm1469, %v2459, %v2439
    %v2463 = vsel %vm1469, %v2460, %v2441
    %v2464 = vsel %vm1469, %v2461, %v2443
    %v2465 = vsel %vm1473, %v2462, %v2451
    %v2466 = vsel %vm1473, %v2463, %v2453
    %v2467 = vsel %vm1473, %v2464, %v2455
    %v2471 = vrot.slane %v2465, 7
    %v2472 = vrot.slane %v2466, 7
    %v2473 = vsel %vm258, %v2471, %v2472
    %v2474 = vrot.slane %v2467, 7
    %v2475 = vsel %vm258, %v2472, %v2474
    %v2477 = vsel %vm258, %v1476, %v2471
    %v2478 = vld [vmem:[%s7] sm:$0xff]
    %v2479 = vld [vmem:[%s7 + $0x8] sm:$0xff]
    %v2480 = vld [vmem:[%s7 + $0x10] sm:$0xff]
    %v2481 = vld [vmem:[%s7 + $0x18] sm:$0xff]
    %v2483 = vsel %vm280, %v1474, 0
    %v2486 = vsel %vm280, %v1475, 0
    %v2489 = vsel %vm280, %v2477, 0
    %v2491 = vsel %vm280, %v2473, 0
    %v2493 = vsel %vm280, %v2475, 0
    %2495 = vmatprep.subr.mxu0 0.0
    %2496 = vmatpush1.msra.mxu0 %v2478
    %2497 = vmatprep.subr.mxu0 0.0
    %2498 = vmatpush1.msra.mxu0 %v2479
    %2499 = vmatprep.subr.mxu0 0.0
    %2500 = vmatpush1.msra.mxu0 %v2480
    %2501 = vmatprep.subr.mxu0 0.0
    %2502 = vmatpush1.msra.mxu0 %v2481
    %2503 = vmatprep.subr.mxu0 0.0
    %2504 = vmatpush1.msra.mxu0 0.0
    %2505 = vmatprep.subr.mxu0 0.0
    %2506 = vmatpush1.msra.mxu0 0.0
    %2507 = vmatprep.subr.mxu0 0.0
    %2508 = vmatpush1.msra.mxu0 0.0
    %2509 = vmatprep.subr.mxu0 0.0
    %2510 = vmatpush1.msra.mxu0 0.0
    %2511 = vmatprep.subr.mxu0 0.0
    %2512 = vmatpush1.msra.mxu0 0.0
    %2513 = vmatprep.subr.mxu0 0.0
    %2514 = vmatpush1.msra.mxu0 0.0
    %2515 = vmatprep.subr.mxu0 0.0
    %2516 = vmatpush1.msra.mxu0 0.0
    %2517 = vmatprep.subr.mxu0 0.0
    %2518 = vmatpush1.msra.mxu0 0.0
    %2519 = vmatprep.subr.mxu0 0.0
    %2520 = vmatpush1.msra.mxu0 0.0
    %2521 = vmatprep.subr.mxu0 0.0
    %2522 = vmatpush1.msra.mxu0 0.0
    %2523 = vmatprep.subr.mxu0 0.0
    %2524 = vmatpush1.msra.mxu0 0.0
    %2525 = vmatprep.subr.mxu0 0.0
    %2526 = vmatpush1.msra.mxu0 0.0
    %2527 = vmatprep.subr.mxu0 0.0
    %2528 = vmatpush1.msra.mxu0 0.0
    %2529 = vmatprep.subr.mxu0 0.0
    %2530 = vmatpush1.msra.mxu0 0.0
    %2531 = vmatprep.subr.mxu0 0.0
    %2532 = vmatpush1.msra.mxu0 0.0
    %2533 = vmatprep.subr.mxu0 0.0
    %2534 = vmatpush1.msra.mxu0 0.0
    %2535 = vmatprep.subr.mxu0 0.0
    %2536 = vmatpush1.msra.mxu0 0.0
    %2537 = vmatprep.subr.mxu0 0.0
    %2538 = vmatpush1.msra.mxu0 0.0
    %2539 = vmatprep.subr.mxu0 0.0
    %2540 = vmatpush1.msra.mxu0 0.0
    %2541 = vmatprep.subr.mxu0 0.0
    %2542 = vmatpush1.msra.mxu0 0.0
    %2543 = vmatprep.subr.mxu0 0.0
    %2544 = vmatpush1.msra.mxu0 0.0
    %2545 = vmatprep.subr.mxu0 0.0
    %2546 = vmatpush1.msra.mxu0 0.0
    %2547 = vmatprep.subr.mxu0 0.0
    %2548 = vmatpush1.msra.mxu0 0.0
    %2549 = vmatprep.subr.mxu0 0.0
    %2550 = vmatpush1.msra.mxu0 0.0
    %2551 = vmatprep.subr.mxu0 0.0
    %2552 = vmatpush1.msra.mxu0 0.0
    %2553 = vmatprep.subr.mxu0 0.0
    %2554 = vmatpush1.msra.mxu0 0.0
    %2555 = vmatprep.subr.mxu0 0.0
    %2556 = vmatpush1.msra.mxu0 0.0
    %2557 = vmatprep.subr.mxu0 0.0
    %2558 = vmatpush1.msra.mxu0 0.0
    %2559 = vmatprep.mubr.f32.mxu0 0.0
    %2560 = vmatmul.mubr.f32.gmra.mrb[0].mxu0 %v2483
    %v2561 = vpop.f32.mrb[0].mxu0
    %v2562 = vadd.f32 0.0, %v2561
    %v2563 = vpop.f32.mrb[0].mxu0
    %2564 = vmatprep.mubr.f32.mxu0 0.0
    %2565 = vmatmul.mubr.f32.gmra.mrb[0].mxu0 %v2486
    %v2566 = vpop.f32.mrb[0].mxu0
    %v2567 = vadd.f32 0.0, %v2566
    %v2568 = vpop.f32.mrb[0].mxu0
    %2569 = vmatprep.mubr.f32.mxu0 0.0
    %2570 = vmatmul.mubr.f32.gmra.mrb[0].mxu0 %v2489
    %v2571 = vpop.f32.mrb[0].mxu0
    %v2572 = vadd.f32 0.0, %v2571
    %v2573 = vpop.f32.mrb[0].mxu0
    %2574 = vmatprep.mubr.f32.mxu0 0.0
    %2575 = vmatmul.mubr.f32.gmra.mrb[0].mxu0 %v2491
    %v2576 = vpop.f32.mrb[0].mxu0
    %v2577 = vadd.f32 0.0, %v2576
    %v2578 = vpop.f32.mrb[0].mxu0
    %2579 = vmatprep.mubr.f32.mxu0 0.0
    %2580 = vmatmul.mubr.f32.gmra.mrb[0].mxu0 %v2493
    %v2581 = vpop.f32.mrb[0].mxu0
    %v2582 = vadd.f32 0.0, %v2581
    %v2583 = vpop.f32.mrb[0].mxu0
    %2584 = vdwg.mxu0
    %v2585 = vadd.f32 %v273, %v2562
    %v2586 = vadd.f32 %v274, %v2567
    %v2587 = vadd.f32 %v275, %v2572
    %v2588 = vadd.f32 %v276, %v2577
    %v2589 = vadd.f32 %v277, %v2582
    %v2590 = vld [vmem:[%s8] sm:$0x1]
    %v2592 = vlaneseq
    %v2593 = vshrl.u32 %v2592, 7
    %v2594 = vsub.s32 0, %v2593
    %v2595 = vrot.slane %v2590, %v2594
    %v2597 = vadd.f32 %v2585, %v2595
    %v2598 = vadd.f32 %v2586, %v2595
    %v2599 = vadd.f32 %v2587, %v2595
    %v2600 = vadd.f32 %v2588, %v2595
    %v2601 = vadd.f32 %v2589, %v2595
    %v2602 = vld [vmem:[%s9] sm:$0x1]
    %v2603 = vld [vmem:[%s10] sm:$0x1]
    %v2604 = vsel %vm280, %v2597, 0.0
    %2605 = vadd.xlane.f32.xlu0 %v2604
    %v2606 = vpop.xlane.xlu0 %2605
    %v2607 = vsel %vm280, %v2598, 0.0
    %2608 = vadd.xlane.f32.xlu0 %v2607
    %v2609 = vpop.xlane.xlu0 %2608
    %v2610 = vsel %vm280, %v2599, 0.0
    %2611 = vadd.xlane.f32.xlu0 %v2610
    %v2612 = vpop.xlane.xlu0 %2611
    %v2613 = vsel %vm280, %v2600, 0.0
    %2614 = vadd.xlane.f32.xlu0 %v2613
    %v2615 = vpop.xlane.xlu0 %2614
    %v2616 = vsel %vm293, %v2601, 0.0
    %2617 = vadd.xlane.f32.xlu0 %v2616
    %v2618 = vpop.xlane.xlu0 %2617
    %v2619 = vmul.f32 %v2606, %v297
    %v2620 = vmul.f32 %v2609, %v297
    %v2621 = vmul.f32 %v2612, %v297
    %v2622 = vmul.f32 %v2615, %v297
    %v2623 = vmul.f32 %v2618, %v297
    %v2624 = vsub.f32 %v2597, %v2619
    %v2625 = vsub.f32 %v2598, %v2620
    %v2626 = vsub.f32 %v2599, %v2621
    %v2627 = vsub.f32 %v2600, %v2622
    %v2628 = vsub.f32 %v2601, %v2623
    %v2629 = vmul.f32 %v2624, %v2624
    %v2630 = vmul.f32 %v2625, %v2625
    %v2631 = vmul.f32 %v2626, %v2626
    %v2632 = vmul.f32 %v2627, %v2627
    %v2633 = vmul.f32 %v2628, %v2628
    %v2634 = vsel %vm280, %v2629, 0.0
    %2635 = vadd.xlane.f32.xlu0 %v2634
    %v2636 = vpop.xlane.xlu0 %2635
    %v2637 = vsel %vm280, %v2630, 0.0
    %2638 = vadd.xlane.f32.xlu0 %v2637
    %v2639 = vpop.xlane.xlu0 %2638
    %v2640 = vsel %vm280, %v2631, 0.0
    %2641 = vadd.xlane.f32.xlu0 %v2640
    %v2642 = vpop.xlane.xlu0 %2641
    %v2643 = vsel %vm280, %v2632, 0.0
    %2644 = vadd.xlane.f32.xlu0 %v2643
    %v2645 = vpop.xlane.xlu0 %2644
    %v2646 = vsel %vm293, %v2633, 0.0
    %2647 = vadd.xlane.f32.xlu0 %v2646
    %v2648 = vpop.xlane.xlu0 %2647
    %v2649 = vmul.f32 %v2636, %v297
    %v2650 = vmul.f32 %v2639, %v297
    %v2651 = vmul.f32 %v2642, %v297
    %v2652 = vmul.f32 %v2645, %v297
    %v2653 = vmul.f32 %v2648, %v297
    %v2654 = vadd.f32 %v2649, 1e-06
    %v2655 = vadd.f32 %v2650, 1e-06
    %v2656 = vadd.f32 %v2651, 1e-06
    %v2657 = vadd.f32 %v2652, 1e-06
    %v2658 = vadd.f32 %v2653, 1e-06
    %v2659 = vrsqrt.pop %v2654
    %v2660 = vrsqrt.pop %v2655
    %v2661 = vrsqrt.pop %v2656
    %v2662 = vrsqrt.pop %v2657
    %v2663 = vrsqrt.pop %v2658
    %v2664 = vmul.f32 %v2624, %v2659
    %v2665 = vmul.f32 %v2625, %v2660
    %v2666 = vmul.f32 %v2626, %v2661
    %v2667 = vmul.f32 %v2627, %v2662
    %v2668 = vmul.f32 %v2628, %v2663
    %v2670 = vlaneseq
    %v2671 = vshrl.u32 %v2670, 7
    %v2672 = vsub.s32 0, %v2671
    %v2673 = vrot.slane %v2602, %v2672
    %v2675 = vmul.f32 %v2664, %v2673
    %v2676 = vmul.f32 %v2665, %v2673
    %v2677 = vmul.f32 %v2666, %v2673
    %v2678 = vmul.f32 %v2667, %v2673
    %v2679 = vmul.f32 %v2668, %v2673
    %v2681 = vlaneseq
    %v2682 = vshrl.u32 %v2681, 7
    %v2683 = vsub.s32 0, %v2682
    %v2684 = vrot.slane %v2603, %v2683
    %v2686 = vadd.f32 %v2675, %v2684
    %v2687 = vadd.f32 %v2676, %v2684
    %v2688 = vadd.f32 %v2677, %v2684
    %v2689 = vadd.f32 %v2678, %v2684
    %v2690 = vadd.f32 %v2679, %v2684
    %v2691 = vld [vmem:[%s11] sm:$0xff]
    %v2692 = vld [vmem:[%s11 + $0x8] sm:$0xff]
    %v2693 = vld [vmem:[%s11 + $0x10] sm:$0xff]
    %v2694 = vld [vmem:[%s11 + $0x18] sm:$0xff]
    %v2695 = vld [vmem:[%s12] sm:$0x1]
    %v2697 = vlaneseq
    %v2698 = vshrl.u32 %v2697, 7
    %v2699 = vsub.s32 0, %v2698
    %v2700 = vrot.slane %v2695, %v2699
    %v2703 = vsel %vm280, %v2686, 0
    %v2706 = vsel %vm280, %v2687, 0
    %v2709 = vsel %vm280, %v2688, 0
    %v2712 = vsel %vm280, %v2689, 0
    %v2715 = vsel %vm280, %v2690, 0
    %2717 = vmatprep.subr.mxu0 0.0
    %2718 = vmatpush1.msra.mxu0 %v2691
    %2719 = vmatprep.subr.mxu0 0.0
    %2720 = vmatpush1.msra.mxu0 %v2692
    %2721 = vmatprep.subr.mxu0 0.0
    %2722 = vmatpush1.msra.mxu0 %v2693
    %2723 = vmatprep.subr.mxu0 0.0
    %2724 = vmatpush1.msra.mxu0 %v2694
    %2725 = vmatprep.subr.mxu0 0.0
    %2726 = vmatpush1.msra.mxu0 0.0
    %2727 = vmatprep.subr.mxu0 0.0
    %2728 = vmatpush1.msra.mxu0 0.0
    %2729 = vmatprep.subr.mxu0 0.0
    %2730 = vmatpush1.msra.mxu0 0.0
    %2731 = vmatprep.subr.mxu0 0.0
    %2732 = vmatpush1.msra.mxu0 0.0
    %2733 = vmatprep.subr.mxu0 0.0
    %2734 = vmatpush1.msra.mxu0 0.0
    %2735 = vmatprep.subr.mxu0 0.0
    %2736 = vmatpush1.msra.mxu0 0.0
    %2737 = vmatprep.subr.mxu0 0.0
    %2738 = vmatpush1.msra.mxu0 0.0
    %2739 = vmatprep.subr.mxu0 0.0
    %2740 = vmatpush1.msra.mxu0 0.0
    %2741 = vmatprep.subr.mxu0 0.0
    %2742 = vmatpush1.msra.mxu0 0.0
    %2743 = vmatprep.subr.mxu0 0.0
    %2744 = vmatpush1.msra.mxu0 0.0
    %2745 = vmatprep.subr.mxu0 0.0
    %2746 = vmatpush1.msra.mxu0 0.0
    %2747 = vmatprep.subr.mxu0 0.0
    %2748 = vmatpush1.msra.mxu0 0.0
    %2749 = vmatprep.subr.mxu0 0.0
    %2750 = vmatpush1.msra.mxu0 0.0
    %2751 = vmatprep.subr.mxu0 0.0
    %2752 = vmatpush1.msra.mxu0 0.0
    %2753 = vmatprep.subr.mxu0 0.0
    %2754 = vmatpush1.msra.mxu0 0.0
    %2755 = vmatprep.subr.mxu0 0.0
    %2756 = vmatpush1.msra.mxu0 0.0
    %2757 = vmatprep.subr.mxu0 0.0
    %2758 = vmatpush1.msra.mxu0 0.0
    %2759 = vmatprep.subr.mxu0 0.0
    %2760 = vmatpush1.msra.mxu0 0.0
    %2761 = vmatprep.subr.mxu0 0.0
    %2762 = vmatpush1.msra.mxu0 0.0
    %2763 = vmatprep.subr.mxu0 0.0
    %2764 = vmatpush1.msra.mxu0 0.0
    %2765 = vmatprep.subr.mxu0 0.0
    %2766 = vmatpush1.msra.mxu0 0.0
    %2767 = vmatprep.subr.mxu0 0.0
    %2768 = vmatpush1.msra.mxu0 0.0
    %2769 = vmatprep.subr.mxu0 0.0
    %2770 = vmatpush1.msra.mxu0 0.0
    %2771 = vmatprep.subr.mxu0 0.0
    %2772 = vmatpush1.msra.mxu0 0.0
    %2773 = vmatprep.subr.mxu0 0.0
    %2774 = vmatpush1.msra.mxu0 0.0
    %2775 = vmatprep.subr.mxu0 0.0
    %2776 = vmatpush1.msra.mxu0 0.0
    %2777 = vmatprep.subr.mxu0 0.0
    %2778 = vmatpush1.msra.mxu0 0.0
    %2779 = vmatprep.subr.mxu0 0.0
    %2780 = vmatpush1.msra.mxu0 0.0
    %2781 = vmatprep.mubr.f32.mxu0 0.0
    %2782 = vmatmul.mubr.f32.gmra.mrb[0].mxu0 %v2703
    %v2783 = vpop.f32.mrb[0].mxu0
    %v2784 = vadd.f32 %v2700, %v2783
    %v2785 = vpop.f32.mrb[0].mxu0
    %2786 = vmatprep.mubr.f32.mxu0 0.0
    %2787 = vmatmul.mubr.f32.gmra.mrb[0].mxu0 %v2706
    %v2788 = vpop.f32.mrb[0].mxu0
    %v2789 = vadd.f32 %v2700, %v2788
    %v2790 = vpop.f32.mrb[0].mxu0
    %2791 = vmatprep.mubr.f32.mxu0 0.0
    %2792 = vmatmul.mubr.f32.gmra.mrb[0].mxu0 %v2709
    %v2793 = vpop.f32.mrb[0].mxu0
    %v2794 = vadd.f32 %v2700, %v2793
    %v2795 = vpop.f32.mrb[0].mxu0
    %2796 = vmatprep.mubr.f32.mxu0 0.0
    %2797 = vmatmul.mubr.f32.gmra.mrb[0].mxu0 %v2712
    %v2798 = vpop.f32.mrb[0].mxu0
    %v2799 = vadd.f32 %v2700, %v2798
    %v2800 = vpop.f32.mrb[0].mxu0
    %2801 = vmatprep.mubr.f32.mxu0 0.0
    %2802 = vmatmul.mubr.f32.gmra.mrb[0].mxu0 %v2715
    %v2803 = vpop.f32.mrb[0].mxu0
    %v2804 = vadd.f32 %v2700, %v2803
    %v2805 = vpop.f32.mrb[0].mxu0
    %2806 = vdwg.mxu0
    %v2807 = vmul.f32 %v2784, 0.5
    %v2808 = vmul.f32 %v2789, 0.5
    %v2809 = vmul.f32 %v2794, 0.5
    %v2810 = vmul.f32 %v2799, 0.5
    %v2811 = vmul.f32 %v2804, 0.5
    %v2812 = vmul.f32 %v2784, 0.044715
    %v2813 = vmul.f32 %v2789, 0.044715
    %v2814 = vmul.f32 %v2794, 0.044715
    %v2815 = vmul.f32 %v2799, 0.044715
    %v2816 = vmul.f32 %v2804, 0.044715
    %v2817 = vmul.f32 %v2812, %v2784
    %v2818 = vmul.f32 %v2813, %v2789
    %v2819 = vmul.f32 %v2814, %v2794
    %v2820 = vmul.f32 %v2815, %v2799
    %v2821 = vmul.f32 %v2816, %v2804
    %v2822 = vmul.f32 %v2817, %v2784
    %v2823 = vmul.f32 %v2818, %v2789
    %v2824 = vmul.f32 %v2819, %v2794
    %v2825 = vmul.f32 %v2820, %v2799
    %v2826 = vmul.f32 %v2821, %v2804
    %v2827 = vadd.f32 %v2784, %v2822
    %v2828 = vadd.f32 %v2789, %v2823
    %v2829 = vadd.f32 %v2794, %v2824
    %v2830 = vadd.f32 %v2799, %v2825
    %v2831 = vadd.f32 %v2804, %v2826
    %v2832 = vmul.f32 %v2827, 0.7978846
    %v2833 = vmul.f32 %v2828, 0.7978846
    %v2834 = vmul.f32 %v2829, 0.7978846
    %v2835 = vmul.f32 %v2830, 0.7978846
    %v2836 = vmul.f32 %v2831, 0.7978846
    %v2837 = vtanh.pop %v2832
    %v2838 = vtanh.pop %v2833
    %v2839 = vtanh.pop %v2834
    %v2840 = vtanh.pop %v2835
    %v2841 = vtanh.pop %v2836
    %v2842 = vadd.f32 %v2837, 1.0
    %v2843 = vadd.f32 %v2838, 1.0
    %v2844 = vadd.f32 %v2839, 1.0
    %v2845 = vadd.f32 %v2840, 1.0
    %v2846 = vadd.f32 %v2841, 1.0
    %v2847 = vmul.f32 %v2807, %v2842
    %v2848 = vmul.f32 %v2808, %v2843
    %v2849 = vmul.f32 %v2809, %v2844
    %v2850 = vmul.f32 %v2810, %v2845
    %v2851 = vmul.f32 %v2811, %v2846
    %v2852 = vld [vmem:[%s13] sm:$0xff]
    %v2853 = vld [vmem:[%s13 + $0x8] sm:$0xff]
    %v2854 = vld [vmem:[%s13 + $0x10] sm:$0xff]
    %v2855 = vld [vmem:[%s13 + $0x18] sm:$0xff]
    %v2856 = vld [vmem:[%s13 + $0x20] sm:$0xff]
    %v2857 = vld [vmem:[%s13 + $0x28] sm:$0xff]
    %v2858 = vld [vmem:[%s13 + $0x30] sm:$0xff]
    %v2859 = vld [vmem:[%s13 + $0x38] sm:$0xff]
    %vm2860 = vcmask 523264
    %v2862 = vsel %vm2860, %v2847, 0
    %v2865 = vsel %vm2860, %v2848, 0
    %v2868 = vsel %vm2860, %v2849, 0
    %v2871 = vsel %vm2860, %v2850, 0
    %v2874 = vsel %vm2860, %v2851, 0
    %2876 = vmatprep.subr.mxu0 0.0
    %2877 = vmatpush1.msra.mxu0 %v2852
    %2878 = vmatprep.subr.mxu0 0.0
    %2879 = vmatpush1.msra.mxu0 %v2853
    %2880 = vmatprep.subr.mxu0 0.0
    %2881 = vmatpush1.msra.mxu0 %v2854
    %2882 = vmatprep.subr.mxu0 0.0
    %2883 = vmatpush1.msra.mxu0 %v2855
    %2884 = vmatprep.subr.mxu0 0.0
    %2885 = vmatpush1.msra.mxu0 %v2856
    %2886 = vmatprep.subr.mxu0 0.0
    %2887 = vmatpush1.msra.mxu0 %v2857
    %2888 = vmatprep.subr.mxu0 0.0
    %2889 = vmatpush1.msra.mxu0 %v2858
    %2890 = vmatprep.subr.mxu0 0.0
    %2891 = vmatpush1.msra.mxu0 %v2859
    %2892 = vmatprep.subr.mxu0 0.0
    %2893 = vmatpush1.msra.mxu0 0.0
    %2894 = vmatprep.subr.mxu0 0.0
    %2895 = vmatpush1.msra.mxu0 0.0
    %2896 = vmatprep.subr.mxu0 0.0
    %2897 = vmatpush1.msra.mxu0 0.0
    %2898 = vmatprep.subr.mxu0 0.0
    %2899 = vmatpush1.msra.mxu0 0.0
    %2900 = vmatprep.subr.mxu0 0.0
    %2901 = vmatpush1.msra.mxu0 0.0
    %2902 = vmatprep.subr.mxu0 0.0
    %2903 = vmatpush1.msra.mxu0 0.0
    %2904 = vmatprep.subr.mxu0 0.0
    %2905 = vmatpush1.msra.mxu0 0.0
    %2906 = vmatprep.subr.mxu0 0.0
    %2907 = vmatpush1.msra.mxu0 0.0
    %2908 = vmatprep.subr.mxu0 0.0
    %2909 = vmatpush1.msra.mxu0 0.0
    %2910 = vmatprep.subr.mxu0 0.0
    %2911 = vmatpush1.msra.mxu0 0.0
    %2912 = vmatprep.subr.mxu0 0.0
    %2913 = vmatpush1.msra.mxu0 0.0
    %2914 = vmatprep.subr.mxu0 0.0
    %2915 = vmatpush1.msra.mxu0 0.0
    %2916 = vmatprep.subr.mxu0 0.0
    %2917 = vmatpush1.msra.mxu0 0.0
    %2918 = vmatprep.subr.mxu0 0.0
    %2919 = vmatpush1.msra.mxu0 0.0
    %2920 = vmatprep.subr.mxu0 0.0
    %2921 = vmatpush1.msra.mxu0 0.0
    %2922 = vmatprep.subr.mxu0 0.0
    %2923 = vmatpush1.msra.mxu0 0.0
    %2924 = vmatprep.subr.mxu0 0.0
    %2925 = vmatpush1.msra.mxu0 0.0
    %2926 = vmatprep.subr.mxu0 0.0
    %2927 = vmatpush1.msra.mxu0 0.0
    %2928 = vmatprep.subr.mxu0 0.0
    %2929 = vmatpush1.msra.mxu0 0.0
    %2930 = vmatprep.subr.mxu0 0.0
    %2931 = vmatpush1.msra.mxu0 0.0
    %2932 = vmatprep.subr.mxu0 0.0
    %2933 = vmatpush1.msra.mxu0 0.0
    %2934 = vmatprep.subr.mxu0 0.0
    %2935 = vmatpush1.msra.mxu0 0.0
    %2936 = vmatprep.subr.mxu0 0.0
    %2937 = vmatpush1.msra.mxu0 0.0
    %2938 = vmatprep.subr.mxu0 0.0
    %2939 = vmatpush1.msra.mxu0 0.0
    %2940 = vmatprep.mubr.f32.mxu0 0.0
    %2941 = vmatmul.mubr.f32.gmra.mrb[0].mxu0 %v2862
    %v2942 = vpop.f32.mrb[0].mxu0
    %v2943 = vadd.f32 0.0, %v2942
    %v2944 = vpop.f32.mrb[0].mxu0
    %2945 = vmatprep.mubr.f32.mxu0 0.0
    %2946 = vmatmul.mubr.f32.gmra.mrb[0].mxu0 %v2865
    %v2947 = vpop.f32.mrb[0].mxu0
    %v2948 = vadd.f32 0.0, %v2947
    %v2949 = vpop.f32.mrb[0].mxu0
    %2950 = vmatprep.mubr.f32.mxu0 0.0
    %2951 = vmatmul.mubr.f32.gmra.mrb[0].mxu0 %v2868
    %v2952 = vpop.f32.mrb[0].mxu0
    %v2953 = vadd.f32 0.0, %v2952
    %v2954 = vpop.f32.mrb[0].mxu0
    %2955 = vmatprep.mubr.f32.mxu0 0.0
    %2956 = vmatmul.mubr.f32.gmra.mrb[0].mxu0 %v2871
    %v2957 = vpop.f32.mrb[0].mxu0
    %v2958 = vadd.f32 0.0, %v2957
    %v2959 = vpop.f32.mrb[0].mxu0
    %2960 = vmatprep.mubr.f32.mxu0 0.0
    %2961 = vmatmul.mubr.f32.gmra.mrb[0].mxu0 %v2874
    %v2962 = vpop.f32.mrb[0].mxu0
    %v2963 = vadd.f32 0.0, %v2962
    %v2964 = vpop.f32.mrb[0].mxu0
    %2965 = vdwg.mxu0
    %v2966 = vadd.f32 %v2597, %v2943
    %v2967 = vadd.f32 %v2598, %v2948
    %v2968 = vadd.f32 %v2599, %v2953
    %v2969 = vadd.f32 %v2600, %v2958
    %v2970 = vadd.f32 %v2601, %v2963
    %v2971 = vld [vmem:[%s14] sm:$0x1]
    %v2973 = vlaneseq
    %v2974 = vshrl.u32 %v2973, 7
    %v2975 = vsub.s32 0, %v2974
    %v2976 = vrot.slane %v2971, %v2975
    %v2978 = vadd.f32 %v2966, %v2976
    %v2979 = vadd.f32 %v2967, %v2976
    %v2980 = vadd.f32 %v2968, %v2976
    %v2981 = vadd.f32 %v2969, %v2976
    %v2982 = vadd.f32 %v2970, %v2976
    %s2983 = scalar_lea.vmem %s3, 1
    %v2984 = vld [vmem:[%s2983] sm:$0x1]
    %s2985 = scalar_lea.vmem %s4, 1
    %v2986 = vld [vmem:[%s2985] sm:$0x1]
    %v2987 = vsel %vm280, %v2978, 0.0
    %2988 = vadd.xlane.f32.xlu0 %v2987
    %v2989 = vpop.xlane.xlu0 %2988
    %v2990 = vsel %vm280, %v2979, 0.0
    %2991 = vadd.xlane.f32.xlu0 %v2990
    %v2992 = vpop.xlane.xlu0 %2991
    %v2993 = vsel %vm280, %v2980, 0.0
    %2994 = vadd.xlane.f32.xlu0 %v2993
    %v2995 = vpop.xlane.xlu0 %2994
    %v2996 = vsel %vm280, %v2981, 0.0
    %2997 = vadd.xlane.f32.xlu0 %v2996
    %v2998 = vpop.xlane.xlu0 %2997
    %v2999 = vsel %vm293, %v2982, 0.0
    %3000 = vadd.xlane.f32.xlu0 %v2999
    %v3001 = vpop.xlane.xlu0 %3000
    %v3002 = vmul.f32 %v2989, %v297
    %v3003 = vmul.f32 %v2992, %v297
    %v3004 = vmul.f32 %v2995, %v297
    %v3005 = vmul.f32 %v2998, %v297
    %v3006 = vmul.f32 %v3001, %v297
    %v3007 = vsub.f32 %v2978, %v3002
    %v3008 = vsub.f32 %v2979, %v3003
    %v3009 = vsub.f32 %v2980, %v3004
    %v3010 = vsub.f32 %v2981, %v3005
    %v3011 = vsub.f32 %v2982, %v3006
    %v3012 = vmul.f32 %v3007, %v3007
    %v3013 = vmul.f32 %v3008, %v3008
    %v3014 = vmul.f32 %v3009, %v3009
    %v3015 = vmul.f32 %v3010, %v3010
    %v3016 = vmul.f32 %v3011, %v3011
    %v3017 = vsel %vm280, %v3012, 0.0
    %3018 = vadd.xlane.f32.xlu0 %v3017
    %v3019 = vpop.xlane.xlu0 %3018
    %v3020 = vsel %vm280, %v3013, 0.0
    %3021 = vadd.xlane.f32.xlu0 %v3020
    %v3022 = vpop.xlane.xlu0 %3021
    %v3023 = vsel %vm280, %v3014, 0.0
    %3024 = vadd.xlane.f32.xlu0 %v3023
    %v3025 = vpop.xlane.xlu0 %3024
    %v3026 = vsel %vm280, %v3015, 0.0
    %3027 = vadd.xlane.f32.xlu0 %v3026
    %v3028 = vpop.xlane.xlu0 %3027
    %v3029 = vsel %vm293, %v3016, 0.0
    %3030 = vadd.xlane.f32.xlu0 %v3029
    %v3031 = vpop.xlane.xlu0 %3030
    %v3032 = vmul.f32 %v3019, %v297
    %v3033 = vmul.f32 %v3022, %v297
    %v3034 = vmul.f32 %v3025, %v297
    %v3035 = vmul.f32 %v3028, %v297
    %v3036 = vmul.f32 %v3031, %v297
    %v3037 = vadd.f32 %v3032, 1e-06
    %v3038 = vadd.f32 %v3033, 1e-06
    %v3039 = vadd.f32 %v3034, 1e-06
    %v3040 = vadd.f32 %v3035, 1e-06
    %v3041 = vadd.f32 %v3036, 1e-06
    %v3042 = vrsqrt.pop %v3037
    %v3043 = vrsqrt.pop %v3038
    %v3044 = vrsqrt.pop %v3039
    %v3045 = vrsqrt.pop %v3040
    %v3046 = vrsqrt.pop %v3041
    %v3047 = vmul.f32 %v3007, %v3042
    %v3048 = vmul.f32 %v3008, %v3043
    %v3049 = vmul.f32 %v3009, %v3044
    %v3050 = vmul.f32 %v3010, %v3045
    %v3051 = vmul.f32 %v3011, %v3046
    %v3053 = vlaneseq
    %v3054 = vshrl.u32 %v3053, 7
    %v3055 = vsub.s32 0, %v3054
    %v3056 = vrot.slane %v2984, %v3055
    %v3058 = vmul.f32 %v3047, %v3056
    %v3059 = vmul.f32 %v3048, %v3056
    %v3060 = vmul.f32 %v3049, %v3056
    %v3061 = vmul.f32 %v3050, %v3056
    %v3062 = vmul.f32 %v3051, %v3056
    %v3064 = vlaneseq
    %v3065 = vshrl.u32 %v3064, 7
    %v3066 = vsub.s32 0, %v3065
    %v3067 = vrot.slane %v2986, %v3066
    %v3069 = vadd.f32 %v3058, %v3067
    %v3070 = vadd.f32 %v3059, %v3067
    %v3071 = vadd.f32 %v3060, %v3067
    %v3072 = vadd.f32 %v3061, %v3067
    %v3073 = vadd.f32 %v3062, %v3067
    %s3074 = scalar_lea.vmem %s5, 32
    %v3075 = vld [vmem:[%s3074] sm:$0xff]
    %v3076 = vld [vmem:[%s3074 + $0x8] sm:$0xff]
    %v3077 = vld [vmem:[%s3074 + $0x10] sm:$0xff]
    %v3078 = vld [vmem:[%s3074 + $0x18] sm:$0xff]
    %s3079 = scalar_lea.vmem %s6, 1
    %v3080 = vld [vmem:[%s3079] sm:$0x1]
    %v3082 = vlaneseq
    %v3083 = vshrl.u32 %v3082, 7
    %v3084 = vsub.s32 0, %v3083
    %v3085 = vrot.slane %v3080, %v3084
    %v3088 = vsel %vm280, %v3069, 0
    %v3091 = vsel %vm280, %v3070, 0
    %v3094 = vsel %vm280, %v3071, 0
    %v3097 = vsel %vm280, %v3072, 0
    %v3100 = vsel %vm280, %v3073, 0
    %3102 = vmatprep.subr.mxu0 0.0
    %3103 = vmatpush1.msra.mxu0 %v3075
    %3104 = vmatprep.subr.mxu0 0.0
    %3105 = vmatpush1.msra.mxu0 %v3076
    %3106 = vmatprep.subr.mxu0 0.0
    %3107 = vmatpush1.msra.mxu0 %v3077
    %3108 = vmatprep.subr.mxu0 0.0
    %3109 = vmatpush1.msra.mxu0 %v3078
    %3110 = vmatprep.subr.mxu0 0.0
    %3111 = vmatpush1.msra.mxu0 0.0
    %3112 = vmatprep.subr.mxu0 0.0
    %3113 = vmatpush1.msra.mxu0 0.0
    %3114 = vmatprep.subr.mxu0 0.0
    %3115 = vmatpush1.msra.mxu0 0.0
    %3116 = vmatprep.subr.mxu0 0.0
    %3117 = vmatpush1.msra.mxu0 0.0
    %3118 = vmatprep.subr.mxu0 0.0
    %3119 = vmatpush1.msra.mxu0 0.0
    %3120 = vmatprep.subr.mxu0 0.0
    %3121 = vmatpush1.msra.mxu0 0.0
    %3122 = vmatprep.subr.mxu0 0.0
    %3123 = vmatpush1.msra.mxu0 0.0
    %3124 = vmatprep.subr.mxu0 0.0
    %3125 = vmatpush1.msra.mxu0 0.0
    %3126 = vmatprep.subr.mxu0 0.0
    %3127 = vmatpush1.msra.mxu0 0.0
    %3128 = vmatprep.subr.mxu0 0.0
    %3129 = vmatpush1.msra.mxu0 0.0
    %3130 = vmatprep.subr.mxu0 0.0
    %3131 = vmatpush1.msra.mxu0 0.0
    %3132 = vmatprep.subr.mxu0 0.0
    %3133 = vmatpush1.msra.mxu0 0.0
    %3134 = vmatprep.subr.mxu0 0.0
    %3135 = vmatpush1.msra.mxu0 0.0
    %3136 = vmatprep.subr.mxu0 0.0
    %3137 = vmatpush1.msra.mxu0 0.0
    %3138 = vmatprep.subr.mxu0 0.0
    %3139 = vmatpush1.msra.mxu0 0.0
    %3140 = vmatprep.subr.mxu0 0.0
    %3141 = vmatpush1.msra.mxu0 0.0
    %3142 = vmatprep.subr.mxu0 0.0
    %3143 = vmatpush1.msra.mxu0 0.0
    %3144 = vmatprep.subr.mxu0 0.0
    %3145 = vmatpush1.msra.mxu0 0.0
    %3146 = vmatprep.subr.mxu0 0.0
    %3147 = vmatpush1.msra.mxu0 0.0
    %3148 = vmatprep.subr.mxu0 0.0
    %3149 = vmatpush1.msra.mxu0 0.0
    %3150 = vmatprep.subr.mxu0 0.0
    %3151 = vmatpush1.msra.mxu0 0.0
    %3152 = vmatprep.subr.mxu0 0.0
    %3153 = vmatpush1.msra.mxu0 0.0
    %3154 = vmatprep.subr.mxu0 0.0
    %3155 = vmatpush1.msra.mxu0 0.0
    %3156 = vmatprep.subr.mxu0 0.0
    %3157 = vmatpush1.msra.mxu0 0.0
    %3158 = vmatprep.subr.mxu0 0.0
    %3159 = vmatpush1.msra.mxu0 0.0
    %3160 = vmatprep.subr.mxu0 0.0
    %3161 = vmatpush1.msra.mxu0 0.0
    %3162 = vmatprep.subr.mxu0 0.0
    %3163 = vmatpush1.msra.mxu0 0.0
    %3164 = vmatprep.subr.mxu0 0.0
    %3165 = vmatpush1.msra.mxu0 0.0
    %3166 = vmatprep.mubr.f32.mxu0 0.0
    %3167 = vmatmul.mubr.f32.gmra.mrb[0].mxu0 %v3088
    %v3168 = vpop.f32.mrb[0].mxu0
    %v3169 = vadd.f32 %v3085, %v3168
    %v3170 = vpop.f32.mrb[0].mxu0
    %3171 = vmatprep.mubr.f32.mxu0 0.0
    %3172 = vmatmul.mubr.f32.gmra.mrb[0].mxu0 %v3091
    %v3173 = vpop.f32.mrb[0].mxu0
    %v3174 = vadd.f32 %v3085, %v3173
    %v3175 = vpop.f32.mrb[0].mxu0
    %3176 = vmatprep.mubr.f32.mxu0 0.0
    %3177 = vmatmul.mubr.f32.gmra.mrb[0].mxu0 %v3094
    %v3178 = vpop.f32.mrb[0].mxu0
    %v3179 = vadd.f32 %v3085, %v3178
    %v3180 = vpop.f32.mrb[0].mxu0
    %3181 = vmatprep.mubr.f32.mxu0 0.0
    %3182 = vmatmul.mubr.f32.gmra.mrb[0].mxu0 %v3097
    %v3183 = vpop.f32.mrb[0].mxu0
    %v3184 = vadd.f32 %v3085, %v3183
    %v3185 = vpop.f32.mrb[0].mxu0
    %3186 = vmatprep.mubr.f32.mxu0 0.0
    %3187 = vmatmul.mubr.f32.gmra.mrb[0].mxu0 %v3100
    %v3188 = vpop.f32.mrb[0].mxu0
    %v3189 = vadd.f32 %v3085, %v3188
    %v3190 = vpop.f32.mrb[0].mxu0
    %3191 = vdwg.mxu0
    %3195 = vrot.lane.b32.xlu0 %v3169, 96
    %v3196 = vpop.permute.xlu0 %3195
    %3197 = vrot.lane.b32.xlu0 %v3174, 96
    %v3198 = vpop.permute.xlu0 %3197
    %3199 = vrot.lane.b32.xlu0 %v3179, 96
    %v3200 = vpop.permute.xlu0 %3199
    %v3201 = vsel %vm495, %v3169, 0
    %v3203 = vsel %vm495, %v3174, 0
    %v3205 = vsel %vm495, %v3179, 0
    %v3207 = vsel %vm495, %v3196, 0
    %v3209 = vsel %vm495, %v3198, 0
    %v3211 = vsel %vm495, %v3200, 0
    %3213 = vmatprep.subr.mxu0 0.0
    %3214 = vmatpush1.xpose.msra.mxu0 %v3207
    %3215 = vmatprep.subr.mxu0 0.0
    %3216 = vmatpush1.xpose.msra.mxu0 %v3209
    %3217 = vmatprep.subr.mxu0 0.0
    %3218 = vmatpush1.xpose.msra.mxu0 %v3211
    %3219 = vmatprep.subr.mxu0 0.0
    %3220 = vmatpush1.xpose.msra.mxu0 0.0
    %3221 = vmatprep.subr.mxu0 0.0
    %3222 = vmatpush1.xpose.msra.mxu0 0.0
    %3223 = vmatprep.subr.mxu0 0.0
    %3224 = vmatpush1.xpose.msra.mxu0 0.0
    %3225 = vmatprep.subr.mxu0 0.0
    %3226 = vmatpush1.xpose.msra.mxu0 0.0
    %3227 = vmatprep.subr.mxu0 0.0
    %3228 = vmatpush1.xpose.msra.mxu0 0.0
    %3229 = vmatprep.subr.mxu0 0.0
    %3230 = vmatpush1.xpose.msra.mxu0 0.0
    %3231 = vmatprep.subr.mxu0 0.0
    %3232 = vmatpush1.xpose.msra.mxu0 0.0
    %3233 = vmatprep.subr.mxu0 0.0
    %3234 = vmatpush1.xpose.msra.mxu0 0.0
    %3235 = vmatprep.subr.mxu0 0.0
    %3236 = vmatpush1.xpose.msra.mxu0 0.0
    %3237 = vmatprep.subr.mxu0 0.0
    %3238 = vmatpush1.xpose.msra.mxu0 0.0
    %3239 = vmatprep.subr.mxu0 0.0
    %3240 = vmatpush1.xpose.msra.mxu0 0.0
    %3241 = vmatprep.subr.mxu0 0.0
    %3242 = vmatpush1.xpose.msra.mxu0 0.0
    %3243 = vmatprep.subr.mxu0 0.0
    %3244 = vmatpush1.xpose.msra.mxu0 0.0
    %3245 = vmatprep.subr.mxu0 0.0
    %3246 = vmatpush1.xpose.msra.mxu0 0.0
    %3247 = vmatprep.subr.mxu0 0.0
    %3248 = vmatpush1.xpose.msra.mxu0 0.0
    %3249 = vmatprep.subr.mxu0 0.0
    %3250 = vmatpush1.xpose.msra.mxu0 0.0
    %3251 = vmatprep.subr.mxu0 0.0
    %3252 = vmatpush1.xpose.msra.mxu0 0.0
    %3253 = vmatprep.subr.mxu0 0.0
    %3254 = vmatpush1.xpose.msra.mxu0 0.0
    %3255 = vmatprep.subr.mxu0 0.0
    %3256 = vmatpush1.xpose.msra.mxu0 0.0
    %3257 = vmatprep.subr.mxu0 0.0
    %3258 = vmatpush1.xpose.msra.mxu0 0.0
    %3259 = vmatprep.subr.mxu0 0.0
    %3260 = vmatpush1.xpose.msra.mxu0 0.0
    %3261 = vmatprep.subr.mxu0 0.0
    %3262 = vmatpush1.xpose.msra.mxu0 0.0
    %3263 = vmatprep.subr.mxu0 0.0
    %3264 = vmatpush1.xpose.msra.mxu0 0.0
    %3265 = vmatprep.subr.mxu0 0.0
    %3266 = vmatpush1.xpose.msra.mxu0 0.0
    %3267 = vmatprep.subr.mxu0 0.0
    %3268 = vmatpush1.xpose.msra.mxu0 0.0
    %3269 = vmatprep.subr.mxu0 0.0
    %3270 = vmatpush1.xpose.msra.mxu0 0.0
    %3271 = vmatprep.subr.mxu0 0.0
    %3272 = vmatpush1.xpose.msra.mxu0 0.0
    %3273 = vmatprep.subr.mxu0 0.0
    %3274 = vmatpush1.xpose.msra.mxu0 0.0
    %3275 = vmatprep.subr.mxu0 0.0
    %3276 = vmatpush1.xpose.msra.mxu0 0.0
    %3277 = vmatprep.mubr.f32.mxu0 0.0
    %3278 = vmatmul.mubr.f32.gmra.mrb[0].mxu0 %v3201
    %v3279 = vpop.f32.mrb[0].mxu0
    %v3280 = vadd.f32 0.0, %v3279
    %v3281 = vpop.f32.mrb[0].mxu0
    %3282 = vmatprep.mubr.f32.mxu0 0.0
    %3283 = vmatmul.mubr.f32.gmra.mrb[0].mxu0 %v3203
    %v3284 = vpop.f32.mrb[0].mxu0
    %v3285 = vadd.f32 0.0, %v3284
    %v3286 = vpop.f32.mrb[0].mxu0
    %3287 = vmatprep.mubr.f32.mxu0 0.0
    %3288 = vmatmul.mubr.f32.gmra.mrb[0].mxu0 %v3205
    %v3289 = vpop.f32.mrb[0].mxu0
    %v3290 = vadd.f32 0.0, %v3289
    %v3291 = vpop.f32.mrb[0].mxu0
    %3292 = vdwg.mxu0
    %v3293 = vsel %vm588, %v3280, -inf
    %3294 = vmax.xlane.f32.xlu0 %v3293
    %v3295 = vpop.xlane.xlu0 %3294
    %v3296 = vsel %vm588, %v3285, -inf
    %3297 = vmax.xlane.f32.xlu0 %v3296
    %v3298 = vpop.xlane.xlu0 %3297
    %v3299 = vsel %vm595, %v3290, -inf
    %3300 = vmax.xlane.f32.xlu0 %v3299
    %v3301 = vpop.xlane.xlu0 %3300
    %v3302 = vsub.f32 %v3280, %v3295
    %v3303 = vsub.f32 %v3285, %v3298
    %v3304 = vsub.f32 %v3290, %v3301
    %v3305 = vmul.f32 %v3302, 1.442695
    %v3306 = vpow.pop %v3305
    %v3307 = vmul.f32 %v3303, 1.442695
    %v3308 = vpow.pop %v3307
    %v3309 = vmul.f32 %v3304, 1.442695
    %v3310 = vpow.pop %v3309
    %v3311 = vsel %vm588, %v3306, 0.0
    %3312 = vadd.xlane.f32.xlu0 %v3311
    %v3313 = vpop.xlane.xlu0 %3312
    %v3314 = vsel %vm588, %v3308, 0.0
    %3315 = vadd.xlane.f32.xlu0 %v3314
    %v3316 = vpop.xlane.xlu0 %3315
    %v3317 = vsel %vm595, %v3310, 0.0
    %3318 = vadd.xlane.f32.xlu0 %v3317
    %v3319 = vpop.xlane.xlu0 %3318
    %3320 = vrot.lane.b32.xlu0 %v3169, 64
    %v3321 = vpop.permute.xlu0 %3320
    %3322 = vrot.lane.b32.xlu0 %v3174, 64
    %v3323 = vpop.permute.xlu0 %3322
    %3324 = vrot.lane.b32.xlu0 %v3179, 64
    %v3325 = vpop.permute.xlu0 %3324
    %v3329 = vsel %vm588, %v3306, 0
    %v3332 = vsel %vm588, %v3308, 0
    %v3335 = vsel %vm588, %v3310, 0
    %v3337 = vsel %vm258, %v3325, 0
    %3339 = vmatprep.subr.mxu0 0.0
    %3340 = vmatpush1.msra.mxu0 %v3321
    %3341 = vmatprep.subr.mxu0 0.0
    %3342 = vmatpush1.msra.mxu0 %v3323
    %3343 = vmatprep.subr.mxu0 0.0
    %3344 = vmatpush1.msra.mxu0 %v3337
    %3345 = vmatprep.subr.mxu0 0.0
    %3346 = vmatpush1.msra.mxu0 0.0
    %3347 = vmatprep.subr.mxu0 0.0
    %3348 = vmatpush1.msra.mxu0 0.0
    %3349 = vmatprep.subr.mxu0 0.0
    %3350 = vmatpush1.msra.mxu0 0.0
    %3351 = vmatprep.subr.mxu0 0.0
    %3352 = vmatpush1.msra.mxu0 0.0
    %3353 = vmatprep.subr.mxu0 0.0
    %3354 = vmatpush1.msra.mxu0 0.0
    %3355 = vmatprep.subr.mxu0 0.0
    %3356 = vmatpush1.msra.mxu0 0.0
    %3357 = vmatprep.subr.mxu0 0.0
    %3358 = vmatpush1.msra.mxu0 0.0
    %3359 = vmatprep.subr.mxu0 0.0
    %3360 = vmatpush1.msra.mxu0 0.0
    %3361 = vmatprep.subr.mxu0 0.0
    %3362 = vmatpush1.msra.mxu0 0.0
    %3363 = vmatprep.subr.mxu0 0.0
    %3364 = vmatpush1.msra.mxu0 0.0
    %3365 = vmatprep.subr.mxu0 0.0
    %3366 = vmatpush1.msra.mxu0 0.0
    %3367 = vmatprep.subr.mxu0 0.0
    %3368 = vmatpush1.msra.mxu0 0.0
    %3369 = vmatprep.subr.mxu0 0.0
    %3370 = vmatpush1.msra.mxu0 0.0
    %3371 = vmatprep.subr.mxu0 0.0
    %3372 = vmatpush1.msra.mxu0 0.0
    %3373 = vmatprep.subr.mxu0 0.0
    %3374 = vmatpush1.msra.mxu0 0.0
    %3375 = vmatprep.subr.mxu0 0.0
    %3376 = vmatpush1.msra.mxu0 0.0
    %3377 = vmatprep.subr.mxu0 0.0
    %3378 = vmatpush1.msra.mxu0 0.0
    %3379 = vmatprep.subr.mxu0 0.0
    %3380 = vmatpush1.msra.mxu0 0.0
    %3381 = vmatprep.subr.mxu0 0.0
    %3382 = vmatpush1.msra.mxu0 0.0
    %3383 = vmatprep.subr.mxu0 0.0
    %3384 = vmatpush1.msra.mxu0 0.0
    %3385 = vmatprep.subr.mxu0 0.0
    %3386 = vmatpush1.msra.mxu0 0.0
    %3387 = vmatprep.subr.mxu0 0.0
    %3388 = vmatpush1.msra.mxu0 0.0
    %3389 = vmatprep.subr.mxu0 0.0
    %3390 = vmatpush1.msra.mxu0 0.0
    %3391 = vmatprep.subr.mxu0 0.0
    %3392 = vmatpush1.msra.mxu0 0.0
    %3393 = vmatprep.subr.mxu0 0.0
    %3394 = vmatpush1.msra.mxu0 0.0
    %3395 = vmatprep.subr.mxu0 0.0
    %3396 = vmatpush1.msra.mxu0 0.0
    %3397 = vmatprep.subr.mxu0 0.0
    %3398 = vmatpush1.msra.mxu0 0.0
    %3399 = vmatprep.subr.mxu0 0.0
    %3400 = vmatpush1.msra.mxu0 0.0
    %3401 = vmatprep.subr.mxu0 0.0
    %3402 = vmatpush1.msra.mxu0 0.0
    %3403 = vmatprep.mubr.f32.mxu0 0.0
    %3404 = vmatmul.mubr.f32.gmra.mrb[0].mxu0 %v3329
    %v3405 = vpop.f32.mrb[0].mxu0
    %v3406 = vadd.f32 0.0, %v3405
    %v3407 = vpop.f32.mrb[0].mxu0
    %3408 = vmatprep.mubr.f32.mxu0 0.0
    %3409 = vmatmul.mubr.f32.gmra.mrb[0].mxu0 %v3332
    %v3410 = vpop.f32.mrb[0].mxu0
    %v3411 = vadd.f32 0.0, %v3410
    %v3412 = vpop.f32.mrb[0].mxu0
    %3413 = vmatprep.mubr.f32.mxu0 0.0
    %3414 = vmatmul.mubr.f32.gmra.mrb[0].mxu0 %v3335
    %v3415 = vpop.f32.mrb[0].mxu0
    %v3416 = vadd.f32 0.0, %v3415
    %v3417 = vpop.f32.mrb[0].mxu0
    %3418 = vdwg.mxu0
    %v3419 = vrcp.pop %v3313
    %v3420 = vrcp.pop %v3316
    %v3421 = vrcp.pop %v3319
    %v3422 = vmul.f32 %v3406, %v3419
    %v3423 = vmul.f32 %v3411, %v3420
    %v3424 = vmul.f32 %v3416, %v3421
    %3425 = vrot.lane.b32.xlu0 %v3169, 120
    %v3426 = vpop.permute.xlu0 %3425
    %3427 = vrot.lane.b32.xlu0 %v3174, 120
    %v3428 = vpop.permute.xlu0 %3427
    %3429 = vrot.lane.b32.xlu0 %v3179, 120
    %v3430 = vpop.permute.xlu0 %3429
    %3431 = vrot.lane.b32.xlu0 %v3169, 88
    %v3432 = vpop.permute.xlu0 %3431
    %3433 = vrot.lane.b32.xlu0 %v3174, 88
    %v3434 = vpop.permute.xlu0 %3433
    %3435 = vrot.lane.b32.xlu0 %v3179, 88
    %v3436 = vpop.permute.xlu0 %3435
    %v3437 = vsel %vm495, %v3426, 0
    %v3439 = vsel %vm495, %v3428, 0
    %v3441 = vsel %vm495, %v3430, 0
    %v3443 = vsel %vm495, %v3432, 0
    %v3445 = vsel %vm495, %v3434, 0
    %v3447 = vsel %vm495, %v3436, 0
    %3449 = vmatprep.subr.mxu0 0.0
    %3450 = vmatpush1.xpose.msra.mxu0 %v3443
    %3451 = vmatprep.subr.mxu0 0.0
    %3452 = vmatpush1.xpose.msra.mxu0 %v3445
    %3453 = vmatprep.subr.mxu0 0.0
    %3454 = vmatpush1.xpose.msra.mxu0 %v3447
    %3455 = vmatprep.subr.mxu0 0.0
    %3456 = vmatpush1.xpose.msra.mxu0 0.0
    %3457 = vmatprep.subr.mxu0 0.0
    %3458 = vmatpush1.xpose.msra.mxu0 0.0
    %3459 = vmatprep.subr.mxu0 0.0
    %3460 = vmatpush1.xpose.msra.mxu0 0.0
    %3461 = vmatprep.subr.mxu0 0.0
    %3462 = vmatpush1.xpose.msra.mxu0 0.0
    %3463 = vmatprep.subr.mxu0 0.0
    %3464 = vmatpush1.xpose.msra.mxu0 0.0
    %3465 = vmatprep.subr.mxu0 0.0
    %3466 = vmatpush1.xpose.msra.mxu0 0.0
    %3467 = vmatprep.subr.mxu0 0.0
    %3468 = vmatpush1.xpose.msra.mxu0 0.0
    %3469 = vmatprep.subr.mxu0 0.0
    %3470 = vmatpush1.xpose.msra.mxu0 0.0
    %3471 = vmatprep.subr.mxu0 0.0
    %3472 = vmatpush1.xpose.msra.mxu0 0.0
    %3473 = vmatprep.subr.mxu0 0.0
    %3474 = vmatpush1.xpose.msra.mxu0 0.0
    %3475 = vmatprep.subr.mxu0 0.0
    %3476 = vmatpush1.xpose.msra.mxu0 0.0
    %3477 = vmatprep.subr.mxu0 0.0
    %3478 = vmatpush1.xpose.msra.mxu0 0.0
    %3479 = vmatprep.subr.mxu0 0.0
    %3480 = vmatpush1.xpose.msra.mxu0 0.0
    %3481 = vmatprep.subr.mxu0 0.0
    %3482 = vmatpush1.xpose.msra.mxu0 0.0
    %3483 = vmatprep.subr.mxu0 0.0
    %3484 = vmatpush1.xpose.msra.mxu0 0.0
    %3485 = vmatprep.subr.mxu0 0.0
    %3486 = vmatpush1.xpose.msra.mxu0 0.0
    %3487 = vmatprep.subr.mxu0 0.0
    %3488 = vmatpush1.xpose.msra.mxu0 0.0
    %3489 = vmatprep.subr.mxu0 0.0
    %3490 = vmatpush1.xpose.msra.mxu0 0.0
    %3491 = vmatprep.subr.mxu0 0.0
    %3492 = vmatpush1.xpose.msra.mxu0 0.0
    %3493 = vmatprep.subr.mxu0 0.0
    %3494 = vmatpush1.xpose.msra.mxu0 0.0
    %3495 = vmatprep.subr.mxu0 0.0
    %3496 = vmatpush1.xpose.msra.mxu0 0.0
    %3497 = vmatprep.subr.mxu0 0.0
    %3498 = vmatpush1.xpose.msra.mxu0 0.0
    %3499 = vmatprep.subr.mxu0 0.0
    %3500 = vmatpush1.xpose.msra.mxu0 0.0
    %3501 = vmatprep.subr.mxu0 0.0
    %3502 = vmatpush1.xpose.msra.mxu0 0.0
    %3503 = vmatprep.subr.mxu0 0.0
    %3504 = vmatpush1.xpose.msra.mxu0 0.0
    %3505 = vmatprep.subr.mxu0 0.0
    %3506 = vmatpush1.xpose.msra.mxu0 0.0
    %3507 = vmatprep.subr.mxu0 0.0
    %3508 = vmatpush1.xpose.msra.mxu0 0.0
    %3509 = vmatprep.subr.mxu0 0.0
    %3510 = vmatpush1.xpose.msra.mxu0 0.0
    %3511 = vmatprep.subr.mxu0 0.0
    %3512 = vmatpush1.xpose.msra.mxu0 0.0
    %3513 = vmatprep.mubr.f32.mxu0 0.0
    %3514 = vmatmul.mubr.f32.gmra.mrb[0].mxu0 %v3437
    %v3515 = vpop.f32.mrb[0].mxu0
    %v3516 = vadd.f32 0.0, %v3515
    %v3517 = vpop.f32.mrb[0].mxu0
    %3518 = vmatprep.mubr.f32.mxu0 0.0
    %3519 = vmatmul.mubr.f32.gmra.mrb[0].mxu0 %v3439
    %v3520 = vpop.f32.mrb[0].mxu0
    %v3521 = vadd.f32 0.0, %v3520
    %v3522 = vpop.f32.mrb[0].mxu0
    %3523 = vmatprep.mubr.f32.mxu0 0.0
    %3524 = vmatmul.mubr.f32.gmra.mrb[0].mxu0 %v3441
    %v3525 = vpop.f32.mrb[0].mxu0
    %v3526 = vadd.f32 0.0, %v3525
    %v3527 = vpop.f32.mrb[0].mxu0
    %3528 = vdwg.mxu0
    %v3529 = vsel %vm588, %v3516, -inf
    %3530 = vmax.xlane.f32.xlu0 %v3529
    %v3531 = vpop.xlane.xlu0 %3530
    %v3532 = vsel %vm588, %v3521, -inf
    %3533 = vmax.xlane.f32.xlu0 %v3532
    %v3534 = vpop.xlane.xlu0 %3533
    %v3535 = vsel %vm595, %v3526, -inf
    %3536 = vmax.xlane.f32.xlu0 %v3535
    %v3537 = vpop.xlane.xlu0 %3536
    %v3538 = vsub.f32 %v3516, %v3531
    %v3539 = vsub.f32 %v3521, %v3534
    %v3540 = vsub.f32 %v3526, %v3537
    %v3541 = vmul.f32 %v3538, 1.442695
    %v3542 = vpow.pop %v3541
    %v3543 = vmul.f32 %v3539, 1.442695
    %v3544 = vpow.pop %v3543
    %v3545 = vmul.f32 %v3540, 1.442695
    %v3546 = vpow.pop %v3545
    %v3547 = vsel %vm588, %v3542, 0.0
    %3548 = vadd.xlane.f32.xlu0 %v3547
    %v3549 = vpop.xlane.xlu0 %3548
    %v3550 = vsel %vm588, %v3544, 0.0
    %3551 = vadd.xlane.f32.xlu0 %v3550
    %v3552 = vpop.xlane.xlu0 %3551
    %v3553 = vsel %vm595, %v3546, 0.0
    %3554 = vadd.xlane.f32.xlu0 %v3553
    %v3555 = vpop.xlane.xlu0 %3554
    %3556 = vrot.lane.b32.xlu0 %v3169, 56
    %v3557 = vpop.permute.xlu0 %3556
    %3558 = vrot.lane.b32.xlu0 %v3174, 56
    %v3559 = vpop.permute.xlu0 %3558
    %3560 = vrot.lane.b32.xlu0 %v3179, 56
    %v3561 = vpop.permute.xlu0 %3560
    %v3565 = vsel %vm588, %v3542, 0
    %v3568 = vsel %vm588, %v3544, 0
    %v3571 = vsel %vm588, %v3546, 0
    %v3573 = vsel %vm258, %v3561, 0
    %3575 = vmatprep.subr.mxu0 0.0
    %3576 = vmatpush1.msra.mxu0 %v3557
    %3577 = vmatprep.subr.mxu0 0.0
    %3578 = vmatpush1.msra.mxu0 %v3559
    %3579 = vmatprep.subr.mxu0 0.0
    %3580 = vmatpush1.msra.mxu0 %v3573
    %3581 = vmatprep.subr.mxu0 0.0
    %3582 = vmatpush1.msra.mxu0 0.0
    %3583 = vmatprep.subr.mxu0 0.0
    %3584 = vmatpush1.msra.mxu0 0.0
    %3585 = vmatprep.subr.mxu0 0.0
    %3586 = vmatpush1.msra.mxu0 0.0
    %3587 = vmatprep.subr.mxu0 0.0
    %3588 = vmatpush1.msra.mxu0 0.0
    %3589 = vmatprep.subr.mxu0 0.0
    %3590 = vmatpush1.msra.mxu0 0.0
    %3591 = vmatprep.subr.mxu0 0.0
    %3592 = vmatpush1.msra.mxu0 0.0
    %3593 = vmatprep.subr.mxu0 0.0
    %3594 = vmatpush1.msra.mxu0 0.0
    %3595 = vmatprep.subr.mxu0 0.0
    %3596 = vmatpush1.msra.mxu0 0.0
    %3597 = vmatprep.subr.mxu0 0.0
    %3598 = vmatpush1.msra.mxu0 0.0
    %3599 = vmatprep.subr.mxu0 0.0
    %3600 = vmatpush1.msra.mxu0 0.0
    %3601 = vmatprep.subr.mxu0 0.0
    %3602 = vmatpush1.msra.mxu0 0.0
    %3603 = vmatprep.subr.mxu0 0.0
    %3604 = vmatpush1.msra.mxu0 0.0
    %3605 = vmatprep.subr.mxu0 0.0
    %3606 = vmatpush1.msra.mxu0 0.0
    %3607 = vmatprep.subr.mxu0 0.0
    %3608 = vmatpush1.msra.mxu0 0.0
    %3609 = vmatprep.subr.mxu0 0.0
    %3610 = vmatpush1.msra.mxu0 0.0
    %3611 = vmatprep.subr.mxu0 0.0
    %3612 = vmatpush1.msra.mxu0 0.0
    %3613 = vmatprep.subr.mxu0 0.0
    %3614 = vmatpush1.msra.mxu0 0.0
    %3615 = vmatprep.subr.mxu0 0.0
    %3616 = vmatpush1.msra.mxu0 0.0
    %3617 = vmatprep.subr.mxu0 0.0
    %3618 = vmatpush1.msra.mxu0 0.0
    %3619 = vmatprep.subr.mxu0 0.0
    %3620 = vmatpush1.msra.mxu0 0.0
    %3621 = vmatprep.subr.mxu0 0.0
    %3622 = vmatpush1.msra.mxu0 0.0
    %3623 = vmatprep.subr.mxu0 0.0
    %3624 = vmatpush1.msra.mxu0 0.0
    %3625 = vmatprep.subr.mxu0 0.0
    %3626 = vmatpush1.msra.mxu0 0.0
    %3627 = vmatprep.subr.mxu0 0.0
    %3628 = vmatpush1.msra.mxu0 0.0
    %3629 = vmatprep.subr.mxu0 0.0
    %3630 = vmatpush1.msra.mxu0 0.0
    %3631 = vmatprep.subr.mxu0 0.0
    %3632 = vmatpush1.msra.mxu0 0.0
    %3633 = vmatprep.subr.mxu0 0.0
    %3634 = vmatpush1.msra.mxu0 0.0
    %3635 = vmatprep.subr.mxu0 0.0
    %3636 = vmatpush1.msra.mxu0 0.0
    %3637 = vmatprep.subr.mxu0 0.0
    %3638 = vmatpush1.msra.mxu0 0.0
    %3639 = vmatprep.mubr.f32.mxu0 0.0
    %3640 = vmatmul.mubr.f32.gmra.mrb[0].mxu0 %v3565
    %v3641 = vpop.f32.mrb[0].mxu0
    %v3642 = vadd.f32 0.0, %v3641
    %v3643 = vpop.f32.mrb[0].mxu0
    %3644 = vmatprep.mubr.f32.mxu0 0.0
    %3645 = vmatmul.mubr.f32.gmra.mrb[0].mxu0 %v3568
    %v3646 = vpop.f32.mrb[0].mxu0
    %v3647 = vadd.f32 0.0, %v3646
    %v3648 = vpop.f32.mrb[0].mxu0
    %3649 = vmatprep.mubr.f32.mxu0 0.0
    %3650 = vmatmul.mubr.f32.gmra.mrb[0].mxu0 %v3571
    %v3651 = vpop.f32.mrb[0].mxu0
    %v3652 = vadd.f32 0.0, %v3651
    %v3653 = vpop.f32.mrb[0].mxu0
    %3654 = vdwg.mxu0
    %v3655 = vrcp.pop %v3549
    %v3656 = vrcp.pop %v3552
    %v3657 = vrcp.pop %v3555
    %v3658 = vmul.f32 %v3642, %v3655
    %v3659 = vmul.f32 %v3647, %v3656
    %v3660 = vmul.f32 %v3652, %v3657
    %3661 = vrot.lane.b32.xlu0 %v3169, 112
    %v3662 = vpop.permute.xlu0 %3661
    %3663 = vrot.lane.b32.xlu0 %v3174, 112
    %v3664 = vpop.permute.xlu0 %3663
    %3665 = vrot.lane.b32.xlu0 %v3179, 112
    %v3666 = vpop.permute.xlu0 %3665
    %3667 = vrot.lane.b32.xlu0 %v3169, 80
    %v3668 = vpop.permute.xlu0 %3667
    %3669 = vrot.lane.b32.xlu0 %v3174, 80
    %v3670 = vpop.permute.xlu0 %3669
    %3671 = vrot.lane.b32.xlu0 %v3179, 80
    %v3672 = vpop.permute.xlu0 %3671
    %v3673 = vsel %vm495, %v3662, 0
    %v3675 = vsel %vm495, %v3664, 0
    %v3677 = vsel %vm495, %v3666, 0
    %v3679 = vsel %vm495, %v3668, 0
    %v3681 = vsel %vm495, %v3670, 0
    %v3683 = vsel %vm495, %v3672, 0
    %3685 = vmatprep.subr.mxu0 0.0
    %3686 = vmatpush1.xpose.msra.mxu0 %v3679
    %3687 = vmatprep.subr.mxu0 0.0
    %3688 = vmatpush1.xpose.msra.mxu0 %v3681
    %3689 = vmatprep.subr.mxu0 0.0
    %3690 = vmatpush1.xpose.msra.mxu0 %v3683
    %3691 = vmatprep.subr.mxu0 0.0
    %3692 = vmatpush1.xpose.msra.mxu0 0.0
    %3693 = vmatprep.subr.mxu0 0.0
    %3694 = vmatpush1.xpose.msra.mxu0 0.0
    %3695 = vmatprep.subr.mxu0 0.0
    %3696 = vmatpush1.xpose.msra.mxu0 0.0
    %3697 = vmatprep.subr.mxu0 0.0
    %3698 = vmatpush1.xpose.msra.mxu0 0.0
    %3699 = vmatprep.subr.mxu0 0.0
    %3700 = vmatpush1.xpose.msra.mxu0 0.0
    %3701 = vmatprep.subr.mxu0 0.0
    %3702 = vmatpush1.xpose.msra.mxu0 0.0
    %3703 = vmatprep.subr.mxu0 0.0
    %3704 = vmatpush1.xpose.msra.mxu0 0.0
    %3705 = vmatprep.subr.mxu0 0.0
    %3706 = vmatpush1.xpose.msra.mxu0 0.0
    %3707 = vmatprep.subr.mxu0 0.0
    %3708 = vmatpush1.xpose.msra.mxu0 0.0
    %3709 = vmatprep.subr.mxu0 0.0
    %3710 = vmatpush1.xpose.msra.mxu0 0.0
    %3711 = vmatprep.subr.mxu0 0.0
    %3712 = vmatpush1.xpose.msra.mxu0 0.0
    %3713 = vmatprep.subr.mxu0 0.0
    %3714 = vmatpush1.xpose.msra.mxu0 0.0
    %3715 = vmatprep.subr.mxu0 0.0
    %3716 = vmatpush1.xpose.msra.mxu0 0.0
    %3717 = vmatprep.subr.mxu0 0.0
    %3718 = vmatpush1.xpose.msra.mxu0 0.0
    %3719 = vmatprep.subr.mxu0 0.0
    %3720 = vmatpush1.xpose.msra.mxu0 0.0
    %3721 = vmatprep.subr.mxu0 0.0
    %3722 = vmatpush1.xpose.msra.mxu0 0.0
    %3723 = vmatprep.subr.mxu0 0.0
    %3724 = vmatpush1.xpose.msra.mxu0 0.0
    %3725 = vmatprep.subr.mxu0 0.0
    %3726 = vmatpush1.xpose.msra.mxu0 0.0
    %3727 = vmatprep.subr.mxu0 0.0
    %3728 = vmatpush1.xpose.msra.mxu0 0.0
    %3729 = vmatprep.subr.mxu0 0.0
    %3730 = vmatpush1.xpose.msra.mxu0 0.0
    %3731 = vmatprep.subr.mxu0 0.0
    %3732 = vmatpush1.xpose.msra.mxu0 0.0
    %3733 = vmatprep.subr.mxu0 0.0
    %3734 = vmatpush1.xpose.msra.mxu0 0.0
    %3735 = vmatprep.subr.mxu0 0.0
    %3736 = vmatpush1.xpose.msra.mxu0 0.0
    %3737 = vmatprep.subr.mxu0 0.0
    %3738 = vmatpush1.xpose.msra.mxu0 0.0
    %3739 = vmatprep.subr.mxu0 0.0
    %3740 = vmatpush1.xpose.msra.mxu0 0.0
    %3741 = vmatprep.subr.mxu0 0.0
    %3742 = vmatpush1.xpose.msra.mxu0 0.0
    %3743 = vmatprep.subr.mxu0 0.0
    %3744 = vmatpush1.xpose.msra.mxu0 0.0
    %3745 = vmatprep.subr.mxu0 0.0
    %3746 = vmatpush1.xpose.msra.mxu0 0.0
    %3747 = vmatprep.subr.mxu0 0.0
    %3748 = vmatpush1.xpose.msra.mxu0 0.0
    %3749 = vmatprep.mubr.f32.mxu0 0.0
    %3750 = vmatmul.mubr.f32.gmra.mrb[0].mxu0 %v3673
    %v3751 = vpop.f32.mrb[0].mxu0
    %v3752 = vadd.f32 0.0, %v3751
    %v3753 = vpop.f32.mrb[0].mxu0
    %3754 = vmatprep.mubr.f32.mxu0 0.0
    %3755 = vmatmul.mubr.f32.gmra.mrb[0].mxu0 %v3675
    %v3756 = vpop.f32.mrb[0].mxu0
    %v3757 = vadd.f32 0.0, %v3756
    %v3758 = vpop.f32.mrb[0].mxu0
    %3759 = vmatprep.mubr.f32.mxu0 0.0
    %3760 = vmatmul.mubr.f32.gmra.mrb[0].mxu0 %v3677
    %v3761 = vpop.f32.mrb[0].mxu0
    %v3762 = vadd.f32 0.0, %v3761
    %v3763 = vpop.f32.mrb[0].mxu0
    %3764 = vdwg.mxu0
    %v3765 = vsel %vm588, %v3752, -inf
    %3766 = vmax.xlane.f32.xlu0 %v3765
    %v3767 = vpop.xlane.xlu0 %3766
    %v3768 = vsel %vm588, %v3757, -inf
    %3769 = vmax.xlane.f32.xlu0 %v3768
    %v3770 = vpop.xlane.xlu0 %3769
    %v3771 = vsel %vm595, %v3762, -inf
    %3772 = vmax.xlane.f32.xlu0 %v3771
    %v3773 = vpop.xlane.xlu0 %3772
    %v3774 = vsub.f32 %v3752, %v3767
    %v3775 = vsub.f32 %v3757, %v3770
    %v3776 = vsub.f32 %v3762, %v3773
    %v3777 = vmul.f32 %v3774, 1.442695
    %v3778 = vpow.pop %v3777
    %v3779 = vmul.f32 %v3775, 1.442695
    %v3780 = vpow.pop %v3779
    %v3781 = vmul.f32 %v3776, 1.442695
    %v3782 = vpow.pop %v3781
    %v3783 = vsel %vm588, %v3778, 0.0
    %3784 = vadd.xlane.f32.xlu0 %v3783
    %v3785 = vpop.xlane.xlu0 %3784
    %v3786 = vsel %vm588, %v3780, 0.0
    %3787 = vadd.xlane.f32.xlu0 %v3786
    %v3788 = vpop.xlane.xlu0 %3787
    %v3789 = vsel %vm595, %v3782, 0.0
    %3790 = vadd.xlane.f32.xlu0 %v3789
    %v3791 = vpop.xlane.xlu0 %3790
    %3792 = vrot.lane.b32.xlu0 %v3169, 48
    %v3793 = vpop.permute.xlu0 %3792
    %3794 = vrot.lane.b32.xlu0 %v3174, 48
    %v3795 = vpop.permute.xlu0 %3794
    %3796 = vrot.lane.b32.xlu0 %v3179, 48
    %v3797 = vpop.permute.xlu0 %3796
    %v3801 = vsel %vm588, %v3778, 0
    %v3804 = vsel %vm588, %v3780, 0
    %v3807 = vsel %vm588, %v3782, 0
    %v3809 = vsel %vm258, %v3797, 0
    %3811 = vmatprep.subr.mxu0 0.0
    %3812 = vmatpush1.msra.mxu0 %v3793
    %3813 = vmatprep.subr.mxu0 0.0
    %3814 = vmatpush1.msra.mxu0 %v3795
    %3815 = vmatprep.subr.mxu0 0.0
    %3816 = vmatpush1.msra.mxu0 %v3809
    %3817 = vmatprep.subr.mxu0 0.0
    %3818 = vmatpush1.msra.mxu0 0.0
    %3819 = vmatprep.subr.mxu0 0.0
    %3820 = vmatpush1.msra.mxu0 0.0
    %3821 = vmatprep.subr.mxu0 0.0
    %3822 = vmatpush1.msra.mxu0 0.0
    %3823 = vmatprep.subr.mxu0 0.0
    %3824 = vmatpush1.msra.mxu0 0.0
    %3825 = vmatprep.subr.mxu0 0.0
    %3826 = vmatpush1.msra.mxu0 0.0
    %3827 = vmatprep.subr.mxu0 0.0
    %3828 = vmatpush1.msra.mxu0 0.0
    %3829 = vmatprep.subr.mxu0 0.0
    %3830 = vmatpush1.msra.mxu0 0.0
    %3831 = vmatprep.subr.mxu0 0.0
    %3832 = vmatpush1.msra.mxu0 0.0
    %3833 = vmatprep.subr.mxu0 0.0
    %3834 = vmatpush1.msra.mxu0 0.0
    %3835 = vmatprep.subr.mxu0 0.0
    %3836 = vmatpush1.msra.mxu0 0.0
    %3837 = vmatprep.subr.mxu0 0.0
    %3838 = vmatpush1.msra.mxu0 0.0
    %3839 = vmatprep.subr.mxu0 0.0
    %3840 = vmatpush1.msra.mxu0 0.0
    %3841 = vmatprep.subr.mxu0 0.0
    %3842 = vmatpush1.msra.mxu0 0.0
    %3843 = vmatprep.subr.mxu0 0.0
    %3844 = vmatpush1.msra.mxu0 0.0
    %3845 = vmatprep.subr.mxu0 0.0
    %3846 = vmatpush1.msra.mxu0 0.0
    %3847 = vmatprep.subr.mxu0 0.0
    %3848 = vmatpush1.msra.mxu0 0.0
    %3849 = vmatprep.subr.mxu0 0.0
    %3850 = vmatpush1.msra.mxu0 0.0
    %3851 = vmatprep.subr.mxu0 0.0
    %3852 = vmatpush1.msra.mxu0 0.0
    %3853 = vmatprep.subr.mxu0 0.0
    %3854 = vmatpush1.msra.mxu0 0.0
    %3855 = vmatprep.subr.mxu0 0.0
    %3856 = vmatpush1.msra.mxu0 0.0
    %3857 = vmatprep.subr.mxu0 0.0
    %3858 = vmatpush1.msra.mxu0 0.0
    %3859 = vmatprep.subr.mxu0 0.0
    %3860 = vmatpush1.msra.mxu0 0.0
    %3861 = vmatprep.subr.mxu0 0.0
    %3862 = vmatpush1.msra.mxu0 0.0
    %3863 = vmatprep.subr.mxu0 0.0
    %3864 = vmatpush1.msra.mxu0 0.0
    %3865 = vmatprep.subr.mxu0 0.0
    %3866 = vmatpush1.msra.mxu0 0.0
    %3867 = vmatprep.subr.mxu0 0.0
    %3868 = vmatpush1.msra.mxu0 0.0
    %3869 = vmatprep.subr.mxu0 0.0
    %3870 = vmatpush1.msra.mxu0 0.0
    %3871 = vmatprep.subr.mxu0 0.0
    %3872 = vmatpush1.msra.mxu0 0.0
    %3873 = vmatprep.subr.mxu0 0.0
    %3874 = vmatpush1.msra.mxu0 0.0
    %3875 = vmatprep.mubr.f32.mxu0 0.0
    %3876 = vmatmul.mubr.f32.gmra.mrb[0].mxu0 %v3801
    %v3877 = vpop.f32.mrb[0].mxu0
    %v3878 = vadd.f32 0.0, %v3877
    %v3879 = vpop.f32.mrb[0].mxu0
    %3880 = vmatprep.mubr.f32.mxu0 0.0
    %3881 = vmatmul.mubr.f32.gmra.mrb[0].mxu0 %v3804
    %v3882 = vpop.f32.mrb[0].mxu0
    %v3883 = vadd.f32 0.0, %v3882
    %v3884 = vpop.f32.mrb[0].mxu0
    %3885 = vmatprep.mubr.f32.mxu0 0.0
    %3886 = vmatmul.mubr.f32.gmra.mrb[0].mxu0 %v3807
    %v3887 = vpop.f32.mrb[0].mxu0
    %v3888 = vadd.f32 0.0, %v3887
    %v3889 = vpop.f32.mrb[0].mxu0
    %3890 = vdwg.mxu0
    %v3891 = vrcp.pop %v3785
    %v3892 = vrcp.pop %v3788
    %v3893 = vrcp.pop %v3791
    %v3894 = vmul.f32 %v3878, %v3891
    %v3895 = vmul.f32 %v3883, %v3892
    %v3896 = vmul.f32 %v3888, %v3893
    %3897 = vrot.lane.b32.xlu0 %v3169, 104
    %v3898 = vpop.permute.xlu0 %3897
    %3899 = vrot.lane.b32.xlu0 %v3174, 104
    %v3900 = vpop.permute.xlu0 %3899
    %3901 = vrot.lane.b32.xlu0 %v3179, 104
    %v3902 = vpop.permute.xlu0 %3901
    %3903 = vrot.lane.b32.xlu0 %v3169, 72
    %v3904 = vpop.permute.xlu0 %3903
    %3905 = vrot.lane.b32.xlu0 %v3174, 72
    %v3906 = vpop.permute.xlu0 %3905
    %3907 = vrot.lane.b32.xlu0 %v3179, 72
    %v3908 = vpop.permute.xlu0 %3907
    %v3909 = vsel %vm495, %v3898, 0
    %v3911 = vsel %vm495, %v3900, 0
    %v3913 = vsel %vm495, %v3902, 0
    %v3915 = vsel %vm495, %v3904, 0
    %v3917 = vsel %vm495, %v3906, 0
    %v3919 = vsel %vm495, %v3908, 0
    %3921 = vmatprep.subr.mxu0 0.0
    %3922 = vmatpush1.xpose.msra.mxu0 %v3915
    %3923 = vmatprep.subr.mxu0 0.0
    %3924 = vmatpush1.xpose.msra.mxu0 %v3917
    %3925 = vmatprep.subr.mxu0 0.0
    %3926 = vmatpush1.xpose.msra.mxu0 %v3919
    %3927 = vmatprep.subr.mxu0 0.0
    %3928 = vmatpush1.xpose.msra.mxu0 0.0
    %3929 = vmatprep.subr.mxu0 0.0
    %3930 = vmatpush1.xpose.msra.mxu0 0.0
    %3931 = vmatprep.subr.mxu0 0.0
    %3932 = vmatpush1.xpose.msra.mxu0 0.0
    %3933 = vmatprep.subr.mxu0 0.0
    %3934 = vmatpush1.xpose.msra.mxu0 0.0
    %3935 = vmatprep.subr.mxu0 0.0
    %3936 = vmatpush1.xpose.msra.mxu0 0.0
    %3937 = vmatprep.subr.mxu0 0.0
    %3938 = vmatpush1.xpose.msra.mxu0 0.0
    %3939 = vmatprep.subr.mxu0 0.0
    %3940 = vmatpush1.xpose.msra.mxu0 0.0
    %3941 = vmatprep.subr.mxu0 0.0
    %3942 = vmatpush1.xpose.msra.mxu0 0.0
    %3943 = vmatprep.subr.mxu0 0.0
    %3944 = vmatpush1.xpose.msra.mxu0 0.0
    %3945 = vmatprep.subr.mxu0 0.0
    %3946 = vmatpush1.xpose.msra.mxu0 0.0
    %3947 = vmatprep.subr.mxu0 0.0
    %3948 = vmatpush1.xpose.msra.mxu0 0.0
    %3949 = vmatprep.subr.mxu0 0.0
    %3950 = vmatpush1.xpose.msra.mxu0 0.0
    %3951 = vmatprep.subr.mxu0 0.0
    %3952 = vmatpush1.xpose.msra.mxu0 0.0
    %3953 = vmatprep.subr.mxu0 0.0
    %3954 = vmatpush1.xpose.msra.mxu0 0.0
    %3955 = vmatprep.subr.mxu0 0.0
    %3956 = vmatpush1.xpose.msra.mxu0 0.0
    %3957 = vmatprep.subr.mxu0 0.0
    %3958 = vmatpush1.xpose.msra.mxu0 0.0
    %3959 = vmatprep.subr.mxu0 0.0
    %3960 = vmatpush1.xpose.msra.mxu0 0.0
    %3961 = vmatprep.subr.mxu0 0.0
    %3962 = vmatpush1.xpose.msra.mxu0 0.0
    %3963 = vmatprep.subr.mxu0 0.0
    %3964 = vmatpush1.xpose.msra.mxu0 0.0
    %3965 = vmatprep.subr.mxu0 0.0
    %3966 = vmatpush1.xpose.msra.mxu0 0.0
    %3967 = vmatprep.subr.mxu0 0.0
    %3968 = vmatpush1.xpose.msra.mxu0 0.0
    %3969 = vmatprep.subr.mxu0 0.0
    %3970 = vmatpush1.xpose.msra.mxu0 0.0
    %3971 = vmatprep.subr.mxu0 0.0
    %3972 = vmatpush1.xpose.msra.mxu0 0.0
    %3973 = vmatprep.subr.mxu0 0.0
    %3974 = vmatpush1.xpose.msra.mxu0 0.0
    %3975 = vmatprep.subr.mxu0 0.0
    %3976 = vmatpush1.xpose.msra.mxu0 0.0
    %3977 = vmatprep.subr.mxu0 0.0
    %3978 = vmatpush1.xpose.msra.mxu0 0.0
    %3979 = vmatprep.subr.mxu0 0.0
    %3980 = vmatpush1.xpose.msra.mxu0 0.0
    %3981 = vmatprep.subr.mxu0 0.0
    %3982 = vmatpush1.xpose.msra.mxu0 0.0
    %3983 = vmatprep.subr.mxu0 0.0
    %3984 = vmatpush1.xpose.msra.mxu0 0.0
    %3985 = vmatprep.mubr.f32.mxu0 0.0
    %3986 = vmatmul.mubr.f32.gmra.mrb[0].mxu0 %v3909
    %v3987 = vpop.f32.mrb[0].mxu0
    %v3988 = vadd.f32 0.0, %v3987
    %v3989 = vpop.f32.mrb[0].mxu0
    %3990 = vmatprep.mubr.f32.mxu0 0.0
    %3991 = vmatmul.mubr.f32.gmra.mrb[0].mxu0 %v3911
    %v3992 = vpop.f32.mrb[0].mxu0
    %v3993 = vadd.f32 0.0, %v3992
    %v3994 = vpop.f32.mrb[0].mxu0
    %3995 = vmatprep.mubr.f32.mxu0 0.0
    %3996 = vmatmul.mubr.f32.gmra.mrb[0].mxu0 %v3913
    %v3997 = vpop.f32.mrb[0].mxu0
    %v3998 = vadd.f32 0.0, %v3997
    %v3999 = vpop.f32.mrb[0].mxu0
    %4000 = vdwg.mxu0
    %v4001 = vsel %vm588, %v3988, -inf
    %4002 = vmax.xlane.f32.xlu0 %v4001
    %v4003 = vpop.xlane.xlu0 %4002
    %v4004 = vsel %vm588, %v3993, -inf
    %4005 = vmax.xlane.f32.xlu0 %v4004
    %v4006 = vpop.xlane.xlu0 %4005
    %v4007 = vsel %vm595, %v3998, -inf
    %4008 = vmax.xlane.f32.xlu0 %v4007
    %v4009 = vpop.xlane.xlu0 %4008
    %v4010 = vsub.f32 %v3988, %v4003
    %v4011 = vsub.f32 %v3993, %v4006
    %v4012 = vsub.f32 %v3998, %v4009
    %v4013 = vmul.f32 %v4010, 1.442695
    %v4014 = vpow.pop %v4013
    %v4015 = vmul.f32 %v4011, 1.442695
    %v4016 = vpow.pop %v4015
    %v4017 = vmul.f32 %v4012, 1.442695
    %v4018 = vpow.pop %v4017
    %v4019 = vsel %vm588, %v4014, 0.0
    %4020 = vadd.xlane.f32.xlu0 %v4019
    %v4021 = vpop.xlane.xlu0 %4020
    %v4022 = vsel %vm588, %v4016, 0.0
    %4023 = vadd.xlane.f32.xlu0 %v4022
    %v4024 = vpop.xlane.xlu0 %4023
    %v4025 = vsel %vm595, %v4018, 0.0
    %4026 = vadd.xlane.f32.xlu0 %v4025
    %v4027 = vpop.xlane.xlu0 %4026
    %4028 = vrot.lane.b32.xlu0 %v3169, 40
    %v4029 = vpop.permute.xlu0 %4028
    %4030 = vrot.lane.b32.xlu0 %v3174, 40
    %v4031 = vpop.permute.xlu0 %4030
    %4032 = vrot.lane.b32.xlu0 %v3179, 40
    %v4033 = vpop.permute.xlu0 %4032
    %v4037 = vsel %vm588, %v4014, 0
    %v4040 = vsel %vm588, %v4016, 0
    %v4043 = vsel %vm588, %v4018, 0
    %v4045 = vsel %vm258, %v4033, 0
    %4047 = vmatprep.subr.mxu0 0.0
    %4048 = vmatpush1.msra.mxu0 %v4029
    %4049 = vmatprep.subr.mxu0 0.0
    %4050 = vmatpush1.msra.mxu0 %v4031
    %4051 = vmatprep.subr.mxu0 0.0
    %4052 = vmatpush1.msra.mxu0 %v4045
    %4053 = vmatprep.subr.mxu0 0.0
    %4054 = vmatpush1.msra.mxu0 0.0
    %4055 = vmatprep.subr.mxu0 0.0
    %4056 = vmatpush1.msra.mxu0 0.0
    %4057 = vmatprep.subr.mxu0 0.0
    %4058 = vmatpush1.msra.mxu0 0.0
    %4059 = vmatprep.subr.mxu0 0.0
    %4060 = vmatpush1.msra.mxu0 0.0
    %4061 = vmatprep.subr.mxu0 0.0
    %4062 = vmatpush1.msra.mxu0 0.0
    %4063 = vmatprep.subr.mxu0 0.0
    %4064 = vmatpush1.msra.mxu0 0.0
    %4065 = vmatprep.subr.mxu0 0.0
    %4066 = vmatpush1.msra.mxu0 0.0
    %4067 = vmatprep.subr.mxu0 0.0
    %4068 = vmatpush1.msra.mxu0 0.0
    %4069 = vmatprep.subr.mxu0 0.0
    %4070 = vmatpush1.msra.mxu0 0.0
    %4071 = vmatprep.subr.mxu0 0.0
    %4072 = vmatpush1.msra.mxu0 0.0
    %4073 = vmatprep.subr.mxu0 0.0
    %4074 = vmatpush1.msra.mxu0 0.0
    %4075 = vmatprep.subr.mxu0 0.0
    %4076 = vmatpush1.msra.mxu0 0.0
    %4077 = vmatprep.subr.mxu0 0.0
    %4078 = vmatpush1.msra.mxu0 0.0
    %4079 = vmatprep.subr.mxu0 0.0
    %4080 = vmatpush1.msra.mxu0 0.0
    %4081 = vmatprep.subr.mxu0 0.0
    %4082 = vmatpush1.msra.mxu0 0.0
    %4083 = vmatprep.subr.mxu0 0.0
    %4084 = vmatpush1.msra.mxu0 0.0
    %4085 = vmatprep.subr.mxu0 0.0
    %4086 = vmatpush1.msra.mxu0 0.0
    %4087 = vmatprep.subr.mxu0 0.0
    %4088 = vmatpush1.msra.mxu0 0.0
    %4089 = vmatprep.subr.mxu0 0.0
    %4090 = vmatpush1.msra.mxu0 0.0
    %4091 = vmatprep.subr.mxu0 0.0
    %4092 = vmatpush1.msra.mxu0 0.0
    %4093 = vmatprep.subr.mxu0 0.0
    %4094 = vmatpush1.msra.mxu0 0.0
    %4095 = vmatprep.subr.mxu0 0.0
    %4096 = vmatpush1.msra.mxu0 0.0
    %4097 = vmatprep.subr.mxu0 0.0
    %4098 = vmatpush1.msra.mxu0 0.0
    %4099 = vmatprep.subr.mxu0 0.0
    %4100 = vmatpush1.msra.mxu0 0.0
    %4101 = vmatprep.subr.mxu0 0.0
    %4102 = vmatpush1.msra.mxu0 0.0
    %4103 = vmatprep.subr.mxu0 0.0
    %4104 = vmatpush1.msra.mxu0 0.0
    %4105 = vmatprep.subr.mxu0 0.0
    %4106 = vmatpush1.msra.mxu0 0.0
    %4107 = vmatprep.subr.mxu0 0.0
    %4108 = vmatpush1.msra.mxu0 0.0
    %4109 = vmatprep.subr.mxu0 0.0
    %4110 = vmatpush1.msra.mxu0 0.0
    %4111 = vmatprep.mubr.f32.mxu0 0.0
    %4112 = vmatmul.mubr.f32.gmra.mrb[0].mxu0 %v4037
    %v4113 = vpop.f32.mrb[0].mxu0
    %v4114 = vadd.f32 0.0, %v4113
    %v4115 = vpop.f32.mrb[0].mxu0
    %4116 = vmatprep.mubr.f32.mxu0 0.0
    %4117 = vmatmul.mubr.f32.gmra.mrb[0].mxu0 %v4040
    %v4118 = vpop.f32.mrb[0].mxu0
    %v4119 = vadd.f32 0.0, %v4118
    %v4120 = vpop.f32.mrb[0].mxu0
    %4121 = vmatprep.mubr.f32.mxu0 0.0
    %4122 = vmatmul.mubr.f32.gmra.mrb[0].mxu0 %v4043
    %v4123 = vpop.f32.mrb[0].mxu0
    %v4124 = vadd.f32 0.0, %v4123
    %v4125 = vpop.f32.mrb[0].mxu0
    %4126 = vdwg.mxu0
    %v4127 = vrcp.pop %v4021
    %v4128 = vrcp.pop %v4024
    %v4129 = vrcp.pop %v4027
    %v4130 = vmul.f32 %v4114, %v4127
    %v4131 = vmul.f32 %v4119, %v4128
    %v4132 = vmul.f32 %v4124, %v4129
    %4136 = vrot.lane.b32.xlu0 %v3658, 8
    %v4137 = vpop.permute.xlu0 %4136
    %4138 = vrot.lane.b32.xlu0 %v3659, 8
    %v4139 = vpop.permute.xlu0 %4138
    %4140 = vrot.lane.b32.xlu0 %v3660, 8
    %v4141 = vpop.permute.xlu0 %4140
    %4148 = vrot.lane.b32.xlu0 %v3894, 16
    %v4149 = vpop.permute.xlu0 %4148
    %4150 = vrot.lane.b32.xlu0 %v3895, 16
    %v4151 = vpop.permute.xlu0 %4150
    %4152 = vrot.lane.b32.xlu0 %v3896, 16
    %v4153 = vpop.permute.xlu0 %4152
    %4160 = vrot.lane.b32.xlu0 %v4130, 24
    %v4161 = vpop.permute.xlu0 %4160
    %4162 = vrot.lane.b32.xlu0 %v4131, 24
    %v4163 = vpop.permute.xlu0 %4162
    %4164 = vrot.lane.b32.xlu0 %v4132, 24
    %v4165 = vpop.permute.xlu0 %4164
    %v4169 = vsel %vm495, %v3422, %v4137
    %v4170 = vsel %vm495, %v3423, %v4139
    %v4171 = vsel %vm495, %v3424, %v4141
    %v4172 = vsel %vm1469, %v4169, %v4149
    %v4173 = vsel %vm1469, %v4170, %v4151
    %v4174 = vsel %vm1469, %v4171, %v4153
    %v4175 = vsel %vm1473, %v4172, %v4161
    %v4176 = vsel %vm1473, %v4173, %v4163
    %v4177 = vsel %vm1473, %v4174, %v4165
    %v4180 = vrot.slane %v3179, 1
    %v4181 = vrot.slane %v3184, 1
    %v4182 = vsel %vm1479, %v4180, %v4181
    %v4183 = vrot.slane %v3189, 1
    %v4184 = vsel %vm1479, %v4181, %v4183
    %4185 = vrot.lane.b32.xlu0 %v4182, 96
    %v4186 = vpop.permute.xlu0 %4185
    %4187 = vrot.lane.b32.xlu0 %v4184, 96
    %v4188 = vpop.permute.xlu0 %4187
    %4189 = vrot.lane.b32.xlu0 %v4183, 96
    %v4190 = vpop.permute.xlu0 %4189
    %v4191 = vsel %vm495, %v4182, 0
    %v4193 = vsel %vm495, %v4184, 0
    %v4195 = vsel %vm495, %v4183, 0
    %v4197 = vsel %vm495, %v4186, 0
    %v4199 = vsel %vm495, %v4188, 0
    %v4201 = vsel %vm495, %v4190, 0
    %4203 = vmatprep.subr.mxu0 0.0
    %4204 = vmatpush1.xpose.msra.mxu0 %v4197
    %4205 = vmatprep.subr.mxu0 0.0
    %4206 = vmatpush1.xpose.msra.mxu0 %v4199
    %4207 = vmatprep.subr.mxu0 0.0
    %4208 = vmatpush1.xpose.msra.mxu0 %v4201
    %4209 = vmatprep.subr.mxu0 0.0
    %4210 = vmatpush1.xpose.msra.mxu0 0.0
    %4211 = vmatprep.subr.mxu0 0.0
    %4212 = vmatpush1.xpose.msra.mxu0 0.0
    %4213 = vmatprep.subr.mxu0 0.0
    %4214 = vmatpush1.xpose.msra.mxu0 0.0
    %4215 = vmatprep.subr.mxu0 0.0
    %4216 = vmatpush1.xpose.msra.mxu0 0.0
    %4217 = vmatprep.subr.mxu0 0.0
    %4218 = vmatpush1.xpose.msra.mxu0 0.0
    %4219 = vmatprep.subr.mxu0 0.0
    %4220 = vmatpush1.xpose.msra.mxu0 0.0
    %4221 = vmatprep.subr.mxu0 0.0
    %4222 = vmatpush1.xpose.msra.mxu0 0.0
    %4223 = vmatprep.subr.mxu0 0.0
    %4224 = vmatpush1.xpose.msra.mxu0 0.0
    %4225 = vmatprep.subr.mxu0 0.0
    %4226 = vmatpush1.xpose.msra.mxu0 0.0
    %4227 = vmatprep.subr.mxu0 0.0
    %4228 = vmatpush1.xpose.msra.mxu0 0.0
    %4229 = vmatprep.subr.mxu0 0.0
    %4230 = vmatpush1.xpose.msra.mxu0 0.0
    %4231 = vmatprep.subr.mxu0 0.0
    %4232 = vmatpush1.xpose.msra.mxu0 0.0
    %4233 = vmatprep.subr.mxu0 0.0
    %4234 = vmatpush1.xpose.msra.mxu0 0.0
    %4235 = vmatprep.subr.mxu0 0.0
    %4236 = vmatpush1.xpose.msra.mxu0 0.0
    %4237 = vmatprep.subr.mxu0 0.0
    %4238 = vmatpush1.xpose.msra.mxu0 0.0
    %4239 = vmatprep.subr.mxu0 0.0
    %4240 = vmatpush1.xpose.msra.mxu0 0.0
    %4241 = vmatprep.subr.mxu0 0.0
    %4242 = vmatpush1.xpose.msra.mxu0 0.0
    %4243 = vmatprep.subr.mxu0 0.0
    %4244 = vmatpush1.xpose.msra.mxu0 0.0
    %4245 = vmatprep.subr.mxu0 0.0
    %4246 = vmatpush1.xpose.msra.mxu0 0.0
    %4247 = vmatprep.subr.mxu0 0.0
    %4248 = vmatpush1.xpose.msra.mxu0 0.0
    %4249 = vmatprep.subr.mxu0 0.0
    %4250 = vmatpush1.xpose.msra.mxu0 0.0
    %4251 = vmatprep.subr.mxu0 0.0
    %4252 = vmatpush1.xpose.msra.mxu0 0.0
    %4253 = vmatprep.subr.mxu0 0.0
    %4254 = vmatpush1.xpose.msra.mxu0 0.0
    %4255 = vmatprep.subr.mxu0 0.0
    %4256 = vmatpush1.xpose.msra.mxu0 0.0
    %4257 = vmatprep.subr.mxu0 0.0
    %4258 = vmatpush1.xpose.msra.mxu0 0.0
    %4259 = vmatprep.subr.mxu0 0.0
    %4260 = vmatpush1.xpose.msra.mxu0 0.0
    %4261 = vmatprep.subr.mxu0 0.0
    %4262 = vmatpush1.xpose.msra.mxu0 0.0
    %4263 = vmatprep.subr.mxu0 0.0
    %4264 = vmatpush1.xpose.msra.mxu0 0.0
    %4265 = vmatprep.subr.mxu0 0.0
    %4266 = vmatpush1.xpose.msra.mxu0 0.0
    %4267 = vmatprep.mubr.f32.mxu0 0.0
    %4268 = vmatmul.mubr.f32.gmra.mrb[0].mxu0 %v4191
    %v4269 = vpop.f32.mrb[0].mxu0
    %v4270 = vadd.f32 0.0, %v4269
    %v4271 = vpop.f32.mrb[0].mxu0
    %4272 = vmatprep.mubr.f32.mxu0 0.0
    %4273 = vmatmul.mubr.f32.gmra.mrb[0].mxu0 %v4193
    %v4274 = vpop.f32.mrb[0].mxu0
    %v4275 = vadd.f32 0.0, %v4274
    %v4276 = vpop.f32.mrb[0].mxu0
    %4277 = vmatprep.mubr.f32.mxu0 0.0
    %4278 = vmatmul.mubr.f32.gmra.mrb[0].mxu0 %v4195
    %v4279 = vpop.f32.mrb[0].mxu0
    %v4280 = vadd.f32 0.0, %v4279
    %v4281 = vpop.f32.mrb[0].mxu0
    %4282 = vdwg.mxu0
    %v4283 = vsel %vm588, %v4270, -inf
    %4284 = vmax.xlane.f32.xlu0 %v4283
    %v4285 = vpop.xlane.xlu0 %4284
    %v4286 = vsel %vm588, %v4275, -inf
    %4287 = vmax.xlane.f32.xlu0 %v4286
    %v4288 = vpop.xlane.xlu0 %4287
    %v4289 = vsel %vm595, %v4280, -inf
    %4290 = vmax.xlane.f32.xlu0 %v4289
    %v4291 = vpop.xlane.xlu0 %4290
    %v4292 = vsub.f32 %v4270, %v4285
    %v4293 = vsub.f32 %v4275, %v4288
    %v4294 = vsub.f32 %v4280, %v4291
    %v4295 = vmul.f32 %v4292, 1.442695
    %v4296 = vpow.pop %v4295
    %v4297 = vmul.f32 %v4293, 1.442695
    %v4298 = vpow.pop %v4297
    %v4299 = vmul.f32 %v4294, 1.442695
    %v4300 = vpow.pop %v4299
    %v4301 = vsel %vm588, %v4296, 0.0
    %4302 = vadd.xlane.f32.xlu0 %v4301
    %v4303 = vpop.xlane.xlu0 %4302
    %v4304 = vsel %vm588, %v4298, 0.0
    %4305 = vadd.xlane.f32.xlu0 %v4304
    %v4306 = vpop.xlane.xlu0 %4305
    %v4307 = vsel %vm595, %v4300, 0.0
    %4308 = vadd.xlane.f32.xlu0 %v4307
    %v4309 = vpop.xlane.xlu0 %4308
    %4310 = vrot.lane.b32.xlu0 %v4182, 64
    %v4311 = vpop.permute.xlu0 %4310
    %4312 = vrot.lane.b32.xlu0 %v4184, 64
    %v4313 = vpop.permute.xlu0 %4312
    %4314 = vrot.lane.b32.xlu0 %v4183, 64
    %v4315 = vpop.permute.xlu0 %4314
    %v4319 = vsel %vm588, %v4296, 0
    %v4322 = vsel %vm588, %v4298, 0
    %v4325 = vsel %vm588, %v4300, 0
    %v4327 = vsel %vm258, %v4315, 0
    %4329 = vmatprep.subr.mxu0 0.0
    %4330 = vmatpush1.msra.mxu0 %v4311
    %4331 = vmatprep.subr.mxu0 0.0
    %4332 = vmatpush1.msra.mxu0 %v4313
    %4333 = vmatprep.subr.mxu0 0.0
    %4334 = vmatpush1.msra.mxu0 %v4327
    %4335 = vmatprep.subr.mxu0 0.0
    %4336 = vmatpush1.msra.mxu0 0.0
    %4337 = vmatprep.subr.mxu0 0.0
    %4338 = vmatpush1.msra.mxu0 0.0
    %4339 = vmatprep.subr.mxu0 0.0
    %4340 = vmatpush1.msra.mxu0 0.0
    %4341 = vmatprep.subr.mxu0 0.0
    %4342 = vmatpush1.msra.mxu0 0.0
    %4343 = vmatprep.subr.mxu0 0.0
    %4344 = vmatpush1.msra.mxu0 0.0
    %4345 = vmatprep.subr.mxu0 0.0
    %4346 = vmatpush1.msra.mxu0 0.0
    %4347 = vmatprep.subr.mxu0 0.0
    %4348 = vmatpush1.msra.mxu0 0.0
    %4349 = vmatprep.subr.mxu0 0.0
    %4350 = vmatpush1.msra.mxu0 0.0
    %4351 = vmatprep.subr.mxu0 0.0
    %4352 = vmatpush1.msra.mxu0 0.0
    %4353 = vmatprep.subr.mxu0 0.0
    %4354 = vmatpush1.msra.mxu0 0.0
    %4355 = vmatprep.subr.mxu0 0.0
    %4356 = vmatpush1.msra.mxu0 0.0
    %4357 = vmatprep.subr.mxu0 0.0
    %4358 = vmatpush1.msra.mxu0 0.0
    %4359 = vmatprep.subr.mxu0 0.0
    %4360 = vmatpush1.msra.mxu0 0.0
    %4361 = vmatprep.subr.mxu0 0.0
    %4362 = vmatpush1.msra.mxu0 0.0
    %4363 = vmatprep.subr.mxu0 0.0
    %4364 = vmatpush1.msra.mxu0 0.0
    %4365 = vmatprep.subr.mxu0 0.0
    %4366 = vmatpush1.msra.mxu0 0.0
    %4367 = vmatprep.subr.mxu0 0.0
    %4368 = vmatpush1.msra.mxu0 0.0
    %4369 = vmatprep.subr.mxu0 0.0
    %4370 = vmatpush1.msra.mxu0 0.0
    %4371 = vmatprep.subr.mxu0 0.0
    %4372 = vmatpush1.msra.mxu0 0.0
    %4373 = vmatprep.subr.mxu0 0.0
    %4374 = vmatpush1.msra.mxu0 0.0
    %4375 = vmatprep.subr.mxu0 0.0
    %4376 = vmatpush1.msra.mxu0 0.0
    %4377 = vmatprep.subr.mxu0 0.0
    %4378 = vmatpush1.msra.mxu0 0.0
    %4379 = vmatprep.subr.mxu0 0.0
    %4380 = vmatpush1.msra.mxu0 0.0
    %4381 = vmatprep.subr.mxu0 0.0
    %4382 = vmatpush1.msra.mxu0 0.0
    %4383 = vmatprep.subr.mxu0 0.0
    %4384 = vmatpush1.msra.mxu0 0.0
    %4385 = vmatprep.subr.mxu0 0.0
    %4386 = vmatpush1.msra.mxu0 0.0
    %4387 = vmatprep.subr.mxu0 0.0
    %4388 = vmatpush1.msra.mxu0 0.0
    %4389 = vmatprep.subr.mxu0 0.0
    %4390 = vmatpush1.msra.mxu0 0.0
    %4391 = vmatprep.subr.mxu0 0.0
    %4392 = vmatpush1.msra.mxu0 0.0
    %4393 = vmatprep.mubr.f32.mxu0 0.0
    %4394 = vmatmul.mubr.f32.gmra.mrb[0].mxu0 %v4319
    %v4395 = vpop.f32.mrb[0].mxu0
    %v4396 = vadd.f32 0.0, %v4395
    %v4397 = vpop.f32.mrb[0].mxu0
    %4398 = vmatprep.mubr.f32.mxu0 0.0
    %4399 = vmatmul.mubr.f32.gmra.mrb[0].mxu0 %v4322
    %v4400 = vpop.f32.mrb[0].mxu0
    %v4401 = vadd.f32 0.0, %v4400
    %v4402 = vpop.f32.mrb[0].mxu0
    %4403 = vmatprep.mubr.f32.mxu0 0.0
    %4404 = vmatmul.mubr.f32.gmra.mrb[0].mxu0 %v4325
    %v4405 = vpop.f32.mrb[0].mxu0
    %v4406 = vadd.f32 0.0, %v4405
    %v4407 = vpop.f32.mrb[0].mxu0
    %4408 = vdwg.mxu0
    %v4409 = vrcp.pop %v4303
    %v4410 = vrcp.pop %v4306
    %v4411 = vrcp.pop %v4309
    %v4412 = vmul.f32 %v4396, %v4409
    %v4413 = vmul.f32 %v4401, %v4410
    %v4414 = vmul.f32 %v4406, %v4411
    %4415 = vrot.lane.b32.xlu0 %v4182, 120
    %v4416 = vpop.permute.xlu0 %4415
    %4417 = vrot.lane.b32.xlu0 %v4184, 120
    %v4418 = vpop.permute.xlu0 %4417
    %4419 = vrot.lane.b32.xlu0 %v4183, 120
    %v4420 = vpop.permute.xlu0 %4419
    %4421 = vrot.lane.b32.xlu0 %v4182, 88
    %v4422 = vpop.permute.xlu0 %4421
    %4423 = vrot.lane.b32.xlu0 %v4184, 88
    %v4424 = vpop.permute.xlu0 %4423
    %4425 = vrot.lane.b32.xlu0 %v4183, 88
    %v4426 = vpop.permute.xlu0 %4425
    %v4427 = vsel %vm495, %v4416, 0
    %v4429 = vsel %vm495, %v4418, 0
    %v4431 = vsel %vm495, %v4420, 0
    %v4433 = vsel %vm495, %v4422, 0
    %v4435 = vsel %vm495, %v4424, 0
    %v4437 = vsel %vm495, %v4426, 0
    %4439 = vmatprep.subr.mxu0 0.0
    %4440 = vmatpush1.xpose.msra.mxu0 %v4433
    %4441 = vmatprep.subr.mxu0 0.0
    %4442 = vmatpush1.xpose.msra.mxu0 %v4435
    %4443 = vmatprep.subr.mxu0 0.0
    %4444 = vmatpush1.xpose.msra.mxu0 %v4437
    %4445 = vmatprep.subr.mxu0 0.0
    %4446 = vmatpush1.xpose.msra.mxu0 0.0
    %4447 = vmatprep.subr.mxu0 0.0
    %4448 = vmatpush1.xpose.msra.mxu0 0.0
    %4449 = vmatprep.subr.mxu0 0.0
    %4450 = vmatpush1.xpose.msra.mxu0 0.0
    %4451 = vmatprep.subr.mxu0 0.0
    %4452 = vmatpush1.xpose.msra.mxu0 0.0
    %4453 = vmatprep.subr.mxu0 0.0
    %4454 = vmatpush1.xpose.msra.mxu0 0.0
    %4455 = vmatprep.subr.mxu0 0.0
    %4456 = vmatpush1.xpose.msra.mxu0 0.0
    %4457 = vmatprep.subr.mxu0 0.0
    %4458 = vmatpush1.xpose.msra.mxu0 0.0
    %4459 = vmatprep.subr.mxu0 0.0
    %4460 = vmatpush1.xpose.msra.mxu0 0.0
    %4461 = vmatprep.subr.mxu0 0.0
    %4462 = vmatpush1.xpose.msra.mxu0 0.0
    %4463 = vmatprep.subr.mxu0 0.0
    %4464 = vmatpush1.xpose.msra.mxu0 0.0
    %4465 = vmatprep.subr.mxu0 0.0
    %4466 = vmatpush1.xpose.msra.mxu0 0.0
    %4467 = vmatprep.subr.mxu0 0.0
    %4468 = vmatpush1.xpose.msra.mxu0 0.0
    %4469 = vmatprep.subr.mxu0 0.0
    %4470 = vmatpush1.xpose.msra.mxu0 0.0
    %4471 = vmatprep.subr.mxu0 0.0
    %4472 = vmatpush1.xpose.msra.mxu0 0.0
    %4473 = vmatprep.subr.mxu0 0.0
    %4474 = vmatpush1.xpose.msra.mxu0 0.0
    %4475 = vmatprep.subr.mxu0 0.0
    %4476 = vmatpush1.xpose.msra.mxu0 0.0
    %4477 = vmatprep.subr.mxu0 0.0
    %4478 = vmatpush1.xpose.msra.mxu0 0.0
    %4479 = vmatprep.subr.mxu0 0.0
    %4480 = vmatpush1.xpose.msra.mxu0 0.0
    %4481 = vmatprep.subr.mxu0 0.0
    %4482 = vmatpush1.xpose.msra.mxu0 0.0
    %4483 = vmatprep.subr.mxu0 0.0
    %4484 = vmatpush1.xpose.msra.mxu0 0.0
    %4485 = vmatprep.subr.mxu0 0.0
    %4486 = vmatpush1.xpose.msra.mxu0 0.0
    %4487 = vmatprep.subr.mxu0 0.0
    %4488 = vmatpush1.xpose.msra.mxu0 0.0
    %4489 = vmatprep.subr.mxu0 0.0
    %4490 = vmatpush1.xpose.msra.mxu0 0.0
    %4491 = vmatprep.subr.mxu0 0.0
    %4492 = vmatpush1.xpose.msra.mxu0 0.0
    %4493 = vmatprep.subr.mxu0 0.0
    %4494 = vmatpush1.xpose.msra.mxu0 0.0
    %4495 = vmatprep.subr.mxu0 0.0
    %4496 = vmatpush1.xpose.msra.mxu0 0.0
    %4497 = vmatprep.subr.mxu0 0.0
    %4498 = vmatpush1.xpose.msra.mxu0 0.0
    %4499 = vmatprep.subr.mxu0 0.0
    %4500 = vmatpush1.xpose.msra.mxu0 0.0
    %4501 = vmatprep.subr.mxu0 0.0
    %4502 = vmatpush1.xpose.msra.mxu0 0.0
    %4503 = vmatprep.mubr.f32.mxu0 0.0
    %4504 = vmatmul.mubr.f32.gmra.mrb[0].mxu0 %v4427
    %v4505 = vpop.f32.mrb[0].mxu0
    %v4506 = vadd.f32 0.0, %v4505
    %v4507 = vpop.f32.mrb[0].mxu0
    %4508 = vmatprep.mubr.f32.mxu0 0.0
    %4509 = vmatmul.mubr.f32.gmra.mrb[0].mxu0 %v4429
    %v4510 = vpop.f32.mrb[0].mxu0
    %v4511 = vadd.f32 0.0, %v4510
    %v4512 = vpop.f32.mrb[0].mxu0
    %4513 = vmatprep.mubr.f32.mxu0 0.0
    %4514 = vmatmul.mubr.f32.gmra.mrb[0].mxu0 %v4431
    %v4515 = vpop.f32.mrb[0].mxu0
    %v4516 = vadd.f32 0.0, %v4515
    %v4517 = vpop.f32.mrb[0].mxu0
    %4518 = vdwg.mxu0
    %v4519 = vsel %vm588, %v4506, -inf
    %4520 = vmax.xlane.f32.xlu0 %v4519
    %v4521 = vpop.xlane.xlu0 %4520
    %v4522 = vsel %vm588, %v4511, -inf
    %4523 = vmax.xlane.f32.xlu0 %v4522
    %v4524 = vpop.xlane.xlu0 %4523
    %v4525 = vsel %vm595, %v4516, -inf
    %4526 = vmax.xlane.f32.xlu0 %v4525
    %v4527 = vpop.xlane.xlu0 %4526
    %v4528 = vsub.f32 %v4506, %v4521
    %v4529 = vsub.f32 %v4511, %v4524
    %v4530 = vsub.f32 %v4516, %v4527
    %v4531 = vmul.f32 %v4528, 1.442695
    %v4532 = vpow.pop %v4531
    %v4533 = vmul.f32 %v4529, 1.442695
    %v4534 = vpow.pop %v4533
    %v4535 = vmul.f32 %v4530, 1.442695
    %v4536 = vpow.pop %v4535
    %v4537 = vsel %vm588, %v4532, 0.0
    %4538 = vadd.xlane.f32.xlu0 %v4537
    %v4539 = vpop.xlane.xlu0 %4538
    %v4540 = vsel %vm588, %v4534, 0.0
    %4541 = vadd.xlane.f32.xlu0 %v4540
    %v4542 = vpop.xlane.xlu0 %4541
    %v4543 = vsel %vm595, %v4536, 0.0
    %4544 = vadd.xlane.f32.xlu0 %v4543
    %v4545 = vpop.xlane.xlu0 %4544
    %4546 = vrot.lane.b32.xlu0 %v4182, 56
    %v4547 = vpop.permute.xlu0 %4546
    %4548 = vrot.lane.b32.xlu0 %v4184, 56
    %v4549 = vpop.permute.xlu0 %4548
    %4550 = vrot.lane.b32.xlu0 %v4183, 56
    %v4551 = vpop.permute.xlu0 %4550
    %v4555 = vsel %vm588, %v4532, 0
    %v4558 = vsel %vm588, %v4534, 0
    %v4561 = vsel %vm588, %v4536, 0
    %v4563 = vsel %vm258, %v4551, 0
    %4565 = vmatprep.subr.mxu0 0.0
    %4566 = vmatpush1.msra.mxu0 %v4547
    %4567 = vmatprep.subr.mxu0 0.0
    %4568 = vmatpush1.msra.mxu0 %v4549
    %4569 = vmatprep.subr.mxu0 0.0
    %4570 = vmatpush1.msra.mxu0 %v4563
    %4571 = vmatprep.subr.mxu0 0.0
    %4572 = vmatpush1.msra.mxu0 0.0
    %4573 = vmatprep.subr.mxu0 0.0
    %4574 = vmatpush1.msra.mxu0 0.0
    %4575 = vmatprep.subr.mxu0 0.0
    %4576 = vmatpush1.msra.mxu0 0.0
    %4577 = vmatprep.subr.mxu0 0.0
    %4578 = vmatpush1.msra.mxu0 0.0
    %4579 = vmatprep.subr.mxu0 0.0
    %4580 = vmatpush1.msra.mxu0 0.0
    %4581 = vmatprep.subr.mxu0 0.0
    %4582 = vmatpush1.msra.mxu0 0.0
    %4583 = vmatprep.subr.mxu0 0.0
    %4584 = vmatpush1.msra.mxu0 0.0
    %4585 = vmatprep.subr.mxu0 0.0
    %4586 = vmatpush1.msra.mxu0 0.0
    %4587 = vmatprep.subr.mxu0 0.0
    %4588 = vmatpush1.msra.mxu0 0.0
    %4589 = vmatprep.subr.mxu0 0.0
    %4590 = vmatpush1.msra.mxu0 0.0
    %4591 = vmatprep.subr.mxu0 0.0
    %4592 = vmatpush1.msra.mxu0 0.0
    %4593 = vmatprep.subr.mxu0 0.0
    %4594 = vmatpush1.msra.mxu0 0.0
    %4595 = vmatprep.subr.mxu0 0.0
    %4596 = vmatpush1.msra.mxu0 0.0
    %4597 = vmatprep.subr.mxu0 0.0
    %4598 = vmatpush1.msra.mxu0 0.0
    %4599 = vmatprep.subr.mxu0 0.0
    %4600 = vmatpush1.msra.mxu0 0.0
    %4601 = vmatprep.subr.mxu0 0.0
    %4602 = vmatpush1.msra.mxu0 0.0
    %4603 = vmatprep.subr.mxu0 0.0
    %4604 = vmatpush1.msra.mxu0 0.0
    %4605 = vmatprep.subr.mxu0 0.0
    %4606 = vmatpush1.msra.mxu0 0.0
    %4607 = vmatprep.subr.mxu0 0.0
    %4608 = vmatpush1.msra.mxu0 0.0
    %4609 = vmatprep.subr.mxu0 0.0
    %4610 = vmatpush1.msra.mxu0 0.0
    %4611 = vmatprep.subr.mxu0 0.0
    %4612 = vmatpush1.msra.mxu0 0.0
    %4613 = vmatprep.subr.mxu0 0.0
    %4614 = vmatpush1.msra.mxu0 0.0
    %4615 = vmatprep.subr.mxu0 0.0
    %4616 = vmatpush1.msra.mxu0 0.0
    %4617 = vmatprep.subr.mxu0 0.0
    %4618 = vmatpush1.msra.mxu0 0.0
    %4619 = vmatprep.subr.mxu0 0.0
    %4620 = vmatpush1.msra.mxu0 0.0
    %4621 = vmatprep.subr.mxu0 0.0
    %4622 = vmatpush1.msra.mxu0 0.0
    %4623 = vmatprep.subr.mxu0 0.0
    %4624 = vmatpush1.msra.mxu0 0.0
    %4625 = vmatprep.subr.mxu0 0.0
    %4626 = vmatpush1.msra.mxu0 0.0
    %4627 = vmatprep.subr.mxu0 0.0
    %4628 = vmatpush1.msra.mxu0 0.0
    %4629 = vmatprep.mubr.f32.mxu0 0.0
    %4630 = vmatmul.mubr.f32.gmra.mrb[0].mxu0 %v4555
    %v4631 = vpop.f32.mrb[0].mxu0
    %v4632 = vadd.f32 0.0, %v4631
    %v4633 = vpop.f32.mrb[0].mxu0
    %4634 = vmatprep.mubr.f32.mxu0 0.0
    %4635 = vmatmul.mubr.f32.gmra.mrb[0].mxu0 %v4558
    %v4636 = vpop.f32.mrb[0].mxu0
    %v4637 = vadd.f32 0.0, %v4636
    %v4638 = vpop.f32.mrb[0].mxu0
    %4639 = vmatprep.mubr.f32.mxu0 0.0
    %4640 = vmatmul.mubr.f32.gmra.mrb[0].mxu0 %v4561
    %v4641 = vpop.f32.mrb[0].mxu0
    %v4642 = vadd.f32 0.0, %v4641
    %v4643 = vpop.f32.mrb[0].mxu0
    %4644 = vdwg.mxu0
    %v4645 = vrcp.pop %v4539
    %v4646 = vrcp.pop %v4542
    %v4647 = vrcp.pop %v4545
    %v4648 = vmul.f32 %v4632, %v4645
    %v4649 = vmul.f32 %v4637, %v4646
    %v4650 = vmul.f32 %v4642, %v4647
    %4651 = vrot.lane.b32.xlu0 %v4182, 112
    %v4652 = vpop.permute.xlu0 %4651
    %4653 = vrot.lane.b32.xlu0 %v4184, 112
    %v4654 = vpop.permute.xlu0 %4653
    %4655 = vrot.lane.b32.xlu0 %v4183, 112
    %v4656 = vpop.permute.xlu0 %4655
    %4657 = vrot.lane.b32.xlu0 %v4182, 80
    %v4658 = vpop.permute.xlu0 %4657
    %4659 = vrot.lane.b32.xlu0 %v4184, 80
    %v4660 = vpop.permute.xlu0 %4659
    %4661 = vrot.lane.b32.xlu0 %v4183, 80
    %v4662 = vpop.permute.xlu0 %4661
    %v4663 = vsel %vm495, %v4652, 0
    %v4665 = vsel %vm495, %v4654, 0
    %v4667 = vsel %vm495, %v4656, 0
    %v4669 = vsel %vm495, %v4658, 0
    %v4671 = vsel %vm495, %v4660, 0
    %v4673 = vsel %vm495, %v4662, 0
    %4675 = vmatprep.subr.mxu0 0.0
    %4676 = vmatpush1.xpose.msra.mxu0 %v4669
    %4677 = vmatprep.subr.mxu0 0.0
    %4678 = vmatpush1.xpose.msra.mxu0 %v4671
    %4679 = vmatprep.subr.mxu0 0.0
    %4680 = vmatpush1.xpose.msra.mxu0 %v4673
    %4681 = vmatprep.subr.mxu0 0.0
    %4682 = vmatpush1.xpose.msra.mxu0 0.0
    %4683 = vmatprep.subr.mxu0 0.0
    %4684 = vmatpush1.xpose.msra.mxu0 0.0
    %4685 = vmatprep.subr.mxu0 0.0
    %4686 = vmatpush1.xpose.msra.mxu0 0.0
    %4687 = vmatprep.subr.mxu0 0.0
    %4688 = vmatpush1.xpose.msra.mxu0 0.0
    %4689 = vmatprep.subr.mxu0 0.0
    %4690 = vmatpush1.xpose.msra.mxu0 0.0
    %4691 = vmatprep.subr.mxu0 0.0
    %4692 = vmatpush1.xpose.msra.mxu0 0.0
    %4693 = vmatprep.subr.mxu0 0.0
    %4694 = vmatpush1.xpose.msra.mxu0 0.0
    %4695 = vmatprep.subr.mxu0 0.0
    %4696 = vmatpush1.xpose.msra.mxu0 0.0
    %4697 = vmatprep.subr.mxu0 0.0
    %4698 = vmatpush1.xpose.msra.mxu0 0.0
    %4699 = vmatprep.subr.mxu0 0.0
    %4700 = vmatpush1.xpose.msra.mxu0 0.0
    %4701 = vmatprep.subr.mxu0 0.0
    %4702 = vmatpush1.xpose.msra.mxu0 0.0
    %4703 = vmatprep.subr.mxu0 0.0
    %4704 = vmatpush1.xpose.msra.mxu0 0.0
    %4705 = vmatprep.subr.mxu0 0.0
    %4706 = vmatpush1.xpose.msra.mxu0 0.0
    %4707 = vmatprep.subr.mxu0 0.0
    %4708 = vmatpush1.xpose.msra.mxu0 0.0
    %4709 = vmatprep.subr.mxu0 0.0
    %4710 = vmatpush1.xpose.msra.mxu0 0.0
    %4711 = vmatprep.subr.mxu0 0.0
    %4712 = vmatpush1.xpose.msra.mxu0 0.0
    %4713 = vmatprep.subr.mxu0 0.0
    %4714 = vmatpush1.xpose.msra.mxu0 0.0
    %4715 = vmatprep.subr.mxu0 0.0
    %4716 = vmatpush1.xpose.msra.mxu0 0.0
    %4717 = vmatprep.subr.mxu0 0.0
    %4718 = vmatpush1.xpose.msra.mxu0 0.0
    %4719 = vmatprep.subr.mxu0 0.0
    %4720 = vmatpush1.xpose.msra.mxu0 0.0
    %4721 = vmatprep.subr.mxu0 0.0
    %4722 = vmatpush1.xpose.msra.mxu0 0.0
    %4723 = vmatprep.subr.mxu0 0.0
    %4724 = vmatpush1.xpose.msra.mxu0 0.0
    %4725 = vmatprep.subr.mxu0 0.0
    %4726 = vmatpush1.xpose.msra.mxu0 0.0
    %4727 = vmatprep.subr.mxu0 0.0
    %4728 = vmatpush1.xpose.msra.mxu0 0.0
    %4729 = vmatprep.subr.mxu0 0.0
    %4730 = vmatpush1.xpose.msra.mxu0 0.0
    %4731 = vmatprep.subr.mxu0 0.0
    %4732 = vmatpush1.xpose.msra.mxu0 0.0
    %4733 = vmatprep.subr.mxu0 0.0
    %4734 = vmatpush1.xpose.msra.mxu0 0.0
    %4735 = vmatprep.subr.mxu0 0.0
    %4736 = vmatpush1.xpose.msra.mxu0 0.0
    %4737 = vmatprep.subr.mxu0 0.0
    %4738 = vmatpush1.xpose.msra.mxu0 0.0
    %4739 = vmatprep.mubr.f32.mxu0 0.0
    %4740 = vmatmul.mubr.f32.gmra.mrb[0].mxu0 %v4663
    %v4741 = vpop.f32.mrb[0].mxu0
    %v4742 = vadd.f32 0.0, %v4741
    %v4743 = vpop.f32.mrb[0].mxu0
    %4744 = vmatprep.mubr.f32.mxu0 0.0
    %4745 = vmatmul.mubr.f32.gmra.mrb[0].mxu0 %v4665
    %v4746 = vpop.f32.mrb[0].mxu0
    %v4747 = vadd.f32 0.0, %v4746
    %v4748 = vpop.f32.mrb[0].mxu0
    %4749 = vmatprep.mubr.f32.mxu0 0.0
    %4750 = vmatmul.mubr.f32.gmra.mrb[0].mxu0 %v4667
    %v4751 = vpop.f32.mrb[0].mxu0
    %v4752 = vadd.f32 0.0, %v4751
    %v4753 = vpop.f32.mrb[0].mxu0
    %4754 = vdwg.mxu0
    %v4755 = vsel %vm588, %v4742, -inf
    %4756 = vmax.xlane.f32.xlu0 %v4755
    %v4757 = vpop.xlane.xlu0 %4756
    %v4758 = vsel %vm588, %v4747, -inf
    %4759 = vmax.xlane.f32.xlu0 %v4758
    %v4760 = vpop.xlane.xlu0 %4759
    %v4761 = vsel %vm595, %v4752, -inf
    %4762 = vmax.xlane.f32.xlu0 %v4761
    %v4763 = vpop.xlane.xlu0 %4762
    %v4764 = vsub.f32 %v4742, %v4757
    %v4765 = vsub.f32 %v4747, %v4760
    %v4766 = vsub.f32 %v4752, %v4763
    %v4767 = vmul.f32 %v4764, 1.442695
    %v4768 = vpow.pop %v4767
    %v4769 = vmul.f32 %v4765, 1.442695
    %v4770 = vpow.pop %v4769
    %v4771 = vmul.f32 %v4766, 1.442695
    %v4772 = vpow.pop %v4771
    %v4773 = vsel %vm588, %v4768, 0.0
    %4774 = vadd.xlane.f32.xlu0 %v4773
    %v4775 = vpop.xlane.xlu0 %4774
    %v4776 = vsel %vm588, %v4770, 0.0
    %4777 = vadd.xlane.f32.xlu0 %v4776
    %v4778 = vpop.xlane.xlu0 %4777
    %v4779 = vsel %vm595, %v4772, 0.0
    %4780 = vadd.xlane.f32.xlu0 %v4779
    %v4781 = vpop.xlane.xlu0 %4780
    %4782 = vrot.lane.b32.xlu0 %v4182, 48
    %v4783 = vpop.permute.xlu0 %4782
    %4784 = vrot.lane.b32.xlu0 %v4184, 48
    %v4785 = vpop.permute.xlu0 %4784
    %4786 = vrot.lane.b32.xlu0 %v4183, 48
    %v4787 = vpop.permute.xlu0 %4786
    %v4791 = vsel %vm588, %v4768, 0
    %v4794 = vsel %vm588, %v4770, 0
    %v4797 = vsel %vm588, %v4772, 0
    %v4799 = vsel %vm258, %v4787, 0
    %4801 = vmatprep.subr.mxu0 0.0
    %4802 = vmatpush1.msra.mxu0 %v4783
    %4803 = vmatprep.subr.mxu0 0.0
    %4804 = vmatpush1.msra.mxu0 %v4785
    %4805 = vmatprep.subr.mxu0 0.0
    %4806 = vmatpush1.msra.mxu0 %v4799
    %4807 = vmatprep.subr.mxu0 0.0
    %4808 = vmatpush1.msra.mxu0 0.0
    %4809 = vmatprep.subr.mxu0 0.0
    %4810 = vmatpush1.msra.mxu0 0.0
    %4811 = vmatprep.subr.mxu0 0.0
    %4812 = vmatpush1.msra.mxu0 0.0
    %4813 = vmatprep.subr.mxu0 0.0
    %4814 = vmatpush1.msra.mxu0 0.0
    %4815 = vmatprep.subr.mxu0 0.0
    %4816 = vmatpush1.msra.mxu0 0.0
    %4817 = vmatprep.subr.mxu0 0.0
    %4818 = vmatpush1.msra.mxu0 0.0
    %4819 = vmatprep.subr.mxu0 0.0
    %4820 = vmatpush1.msra.mxu0 0.0
    %4821 = vmatprep.subr.mxu0 0.0
    %4822 = vmatpush1.msra.mxu0 0.0
    %4823 = vmatprep.subr.mxu0 0.0
    %4824 = vmatpush1.msra.mxu0 0.0
    %4825 = vmatprep.subr.mxu0 0.0
    %4826 = vmatpush1.msra.mxu0 0.0
    %4827 = vmatprep.subr.mxu0 0.0
    %4828 = vmatpush1.msra.mxu0 0.0
    %4829 = vmatprep.subr.mxu0 0.0
    %4830 = vmatpush1.msra.mxu0 0.0
    %4831 = vmatprep.subr.mxu0 0.0
    %4832 = vmatpush1.msra.mxu0 0.0
    %4833 = vmatprep.subr.mxu0 0.0
    %4834 = vmatpush1.msra.mxu0 0.0
    %4835 = vmatprep.subr.mxu0 0.0
    %4836 = vmatpush1.msra.mxu0 0.0
    %4837 = vmatprep.subr.mxu0 0.0
    %4838 = vmatpush1.msra.mxu0 0.0
    %4839 = vmatprep.subr.mxu0 0.0
    %4840 = vmatpush1.msra.mxu0 0.0
    %4841 = vmatprep.subr.mxu0 0.0
    %4842 = vmatpush1.msra.mxu0 0.0
    %4843 = vmatprep.subr.mxu0 0.0
    %4844 = vmatpush1.msra.mxu0 0.0
    %4845 = vmatprep.subr.mxu0 0.0
    %4846 = vmatpush1.msra.mxu0 0.0
    %4847 = vmatprep.subr.mxu0 0.0
    %4848 = vmatpush1.msra.mxu0 0.0
    %4849 = vmatprep.subr.mxu0 0.0
    %4850 = vmatpush1.msra.mxu0 0.0
    %4851 = vmatprep.subr.mxu0 0.0
    %4852 = vmatpush1.msra.mxu0 0.0
    %4853 = vmatprep.subr.mxu0 0.0
    %4854 = vmatpush1.msra.mxu0 0.0
    %4855 = vmatprep.subr.mxu0 0.0
    %4856 = vmatpush1.msra.mxu0 0.0
    %4857 = vmatprep.subr.mxu0 0.0
    %4858 = vmatpush1.msra.mxu0 0.0
    %4859 = vmatprep.subr.mxu0 0.0
    %4860 = vmatpush1.msra.mxu0 0.0
    %4861 = vmatprep.subr.mxu0 0.0
    %4862 = vmatpush1.msra.mxu0 0.0
    %4863 = vmatprep.subr.mxu0 0.0
    %4864 = vmatpush1.msra.mxu0 0.0
    %4865 = vmatprep.mubr.f32.mxu0 0.0
    %4866 = vmatmul.mubr.f32.gmra.mrb[0].mxu0 %v4791
    %v4867 = vpop.f32.mrb[0].mxu0
    %v4868 = vadd.f32 0.0, %v4867
    %v4869 = vpop.f32.mrb[0].mxu0
    %4870 = vmatprep.mubr.f32.mxu0 0.0
    %4871 = vmatmul.mubr.f32.gmra.mrb[0].mxu0 %v4794
    %v4872 = vpop.f32.mrb[0].mxu0
    %v4873 = vadd.f32 0.0, %v4872
    %v4874 = vpop.f32.mrb[0].mxu0
    %4875 = vmatprep.mubr.f32.mxu0 0.0
    %4876 = vmatmul.mubr.f32.gmra.mrb[0].mxu0 %v4797
    %v4877 = vpop.f32.mrb[0].mxu0
    %v4878 = vadd.f32 0.0, %v4877
    %v4879 = vpop.f32.mrb[0].mxu0
    %4880 = vdwg.mxu0
    %v4881 = vrcp.pop %v4775
    %v4882 = vrcp.pop %v4778
    %v4883 = vrcp.pop %v4781
    %v4884 = vmul.f32 %v4868, %v4881
    %v4885 = vmul.f32 %v4873, %v4882
    %v4886 = vmul.f32 %v4878, %v4883
    %4887 = vrot.lane.b32.xlu0 %v4182, 104
    %v4888 = vpop.permute.xlu0 %4887
    %4889 = vrot.lane.b32.xlu0 %v4184, 104
    %v4890 = vpop.permute.xlu0 %4889
    %4891 = vrot.lane.b32.xlu0 %v4183, 104
    %v4892 = vpop.permute.xlu0 %4891
    %4893 = vrot.lane.b32.xlu0 %v4182, 72
    %v4894 = vpop.permute.xlu0 %4893
    %4895 = vrot.lane.b32.xlu0 %v4184, 72
    %v4896 = vpop.permute.xlu0 %4895
    %4897 = vrot.lane.b32.xlu0 %v4183, 72
    %v4898 = vpop.permute.xlu0 %4897
    %v4899 = vsel %vm495, %v4888, 0
    %v4901 = vsel %vm495, %v4890, 0
    %v4903 = vsel %vm495, %v4892, 0
    %v4905 = vsel %vm495, %v4894, 0
    %v4907 = vsel %vm495, %v4896, 0
    %v4909 = vsel %vm495, %v4898, 0
    %4911 = vmatprep.subr.mxu0 0.0
    %4912 = vmatpush1.xpose.msra.mxu0 %v4905
    %4913 = vmatprep.subr.mxu0 0.0
    %4914 = vmatpush1.xpose.msra.mxu0 %v4907
    %4915 = vmatprep.subr.mxu0 0.0
    %4916 = vmatpush1.xpose.msra.mxu0 %v4909
    %4917 = vmatprep.subr.mxu0 0.0
    %4918 = vmatpush1.xpose.msra.mxu0 0.0
    %4919 = vmatprep.subr.mxu0 0.0
    %4920 = vmatpush1.xpose.msra.mxu0 0.0
    %4921 = vmatprep.subr.mxu0 0.0
    %4922 = vmatpush1.xpose.msra.mxu0 0.0
    %4923 = vmatprep.subr.mxu0 0.0
    %4924 = vmatpush1.xpose.msra.mxu0 0.0
    %4925 = vmatprep.subr.mxu0 0.0
    %4926 = vmatpush1.xpose.msra.mxu0 0.0
    %4927 = vmatprep.subr.mxu0 0.0
    %4928 = vmatpush1.xpose.msra.mxu0 0.0
    %4929 = vmatprep.subr.mxu0 0.0
    %4930 = vmatpush1.xpose.msra.mxu0 0.0
    %4931 = vmatprep.subr.mxu0 0.0
    %4932 = vmatpush1.xpose.msra.mxu0 0.0
    %4933 = vmatprep.subr.mxu0 0.0
    %4934 = vmatpush1.xpose.msra.mxu0 0.0
    %4935 = vmatprep.subr.mxu0 0.0
    %4936 = vmatpush1.xpose.msra.mxu0 0.0
    %4937 = vmatprep.subr.mxu0 0.0
    %4938 = vmatpush1.xpose.msra.mxu0 0.0
    %4939 = vmatprep.subr.mxu0 0.0
    %4940 = vmatpush1.xpose.msra.mxu0 0.0
    %4941 = vmatprep.subr.mxu0 0.0
    %4942 = vmatpush1.xpose.msra.mxu0 0.0
    %4943 = vmatprep.subr.mxu0 0.0
    %4944 = vmatpush1.xpose.msra.mxu0 0.0
    %4945 = vmatprep.subr.mxu0 0.0
    %4946 = vmatpush1.xpose.msra.mxu0 0.0
    %4947 = vmatprep.subr.mxu0 0.0
    %4948 = vmatpush1.xpose.msra.mxu0 0.0
    %4949 = vmatprep.subr.mxu0 0.0
    %4950 = vmatpush1.xpose.msra.mxu0 0.0
    %4951 = vmatprep.subr.mxu0 0.0
    %4952 = vmatpush1.xpose.msra.mxu0 0.0
    %4953 = vmatprep.subr.mxu0 0.0
    %4954 = vmatpush1.xpose.msra.mxu0 0.0
    %4955 = vmatprep.subr.mxu0 0.0
    %4956 = vmatpush1.xpose.msra.mxu0 0.0
    %4957 = vmatprep.subr.mxu0 0.0
    %4958 = vmatpush1.xpose.msra.mxu0 0.0
    %4959 = vmatprep.subr.mxu0 0.0
    %4960 = vmatpush1.xpose.msra.mxu0 0.0
    %4961 = vmatprep.subr.mxu0 0.0
    %4962 = vmatpush1.xpose.msra.mxu0 0.0
    %4963 = vmatprep.subr.mxu0 0.0
    %4964 = vmatpush1.xpose.msra.mxu0 0.0
    %4965 = vmatprep.subr.mxu0 0.0
    %4966 = vmatpush1.xpose.msra.mxu0 0.0
    %4967 = vmatprep.subr.mxu0 0.0
    %4968 = vmatpush1.xpose.msra.mxu0 0.0
    %4969 = vmatprep.subr.mxu0 0.0
    %4970 = vmatpush1.xpose.msra.mxu0 0.0
    %4971 = vmatprep.subr.mxu0 0.0
    %4972 = vmatpush1.xpose.msra.mxu0 0.0
    %4973 = vmatprep.subr.mxu0 0.0
    %4974 = vmatpush1.xpose.msra.mxu0 0.0
    %4975 = vmatprep.mubr.f32.mxu0 0.0
    %4976 = vmatmul.mubr.f32.gmra.mrb[0].mxu0 %v4899
    %v4977 = vpop.f32.mrb[0].mxu0
    %v4978 = vadd.f32 0.0, %v4977
    %v4979 = vpop.f32.mrb[0].mxu0
    %4980 = vmatprep.mubr.f32.mxu0 0.0
    %4981 = vmatmul.mubr.f32.gmra.mrb[0].mxu0 %v4901
    %v4982 = vpop.f32.mrb[0].mxu0
    %v4983 = vadd.f32 0.0, %v4982
    %v4984 = vpop.f32.mrb[0].mxu0
    %4985 = vmatprep.mubr.f32.mxu0 0.0
    %4986 = vmatmul.mubr.f32.gmra.mrb[0].mxu0 %v4903
    %v4987 = vpop.f32.mrb[0].mxu0
    %v4988 = vadd.f32 0.0, %v4987
    %v4989 = vpop.f32.mrb[0].mxu0
    %4990 = vdwg.mxu0
    %v4991 = vsel %vm588, %v4978, -inf
    %4992 = vmax.xlane.f32.xlu0 %v4991
    %v4993 = vpop.xlane.xlu0 %4992
    %v4994 = vsel %vm588, %v4983, -inf
    %4995 = vmax.xlane.f32.xlu0 %v4994
    %v4996 = vpop.xlane.xlu0 %4995
    %v4997 = vsel %vm595, %v4988, -inf
    %4998 = vmax.xlane.f32.xlu0 %v4997
    %v4999 = vpop.xlane.xlu0 %4998
    %v5000 = vsub.f32 %v4978, %v4993
    %v5001 = vsub.f32 %v4983, %v4996
    %v5002 = vsub.f32 %v4988, %v4999
    %v5003 = vmul.f32 %v5000, 1.442695
    %v5004 = vpow.pop %v5003
    %v5005 = vmul.f32 %v5001, 1.442695
    %v5006 = vpow.pop %v5005
    %v5007 = vmul.f32 %v5002, 1.442695
    %v5008 = vpow.pop %v5007
    %v5009 = vsel %vm588, %v5004, 0.0
    %5010 = vadd.xlane.f32.xlu0 %v5009
    %v5011 = vpop.xlane.xlu0 %5010
    %v5012 = vsel %vm588, %v5006, 0.0
    %5013 = vadd.xlane.f32.xlu0 %v5012
    %v5014 = vpop.xlane.xlu0 %5013
    %v5015 = vsel %vm595, %v5008, 0.0
    %5016 = vadd.xlane.f32.xlu0 %v5015
    %v5017 = vpop.xlane.xlu0 %5016
    %5018 = vrot.lane.b32.xlu0 %v4182, 40
    %v5019 = vpop.permute.xlu0 %5018
    %5020 = vrot.lane.b32.xlu0 %v4184, 40
    %v5021 = vpop.permute.xlu0 %5020
    %5022 = vrot.lane.b32.xlu0 %v4183, 40
    %v5023 = vpop.permute.xlu0 %5022
    %v5027 = vsel %vm588, %v5004, 0
    %v5030 = vsel %vm588, %v5006, 0
    %v5033 = vsel %vm588, %v5008, 0
    %v5035 = vsel %vm258, %v5023, 0
    %5037 = vmatprep.subr.mxu0 0.0
    %5038 = vmatpush1.msra.mxu0 %v5019
    %5039 = vmatprep.subr.mxu0 0.0
    %5040 = vmatpush1.msra.mxu0 %v5021
    %5041 = vmatprep.subr.mxu0 0.0
    %5042 = vmatpush1.msra.mxu0 %v5035
    %5043 = vmatprep.subr.mxu0 0.0
    %5044 = vmatpush1.msra.mxu0 0.0
    %5045 = vmatprep.subr.mxu0 0.0
    %5046 = vmatpush1.msra.mxu0 0.0
    %5047 = vmatprep.subr.mxu0 0.0
    %5048 = vmatpush1.msra.mxu0 0.0
    %5049 = vmatprep.subr.mxu0 0.0
    %5050 = vmatpush1.msra.mxu0 0.0
    %5051 = vmatprep.subr.mxu0 0.0
    %5052 = vmatpush1.msra.mxu0 0.0
    %5053 = vmatprep.subr.mxu0 0.0
    %5054 = vmatpush1.msra.mxu0 0.0
    %5055 = vmatprep.subr.mxu0 0.0
    %5056 = vmatpush1.msra.mxu0 0.0
    %5057 = vmatprep.subr.mxu0 0.0
    %5058 = vmatpush1.msra.mxu0 0.0
    %5059 = vmatprep.subr.mxu0 0.0
    %5060 = vmatpush1.msra.mxu0 0.0
    %5061 = vmatprep.subr.mxu0 0.0
    %5062 = vmatpush1.msra.mxu0 0.0
    %5063 = vmatprep.subr.mxu0 0.0
    %5064 = vmatpush1.msra.mxu0 0.0
    %5065 = vmatprep.subr.mxu0 0.0
    %5066 = vmatpush1.msra.mxu0 0.0
    %5067 = vmatprep.subr.mxu0 0.0
    %5068 = vmatpush1.msra.mxu0 0.0
    %5069 = vmatprep.subr.mxu0 0.0
    %5070 = vmatpush1.msra.mxu0 0.0
    %5071 = vmatprep.subr.mxu0 0.0
    %5072 = vmatpush1.msra.mxu0 0.0
    %5073 = vmatprep.subr.mxu0 0.0
    %5074 = vmatpush1.msra.mxu0 0.0
    %5075 = vmatprep.subr.mxu0 0.0
    %5076 = vmatpush1.msra.mxu0 0.0
    %5077 = vmatprep.subr.mxu0 0.0
    %5078 = vmatpush1.msra.mxu0 0.0
    %5079 = vmatprep.subr.mxu0 0.0
    %5080 = vmatpush1.msra.mxu0 0.0
    %5081 = vmatprep.subr.mxu0 0.0
    %5082 = vmatpush1.msra.mxu0 0.0
    %5083 = vmatprep.subr.mxu0 0.0
    %5084 = vmatpush1.msra.mxu0 0.0
    %5085 = vmatprep.subr.mxu0 0.0
    %5086 = vmatpush1.msra.mxu0 0.0
    %5087 = vmatprep.subr.mxu0 0.0
    %5088 = vmatpush1.msra.mxu0 0.0
    %5089 = vmatprep.subr.mxu0 0.0
    %5090 = vmatpush1.msra.mxu0 0.0
    %5091 = vmatprep.subr.mxu0 0.0
    %5092 = vmatpush1.msra.mxu0 0.0
    %5093 = vmatprep.subr.mxu0 0.0
    %5094 = vmatpush1.msra.mxu0 0.0
    %5095 = vmatprep.subr.mxu0 0.0
    %5096 = vmatpush1.msra.mxu0 0.0
    %5097 = vmatprep.subr.mxu0 0.0
    %5098 = vmatpush1.msra.mxu0 0.0
    %5099 = vmatprep.subr.mxu0 0.0
    %5100 = vmatpush1.msra.mxu0 0.0
    %5101 = vmatprep.mubr.f32.mxu0 0.0
    %5102 = vmatmul.mubr.f32.gmra.mrb[0].mxu0 %v5027
    %v5103 = vpop.f32.mrb[0].mxu0
    %v5104 = vadd.f32 0.0, %v5103
    %v5105 = vpop.f32.mrb[0].mxu0
    %5106 = vmatprep.mubr.f32.mxu0 0.0
    %5107 = vmatmul.mubr.f32.gmra.mrb[0].mxu0 %v5030
    %v5108 = vpop.f32.mrb[0].mxu0
    %v5109 = vadd.f32 0.0, %v5108
    %v5110 = vpop.f32.mrb[0].mxu0
    %5111 = vmatprep.mubr.f32.mxu0 0.0
    %5112 = vmatmul.mubr.f32.gmra.mrb[0].mxu0 %v5033
    %v5113 = vpop.f32.mrb[0].mxu0
    %v5114 = vadd.f32 0.0, %v5113
    %v5115 = vpop.f32.mrb[0].mxu0
    %5116 = vdwg.mxu0
    %v5117 = vrcp.pop %v5011
    %v5118 = vrcp.pop %v5014
    %v5119 = vrcp.pop %v5017
    %v5120 = vmul.f32 %v5104, %v5117
    %v5121 = vmul.f32 %v5109, %v5118
    %v5122 = vmul.f32 %v5114, %v5119
    %5126 = vrot.lane.b32.xlu0 %v4648, 8
    %v5127 = vpop.permute.xlu0 %5126
    %5128 = vrot.lane.b32.xlu0 %v4649, 8
    %v5129 = vpop.permute.xlu0 %5128
    %5130 = vrot.lane.b32.xlu0 %v4650, 8
    %v5131 = vpop.permute.xlu0 %5130
    %5138 = vrot.lane.b32.xlu0 %v4884, 16
    %v5139 = vpop.permute.xlu0 %5138
    %5140 = vrot.lane.b32.xlu0 %v4885, 16
    %v5141 = vpop.permute.xlu0 %5140
    %5142 = vrot.lane.b32.xlu0 %v4886, 16
    %v5143 = vpop.permute.xlu0 %5142
    %5150 = vrot.lane.b32.xlu0 %v5120, 24
    %v5151 = vpop.permute.xlu0 %5150
    %5152 = vrot.lane.b32.xlu0 %v5121, 24
    %v5153 = vpop.permute.xlu0 %5152
    %5154 = vrot.lane.b32.xlu0 %v5122, 24
    %v5155 = vpop.permute.xlu0 %5154
    %v5159 = vsel %vm495, %v4412, %v5127
    %v5160 = vsel %vm495, %v4413, %v5129
    %v5161 = vsel %vm495, %v4414, %v5131
    %v5162 = vsel %vm1469, %v5159, %v5139
    %v5163 = vsel %vm1469, %v5160, %v5141
    %v5164 = vsel %vm1469, %v5161, %v5143
    %v5165 = vsel %vm1473, %v5162, %v5151
    %v5166 = vsel %vm1473, %v5163, %v5153
    %v5167 = vsel %vm1473, %v5164, %v5155
    %v5171 = vrot.slane %v5165, 7
    %v5172 = vrot.slane %v5166, 7
    %v5173 = vsel %vm258, %v5171, %v5172
    %v5174 = vrot.slane %v5167, 7
    %v5175 = vsel %vm258, %v5172, %v5174
    %v5177 = vsel %vm258, %v4177, %v5171
    %s5178 = scalar_lea.vmem %s7, 32
    %v5179 = vld [vmem:[%s5178] sm:$0xff]
    %v5180 = vld [vmem:[%s5178 + $0x8] sm:$0xff]
    %v5181 = vld [vmem:[%s5178 + $0x10] sm:$0xff]
    %v5182 = vld [vmem:[%s5178 + $0x18] sm:$0xff]
    %v5184 = vsel %vm280, %v4175, 0
    %v5187 = vsel %vm280, %v4176, 0
    %v5190 = vsel %vm280, %v5177, 0
    %v5192 = vsel %vm280, %v5173, 0
    %v5194 = vsel %vm280, %v5175, 0
    %5196 = vmatprep.subr.mxu0 0.0
    %5197 = vmatpush1.msra.mxu0 %v5179
    %5198 = vmatprep.subr.mxu0 0.0
    %5199 = vmatpush1.msra.mxu0 %v5180
    %5200 = vmatprep.subr.mxu0 0.0
    %5201 = vmatpush1.msra.mxu0 %v5181
    %5202 = vmatprep.subr.mxu0 0.0
    %5203 = vmatpush1.msra.mxu0 %v5182
    %5204 = vmatprep.subr.mxu0 0.0
    %5205 = vmatpush1.msra.mxu0 0.0
    %5206 = vmatprep.subr.mxu0 0.0
    %5207 = vmatpush1.msra.mxu0 0.0
    %5208 = vmatprep.subr.mxu0 0.0
    %5209 = vmatpush1.msra.mxu0 0.0
    %5210 = vmatprep.subr.mxu0 0.0
    %5211 = vmatpush1.msra.mxu0 0.0
    %5212 = vmatprep.subr.mxu0 0.0
    %5213 = vmatpush1.msra.mxu0 0.0
    %5214 = vmatprep.subr.mxu0 0.0
    %5215 = vmatpush1.msra.mxu0 0.0
    %5216 = vmatprep.subr.mxu0 0.0
    %5217 = vmatpush1.msra.mxu0 0.0
    %5218 = vmatprep.subr.mxu0 0.0
    %5219 = vmatpush1.msra.mxu0 0.0
    %5220 = vmatprep.subr.mxu0 0.0
    %5221 = vmatpush1.msra.mxu0 0.0
    %5222 = vmatprep.subr.mxu0 0.0
    %5223 = vmatpush1.msra.mxu0 0.0
    %5224 = vmatprep.subr.mxu0 0.0
    %5225 = vmatpush1.msra.mxu0 0.0
    %5226 = vmatprep.subr.mxu0 0.0
    %5227 = vmatpush1.msra.mxu0 0.0
    %5228 = vmatprep.subr.mxu0 0.0
    %5229 = vmatpush1.msra.mxu0 0.0
    %5230 = vmatprep.subr.mxu0 0.0
    %5231 = vmatpush1.msra.mxu0 0.0
    %5232 = vmatprep.subr.mxu0 0.0
    %5233 = vmatpush1.msra.mxu0 0.0
    %5234 = vmatprep.subr.mxu0 0.0
    %5235 = vmatpush1.msra.mxu0 0.0
    %5236 = vmatprep.subr.mxu0 0.0
    %5237 = vmatpush1.msra.mxu0 0.0
    %5238 = vmatprep.subr.mxu0 0.0
    %5239 = vmatpush1.msra.mxu0 0.0
    %5240 = vmatprep.subr.mxu0 0.0
    %5241 = vmatpush1.msra.mxu0 0.0
    %5242 = vmatprep.subr.mxu0 0.0
    %5243 = vmatpush1.msra.mxu0 0.0
    %5244 = vmatprep.subr.mxu0 0.0
    %5245 = vmatpush1.msra.mxu0 0.0
    %5246 = vmatprep.subr.mxu0 0.0
    %5247 = vmatpush1.msra.mxu0 0.0
    %5248 = vmatprep.subr.mxu0 0.0
    %5249 = vmatpush1.msra.mxu0 0.0
    %5250 = vmatprep.subr.mxu0 0.0
    %5251 = vmatpush1.msra.mxu0 0.0
    %5252 = vmatprep.subr.mxu0 0.0
    %5253 = vmatpush1.msra.mxu0 0.0
    %5254 = vmatprep.subr.mxu0 0.0
    %5255 = vmatpush1.msra.mxu0 0.0
    %5256 = vmatprep.subr.mxu0 0.0
    %5257 = vmatpush1.msra.mxu0 0.0
    %5258 = vmatprep.subr.mxu0 0.0
    %5259 = vmatpush1.msra.mxu0 0.0
    %5260 = vmatprep.mubr.f32.mxu0 0.0
    %5261 = vmatmul.mubr.f32.gmra.mrb[0].mxu0 %v5184
    %v5262 = vpop.f32.mrb[0].mxu0
    %v5263 = vadd.f32 0.0, %v5262
    %v5264 = vpop.f32.mrb[0].mxu0
    %5265 = vmatprep.mubr.f32.mxu0 0.0
    %5266 = vmatmul.mubr.f32.gmra.mrb[0].mxu0 %v5187
    %v5267 = vpop.f32.mrb[0].mxu0
    %v5268 = vadd.f32 0.0, %v5267
    %v5269 = vpop.f32.mrb[0].mxu0
    %5270 = vmatprep.mubr.f32.mxu0 0.0
    %5271 = vmatmul.mubr.f32.gmra.mrb[0].mxu0 %v5190
    %v5272 = vpop.f32.mrb[0].mxu0
    %v5273 = vadd.f32 0.0, %v5272
    %v5274 = vpop.f32.mrb[0].mxu0
    %5275 = vmatprep.mubr.f32.mxu0 0.0
    %5276 = vmatmul.mubr.f32.gmra.mrb[0].mxu0 %v5192
    %v5277 = vpop.f32.mrb[0].mxu0
    %v5278 = vadd.f32 0.0, %v5277
    %v5279 = vpop.f32.mrb[0].mxu0
    %5280 = vmatprep.mubr.f32.mxu0 0.0
    %5281 = vmatmul.mubr.f32.gmra.mrb[0].mxu0 %v5194
    %v5282 = vpop.f32.mrb[0].mxu0
    %v5283 = vadd.f32 0.0, %v5282
    %v5284 = vpop.f32.mrb[0].mxu0
    %5285 = vdwg.mxu0
    %v5286 = vadd.f32 %v2978, %v5263
    %v5287 = vadd.f32 %v2979, %v5268
    %v5288 = vadd.f32 %v2980, %v5273
    %v5289 = vadd.f32 %v2981, %v5278
    %v5290 = vadd.f32 %v2982, %v5283
    %s5291 = scalar_lea.vmem %s8, 1
    %v5292 = vld [vmem:[%s5291] sm:$0x1]
    %v5294 = vlaneseq
    %v5295 = vshrl.u32 %v5294, 7
    %v5296 = vsub.s32 0, %v5295
    %v5297 = vrot.slane %v5292, %v5296
    %v5299 = vadd.f32 %v5286, %v5297
    %v5300 = vadd.f32 %v5287, %v5297
    %v5301 = vadd.f32 %v5288, %v5297
    %v5302 = vadd.f32 %v5289, %v5297
    %v5303 = vadd.f32 %v5290, %v5297
    %s5304 = scalar_lea.vmem %s9, 1
    %v5305 = vld [vmem:[%s5304] sm:$0x1]
    %s5306 = scalar_lea.vmem %s10, 1
    %v5307 = vld [vmem:[%s5306] sm:$0x1]
    %v5308 = vsel %vm280, %v5299, 0.0
    %5309 = vadd.xlane.f32.xlu0 %v5308
    %v5310 = vpop.xlane.xlu0 %5309
    %v5311 = vsel %vm280, %v5300, 0.0
    %5312 = vadd.xlane.f32.xlu0 %v5311
    %v5313 = vpop.xlane.xlu0 %5312
    %v5314 = vsel %vm280, %v5301, 0.0
    %5315 = vadd.xlane.f32.xlu0 %v5314
    %v5316 = vpop.xlane.xlu0 %5315
    %v5317 = vsel %vm280, %v5302, 0.0
    %5318 = vadd.xlane.f32.xlu0 %v5317
    %v5319 = vpop.xlane.xlu0 %5318
    %v5320 = vsel %vm293, %v5303, 0.0
    %5321 = vadd.xlane.f32.xlu0 %v5320
    %v5322 = vpop.xlane.xlu0 %5321
    %v5323 = vmul.f32 %v5310, %v297
    %v5324 = vmul.f32 %v5313, %v297
    %v5325 = vmul.f32 %v5316, %v297
    %v5326 = vmul.f32 %v5319, %v297
    %v5327 = vmul.f32 %v5322, %v297
    %v5328 = vsub.f32 %v5299, %v5323
    %v5329 = vsub.f32 %v5300, %v5324
    %v5330 = vsub.f32 %v5301, %v5325
    %v5331 = vsub.f32 %v5302, %v5326
    %v5332 = vsub.f32 %v5303, %v5327
    %v5333 = vmul.f32 %v5328, %v5328
    %v5334 = vmul.f32 %v5329, %v5329
    %v5335 = vmul.f32 %v5330, %v5330
    %v5336 = vmul.f32 %v5331, %v5331
    %v5337 = vmul.f32 %v5332, %v5332
    %v5338 = vsel %vm280, %v5333, 0.0
    %5339 = vadd.xlane.f32.xlu0 %v5338
    %v5340 = vpop.xlane.xlu0 %5339
    %v5341 = vsel %vm280, %v5334, 0.0
    %5342 = vadd.xlane.f32.xlu0 %v5341
    %v5343 = vpop.xlane.xlu0 %5342
    %v5344 = vsel %vm280, %v5335, 0.0
    %5345 = vadd.xlane.f32.xlu0 %v5344
    %v5346 = vpop.xlane.xlu0 %5345
    %v5347 = vsel %vm280, %v5336, 0.0
    %5348 = vadd.xlane.f32.xlu0 %v5347
    %v5349 = vpop.xlane.xlu0 %5348
    %v5350 = vsel %vm293, %v5337, 0.0
    %5351 = vadd.xlane.f32.xlu0 %v5350
    %v5352 = vpop.xlane.xlu0 %5351
    %v5353 = vmul.f32 %v5340, %v297
    %v5354 = vmul.f32 %v5343, %v297
    %v5355 = vmul.f32 %v5346, %v297
    %v5356 = vmul.f32 %v5349, %v297
    %v5357 = vmul.f32 %v5352, %v297
    %v5358 = vadd.f32 %v5353, 1e-06
    %v5359 = vadd.f32 %v5354, 1e-06
    %v5360 = vadd.f32 %v5355, 1e-06
    %v5361 = vadd.f32 %v5356, 1e-06
    %v5362 = vadd.f32 %v5357, 1e-06
    %v5363 = vrsqrt.pop %v5358
    %v5364 = vrsqrt.pop %v5359
    %v5365 = vrsqrt.pop %v5360
    %v5366 = vrsqrt.pop %v5361
    %v5367 = vrsqrt.pop %v5362
    %v5368 = vmul.f32 %v5328, %v5363
    %v5369 = vmul.f32 %v5329, %v5364
    %v5370 = vmul.f32 %v5330, %v5365
    %v5371 = vmul.f32 %v5331, %v5366
    %v5372 = vmul.f32 %v5332, %v5367
    %v5374 = vlaneseq
    %v5375 = vshrl.u32 %v5374, 7
    %v5376 = vsub.s32 0, %v5375
    %v5377 = vrot.slane %v5305, %v5376
    %v5379 = vmul.f32 %v5368, %v5377
    %v5380 = vmul.f32 %v5369, %v5377
    %v5381 = vmul.f32 %v5370, %v5377
    %v5382 = vmul.f32 %v5371, %v5377
    %v5383 = vmul.f32 %v5372, %v5377
    %v5385 = vlaneseq
    %v5386 = vshrl.u32 %v5385, 7
    %v5387 = vsub.s32 0, %v5386
    %v5388 = vrot.slane %v5307, %v5387
    %v5390 = vadd.f32 %v5379, %v5388
    %v5391 = vadd.f32 %v5380, %v5388
    %v5392 = vadd.f32 %v5381, %v5388
    %v5393 = vadd.f32 %v5382, %v5388
    %v5394 = vadd.f32 %v5383, %v5388
    %s5395 = scalar_lea.vmem %s11, 32
    %v5396 = vld [vmem:[%s5395] sm:$0xff]
    %v5397 = vld [vmem:[%s5395 + $0x8] sm:$0xff]
    %v5398 = vld [vmem:[%s5395 + $0x10] sm:$0xff]
    %v5399 = vld [vmem:[%s5395 + $0x18] sm:$0xff]
    %s5400 = scalar_lea.vmem %s12, 1
    %v5401 = vld [vmem:[%s5400] sm:$0x1]
    %v5403 = vlaneseq
    %v5404 = vshrl.u32 %v5403, 7
    %v5405 = vsub.s32 0, %v5404
    %v5406 = vrot.slane %v5401, %v5405
    %v5409 = vsel %vm280, %v5390, 0
    %v5412 = vsel %vm280, %v5391, 0
    %v5415 = vsel %vm280, %v5392, 0
    %v5418 = vsel %vm280, %v5393, 0
    %v5421 = vsel %vm280, %v5394, 0
    %5423 = vmatprep.subr.mxu0 0.0
    %5424 = vmatpush1.msra.mxu0 %v5396
    %5425 = vmatprep.subr.mxu0 0.0
    %5426 = vmatpush1.msra.mxu0 %v5397
    %5427 = vmatprep.subr.mxu0 0.0
    %5428 = vmatpush1.msra.mxu0 %v5398
    %5429 = vmatprep.subr.mxu0 0.0
    %5430 = vmatpush1.msra.mxu0 %v5399
    %5431 = vmatprep.subr.mxu0 0.0
    %5432 = vmatpush1.msra.mxu0 0.0
    %5433 = vmatprep.subr.mxu0 0.0
    %5434 = vmatpush1.msra.mxu0 0.0
    %5435 = vmatprep.subr.mxu0 0.0
    %5436 = vmatpush1.msra.mxu0 0.0
    %5437 = vmatprep.subr.mxu0 0.0
    %5438 = vmatpush1.msra.mxu0 0.0
    %5439 = vmatprep.subr.mxu0 0.0
    %5440 = vmatpush1.msra.mxu0 0.0
    %5441 = vmatprep.subr.mxu0 0.0
    %5442 = vmatpush1.msra.mxu0 0.0
    %5443 = vmatprep.subr.mxu0 0.0
    %5444 = vmatpush1.msra.mxu0 0.0
    %5445 = vmatprep.subr.mxu0 0.0
    %5446 = vmatpush1.msra.mxu0 0.0
    %5447 = vmatprep.subr.mxu0 0.0
    %5448 = vmatpush1.msra.mxu0 0.0
    %5449 = vmatprep.subr.mxu0 0.0
    %5450 = vmatpush1.msra.mxu0 0.0
    %5451 = vmatprep.subr.mxu0 0.0
    %5452 = vmatpush1.msra.mxu0 0.0
    %5453 = vmatprep.subr.mxu0 0.0
    %5454 = vmatpush1.msra.mxu0 0.0
    %5455 = vmatprep.subr.mxu0 0.0
    %5456 = vmatpush1.msra.mxu0 0.0
    %5457 = vmatprep.subr.mxu0 0.0
    %5458 = vmatpush1.msra.mxu0 0.0
    %5459 = vmatprep.subr.mxu0 0.0
    %5460 = vmatpush1.msra.mxu0 0.0
    %5461 = vmatprep.subr.mxu0 0.0
    %5462 = vmatpush1.msra.mxu0 0.0
    %5463 = vmatprep.subr.mxu0 0.0
    %5464 = vmatpush1.msra.mxu0 0.0
    %5465 = vmatprep.subr.mxu0 0.0
    %5466 = vmatpush1.msra.mxu0 0.0
    %5467 = vmatprep.subr.mxu0 0.0
    %5468 = vmatpush1.msra.mxu0 0.0
    %5469 = vmatprep.subr.mxu0 0.0
    %5470 = vmatpush1.msra.mxu0 0.0
    %5471 = vmatprep.subr.mxu0 0.0
    %5472 = vmatpush1.msra.mxu0 0.0
    %5473 = vmatprep.subr.mxu0 0.0
    %5474 = vmatpush1.msra.mxu0 0.0
    %5475 = vmatprep.subr.mxu0 0.0
    %5476 = vmatpush1.msra.mxu0 0.0
    %5477 = vmatprep.subr.mxu0 0.0
    %5478 = vmatpush1.msra.mxu0 0.0
    %5479 = vmatprep.subr.mxu0 0.0
    %5480 = vmatpush1.msra.mxu0 0.0
    %5481 = vmatprep.subr.mxu0 0.0
    %5482 = vmatpush1.msra.mxu0 0.0
    %5483 = vmatprep.subr.mxu0 0.0
    %5484 = vmatpush1.msra.mxu0 0.0
    %5485 = vmatprep.subr.mxu0 0.0
    %5486 = vmatpush1.msra.mxu0 0.0
    %5487 = vmatprep.mubr.f32.mxu0 0.0
    %5488 = vmatmul.mubr.f32.gmra.mrb[0].mxu0 %v5409
    %v5489 = vpop.f32.mrb[0].mxu0
    %v5490 = vadd.f32 %v5406, %v5489
    %v5491 = vpop.f32.mrb[0].mxu0
    %5492 = vmatprep.mubr.f32.mxu0 0.0
    %5493 = vmatmul.mubr.f32.gmra.mrb[0].mxu0 %v5412
    %v5494 = vpop.f32.mrb[0].mxu0
    %v5495 = vadd.f32 %v5406, %v5494
    %v5496 = vpop.f32.mrb[0].mxu0
    %5497 = vmatprep.mubr.f32.mxu0 0.0
    %5498 = vmatmul.mubr.f32.gmra.mrb[0].mxu0 %v5415
    %v5499 = vpop.f32.mrb[0].mxu0
    %v5500 = vadd.f32 %v5406, %v5499
    %v5501 = vpop.f32.mrb[0].mxu0
    %5502 = vmatprep.mubr.f32.mxu0 0.0
    %5503 = vmatmul.mubr.f32.gmra.mrb[0].mxu0 %v5418
    %v5504 = vpop.f32.mrb[0].mxu0
    %v5505 = vadd.f32 %v5406, %v5504
    %v5506 = vpop.f32.mrb[0].mxu0
    %5507 = vmatprep.mubr.f32.mxu0 0.0
    %5508 = vmatmul.mubr.f32.gmra.mrb[0].mxu0 %v5421
    %v5509 = vpop.f32.mrb[0].mxu0
    %v5510 = vadd.f32 %v5406, %v5509
    %v5511 = vpop.f32.mrb[0].mxu0
    %5512 = vdwg.mxu0
    %v5513 = vmul.f32 %v5490, 0.5
    %v5514 = vmul.f32 %v5495, 0.5
    %v5515 = vmul.f32 %v5500, 0.5
    %v5516 = vmul.f32 %v5505, 0.5
    %v5517 = vmul.f32 %v5510, 0.5
    %v5518 = vmul.f32 %v5490, 0.044715
    %v5519 = vmul.f32 %v5495, 0.044715
    %v5520 = vmul.f32 %v5500, 0.044715
    %v5521 = vmul.f32 %v5505, 0.044715
    %v5522 = vmul.f32 %v5510, 0.044715
    %v5523 = vmul.f32 %v5518, %v5490
    %v5524 = vmul.f32 %v5519, %v5495
    %v5525 = vmul.f32 %v5520, %v5500
    %v5526 = vmul.f32 %v5521, %v5505
    %v5527 = vmul.f32 %v5522, %v5510
    %v5528 = vmul.f32 %v5523, %v5490
    %v5529 = vmul.f32 %v5524, %v5495
    %v5530 = vmul.f32 %v5525, %v5500
    %v5531 = vmul.f32 %v5526, %v5505
    %v5532 = vmul.f32 %v5527, %v5510
    %v5533 = vadd.f32 %v5490, %v5528
    %v5534 = vadd.f32 %v5495, %v5529
    %v5535 = vadd.f32 %v5500, %v5530
    %v5536 = vadd.f32 %v5505, %v5531
    %v5537 = vadd.f32 %v5510, %v5532
    %v5538 = vmul.f32 %v5533, 0.7978846
    %v5539 = vmul.f32 %v5534, 0.7978846
    %v5540 = vmul.f32 %v5535, 0.7978846
    %v5541 = vmul.f32 %v5536, 0.7978846
    %v5542 = vmul.f32 %v5537, 0.7978846
    %v5543 = vtanh.pop %v5538
    %v5544 = vtanh.pop %v5539
    %v5545 = vtanh.pop %v5540
    %v5546 = vtanh.pop %v5541
    %v5547 = vtanh.pop %v5542
    %v5548 = vadd.f32 %v5543, 1.0
    %v5549 = vadd.f32 %v5544, 1.0
    %v5550 = vadd.f32 %v5545, 1.0
    %v5551 = vadd.f32 %v5546, 1.0
    %v5552 = vadd.f32 %v5547, 1.0
    %v5553 = vmul.f32 %v5513, %v5548
    %v5554 = vmul.f32 %v5514, %v5549
    %v5555 = vmul.f32 %v5515, %v5550
    %v5556 = vmul.f32 %v5516, %v5551
    %v5557 = vmul.f32 %v5517, %v5552
    %s5558 = scalar_lea.vmem %s13, 64
    %v5559 = vld [vmem:[%s5558] sm:$0xff]
    %v5560 = vld [vmem:[%s5558 + $0x8] sm:$0xff]
    %v5561 = vld [vmem:[%s5558 + $0x10] sm:$0xff]
    %v5562 = vld [vmem:[%s5558 + $0x18] sm:$0xff]
    %v5563 = vld [vmem:[%s5558 + $0x20] sm:$0xff]
    %v5564 = vld [vmem:[%s5558 + $0x28] sm:$0xff]
    %v5565 = vld [vmem:[%s5558 + $0x30] sm:$0xff]
    %v5566 = vld [vmem:[%s5558 + $0x38] sm:$0xff]
    %v5568 = vsel %vm2860, %v5553, 0
    %v5571 = vsel %vm2860, %v5554, 0
    %v5574 = vsel %vm2860, %v5555, 0
    %v5577 = vsel %vm2860, %v5556, 0
    %v5580 = vsel %vm2860, %v5557, 0
    %5582 = vmatprep.subr.mxu0 0.0
    %5583 = vmatpush1.msra.mxu0 %v5559
    %5584 = vmatprep.subr.mxu0 0.0
    %5585 = vmatpush1.msra.mxu0 %v5560
    %5586 = vmatprep.subr.mxu0 0.0
    %5587 = vmatpush1.msra.mxu0 %v5561
    %5588 = vmatprep.subr.mxu0 0.0
    %5589 = vmatpush1.msra.mxu0 %v5562
    %5590 = vmatprep.subr.mxu0 0.0
    %5591 = vmatpush1.msra.mxu0 %v5563
    %5592 = vmatprep.subr.mxu0 0.0
    %5593 = vmatpush1.msra.mxu0 %v5564
    %5594 = vmatprep.subr.mxu0 0.0
    %5595 = vmatpush1.msra.mxu0 %v5565
    %5596 = vmatprep.subr.mxu0 0.0
    %5597 = vmatpush1.msra.mxu0 %v5566
    %5598 = vmatprep.subr.mxu0 0.0
    %5599 = vmatpush1.msra.mxu0 0.0
    %5600 = vmatprep.subr.mxu0 0.0
    %5601 = vmatpush1.msra.mxu0 0.0
    %5602 = vmatprep.subr.mxu0 0.0
    %5603 = vmatpush1.msra.mxu0 0.0
    %5604 = vmatprep.subr.mxu0 0.0
    %5605 = vmatpush1.msra.mxu0 0.0
    %5606 = vmatprep.subr.mxu0 0.0
    %5607 = vmatpush1.msra.mxu0 0.0
    %5608 = vmatprep.subr.mxu0 0.0
    %5609 = vmatpush1.msra.mxu0 0.0
    %5610 = vmatprep.subr.mxu0 0.0
    %5611 = vmatpush1.msra.mxu0 0.0
    %5612 = vmatprep.subr.mxu0 0.0
    %5613 = vmatpush1.msra.mxu0 0.0
    %5614 = vmatprep.subr.mxu0 0.0
    %5615 = vmatpush1.msra.mxu0 0.0
    %5616 = vmatprep.subr.mxu0 0.0
    %5617 = vmatpush1.msra.mxu0 0.0
    %5618 = vmatprep.subr.mxu0 0.0
    %5619 = vmatpush1.msra.mxu0 0.0
    %5620 = vmatprep.subr.mxu0 0.0
    %5621 = vmatpush1.msra.mxu0 0.0
    %5622 = vmatprep.subr.mxu0 0.0
    %5623 = vmatpush1.msra.mxu0 0.0
    %5624 = vmatprep.subr.mxu0 0.0
    %5625 = vmatpush1.msra.mxu0 0.0
    %5626 = vmatprep.subr.mxu0 0.0
    %5627 = vmatpush1.msra.mxu0 0.0
    %5628 = vmatprep.subr.mxu0 0.0
    %5629 = vmatpush1.msra.mxu0 0.0
    %5630 = vmatprep.subr.mxu0 0.0
    %5631 = vmatpush1.msra.mxu0 0.0
    %5632 = vmatprep.subr.mxu0 0.0
    %5633 = vmatpush1.msra.mxu0 0.0
    %5634 = vmatprep.subr.mxu0 0.0
    %5635 = vmatpush1.msra.mxu0 0.0
    %5636 = vmatprep.subr.mxu0 0.0
    %5637 = vmatpush1.msra.mxu0 0.0
    %5638 = vmatprep.subr.mxu0 0.0
    %5639 = vmatpush1.msra.mxu0 0.0
    %5640 = vmatprep.subr.mxu0 0.0
    %5641 = vmatpush1.msra.mxu0 0.0
    %5642 = vmatprep.subr.mxu0 0.0
    %5643 = vmatpush1.msra.mxu0 0.0
    %5644 = vmatprep.subr.mxu0 0.0
    %5645 = vmatpush1.msra.mxu0 0.0
    %5646 = vmatprep.mubr.f32.mxu0 0.0
    %5647 = vmatmul.mubr.f32.gmra.mrb[0].mxu0 %v5568
    %v5648 = vpop.f32.mrb[0].mxu0
    %v5649 = vadd.f32 0.0, %v5648
    %v5650 = vpop.f32.mrb[0].mxu0
    %5651 = vmatprep.mubr.f32.mxu0 0.0
    %5652 = vmatmul.mubr.f32.gmra.mrb[0].mxu0 %v5571
    %v5653 = vpop.f32.mrb[0].mxu0
    %v5654 = vpop.f32.mrb[0].mxu0
    %5655 = vmatprep.mubr.f32.mxu0 0.0
    %5656 = vmatmul.mubr.f32.gmra.mrb[0].mxu0 %v5574
    %v5657 = vpop.f32.mrb[0].mxu0
    %v5658 = vadd.f32 0.0, %v5657
    %v5659 = vpop.f32.mrb[0].mxu0
    %5660 = vmatprep.mubr.f32.mxu0 0.0
    %5661 = vmatmul.mubr.f32.gmra.mrb[0].mxu0 %v5577
    %v5662 = vpop.f32.mrb[0].mxu0
    %v5663 = vpop.f32.mrb[0].mxu0
    %5664 = vmatprep.mubr.f32.mxu0 0.0
    %5665 = vmatmul.mubr.f32.gmra.mrb[0].mxu0 %v5580
    %v5666 = vpop.f32.mrb[0].mxu0
    %v5667 = vpop.f32.mrb[0].mxu0
    %5668 = vdwg.mxu0
    %v5669 = vadd.f32 %v5299, %v5649
    %v5670 = vadd.f32 %v5301, %v5658
    %s5671 = scalar_lea.vmem %s14, 1
    %v5672 = vld [vmem:[%s5671] sm:$0x1]
    %v5674 = vlaneseq
    %v5675 = vshrl.u32 %v5674, 7
    %v5676 = vsub.s32 0, %v5675
    %v5677 = vrot.slane %v5672, %v5676
    %v5679 = vadd.f32 %v5669, %v5677
    %v5680 = vadd.f32 %v5670, %v5677
    %v5681 = vsel %vm258, %v5679, %v5680
    %v5682 = vld [vmem:[%s15] sm:$0x1]
    %v5683 = vld [vmem:[%s16] sm:$0x1]
    %v5684 = vsel %vm293, %v5681, 0.0
    %5685 = vadd.xlane.f32.xlu0 %v5684
    %v5686 = vpop.xlane.xlu0 %5685
    %v5687 = vmul.f32 %v5686, %v297
    %v5688 = vsub.f32 %v5681, %v5687
    %v5689 = vmul.f32 %v5688, %v5688
    %v5690 = vsel %vm293, %v5689, 0.0
    %5691 = vadd.xlane.f32.xlu0 %v5690
    %v5692 = vpop.xlane.xlu0 %5691
    %v5693 = vmul.f32 %v5692, %v297
    %v5694 = vadd.f32 %v5693, 1e-06
    %v5695 = vrsqrt.pop %v5694
    %v5696 = vmul.f32 %v5688, %v5695
    %v5698 = vlaneseq
    %v5699 = vshrl.u32 %v5698, 7
    %v5700 = vsub.s32 0, %v5699
    %v5701 = vrot.slane %v5682, %v5700
    %v5703 = vmul.f32 %v5696, %v5701
    %v5705 = vlaneseq
    %v5706 = vshrl.u32 %v5705, 7
    %v5707 = vsub.s32 0, %v5706
    %v5708 = vrot.slane %v5683, %v5707
    %v5710 = vadd.f32 %v5703, %v5708
    %v5711 = vld [vmem:[%s17] sm:$0xff]
    %v5712 = vld [vmem:[%s17 + $0x8] sm:$0xff]
    %v5713 = vld [vmem:[%s17 + $0x10] sm:$0xff]
    %v5714 = vld [vmem:[%s17 + $0x18] sm:$0xff]
    %v5715 = vld [vmem:[%s18] sm:$0x1]
    %v5717 = vlaneseq
    %v5718 = vshrl.u32 %v5717, 7
    %v5719 = vsub.s32 0, %v5718
    %v5720 = vrot.slane %v5715, %v5719
    %v5723 = vsel %vm280, %v5710, 0
    %5725 = vmatprep.subr.mxu0 0.0
    %5726 = vmatpush1.msra.mxu0 %v5711
    %5727 = vmatprep.subr.mxu0 0.0
    %5728 = vmatpush1.msra.mxu0 %v5712
    %5729 = vmatprep.subr.mxu0 0.0
    %5730 = vmatpush1.msra.mxu0 %v5713
    %5731 = vmatprep.subr.mxu0 0.0
    %5732 = vmatpush1.msra.mxu0 %v5714
    %5733 = vmatprep.subr.mxu0 0.0
    %5734 = vmatpush1.msra.mxu0 0.0
    %5735 = vmatprep.subr.mxu0 0.0
    %5736 = vmatpush1.msra.mxu0 0.0
    %5737 = vmatprep.subr.mxu0 0.0
    %5738 = vmatpush1.msra.mxu0 0.0
    %5739 = vmatprep.subr.mxu0 0.0
    %5740 = vmatpush1.msra.mxu0 0.0
    %5741 = vmatprep.subr.mxu0 0.0
    %5742 = vmatpush1.msra.mxu0 0.0
    %5743 = vmatprep.subr.mxu0 0.0
    %5744 = vmatpush1.msra.mxu0 0.0
    %5745 = vmatprep.subr.mxu0 0.0
    %5746 = vmatpush1.msra.mxu0 0.0
    %5747 = vmatprep.subr.mxu0 0.0
    %5748 = vmatpush1.msra.mxu0 0.0
    %5749 = vmatprep.subr.mxu0 0.0
    %5750 = vmatpush1.msra.mxu0 0.0
    %5751 = vmatprep.subr.mxu0 0.0
    %5752 = vmatpush1.msra.mxu0 0.0
    %5753 = vmatprep.subr.mxu0 0.0
    %5754 = vmatpush1.msra.mxu0 0.0
    %5755 = vmatprep.subr.mxu0 0.0
    %5756 = vmatpush1.msra.mxu0 0.0
    %5757 = vmatprep.subr.mxu0 0.0
    %5758 = vmatpush1.msra.mxu0 0.0
    %5759 = vmatprep.subr.mxu0 0.0
    %5760 = vmatpush1.msra.mxu0 0.0
    %5761 = vmatprep.subr.mxu0 0.0
    %5762 = vmatpush1.msra.mxu0 0.0
    %5763 = vmatprep.subr.mxu0 0.0
    %5764 = vmatpush1.msra.mxu0 0.0
    %5765 = vmatprep.subr.mxu0 0.0
    %5766 = vmatpush1.msra.mxu0 0.0
    %5767 = vmatprep.subr.mxu0 0.0
    %5768 = vmatpush1.msra.mxu0 0.0
    %5769 = vmatprep.subr.mxu0 0.0
    %5770 = vmatpush1.msra.mxu0 0.0
    %5771 = vmatprep.subr.mxu0 0.0
    %5772 = vmatpush1.msra.mxu0 0.0
    %5773 = vmatprep.subr.mxu0 0.0
    %5774 = vmatpush1.msra.mxu0 0.0
    %5775 = vmatprep.subr.mxu0 0.0
    %5776 = vmatpush1.msra.mxu0 0.0
    %5777 = vmatprep.subr.mxu0 0.0
    %5778 = vmatpush1.msra.mxu0 0.0
    %5779 = vmatprep.subr.mxu0 0.0
    %5780 = vmatpush1.msra.mxu0 0.0
    %5781 = vmatprep.subr.mxu0 0.0
    %5782 = vmatpush1.msra.mxu0 0.0
    %5783 = vmatprep.subr.mxu0 0.0
    %5784 = vmatpush1.msra.mxu0 0.0
    %5785 = vmatprep.subr.mxu0 0.0
    %5786 = vmatpush1.msra.mxu0 0.0
    %5787 = vmatprep.subr.mxu0 0.0
    %5788 = vmatpush1.msra.mxu0 0.0
    %5789 = vmatprep.mubr.f32.mxu0 0.0
    %5790 = vmatmul.mubr.f32.gmra.mrb[0].mxu0 %v5723
    %v5791 = vpop.f32.mrb[0].mxu0
    %v5792 = vadd.f32 %v5720, %v5791
    %v5793 = vpop.f32.mrb[0].mxu0
    %5794 = vdwg.mxu0
    %vm5795 = vcmask 74752
    %5796 = vst.msk [vmem:[#allocation2] sm:$0x3] %vm5795, %v5792
    // Predicated region
    $region78: #{vit_forward.1} parent=1 // pred_check
      _
    $region79: #{vit_forward.1} parent=1 // pred_check_branch
      %5798 = sbr.rel (0) target = $region81
    $region80: #{vit_forward.1} parent=1 // pred_region
      %s5800 = ssub.s32 32, 32
      %5801 = vsyncadd [#allocation3], %s5800
      %s5803 = sshll.u32 [#allocation2], 4
      %s5804 = int_to_ptr.vmem [resolvable:$true] %s5803
      %5806 = dma.vmem_to_hbm [thread:$0]  %s5804, 32, %s19, [#allocation3]
    $region81: #{vit_forward.1} parent=1 // pred_fallthru
      _
    // Predicated region
    $region82: #{vit_forward.1} parent=1 // pred_check
      _
    $region83: #{vit_forward.1} parent=1 // pred_check_branch
      %5808 = sbr.rel (0) target = $region85
    $region84: #{vit_forward.1} parent=1 // pred_region
      %5809 = dma.done [#allocation3], 32
    $region85: #{vit_forward.1} parent=1 // pred_fallthru
      _
    %5810 = vsyncpa [#allocation3], 1

</llo_original>
